<compile_context>
chip_gen: v7x
topology: tpu7x:2x2x1
jax: 0.10.0
libtpu: 0.0.40
codegen_flags: <defaults>
</compile_context>

<pallas_src>
import numpy as np
import jax
import jax.numpy as jnp
from jax.experimental import pallas as pl
from jax.experimental.pallas import tpu as pltpu

LANE = 128
VMEM_LIMIT = 32 * 1024 * 1024          # explicit, safe on v5e/v6e/v7x
UP_ROW_CAP = 8                         # row-tile caps: keep many parallel grid
CONV_ROW_CAP = 8                       # steps (megacore) + bounded im2col VMEM


def _round_up(x, m):
    return (x + m - 1) // m * m


def _largest_divisor_leq(n, cap):
    cap = max(1, min(n, cap))
    for d in range(cap, 0, -1):
        if n % d == 0:
            return d
    return 1


# ----------------------------------------------------------------------------
# Kernel 1: ConvTranspose2d(kernel=2, stride=2).  stride == kernel, so every
# output 2x2 block is a per-pixel matmul over channels.  Tiled over
# (batch, row-tiles); a single bf16 dot computes all four (di, dj) taps at
# once and the result is stored directly in pixel-shuffle order
# (th, 2, W, 2*Chalf_p) so the wrapper only needs a free reshape.
# ----------------------------------------------------------------------------
def _upconv_kernel(x_ref, w_ref, b_ref, o_ref):
    th, w_in, cin = x_ref.shape[1], x_ref.shape[2], x_ref.shape[3]
    chp2 = o_ref.shape[-1]                             # 2 * chalf_p
    x = x_ref[0].reshape(th * w_in, cin)               # bf16
    r = jnp.dot(x, w_ref[...],
                preferred_element_type=jnp.float32) + b_ref[...]
    # columns of r are ordered [di][dj][c_padded]
    row0 = r[:, :chp2].reshape(th, w_in, chp2).astype(o_ref.dtype)   # di = 0
    row1 = r[:, chp2:].reshape(th, w_in, chp2).astype(o_ref.dtype)   # di = 1
    o_ref[0] = jnp.stack([row0, row1], axis=1)          # (th, 2, W, 2*chp)


def _upconv_transpose2x2(x1_nhwc, w_up, b_up, chalf_p):
    N, H, W, Cin = x1_nhwc.shape
    chalf = w_up.shape[1]
    # PyTorch ConvTranspose2d weight is (Cin, Chalf, kh, kw)
    #   -> (Cin, kh, kw, Chalf_p) -> (Cin, 4*Chalf_p), columns = [di][dj][c]
    w = jnp.transpose(w_up, (0, 2, 3, 1))
    w = jnp.pad(w, ((0, 0), (0, 0), (0, 0), (0, chalf_p - chalf)))
    w = w.reshape(Cin, 4 * chalf_p).astype(jnp.bfloat16)
    b_pad = jnp.pad(b_up, (0, chalf_p - chalf)).astype(jnp.float32)
    b = jnp.tile(b_pad, 4).reshape(1, 4 * chalf_p)

    # per-input-row VMEM: dbl-buffered bf16 in + dbl-buffered bf16 out + f32 acc
    row_bytes = W * (4 * Cin + 48 * chalf_p)
    th = _largest_divisor_leq(H, min(UP_ROW_CAP,
                                     max(1, (4 * 1024 * 1024) // max(1, row_bytes))))
    x1 = x1_nhwc.astype(jnp.bfloat16)

    y = pl.pallas_call(
        _upconv_kernel,
        out_shape=jax.ShapeDtypeStruct((N, H, 2, W, 2 * chalf_p), jnp.bfloat16),
        grid=(N, H // th),
        in_specs=[pl.BlockSpec((1, th, W, Cin), lambda n, i: (n, i, 0, 0)),
                  pl.BlockSpec((Cin, 4 * chalf_p), lambda n, i: (0, 0)),
                  pl.BlockSpec((1, 4 * chalf_p), lambda n, i: (0, 0))],
        out_specs=pl.BlockSpec((1, th, 2, W, 2 * chalf_p),
                               lambda n, i: (n, i, 0, 0, 0)),
        compiler_params=pltpu.CompilerParams(
            dimension_semantics=("parallel", "parallel"),
            vmem_limit_bytes=VMEM_LIMIT),
    )(x1, w, b)

    # (N, H, 2, W, 2*chp) -> (N, 2H, 2W, chp): contiguous, free reshape.
    return y.reshape(N, 2 * H, 2 * W, chalf_p)


# ----------------------------------------------------------------------------
# Kernel 2: fused 3x3 conv (padding=1) + BatchNorm(eval) + ReLU.
# Row-tiled with 1-row halo blocks (zero-masked at image borders); width is
# zero-padded in-kernel.  The conv is ONE im2col matmul:
#   (TH*W, 9*sum(Cin)) @ (9*sum(Cin), Cout_p), bf16 operands, f32 accumulate.
# Multiple inputs (n_inputs=2 for the fused channel-concat) each contribute
# their own column block, matching the row layout of the packed weight.
# ----------------------------------------------------------------------------
def _make_conv_kernel(n_inputs, th, w_out):
    def kernel(*refs):
        data_refs = refs[:3 * n_inputs]
        w_ref, scale_ref, bias_ref, o_ref = refs[3 * n_inputs:]
        i = pl.program_id(1)
        is_first = i == 0
        is_last = i == pl.num_programs(1) - 1
        cout_p = o_ref.shape[-1]

        tap_cols = []
        for t in range(n_inputs):
            main = data_refs[3 * t][0]            # (TH, W, C)
            top = data_refs[3 * t + 1][0]         # (1, W, C)  row above tile
            bot = data_refs[3 * t + 2][0]         # (1, W, C)  row below tile
            top = jnp.where(is_first, jnp.zeros_like(top), top)
            bot = jnp.where(is_last, jnp.zeros_like(bot), bot)
            x = jnp.concatenate([top, main, bot], axis=0)       # (TH+2, W, C)
            c = x.shape[-1]
            zcol = jnp.zeros((th + 2, 1, c), x.dtype)
            x = jnp.concatenate([zcol, x, zcol], axis=1)        # (TH+2, W+2, C)
            for di in range(3):
                for dj in range(3):
                    tap_cols.append(
                        x[di:di + th, dj:dj + w_out, :].reshape(th * w_out, c))
        patch = jnp.concatenate(tap_cols, axis=1)               # (TH*W, 9*sumC)

        acc = jnp.dot(patch, w_ref[...], preferred_element_type=jnp.float32)
        y = acc * scale_ref[...] + bias_ref[...]                # conv-bias + BN folded
        y = jnp.maximum(y, 0.0)                                 # ReLU
        o_ref[0] = y.reshape(th, w_out, cout_p).astype(o_ref.dtype)
    return kernel


def _conv3x3_bn_relu(inputs, w_mat, scale, bias, out_dtype):
    N, H, W = inputs[0].shape[:3]
    cout_p = w_mat.shape[1]
    cin_tot = sum(x.shape[-1] for x in inputs)

    # budget: inputs (x2 dbl-buf) + im2col (9x) + f32/out rows
    row_bytes = W * (4 * cin_tot + 18 * cin_tot + 12 * cout_p)
    th = _largest_divisor_leq(H, min(CONV_ROW_CAP,
                                     max(1, (6 * 1024 * 1024) // max(1, row_bytes))))

    kernel = _make_conv_kernel(len(inputs), th, W)
    in_specs, args = [], []
    for x in inputs:
        C = x.shape[-1]
        in_specs.append(pl.BlockSpec((1, th, W, C), lambda n, i: (n, i, 0, 0)))
        in_specs.append(pl.BlockSpec(
            (1, 1, W, C), lambda n, i: (n, jnp.maximum(i * th - 1, 0), 0, 0)))
        in_specs.append(pl.BlockSpec(
            (1, 1, W, C), lambda n, i: (n, jnp.minimum((i + 1) * th, H - 1), 0, 0)))
        args += [x, x, x]
    in_specs += [pl.BlockSpec(w_mat.shape, lambda n, i: (0, 0)),
                 pl.BlockSpec((1, cout_p), lambda n, i: (0, 0)),
                 pl.BlockSpec((1, cout_p), lambda n, i: (0, 0))]
    args += [w_mat, scale, bias]

    return pl.pallas_call(
        kernel,
        out_shape=jax.ShapeDtypeStruct((N, H, W, cout_p), out_dtype),
        grid=(N, H // th),
        in_specs=in_specs,
        out_specs=pl.BlockSpec((1, th, W, cout_p), lambda n, i: (n, i, 0, 0)),
        compiler_params=pltpu.CompilerParams(
            dimension_semantics=("parallel", "parallel"),
            vmem_limit_bytes=VMEM_LIMIT),
    )(*args)


# ----------------------------------------------------------------------------
# Parameter packing helpers
# ----------------------------------------------------------------------------
def _conv_weight(w_oihw, cin_splits, cin_pads, cout_p):
    """Pack (Cout, Cin, 3, 3) into (sum_t 9*cin_pad_t, Cout_p) bf16, rows
    ordered [input_t][di][dj][cin] to match the kernel's im2col columns."""
    w = jnp.transpose(w_oihw, (2, 3, 1, 0))            # (3, 3, Cin, Cout)
    cout = w.shape[-1]
    parts, off = [], 0
    for creal, cpad in zip(cin_splits, cin_pads):
        wp = w[:, :, off:off + creal, :]
        wp = jnp.pad(wp, ((0, 0), (0, 0), (0, cpad - creal), (0, cout_p - cout)))
        parts.append(wp.reshape(9 * cpad, cout_p))
        off += creal
    return jnp.concatenate(parts, axis=0).astype(jnp.bfloat16)


def _bn_scale_bias(conv_b, gamma, beta, rmean, rvar, cout_p, eps=1e-5):
    scale = gamma / jnp.sqrt(rvar + eps)
    bias = (conv_b - rmean) * scale + beta
    pad = cout_p - scale.shape[0]
    scale = jnp.pad(scale, (0, pad)).reshape(1, cout_p).astype(jnp.float32)
    bias = jnp.pad(bias, (0, pad)).reshape(1, cout_p).astype(jnp.float32)
    return scale, bias


# ----------------------------------------------------------------------------
# UpConv.forward(x1, x2)
# ----------------------------------------------------------------------------
def upconv_forward(params, x1_nchw, x2_nchw):
    N, Cin, H, W = x1_nchw.shape
    chalf = Cin // 2
    cout = params["c1_w"].shape[0]
    chalf_p = _round_up(chalf, LANE)
    cout_p = _round_up(cout, LANE)

    x1 = jnp.transpose(x1_nchw, (0, 2, 3, 1))                   # NCHW -> NHWC
    x2 = jnp.transpose(x2_nchw, (0, 2, 3, 1)).astype(jnp.bfloat16)

    # --- self.up: ConvTranspose2d(Cin, Cin//2, kernel_size=2, stride=2) ---
    y = _upconv_transpose2x2(x1, params["up_w"], params["up_b"], chalf_p)

    # --- torch.cat([x1, x2], dim=1) fused into conv1 (two inputs, split W) ---
    w1 = _conv_weight(params["c1_w"], [chalf, chalf], [chalf_p, chalf], cout_p)
    s1, b1 = _bn_scale_bias(params["c1_b"], params["bn1_g"], params["bn1_b"],
                            params["bn1_rm"], params["bn1_rv"], cout_p)
    h = _conv3x3_bn_relu([y, x2], w1, s1, b1, jnp.bfloat16)

    # --- second Conv3x3 -> BN -> ReLU ---
    w2 = _conv_weight(params["c2_w"], [cout], [cout_p], cout_p)
    s2, b2 = _bn_scale_bias(params["c2_b"], params["bn2_g"], params["bn2_b"],
                            params["bn2_rm"], params["bn2_rv"], cout_p)
    h = _conv3x3_bn_relu([h], w2, s2, b2, jnp.float32)

    h = h[..., :cout]                                           # drop lane pad
    return jnp.transpose(h, (0, 3, 1, 2))                       # back to NCHW


# ----------------------------------------------------------------------------
# Pure-JAX reference (NCHW, f32, mirrors the PyTorch ops)
# ----------------------------------------------------------------------------
def reference_forward(params, x1, x2):
    N, Cin, H, W = x1.shape
    chalf = Cin // 2
    up = jnp.einsum('nchw,codk->nohdwk', x1, params["up_w"])
    up = up.reshape(N, chalf, 2 * H, 2 * W) + params["up_b"][None, :, None, None]
    x = jnp.concatenate([up, x2], axis=1)

    def conv_bn_relu(x, w, b, g, bt, rm, rv, eps=1e-5):
        y = jax.lax.conv_general_dilated(
            x, w, (1, 1), 'SAME', dimension_numbers=('NCHW', 'OIHW', 'NCHW'))
        y = y + b[None, :, None, None]
        y = (y - rm[None, :, None, None]) / jnp.sqrt(rv[None, :, None, None] + eps)
        y = y * g[None, :, None, None] + bt[None, :, None, None]
        return jnp.maximum(y, 0.0)

    h = conv_bn_relu(x, params["c1_w"], params["c1_b"], params["bn1_g"],
                     params["bn1_b"], params["bn1_rm"], params["bn1_rv"])
    h = conv_bn_relu(h, params["c2_w"], params["c2_b"], params["bn2_g"],
                     params["bn2_b"], params["bn2_rm"], params["bn2_rv"])
    return h


if __name__ == "__main__":
    in_channels, out_channels = 8, 8
    N, H, W = 2, 16, 16                      # x1: 16x16 -> output 32x32
    chalf = in_channels // 2

    key = jax.random.PRNGKey(0)
    ks = jax.random.split(key, 8)
    params = {
        "up_w": jax.random.normal(ks[0], (in_channels, chalf, 2, 2), jnp.float32) * 0.1,
        "up_b": jax.random.normal(ks[1], (chalf,), jnp.float32) * 0.1,
        "c1_w": jax.random.normal(ks[2], (out_channels, in_channels, 3, 3), jnp.float32) * 0.1,
        "c1_b": jax.random.normal(ks[3], (out_channels,), jnp.float32) * 0.1,
        "bn1_g": jnp.ones((out_channels,), jnp.float32),
        "bn1_b": jnp.zeros((out_channels,), jnp.float32),
        "bn1_rm": jnp.zeros((out_channels,), jnp.float32),
        "bn1_rv": jnp.ones((out_channels,), jnp.float32),
        "c2_w": jax.random.normal(ks[4], (out_channels, out_channels, 3, 3), jnp.float32) * 0.1,
        "c2_b": jax.random.normal(ks[5], (out_channels,), jnp.float32) * 0.1,
        "bn2_g": jnp.ones((out_channels,), jnp.float32),
        "bn2_b": jnp.zeros((out_channels,), jnp.float32),
        "bn2_rm": jnp.zeros((out_channels,), jnp.float32),
        "bn2_rv": jnp.ones((out_channels,), jnp.float32),
    }

    x1 = jax.random.normal(ks[6], (N, in_channels, H, W), jnp.float32)
    x2 = jax.random.normal(ks[7], (N, chalf, 2 * H, 2 * W), jnp.float32)

    out = jax.jit(upconv_forward)(params, x1, x2)
    out = jax.block_until_ready(out)

    ref = reference_forward(params, x1, x2)
    # bf16 operands / bf16 intermediates -> loosened tolerance (f32 accumulation)
    np.testing.assert_allclose(np.asarray(out), np.asarray(ref), rtol=5e-2, atol=5e-2)
    assert out.shape == (N, out_channels, 2 * H, 2 * W)
    print("KERNEL_OK")
</pallas_src>

<mosaic_0001>
module attributes {stable_mosaic.version = 11 : i64} {
  func.func @_upconv_kernel(%arg0: i32, %arg1: i32, %arg2: memref<1x8x16x8xbf16, #tpu.memory_space<vmem>>, %arg3: memref<8x512xbf16, #tpu.memory_space<vmem>>, %arg4: memref<1x512xf32, #tpu.memory_space<vmem>>, %arg5: memref<1x8x2x16x256xbf16, #tpu.memory_space<vmem>>) attributes {dimension_semantics = [#tpu.dimension_semantics<parallel>, #tpu.dimension_semantics<parallel>], iteration_bounds = array<i64: 2, 2>, scalar_prefetch = 0 : i64, scratch_operands = 0 : i64, tpu.core_type = #tpu.core_type<tc>, window_params = [{transform_indices = @transform_0, window_bounds = array<i64: 1, 8, 16, 8>}, {pipeline_mode = #tpu.pipeline_mode<synchronous>, transform_indices = @transform_1, window_bounds = array<i64: 8, 512>}, {pipeline_mode = #tpu.pipeline_mode<synchronous>, transform_indices = @transform_2, window_bounds = array<i64: 1, 512>}, {transform_indices = @transform_3, window_bounds = array<i64: 1, 8, 2, 16, 256>}]} {
    %c0 = arith.constant 0 : index
    %c0_0 = arith.constant 0 : index
    %c0_1 = arith.constant 0 : index
    %c0_2 = arith.constant 0 : index
    %0 = vector.load %arg2[%c0, %c0_0, %c0_1, %c0_2] : memref<1x8x16x8xbf16, #tpu.memory_space<vmem>>, vector<1x8x16x8xbf16>
    %1 = vector.shape_cast %0 : vector<1x8x16x8xbf16> to vector<8x16x8xbf16>
    %2 = vector.shape_cast %1 : vector<8x16x8xbf16> to vector<128x8xbf16>
    %c0_3 = arith.constant 0 : index
    %c0_4 = arith.constant 0 : index
    %3 = vector.load %arg3[%c0_3, %c0_4] : memref<8x512xbf16, #tpu.memory_space<vmem>>, vector<8x512xbf16>
    %cst = arith.constant dense<0.000000e+00> : vector<128x512xf32>
    %4 = tpu.matmul %2, %3, %cst {dimension_numbers = #tpu.dot_dimension_numbers<[1], [0], [0], [1], [0, 0, 1, 1], [], []>} : vector<128x8xbf16>, vector<8x512xbf16>, vector<128x512xf32> -> vector<128x512xf32>
    %c0_5 = arith.constant 0 : index
    %c0_6 = arith.constant 0 : index
    %5 = vector.load %arg4[%c0_5, %c0_6] : memref<1x512xf32, #tpu.memory_space<vmem>>, vector<1x512xf32>
    %6 = vector.broadcast %5 : vector<1x512xf32> to vector<128x512xf32>
    %7 = arith.addf %4, %6 : vector<128x512xf32>
    %8 = vector.extract_strided_slice %7 {offsets = [0, 0], sizes = [128, 256], strides = [1, 1]} : vector<128x512xf32> to vector<128x256xf32>
    %9 = vector.shape_cast %8 : vector<128x256xf32> to vector<8x16x256xf32>
    %10 = arith.truncf %9 : vector<8x16x256xf32> to vector<8x16x256xbf16>
    %11 = vector.extract_strided_slice %7 {offsets = [0, 256], sizes = [128, 256], strides = [1, 1]} : vector<128x512xf32> to vector<128x256xf32>
    %12 = vector.shape_cast %11 : vector<128x256xf32> to vector<8x16x256xf32>
    %13 = arith.truncf %12 : vector<8x16x256xf32> to vector<8x16x256xbf16>
    %14 = vector.shape_cast %10 : vector<8x16x256xbf16> to vector<8x1x16x256xbf16>
    %15 = vector.shape_cast %13 : vector<8x16x256xbf16> to vector<8x1x16x256xbf16>
    %16 = tpu.concatenate %14, %15 in 1 : vector<8x1x16x256xbf16>, vector<8x1x16x256xbf16> -> vector<8x2x16x256xbf16>
    %c0_7 = arith.constant 0 : index
    %c0_8 = arith.constant 0 : index
    %c0_9 = arith.constant 0 : index
    %c0_10 = arith.constant 0 : index
    %c0_11 = arith.constant 0 : index
    %17 = vector.load %arg5[%c0_7, %c0_8, %c0_9, %c0_10, %c0_11] : memref<1x8x2x16x256xbf16, #tpu.memory_space<vmem>>, vector<1x8x2x16x256xbf16>
    %18 = vector.shape_cast %17 : vector<1x8x2x16x256xbf16> to vector<8x2x16x256xbf16>
    %19 = vector.shape_cast %16 : vector<8x2x16x256xbf16> to vector<1x8x2x16x256xbf16>
    tpu.vector_store %arg5[%c0_7, %c0_8, %c0_9, %c0_10, %c0_11], %19 {strides = array<i32>} : memref<1x8x2x16x256xbf16, #tpu.memory_space<vmem>>, vector<1x8x2x16x256xbf16>,
    return
  }
  func.func @transform_0(%arg0: i32, %arg1: i32) -> (i32, i32, i32, i32) {
    %c0_i32 = arith.constant 0 : i32
    %c0_i32_0 = arith.constant 0 : i32
    %c0_i32_1 = arith.constant 0 : i32
    return %arg0, %arg1, %c0_i32, %c0_i32_0 : i32, i32, i32, i32
  }
  func.func @transform_1(%arg0: i32, %arg1: i32) -> (i32, i32) {
    %c0_i32 = arith.constant 0 : i32
    %c0_i32_0 = arith.constant 0 : i32
    %c0_i32_1 = arith.constant 0 : i32
    return %c0_i32, %c0_i32_0 : i32, i32
  }
  func.func @transform_2(%arg0: i32, %arg1: i32) -> (i32, i32) {
    %c0_i32 = arith.constant 0 : i32
    %c0_i32_0 = arith.constant 0 : i32
    %c0_i32_1 = arith.constant 0 : i32
    return %c0_i32, %c0_i32_0 : i32, i32
  }
  func.func @transform_3(%arg0: i32, %arg1: i32) -> (i32, i32, i32, i32, i32) {
    %c0_i32 = arith.constant 0 : i32
    %c0_i32_0 = arith.constant 0 : i32
    %c0_i32_1 = arith.constant 0 : i32
    %c0_i32_2 = arith.constant 0 : i32
    return %arg0, %arg1, %c0_i32, %c0_i32_0, %c0_i32_1 : i32, i32, i32, i32, i32
  }
}

module attributes {stable_mosaic.version = 11 : i64} {
  func.func @kernel(%arg0: i32, %arg1: i32, %arg2: memref<1x8x32x128xbf16, #tpu.memory_space<vmem>>, %arg3: memref<1x1x32x128xbf16, #tpu.memory_space<vmem>>, %arg4: memref<1x1x32x128xbf16, #tpu.memory_space<vmem>>, %arg5: memref<1x8x32x4xbf16, #tpu.memory_space<vmem>>, %arg6: memref<1x1x32x4xbf16, #tpu.memory_space<vmem>>, %arg7: memref<1x1x32x4xbf16, #tpu.memory_space<vmem>>, %arg8: memref<1188x128xbf16, #tpu.memory_space<vmem>>, %arg9: memref<1x128xf32, #tpu.memory_space<vmem>>, %arg10: memref<1x128xf32, #tpu.memory_space<vmem>>, %arg11: memref<1x8x32x128xbf16, #tpu.memory_space<vmem>>) attributes {dimension_semantics = [#tpu.dimension_semantics<parallel>, #tpu.dimension_semantics<parallel>], iteration_bounds = array<i64: 2, 4>, scalar_prefetch = 0 : i64, scratch_operands = 0 : i64, tpu.core_type = #tpu.core_type<tc>, window_params = [{transform_indices = @transform_0, window_bounds = array<i64: 1, 8, 32, 128>}, {transform_indices = @transform_1, window_bounds = array<i64: 1, 1, 32, 128>}, {transform_indices = @transform_2, window_bounds = array<i64: 1, 1, 32, 128>}, {transform_indices = @transform_3, window_bounds = array<i64: 1, 8, 32, 4>}, {transform_indices = @transform_4, window_bounds = array<i64: 1, 1, 32, 4>}, {transform_indices = @transform_5, window_bounds = array<i64: 1, 1, 32, 4>}, {pipeline_mode = #tpu.pipeline_mode<synchronous>, transform_indices = @transform_6, window_bounds = array<i64: 1188, 128>}, {pipeline_mode = #tpu.pipeline_mode<synchronous>, transform_indices = @transform_7, window_bounds = array<i64: 1, 128>}, {pipeline_mode = #tpu.pipeline_mode<synchronous>, transform_indices = @transform_8, window_bounds = array<i64: 1, 128>}, {transform_indices = @transform_9, window_bounds = array<i64: 1, 8, 32, 128>}]} {
    %c0_i32 = arith.constant 0 : i32
    %0 = arith.cmpi eq, %arg1, %c0_i32 : i32
    %c3_i32 = arith.constant 3 : i32
    %1 = arith.cmpi eq, %arg1, %c3_i32 : i32
    %c0 = arith.constant 0 : index
    %c0_0 = arith.constant 0 : index
    %c0_1 = arith.constant 0 : index
    %c0_2 = arith.constant 0 : index
    %2 = vector.load %arg2[%c0, %c0_0, %c0_1, %c0_2] : memref<1x8x32x128xbf16, #tpu.memory_space<vmem>>, vector<1x8x32x128xbf16>
    %3 = vector.shape_cast %2 : vector<1x8x32x128xbf16> to vector<8x32x128xbf16>
    %c0_3 = arith.constant 0 : index
    %c0_4 = arith.constant 0 : index
    %c0_5 = arith.constant 0 : index
    %c0_6 = arith.constant 0 : index
    %4 = vector.load %arg3[%c0_3, %c0_4, %c0_5, %c0_6] : memref<1x1x32x128xbf16, #tpu.memory_space<vmem>>, vector<1x1x32x128xbf16>
    %5 = vector.shape_cast %4 : vector<1x1x32x128xbf16> to vector<1x32x128xbf16>
    %c0_7 = arith.constant 0 : index
    %c0_8 = arith.constant 0 : index
    %c0_9 = arith.constant 0 : index
    %c0_10 = arith.constant 0 : index
    %6 = vector.load %arg4[%c0_7, %c0_8, %c0_9, %c0_10] : memref<1x1x32x128xbf16, #tpu.memory_space<vmem>>, vector<1x1x32x128xbf16>
    %7 = vector.shape_cast %6 : vector<1x1x32x128xbf16> to vector<1x32x128xbf16>
    %cst = arith.constant 0.000000e+00 : bf16
    %8 = vector.broadcast %cst : bf16 to vector<1x32x128xbf16>
    %9 = arith.select %0, %8, %5 : vector<1x32x128xbf16>
    %cst_11 = arith.constant 0.000000e+00 : bf16
    %10 = vector.broadcast %cst_11 : bf16 to vector<1x32x128xbf16>
    %11 = arith.select %1, %10, %7 : vector<1x32x128xbf16>
    %12 = tpu.concatenate %9, %3, %11 in 0 : vector<1x32x128xbf16>, vector<8x32x128xbf16>, vector<1x32x128xbf16> -> vector<10x32x128xbf16>
    %cst_12 = arith.constant 0.000000e+00 : bf16
    %13 = vector.broadcast %cst_12 : bf16 to vector<10x1x128xbf16>
    %14 = tpu.concatenate %13, %12, %13 in 1 : vector<10x1x128xbf16>, vector<10x32x128xbf16>, vector<10x1x128xbf16> -> vector<10x34x128xbf16>
    %15 = vector.extract_strided_slice %14 {offsets = [0, 0, 0], sizes = [8, 32, 128], strides = [1, 1, 1]} : vector<10x34x128xbf16> to vector<8x32x128xbf16>
    %16 = vector.shape_cast %15 : vector<8x32x128xbf16> to vector<256x128xbf16>
    %17 = vector.extract_strided_slice %14 {offsets = [0, 1, 0], sizes = [8, 32, 128], strides = [1, 1, 1]} : vector<10x34x128xbf16> to vector<8x32x128xbf16>
    %18 = vector.shape_cast %17 : vector<8x32x128xbf16> to vector<256x128xbf16>
    %19 = vector.extract_strided_slice %14 {offsets = [0, 2, 0], sizes = [8, 32, 128], strides = [1, 1, 1]} : vector<10x34x128xbf16> to vector<8x32x128xbf16>
    %20 = vector.shape_cast %19 : vector<8x32x128xbf16> to vector<256x128xbf16>
    %21 = vector.extract_strided_slice %14 {offsets = [1, 0, 0], sizes = [8, 32, 128], strides = [1, 1, 1]} : vector<10x34x128xbf16> to vector<8x32x128xbf16>
    %22 = vector.shape_cast %21 : vector<8x32x128xbf16> to vector<256x128xbf16>
    %23 = vector.extract_strided_slice %14 {offsets = [1, 1, 0], sizes = [8, 32, 128], strides = [1, 1, 1]} : vector<10x34x128xbf16> to vector<8x32x128xbf16>
    %24 = vector.shape_cast %23 : vector<8x32x128xbf16> to vector<256x128xbf16>
    %25 = vector.extract_strided_slice %14 {offsets = [1, 2, 0], sizes = [8, 32, 128], strides = [1, 1, 1]} : vector<10x34x128xbf16> to vector<8x32x128xbf16>
    %26 = vector.shape_cast %25 : vector<8x32x128xbf16> to vector<256x128xbf16>
    %27 = vector.extract_strided_slice %14 {offsets = [2, 0, 0], sizes = [8, 32, 128], strides = [1, 1, 1]} : vector<10x34x128xbf16> to vector<8x32x128xbf16>
    %28 = vector.shape_cast %27 : vector<8x32x128xbf16> to vector<256x128xbf16>
    %29 = vector.extract_strided_slice %14 {offsets = [2, 1, 0], sizes = [8, 32, 128], strides = [1, 1, 1]} : vector<10x34x128xbf16> to vector<8x32x128xbf16>
    %30 = vector.shape_cast %29 : vector<8x32x128xbf16> to vector<256x128xbf16>
    %31 = vector.extract_strided_slice %14 {offsets = [2, 2, 0], sizes = [8, 32, 128], strides = [1, 1, 1]} : vector<10x34x128xbf16> to vector<8x32x128xbf16>
    %32 = vector.shape_cast %31 : vector<8x32x128xbf16> to vector<256x128xbf16>
    %c0_13 = arith.constant 0 : index
    %c0_14 = arith.constant 0 : index
    %c0_15 = arith.constant 0 : index
    %c0_16 = arith.constant 0 : index
    %33 = vector.load %arg5[%c0_13, %c0_14, %c0_15, %c0_16] : memref<1x8x32x4xbf16, #tpu.memory_space<vmem>>, vector<1x8x32x4xbf16>
    %34 = vector.shape_cast %33 : vector<1x8x32x4xbf16> to vector<8x32x4xbf16>
    %c0_17 = arith.constant 0 : index
    %c0_18 = arith.constant 0 : index
    %c0_19 = arith.constant 0 : index
    %c0_20 = arith.constant 0 : index
    %35 = vector.load %arg6[%c0_17, %c0_18, %c0_19, %c0_20] : memref<1x1x32x4xbf16, #tpu.memory_space<vmem>>, vector<1x1x32x4xbf16>
    %36 = vector.shape_cast %35 : vector<1x1x32x4xbf16> to vector<1x32x4xbf16>
    %c0_21 = arith.constant 0 : index
    %c0_22 = arith.constant 0 : index
    %c0_23 = arith.constant 0 : index
    %c0_24 = arith.constant 0 : index
    %37 = vector.load %arg7[%c0_21, %c0_22, %c0_23, %c0_24] : memref<1x1x32x4xbf16, #tpu.memory_space<vmem>>, vector<1x1x32x4xbf16>
    %38 = vector.shape_cast %37 : vector<1x1x32x4xbf16> to vector<1x32x4xbf16>
    %cst_25 = arith.constant 0.000000e+00 : bf16
    %39 = vector.broadcast %cst_25 : bf16 to vector<1x32x4xbf16>
    %40 = arith.select %0, %39, %36 : vector<1x32x4xbf16>
    %cst_26 = arith.constant 0.000000e+00 : bf16
    %41 = vector.broadcast %cst_26 : bf16 to vector<1x32x4xbf16>
    %42 = arith.select %1, %41, %38 : vector<1x32x4xbf16>
    %43 = tpu.concatenate %40, %34, %42 in 0 : vector<1x32x4xbf16>, vector<8x32x4xbf16>, vector<1x32x4xbf16> -> vector<10x32x4xbf16>
    %cst_27 = arith.constant 0.000000e+00 : bf16
    %44 = vector.broadcast %cst_27 : bf16 to vector<10x1x4xbf16>
    %45 = tpu.concatenate %44, %43, %44 in 1 : vector<10x1x4xbf16>, vector<10x32x4xbf16>, vector<10x1x4xbf16> -> vector<10x34x4xbf16>
    %46 = vector.extract_strided_slice %45 {offsets = [0, 0, 0], sizes = [8, 32, 4], strides = [1, 1, 1]} : vector<10x34x4xbf16> to vector<8x32x4xbf16>
    %47 = vector.shape_cast %46 : vector<8x32x4xbf16> to vector<256x4xbf16>
    %48 = vector.extract_strided_slice %45 {offsets = [0, 1, 0], sizes = [8, 32, 4], strides = [1, 1, 1]} : vector<10x34x4xbf16> to vector<8x32x4xbf16>
    %49 = vector.shape_cast %48 : vector<8x32x4xbf16> to vector<256x4xbf16>
    %50 = vector.extract_strided_slice %45 {offsets = [0, 2, 0], sizes = [8, 32, 4], strides = [1, 1, 1]} : vector<10x34x4xbf16> to vector<8x32x4xbf16>
    %51 = vector.shape_cast %50 : vector<8x32x4xbf16> to vector<256x4xbf16>
    %52 = vector.extract_strided_slice %45 {offsets = [1, 0, 0], sizes = [8, 32, 4], strides = [1, 1, 1]} : vector<10x34x4xbf16> to vector<8x32x4xbf16>
    %53 = vector.shape_cast %52 : vector<8x32x4xbf16> to vector<256x4xbf16>
    %54 = vector.extract_strided_slice %45 {offsets = [1, 1, 0], sizes = [8, 32, 4], strides = [1, 1, 1]} : vector<10x34x4xbf16> to vector<8x32x4xbf16>
    %55 = vector.shape_cast %54 : vector<8x32x4xbf16> to vector<256x4xbf16>
    %56 = vector.extract_strided_slice %45 {offsets = [1, 2, 0], sizes = [8, 32, 4], strides = [1, 1, 1]} : vector<10x34x4xbf16> to vector<8x32x4xbf16>
    %57 = vector.shape_cast %56 : vector<8x32x4xbf16> to vector<256x4xbf16>
    %58 = vector.extract_strided_slice %45 {offsets = [2, 0, 0], sizes = [8, 32, 4], strides = [1, 1, 1]} : vector<10x34x4xbf16> to vector<8x32x4xbf16>
    %59 = vector.shape_cast %58 : vector<8x32x4xbf16> to vector<256x4xbf16>
    %60 = vector.extract_strided_slice %45 {offsets = [2, 1, 0], sizes = [8, 32, 4], strides = [1, 1, 1]} : vector<10x34x4xbf16> to vector<8x32x4xbf16>
    %61 = vector.shape_cast %60 : vector<8x32x4xbf16> to vector<256x4xbf16>
    %62 = vector.extract_strided_slice %45 {offsets = [2, 2, 0], sizes = [8, 32, 4], strides = [1, 1, 1]} : vector<10x34x4xbf16> to vector<8x32x4xbf16>
    %63 = vector.shape_cast %62 : vector<8x32x4xbf16> to vector<256x4xbf16>
    %64 = tpu.concatenate %16, %18, %20, %22, %24, %26, %28, %30, %32, %47, %49, %51, %53, %55, %57, %59 in 1 : vector<256x128xbf16>, vector<256x128xbf16>, vector<256x128xbf16>, vector<256x128xbf16>, vector<256x128xbf16>, vector<256x128xbf16>, vector<256x128xbf16>, vector<256x128xbf16>, vector<256x128xbf16>, vector<256x4xbf16>, vector<256x4xbf16>, vector<256x4xbf16>, vector<256x4xbf16>, vector<256x4xbf16>, vector<256x4xbf16>, vector<256x4xbf16> -> vector<256x1180xbf16>
    %65 = tpu.concatenate %61, %63 in 1 : vector<256x4xbf16>, vector<256x4xbf16> -> vector<256x8xbf16>
    %66 = tpu.concatenate %64, %65 in 1 : vector<256x1180xbf16>, vector<256x8xbf16> -> vector<256x1188xbf16>
    %c0_28 = arith.constant 0 : index
    %c0_29 = arith.constant 0 : index
    %67 = vector.load %arg8[%c0_28, %c0_29] : memref<1188x128xbf16, #tpu.memory_space<vmem>>, vector<1188x128xbf16>
    %cst_30 = arith.constant dense<0.000000e+00> : vector<256x128xf32>
    %68 = tpu.matmul %66, %67, %cst_30 {dimension_numbers = #tpu.dot_dimension_numbers<[1], [0], [0], [1], [0, 0, 1, 1], [], []>} : vector<256x1188xbf16>, vector<1188x128xbf16>, vector<256x128xf32> -> vector<256x128xf32>
    %c0_31 = arith.constant 0 : index
    %c0_32 = arith.constant 0 : index
    %69 = vector.load %arg9[%c0_31, %c0_32] : memref<1x128xf32, #tpu.memory_space<vmem>>, vector<1x128xf32>
    %70 = vector.broadcast %69 : vector<1x128xf32> to vector<256x128xf32>
    %71 = arith.mulf %68, %70 : vector<256x128xf32>
    %c0_33 = arith.constant 0 : index
    %c0_34 = arith.constant 0 : index
    %72 = vector.load %arg10[%c0_33, %c0_34] : memref<1x128xf32, #tpu.memory_space<vmem>>, vector<1x128xf32>
    %73 = vector.broadcast %72 : vector<1x128xf32> to vector<256x128xf32>
    %74 = arith.addf %71, %73 : vector<256x128xf32>
    %cst_35 = arith.constant 0.000000e+00 : f32
    %75 = vector.broadcast %cst_35 : f32 to vector<256x128xf32>
    %76 = arith.maximumf %74, %75 : vector<256x128xf32>
    %77 = vector.shape_cast %76 : vector<256x128xf32> to vector<8x32x128xf32>
    %78 = arith.truncf %77 : vector<8x32x128xf32> to vector<8x32x128xbf16>
    %c0_36 = arith.constant 0 : index
    %c0_37 = arith.constant 0 : index
    %c0_38 = arith.constant 0 : index
    %c0_39 = arith.constant 0 : index
    %79 = vector.load %arg11[%c0_36, %c0_37, %c0_38, %c0_39] : memref<1x8x32x128xbf16, #tpu.memory_space<vmem>>, vector<1x8x32x128xbf16>
    %80 = vector.shape_cast %79 : vector<1x8x32x128xbf16> to vector<8x32x128xbf16>
    %81 = vector.shape_cast %78 : vector<8x32x128xbf16> to vector<1x8x32x128xbf16>
    tpu.vector_store %arg11[%c0_36, %c0_37, %c0_38, %c0_39], %81 {strides = array<i32>} : memref<1x8x32x128xbf16, #tpu.memory_space<vmem>>, vector<1x8x32x128xbf16>,
    return
  }
  func.func @transform_0(%arg0: i32, %arg1: i32) -> (i32, i32, i32, i32) {
    %c0_i32 = arith.constant 0 : i32
    %c0_i32_0 = arith.constant 0 : i32
    %c0_i32_1 = arith.constant 0 : i32
    return %arg0, %arg1, %c0_i32, %c0_i32_0 : i32, i32, i32, i32
  }
  func.func @transform_1(%arg0: i32, %arg1: i32) -> (i32, i32, i32, i32) {
    %c8_i32 = arith.constant 8 : i32
    %0 = arith.muli %arg1, %c8_i32 : i32
    %c1_i32 = arith.constant 1 : i32
    %1 = arith.subi %0, %c1_i32 : i32
    %c0_i32 = arith.constant 0 : i32
    %2 = arith.maxsi %1, %c0_i32 : i32
    %c0_i32_0 = arith.constant 0 : i32
    %c0_i32_1 = arith.constant 0 : i32
    %c0_i32_2 = arith.constant 0 : i32
    return %arg0, %2, %c0_i32_0, %c0_i32_1 : i32, i32, i32, i32
  }
  func.func @transform_2(%arg0: i32, %arg1: i32) -> (i32, i32, i32, i32) {
    %c1_i32 = arith.constant 1 : i32
    %0 = arith.addi %arg1, %c1_i32 : i32
    %c8_i32 = arith.constant 8 : i32
    %1 = arith.muli %0, %c8_i32 : i32
    %c31_i32 = arith.constant 31 : i32
    %2 = arith.minsi %1, %c31_i32 : i32
    %c0_i32 = arith.constant 0 : i32
    %c0_i32_0 = arith.constant 0 : i32
    %c0_i32_1 = arith.constant 0 : i32
    return %arg0, %2, %c0_i32, %c0_i32_0 : i32, i32, i32, i32
  }
  func.func @transform_3(%arg0: i32, %arg1: i32) -> (i32, i32, i32, i32) {
    %c0_i32 = arith.constant 0 : i32
    %c0_i32_0 = arith.constant 0 : i32
    %c0_i32_1 = arith.constant 0 : i32
    return %arg0, %arg1, %c0_i32, %c0_i32_0 : i32, i32, i32, i32
  }
  func.func @transform_4(%arg0: i32, %arg1: i32) -> (i32, i32, i32, i32) {
    %c8_i32 = arith.constant 8 : i32
    %0 = arith.muli %arg1, %c8_i32 : i32
    %c1_i32 = arith.constant 1 : i32
    %1 = arith.subi %0, %c1_i32 : i32
    %c0_i32 = arith.constant 0 : i32
    %2 = arith.maxsi %1, %c0_i32 : i32
    %c0_i32_0 = arith.constant 0 : i32
    %c0_i32_1 = arith.constant 0 : i32
    %c0_i32_2 = arith.constant 0 : i32
    return %arg0, %2, %c0_i32_0, %c0_i32_1 : i32, i32, i32, i32
  }
  func.func @transform_5(%arg0: i32, %arg1: i32) -> (i32, i32, i32, i32) {
    %c1_i32 = arith.constant 1 : i32
    %0 = arith.addi %arg1, %c1_i32 : i32
    %c8_i32 = arith.constant 8 : i32
    %1 = arith.muli %0, %c8_i32 : i32
    %c31_i32 = arith.constant 31 : i32
    %2 = arith.minsi %1, %c31_i32 : i32
    %c0_i32 = arith.constant 0 : i32
    %c0_i32_0 = arith.constant 0 : i32
    %c0_i32_1 = arith.constant 0 : i32
    return %arg0, %2, %c0_i32, %c0_i32_0 : i32, i32, i32, i32
  }
  func.func @transform_6(%arg0: i32, %arg1: i32) -> (i32, i32) {
    %c0_i32 = arith.constant 0 : i32
    %c0_i32_0 = arith.constant 0 : i32
    %c0_i32_1 = arith.constant 0 : i32
    return %c0_i32, %c0_i32_0 : i32, i32
  }
  func.func @transform_7(%arg0: i32, %arg1: i32) -> (i32, i32) {
    %c0_i32 = arith.constant 0 : i32
    %c0_i32_0 = arith.constant 0 : i32
    %c0_i32_1 = arith.constant 0 : i32
    return %c0_i32, %c0_i32_0 : i32, i32
  }
  func.func @transform_8(%arg0: i32, %arg1: i32) -> (i32, i32) {
    %c0_i32 = arith.constant 0 : i32
    %c0_i32_0 = arith.constant 0 : i32
    %c0_i32_1 = arith.constant 0 : i32
    return %c0_i32, %c0_i32_0 : i32, i32
  }
  func.func @transform_9(%arg0: i32, %arg1: i32) -> (i32, i32, i32, i32) {
    %c0_i32 = arith.constant 0 : i32
    %c0_i32_0 = arith.constant 0 : i32
    %c0_i32_1 = arith.constant 0 : i32
    return %arg0, %arg1, %c0_i32, %c0_i32_0 : i32, i32, i32, i32
  }
}

module attributes {stable_mosaic.version = 11 : i64} {
  func.func @kernel(%arg0: i32, %arg1: i32, %arg2: memref<1x8x32x128xbf16, #tpu.memory_space<vmem>>, %arg3: memref<1x1x32x128xbf16, #tpu.memory_space<vmem>>, %arg4: memref<1x1x32x128xbf16, #tpu.memory_space<vmem>>, %arg5: memref<1152x128xbf16, #tpu.memory_space<vmem>>, %arg6: memref<1x128xf32, #tpu.memory_space<vmem>>, %arg7: memref<1x128xf32, #tpu.memory_space<vmem>>, %arg8: memref<1x8x32x128xf32, #tpu.memory_space<vmem>>) attributes {dimension_semantics = [#tpu.dimension_semantics<parallel>, #tpu.dimension_semantics<parallel>], iteration_bounds = array<i64: 2, 4>, scalar_prefetch = 0 : i64, scratch_operands = 0 : i64, tpu.core_type = #tpu.core_type<tc>, window_params = [{transform_indices = @transform_0, window_bounds = array<i64: 1, 8, 32, 128>}, {transform_indices = @transform_1, window_bounds = array<i64: 1, 1, 32, 128>}, {transform_indices = @transform_2, window_bounds = array<i64: 1, 1, 32, 128>}, {pipeline_mode = #tpu.pipeline_mode<synchronous>, transform_indices = @transform_3, window_bounds = array<i64: 1152, 128>}, {pipeline_mode = #tpu.pipeline_mode<synchronous>, transform_indices = @transform_4, window_bounds = array<i64: 1, 128>}, {pipeline_mode = #tpu.pipeline_mode<synchronous>, transform_indices = @transform_5, window_bounds = array<i64: 1, 128>}, {transform_indices = @transform_6, window_bounds = array<i64: 1, 8, 32, 128>}]} {
    %c0_i32 = arith.constant 0 : i32
    %0 = arith.cmpi eq, %arg1, %c0_i32 : i32
    %c3_i32 = arith.constant 3 : i32
    %1 = arith.cmpi eq, %arg1, %c3_i32 : i32
    %c0 = arith.constant 0 : index
    %c0_0 = arith.constant 0 : index
    %c0_1 = arith.constant 0 : index
    %c0_2 = arith.constant 0 : index
    %2 = vector.load %arg2[%c0, %c0_0, %c0_1, %c0_2] : memref<1x8x32x128xbf16, #tpu.memory_space<vmem>>, vector<1x8x32x128xbf16>
    %3 = vector.shape_cast %2 : vector<1x8x32x128xbf16> to vector<8x32x128xbf16>
    %c0_3 = arith.constant 0 : index
    %c0_4 = arith.constant 0 : index
    %c0_5 = arith.constant 0 : index
    %c0_6 = arith.constant 0 : index
    %4 = vector.load %arg3[%c0_3, %c0_4, %c0_5, %c0_6] : memref<1x1x32x128xbf16, #tpu.memory_space<vmem>>, vector<1x1x32x128xbf16>
    %5 = vector.shape_cast %4 : vector<1x1x32x128xbf16> to vector<1x32x128xbf16>
    %c0_7 = arith.constant 0 : index
    %c0_8 = arith.constant 0 : index
    %c0_9 = arith.constant 0 : index
    %c0_10 = arith.constant 0 : index
    %6 = vector.load %arg4[%c0_7, %c0_8, %c0_9, %c0_10] : memref<1x1x32x128xbf16, #tpu.memory_space<vmem>>, vector<1x1x32x128xbf16>
    %7 = vector.shape_cast %6 : vector<1x1x32x128xbf16> to vector<1x32x128xbf16>
    %cst = arith.constant 0.000000e+00 : bf16
    %8 = vector.broadcast %cst : bf16 to vector<1x32x128xbf16>
    %9 = arith.select %0, %8, %5 : vector<1x32x128xbf16>
    %cst_11 = arith.constant 0.000000e+00 : bf16
    %10 = vector.broadcast %cst_11 : bf16 to vector<1x32x128xbf16>
    %11 = arith.select %1, %10, %7 : vector<1x32x128xbf16>
    %12 = tpu.concatenate %9, %3, %11 in 0 : vector<1x32x128xbf16>, vector<8x32x128xbf16>, vector<1x32x128xbf16> -> vector<10x32x128xbf16>
    %cst_12 = arith.constant 0.000000e+00 : bf16
    %13 = vector.broadcast %cst_12 : bf16 to vector<10x1x128xbf16>
    %14 = tpu.concatenate %13, %12, %13 in 1 : vector<10x1x128xbf16>, vector<10x32x128xbf16>, vector<10x1x128xbf16> -> vector<10x34x128xbf16>
    %15 = vector.extract_strided_slice %14 {offsets = [0, 0, 0], sizes = [8, 32, 128], strides = [1, 1, 1]} : vector<10x34x128xbf16> to vector<8x32x128xbf16>
    %16 = vector.shape_cast %15 : vector<8x32x128xbf16> to vector<256x128xbf16>
    %17 = vector.extract_strided_slice %14 {offsets = [0, 1, 0], sizes = [8, 32, 128], strides = [1, 1, 1]} : vector<10x34x128xbf16> to vector<8x32x128xbf16>
    %18 = vector.shape_cast %17 : vector<8x32x128xbf16> to vector<256x128xbf16>
    %19 = vector.extract_strided_slice %14 {offsets = [0, 2, 0], sizes = [8, 32, 128], strides = [1, 1, 1]} : vector<10x34x128xbf16> to vector<8x32x128xbf16>
    %20 = vector.shape_cast %19 : vector<8x32x128xbf16> to vector<256x128xbf16>
    %21 = vector.extract_strided_slice %14 {offsets = [1, 0, 0], sizes = [8, 32, 128], strides = [1, 1, 1]} : vector<10x34x128xbf16> to vector<8x32x128xbf16>
    %22 = vector.shape_cast %21 : vector<8x32x128xbf16> to vector<256x128xbf16>
    %23 = vector.extract_strided_slice %14 {offsets = [1, 1, 0], sizes = [8, 32, 128], strides = [1, 1, 1]} : vector<10x34x128xbf16> to vector<8x32x128xbf16>
    %24 = vector.shape_cast %23 : vector<8x32x128xbf16> to vector<256x128xbf16>
    %25 = vector.extract_strided_slice %14 {offsets = [1, 2, 0], sizes = [8, 32, 128], strides = [1, 1, 1]} : vector<10x34x128xbf16> to vector<8x32x128xbf16>
    %26 = vector.shape_cast %25 : vector<8x32x128xbf16> to vector<256x128xbf16>
    %27 = vector.extract_strided_slice %14 {offsets = [2, 0, 0], sizes = [8, 32, 128], strides = [1, 1, 1]} : vector<10x34x128xbf16> to vector<8x32x128xbf16>
    %28 = vector.shape_cast %27 : vector<8x32x128xbf16> to vector<256x128xbf16>
    %29 = vector.extract_strided_slice %14 {offsets = [2, 1, 0], sizes = [8, 32, 128], strides = [1, 1, 1]} : vector<10x34x128xbf16> to vector<8x32x128xbf16>
    %30 = vector.shape_cast %29 : vector<8x32x128xbf16> to vector<256x128xbf16>
    %31 = vector.extract_strided_slice %14 {offsets = [2, 2, 0], sizes = [8, 32, 128], strides = [1, 1, 1]} : vector<10x34x128xbf16> to vector<8x32x128xbf16>
    %32 = vector.shape_cast %31 : vector<8x32x128xbf16> to vector<256x128xbf16>
    %33 = tpu.concatenate %16, %18, %20, %22, %24, %26, %28, %30, %32 in 1 : vector<256x128xbf16>, vector<256x128xbf16>, vector<256x128xbf16>, vector<256x128xbf16>, vector<256x128xbf16>, vector<256x128xbf16>, vector<256x128xbf16>, vector<256x128xbf16>, vector<256x128xbf16> -> vector<256x1152xbf16>
    %c0_13 = arith.constant 0 : index
    %c0_14 = arith.constant 0 : index
    %34 = vector.load %arg5[%c0_13, %c0_14] : memref<1152x128xbf16, #tpu.memory_space<vmem>>, vector<1152x128xbf16>
    %cst_15 = arith.constant dense<0.000000e+00> : vector<256x128xf32>
    %35 = tpu.matmul %33, %34, %cst_15 {dimension_numbers = #tpu.dot_dimension_numbers<[1], [0], [0], [1], [0, 0, 1, 1], [], []>} : vector<256x1152xbf16>, vector<1152x128xbf16>, vector<256x128xf32> -> vector<256x128xf32>
    %c0_16 = arith.constant 0 : index
    %c0_17 = arith.constant 0 : index
    %36 = vector.load %arg6[%c0_16, %c0_17] : memref<1x128xf32, #tpu.memory_space<vmem>>, vector<1x128xf32>
    %37 = vector.broadcast %36 : vector<1x128xf32> to vector<256x128xf32>
    %38 = arith.mulf %35, %37 : vector<256x128xf32>
    %c0_18 = arith.constant 0 : index
    %c0_19 = arith.constant 0 : index
    %39 = vector.load %arg7[%c0_18, %c0_19] : memref<1x128xf32, #tpu.memory_space<vmem>>, vector<1x128xf32>
    %40 = vector.broadcast %39 : vector<1x128xf32> to vector<256x128xf32>
    %41 = arith.addf %38, %40 : vector<256x128xf32>
    %cst_20 = arith.constant 0.000000e+00 : f32
    %42 = vector.broadcast %cst_20 : f32 to vector<256x128xf32>
    %43 = arith.maximumf %41, %42 : vector<256x128xf32>
    %44 = vector.shape_cast %43 : vector<256x128xf32> to vector<8x32x128xf32>
    %c0_21 = arith.constant 0 : index
    %c0_22 = arith.constant 0 : index
    %c0_23 = arith.constant 0 : index
    %c0_24 = arith.constant 0 : index
    %45 = vector.load %arg8[%c0_21, %c0_22, %c0_23, %c0_24] : memref<1x8x32x128xf32, #tpu.memory_space<vmem>>, vector<1x8x32x128xf32>
    %46 = vector.shape_cast %45 : vector<1x8x32x128xf32> to vector<8x32x128xf32>
    %47 = vector.shape_cast %44 : vector<8x32x128xf32> to vector<1x8x32x128xf32>
    tpu.vector_store %arg8[%c0_21, %c0_22, %c0_23, %c0_24], %47 {strides = array<i32>} : memref<1x8x32x128xf32, #tpu.memory_space<vmem>>, vector<1x8x32x128xf32>,
    return
  }
  func.func @transform_0(%arg0: i32, %arg1: i32) -> (i32, i32, i32, i32) {
    %c0_i32 = arith.constant 0 : i32
    %c0_i32_0 = arith.constant 0 : i32
    %c0_i32_1 = arith.constant 0 : i32
    return %arg0, %arg1, %c0_i32, %c0_i32_0 : i32, i32, i32, i32
  }
  func.func @transform_1(%arg0: i32, %arg1: i32) -> (i32, i32, i32, i32) {
    %c8_i32 = arith.constant 8 : i32
    %0 = arith.muli %arg1, %c8_i32 : i32
    %c1_i32 = arith.constant 1 : i32
    %1 = arith.subi %0, %c1_i32 : i32
    %c0_i32 = arith.constant 0 : i32
    %2 = arith.maxsi %1, %c0_i32 : i32
    %c0_i32_0 = arith.constant 0 : i32
    %c0_i32_1 = arith.constant 0 : i32
    %c0_i32_2 = arith.constant 0 : i32
    return %arg0, %2, %c0_i32_0, %c0_i32_1 : i32, i32, i32, i32
  }
  func.func @transform_2(%arg0: i32, %arg1: i32) -> (i32, i32, i32, i32) {
    %c1_i32 = arith.constant 1 : i32
    %0 = arith.addi %arg1, %c1_i32 : i32
    %c8_i32 = arith.constant 8 : i32
    %1 = arith.muli %0, %c8_i32 : i32
    %c31_i32 = arith.constant 31 : i32
    %2 = arith.minsi %1, %c31_i32 : i32
    %c0_i32 = arith.constant 0 : i32
    %c0_i32_0 = arith.constant 0 : i32
    %c0_i32_1 = arith.constant 0 : i32
    return %arg0, %2, %c0_i32, %c0_i32_0 : i32, i32, i32, i32
  }
  func.func @transform_3(%arg0: i32, %arg1: i32) -> (i32, i32) {
    %c0_i32 = arith.constant 0 : i32
    %c0_i32_0 = arith.constant 0 : i32
    %c0_i32_1 = arith.constant 0 : i32
    return %c0_i32, %c0_i32_0 : i32, i32
  }
  func.func @transform_4(%arg0: i32, %arg1: i32) -> (i32, i32) {
    %c0_i32 = arith.constant 0 : i32
    %c0_i32_0 = arith.constant 0 : i32
    %c0_i32_1 = arith.constant 0 : i32
    return %c0_i32, %c0_i32_0 : i32, i32
  }
  func.func @transform_5(%arg0: i32, %arg1: i32) -> (i32, i32) {
    %c0_i32 = arith.constant 0 : i32
    %c0_i32_0 = arith.constant 0 : i32
    %c0_i32_1 = arith.constant 0 : i32
    return %c0_i32, %c0_i32_0 : i32, i32
  }
  func.func @transform_6(%arg0: i32, %arg1: i32) -> (i32, i32, i32, i32) {
    %c0_i32 = arith.constant 0 : i32
    %c0_i32_0 = arith.constant 0 : i32
    %c0_i32_1 = arith.constant 0 : i32
    return %arg0, %arg1, %c0_i32, %c0_i32_0 : i32, i32, i32, i32
  }
}

</mosaic_0001>

<llo_original>
// kernel: tile.8
$region0: #{tile.8}
  #allocation0 [shape = 's32[1]{0}', space=sflag, size = 0x4, scoped, tag = 'scoped memory for tile.8']
  %s0 = inlined_call_operand.vmem [shape: f32[128], index: 0, kind: input, shape index: {}]
  %s1 = inlined_call_operand.vmem [shape: f32[4,128], index: 1, kind: output, shape index: {}]
  // Predicated region
  $region2: #{tile.8} parent=0 // pred_check
    _
  $region3: #{tile.8} parent=0 // pred_check_branch
    %3 = sbr.rel (0) target = $region5
  $region4: #{tile.8} parent=0 // pred_region
    _
  $region5: #{tile.8} parent=0 // pred_fallthru
    _
  %v4 = vld [vmem:[%s0] ss:$0 sm:$0xff]
  %5 = vst [vmem:[%s1] sm:$0xf] %v4

// kernel: upconv_forward.3
$region0: #{upconv_forward.3}
  #allocation0 [shape = 'u32[]', space=smem, size = 0x4, offset = 0x4, fixed_abs, tag = 'smem constant byte address 0x4 - core index']
  #allocation1 [shape = 'u32[144,128]{1,0:T(1,128)}', space=vmem, size = 0x12000, scoped, tag = 'internal scratch']
  %s0 = inlined_call_operand.vmem [shape: bf16[2,16,16,8], index: 0, kind: input, shape index: {}]
  %s1 = inlined_call_operand.vmem [shape: bf16[8,512], index: 1, kind: input, shape index: {}]
  %s2 = inlined_call_operand.vmem [shape: f32[1,512], index: 2, kind: input, shape index: {}]
  %s3 = inlined_call_operand.vmem [shape: bf16[2,16,2,16,256], index: 3, kind: output, shape index: {}]
  %s4 = sld [smem:[#allocation0]]
  $region45: #{upconv_forward.3} parent=0
    _
  %s6 = ssub.s32 1, %s4
  %s7 = scalar_select 0, %s6, %s4
  loop: start=0, step=1, limit=6
  $region2: #{upconv_forward.3} parent=0 // loop_pre_header
    _
  $region3: #{upconv_forward.3} parent=0 // loop_header
    %s9 = sphi 0, %s13
    %p10 = scmp.ge.s32.totalorder %s9, 6
    %s16 = sphi 0, %s28
    %s17 = sphi 0, %s24
    %s18 = sphi 0, %s16
    %s19 = sphi 0, %s17
    %s20 = sphi 0, %s18
    %s21 = sphi 0, %s19
    %s33 = sphi 0, %s35
    %s36 = sphi 0, %s33
    %s37 = sphi 0, %s36
    %s53 = sphi 0, %s37
    %s57 = sphi 0, %s57
    %s59 = sphi 0, %s57
    %s60 = sphi 0, %s59
    %s74 = sphi 0, %s60
    %s78 = sphi 0, %s78
    %s80 = sphi 0, %s78
    %s81 = sphi 0, %s80
    %s95 = sphi 0, %s81
    %s103 = sphi 0, %s105
    %s106 = sphi 0, %s103
    %s107 = sphi 0, %s106
    %s123 = sphi 0, %s107
  $region4: #{upconv_forward.3} parent=0 // loop_header_branch
    %12 = sbr.rel (%p10) target = $region8
  $region5: #{upconv_forward.3} parent=0 // loop_body
    %s14 = ssub.s32 %s9, 1
    %s15 = ssub.s32 %s9, 2
    %s22 = sadd.s32 1, %s17
    %p23 = scmp.ge.s32.totalorder %s22, 2
    %s24 = scalar_select %p23, 0, %s22
    %s25 = sadd.s32 1, %s16
    %s26 = scalar_select %p23, %s25, %s16
    %p27 = scmp.ge.s32.totalorder %s26, 2
    %s28 = scalar_select %p27, 0, %s26
    %s29 = ssub.s32 %s16, %s28
    %s30 = ssub.s32 %s17, %s24
    %s31 = sor.u32 %s29, %s30
    %p32 = scmp.eq.s32.totalorder %s31, 0
    %s34 = sadd.s32 %s33, 1
    %s35 = scalar_select %p32, %s33, %s34
    %p38 = pneg %p32
    %p39 = scmp.eq.s32.totalorder %s9, 3
    %p40 = por %p38, %p39
    %p41 = scmp.ne.s32.totalorder %s33, %s36
    %p42 = scmp.eq.s32.totalorder %s9, 0
    %p43 = por %p41, %p42
    %p44 = scmp.ne.s32.totalorder %s33, %s36
    %p45 = scmp.eq.s32.totalorder %s14, 3
    %p46 = por %p44, %p45
    %p47 = scmp.ne.s32.totalorder %s36, %s37
    %p48 = scmp.eq.s32.totalorder %s14, 0
    %p49 = por %p47, %p48
    %p50 = scmp.ne.s32.totalorder %s36, %s37
    %p51 = scmp.eq.s32.totalorder %s15, 3
    %p52 = por %p50, %p51
    %p54 = scmp.ne.s32.totalorder %s37, %s53
    %p55 = scmp.eq.s32.totalorder %s15, 0
    %p56 = por %p54, %p55
    %s58 = sadd.s32 %s57, 1
    %p61 = scmp.eq.s32.totalorder %s9, 3
    %p62 = scmp.ne.s32.totalorder %s57, %s59
    %p63 = scmp.eq.s32.totalorder %s9, 0
    %p64 = por %p62, %p63
    %p65 = scmp.ne.s32.totalorder %s57, %s59
    %p66 = scmp.eq.s32.totalorder %s14, 3
    %p67 = por %p65, %p66
    %p68 = scmp.ne.s32.totalorder %s59, %s60
    %p69 = scmp.eq.s32.totalorder %s14, 0
    %p70 = por %p68, %p69
    %p71 = scmp.ne.s32.totalorder %s59, %s60
    %p72 = scmp.eq.s32.totalorder %s15, 3
    %p73 = por %p71, %p72
    %p75 = scmp.ne.s32.totalorder %s60, %s74
    %p76 = scmp.eq.s32.totalorder %s15, 0
    %p77 = por %p75, %p76
    %s79 = sadd.s32 %s78, 1
    %p82 = scmp.eq.s32.totalorder %s9, 3
    %p83 = scmp.ne.s32.totalorder %s78, %s80
    %p84 = scmp.eq.s32.totalorder %s9, 0
    %p85 = por %p83, %p84
    %p86 = scmp.ne.s32.totalorder %s78, %s80
    %p87 = scmp.eq.s32.totalorder %s14, 3
    %p88 = por %p86, %p87
    %p89 = scmp.ne.s32.totalorder %s80, %s81
    %p90 = scmp.eq.s32.totalorder %s14, 0
    %p91 = por %p89, %p90
    %p92 = scmp.ne.s32.totalorder %s80, %s81
    %p93 = scmp.eq.s32.totalorder %s15, 3
    %p94 = por %p92, %p93
    %p96 = scmp.ne.s32.totalorder %s81, %s95
    %p97 = scmp.eq.s32.totalorder %s15, 0
    %p98 = por %p96, %p97
    %s99 = ssub.s32 %s16, %s28
    %s100 = ssub.s32 %s17, %s24
    %s101 = sor.u32 %s99, %s100
    %p102 = scmp.eq.s32.totalorder %s101, 0
    %s104 = sadd.s32 %s103, 1
    %s105 = scalar_select %p102, %s103, %s104
    %p108 = pneg %p102
    %p109 = scmp.eq.s32.totalorder %s9, 3
    %p110 = por %p108, %p109
    %p111 = scmp.ne.s32.totalorder %s103, %s106
    %p112 = scmp.eq.s32.totalorder %s9, 0
    %p113 = por %p111, %p112
    %p114 = scmp.ne.s32.totalorder %s103, %s106
    %p115 = scmp.eq.s32.totalorder %s14, 3
    %p116 = por %p114, %p115
    %p117 = scmp.ne.s32.totalorder %s106, %s107
    %p118 = scmp.eq.s32.totalorder %s14, 0
    %p119 = por %p117, %p118
    %p120 = scmp.ne.s32.totalorder %s106, %s107
    %p121 = scmp.eq.s32.totalorder %s15, 3
    %p122 = por %p120, %p121
    %p124 = scmp.ne.s32.totalorder %s107, %s123
    %p125 = scmp.eq.s32.totalorder %s15, 0
    %p126 = por %p124, %p125
    %p127 = scmp.le.s32.totalorder 1, %s9
    %p128 = scmp.lt.s32.totalorder %s9, 5
    %p129 = pnand %p127, %p128
    %p130 = pneg %p129
    // Predicated region
    $region9: #{upconv_forward.3} parent=5 // pred_check
      _
    $region10: #{upconv_forward.3} parent=5 // pred_check_branch
      %132 = sbr.rel (%p129) target = $region12
    $region11: #{upconv_forward.3} parent=5 // pred_region
      %s133 = ssub.s32 %s9, 1
      // Predicated region
      $region13: #{upconv_forward.3} parent=11 // pred_check
        %p134 = pneg %p70
      $region14: #{upconv_forward.3} parent=11 // pred_check_branch
        %136 = sbr.rel (%p134) target = $region16
      $region15: #{upconv_forward.3} parent=11 // pred_region
        _
      $region16: #{upconv_forward.3} parent=11 // pred_fallthru
        _
      // Predicated region
      $region17: #{upconv_forward.3} parent=11 // pred_check
        %p137 = pneg %p91
      $region18: #{upconv_forward.3} parent=11 // pred_check_branch
        %139 = sbr.rel (%p137) target = $region20
      $region19: #{upconv_forward.3} parent=11 // pred_region
        _
      $region20: #{upconv_forward.3} parent=11 // pred_fallthru
        _
    $region12: #{upconv_forward.3} parent=5 // pred_fallthru
      _
    %p140 = scmp.lt.s32.totalorder %s9, 4
    // Predicated region
    $region21: #{upconv_forward.3} parent=5 // pred_check
      %p141 = pneg %p140
    $region22: #{upconv_forward.3} parent=5 // pred_check_branch
      %143 = sbr.rel (%p141) target = $region24
    $region23: #{upconv_forward.3} parent=5 // pred_region
      // Predicated region
      $region25: #{upconv_forward.3} parent=23 // pred_check
        %p144 = pneg %p43
      $region26: #{upconv_forward.3} parent=23 // pred_check_branch
        %146 = sbr.rel (%p144) target = $region28
      $region27: #{upconv_forward.3} parent=23 // pred_region
        %s147 = smul.u32 8, %s17
        %p148 = scmp.lt.s32.totalorder %s16, 1
        %s149 = scalar_select %p148, %s16, 1
        %p150 = scmp.lt.s32.totalorder %s147, 15
        %s151 = scalar_select %p150, %s147, 15
        %s152 = smul.addr %s151, 2
        %s153 = smul.addr %s149, 32
        %s154 = sadd.s32 %s152, %s153
        %s155 = smul.addr %s154, 4
        %s156 = scalar_lea.vmem %s0, %s155
        %s157 = smul.u32 8, %s17
      $region28: #{upconv_forward.3} parent=23 // pred_fallthru
        _
    $region24: #{upconv_forward.3} parent=5 // pred_fallthru
      _
    %p158 = scmp.le.s32.totalorder 1, %s9
    %p159 = scmp.lt.s32.totalorder %s9, 5
    %p160 = pnand %p158, %p159
    %p161 = pneg %p160
    // Predicated region
    $region29: #{upconv_forward.3} parent=5 // pred_check
      _
    $region30: #{upconv_forward.3} parent=5 // pred_check_branch
      %163 = sbr.rel (%p160) target = $region32
    $region31: #{upconv_forward.3} parent=5 // pred_region
      %s164 = ssub.s32 %s9, 1
      %s165 = smul.u32 8, %s19
      %p166 = scmp.lt.s32.totalorder %s18, 1
      %s167 = scalar_select %p166, %s18, 1
      %p168 = scmp.lt.s32.totalorder %s165, 15
      %s169 = scalar_select %p168, %s165, 15
      %s170 = smul.addr %s169, 2
      %s171 = smul.addr %s167, 32
      %s172 = sadd.s32 %s170, %s171
      %s173 = smul.addr %s172, 4
      %s174 = scalar_lea.vmem %s0, %s173
      %p175 = pneg %p49
      %p176 = pneg %p46
      %p177 = pneg %p70
      %p178 = pneg %p67
      %p179 = pneg %p91
      %p180 = pneg %p88
      %p181 = pneg %p119
      %p182 = pneg %p116
      %s183 = smul.u32 8, %s19
      %p184 = scmp.lt.s32.totalorder %s18, 1
      %s185 = scalar_select %p184, %s18, 1
      %p186 = scmp.lt.s32.totalorder %s183, 15
      %s187 = scalar_select %p186, %s183, 15
      %s188 = smul.addr %s187, 8
      %s189 = smul.addr %s185, 128
      %s190 = sadd.s32 %s188, %s189
      %s191 = smul.addr %s190, 4
      %s192 = scalar_lea.vmem %s3, %s191
      %s193 = smul.u32 8, %s19
      %p194 = scmp.lt.s32.totalorder %s18, 1
      %s195 = scalar_select %p194, %s18, 1
      %p196 = scmp.lt.s32.totalorder %s193, 15
      %s197 = scalar_select %p196, %s193, 15
      %s198 = smul.addr %s197, 2
      %s199 = smul.addr %s195, 32
      %s200 = sadd.s32 %s198, %s199
      %s201 = smul.addr %s200, 4
      %s202 = scalar_lea.vmem %s0, %s201
      %s203 = smul.u32 8, %s19
      %s204 = smul.u32 8, %s19
      %p205 = scmp.lt.s32.totalorder %s18, 1
      %s206 = scalar_select %p205, %s18, 1
      %p207 = scmp.lt.s32.totalorder %s204, 15
      %s208 = scalar_select %p207, %s204, 15
      %s209 = smul.addr %s208, 8
      %s210 = smul.addr %s206, 128
      %s211 = sadd.s32 %s209, %s210
      %s212 = smul.addr %s211, 4
      %s213 = scalar_lea.vmem %s3, %s212
      %s214 = smul.u32 8, %s19
      %v216 = vld [vmem:[%s202] sm:$0xf]
      %v217 = vld [vmem:[%s202 + $0x4] sm:$0xf]
      %v218 = vld [vmem:[%s202 + $0x8] sm:$0xf]
      %v219 = vld [vmem:[%s202 + $0xc] sm:$0xf]
      %v220 = vld [vmem:[%s202 + $0x10] sm:$0xf]
      %v221 = vld [vmem:[%s202 + $0x14] sm:$0xf]
      %v222 = vld [vmem:[%s202 + $0x18] sm:$0xf]
      %v223 = vld [vmem:[%s202 + $0x1c] sm:$0xf]
      %v224 = vld [vmem:[%s202 + $0x20] sm:$0xf]
      %v225 = vld [vmem:[%s202 + $0x24] sm:$0xf]
      %v226 = vld [vmem:[%s202 + $0x28] sm:$0xf]
      %v227 = vld [vmem:[%s202 + $0x2c] sm:$0xf]
      %v228 = vld [vmem:[%s202 + $0x30] sm:$0xf]
      %v229 = vld [vmem:[%s202 + $0x34] sm:$0xf]
      %v230 = vld [vmem:[%s202 + $0x38] sm:$0xf]
      %v231 = vld [vmem:[%s202 + $0x3c] sm:$0xf]
      %v232 = vld [vmem:[%s1] sm:$0xff]
      %v233 = vld [vmem:[%s1 + $0x8] sm:$0xff]
      %v234 = vld [vmem:[%s2] sm:$0xf]
      %v236 = vlaneseq
      %v237 = vshrl.u32 %v236, 7
      %v238 = vsub.s32 0, %v237
      %v239 = vrot.slane %v234, %v238
      %v240 = vlaneseq
      %v241 = vshrl.u32 %v240, 7
      %v242 = vsub.s32 1, %v241
      %v243 = vrot.slane %v234, %v242
      %v244 = vlaneseq
      %v245 = vshrl.u32 %v244, 7
      %v246 = vsub.s32 2, %v245
      %v247 = vrot.slane %v234, %v246
      %v248 = vlaneseq
      %v249 = vshrl.u32 %v248, 7
      %v250 = vsub.s32 3, %v249
      %v251 = vrot.slane %v234, %v250
      %v272 = vunpack.c.l.b16 %v216
      %v273 = vunpack.c.l.b16 %v217
      %v274 = vunpack.c.l.b16 %v218
      %v275 = vunpack.c.l.b16 %v219
      %v276 = vunpack.c.l.b16 %v220
      %v277 = vunpack.c.l.b16 %v221
      %v278 = vunpack.c.l.b16 %v222
      %v279 = vunpack.c.l.b16 %v223
      %v280 = vunpack.c.l.b16 %v224
      %v281 = vunpack.c.l.b16 %v225
      %v282 = vunpack.c.l.b16 %v226
      %v283 = vunpack.c.l.b16 %v227
      %v284 = vunpack.c.l.b16 %v228
      %v285 = vunpack.c.l.b16 %v229
      %v286 = vunpack.c.l.b16 %v230
      %v287 = vunpack.c.l.b16 %v231
      %v288 = vpack.c.b16 %v273, %v272
      %v289 = vpack.c.b16 %v275, %v274
      %v290 = vpack.c.b16 %v277, %v276
      %v291 = vpack.c.b16 %v279, %v278
      %v292 = vpack.c.b16 %v281, %v280
      %v293 = vpack.c.b16 %v283, %v282
      %v294 = vpack.c.b16 %v285, %v284
      %v295 = vpack.c.b16 %v287, %v286
      %v298 = vunpack.c.l.b16 %v232
      %v299 = vunpack.c.h.b16 %v232
      %v300 = vunpack.c.l.b16 %v233
      %v301 = vunpack.c.h.b16 %v233
      %v302 = vpack.c.b16 %v298, %v298
      %v303 = vpack.c.b16 %v299, %v299
      %v304 = vpack.c.b16 %v300, %v300
      %v305 = vpack.c.b16 %v301, %v301
      %vm306 = vcmask 64512
      %v308 = vsel %vm306, %v288, 0
      %v311 = vsel %vm306, %v289, 0
      %v314 = vsel %vm306, %v290, 0
      %v317 = vsel %vm306, %v291, 0
      %v320 = vsel %vm306, %v292, 0
      %v323 = vsel %vm306, %v293, 0
      %v326 = vsel %vm306, %v294, 0
      %v329 = vsel %vm306, %v295, 0
      %vm331 = vcmask 1043456
      %v333 = vsel %vm331, %v302, 0
      %v336 = vsel %vm331, %v303, 0
      %v339 = vsel %vm331, %v304, 0
      %v342 = vsel %vm331, %v305, 0
      %344 = vmatprep.subr.bf16.mxu0 %v336
      %345 = vmatpush1.bf16.msra.mxu0 %v333
      %346 = vmatprep.subr.bf16.mxu0 0
      %347 = vmatpush1.bf16.msra.mxu0 0
      %348 = vmatprep.subr.bf16.mxu0 0
      %349 = vmatpush1.bf16.msra.mxu0 0
      %350 = vmatprep.subr.bf16.mxu0 0
      %351 = vmatpush1.bf16.msra.mxu0 0
      %352 = vmatprep.subr.bf16.mxu0 0
      %353 = vmatpush1.bf16.msra.mxu0 0
      %354 = vmatprep.subr.bf16.mxu0 0
      %355 = vmatpush1.bf16.msra.mxu0 0
      %356 = vmatprep.subr.bf16.mxu0 0
      %357 = vmatpush1.bf16.msra.mxu0 0
      %358 = vmatprep.subr.bf16.mxu0 0
      %359 = vmatpush1.bf16.msra.mxu0 0
      %360 = vmatprep.subr.bf16.mxu0 0
      %361 = vmatpush1.bf16.msra.mxu0 0
      %362 = vmatprep.subr.bf16.mxu0 0
      %363 = vmatpush1.bf16.msra.mxu0 0
      %364 = vmatprep.subr.bf16.mxu0 0
      %365 = vmatpush1.bf16.msra.mxu0 0
      %366 = vmatprep.subr.bf16.mxu0 0
      %367 = vmatpush1.bf16.msra.mxu0 0
      %368 = vmatprep.subr.bf16.mxu0 0
      %369 = vmatpush1.bf16.msra.mxu0 0
      %370 = vmatprep.subr.bf16.mxu0 0
      %371 = vmatpush1.bf16.msra.mxu0 0
      %372 = vmatprep.subr.bf16.mxu0 0
      %373 = vmatpush1.bf16.msra.mxu0 0
      %374 = vmatprep.subr.bf16.mxu0 0
      %375 = vmatpush1.bf16.msra.mxu0 0
      %376 = vmatprep.mubr.bf16.mxu0 0
      %377 = vmatmul.mubr.bf16.gmra.mrb[0].mxu0 %v308
      %v378 = vpop.f32.mrb[0].mxu0
      %v379 = vadd.f32 %v239, %v378
      %v380 = vpop.f32.mrb[0].mxu0
      %v381 = vadd.f32 %v243, %v380
      %v382 = vpop.f32.mrb[0].mxu0
      %v383 = vadd.f32 %v239, %v382
      %v384 = vpop.f32.mrb[0].mxu0
      %v385 = vadd.f32 %v243, %v384
      %386 = vmatprep.mubr.bf16.mxu0 0
      %387 = vmatmul.mubr.bf16.gmra.mrb[0].mxu0 %v311
      %v388 = vpop.f32.mrb[0].mxu0
      %v389 = vadd.f32 %v239, %v388
      %v390 = vpop.f32.mrb[0].mxu0
      %v391 = vadd.f32 %v243, %v390
      %v392 = vpop.f32.mrb[0].mxu0
      %v393 = vadd.f32 %v239, %v392
      %v394 = vpop.f32.mrb[0].mxu0
      %v395 = vadd.f32 %v243, %v394
      %396 = vmatprep.mubr.bf16.mxu0 0
      %397 = vmatmul.mubr.bf16.gmra.mrb[0].mxu0 %v314
      %v398 = vpop.f32.mrb[0].mxu0
      %v399 = vadd.f32 %v239, %v398
      %v400 = vpop.f32.mrb[0].mxu0
      %v401 = vadd.f32 %v243, %v400
      %v402 = vpop.f32.mrb[0].mxu0
      %v403 = vadd.f32 %v239, %v402
      %v404 = vpop.f32.mrb[0].mxu0
      %v405 = vadd.f32 %v243, %v404
      %406 = vmatprep.mubr.bf16.mxu0 0
      %407 = vmatmul.mubr.bf16.gmra.mrb[0].mxu0 %v317
      %v408 = vpop.f32.mrb[0].mxu0
      %v409 = vadd.f32 %v239, %v408
      %v410 = vpop.f32.mrb[0].mxu0
      %v411 = vadd.f32 %v243, %v410
      %v412 = vpop.f32.mrb[0].mxu0
      %v413 = vadd.f32 %v239, %v412
      %v414 = vpop.f32.mrb[0].mxu0
      %v415 = vadd.f32 %v243, %v414
      %416 = vmatprep.mubr.bf16.mxu0 0
      %417 = vmatmul.mubr.bf16.gmra.mrb[0].mxu0 %v320
      %v418 = vpop.f32.mrb[0].mxu0
      %v419 = vadd.f32 %v239, %v418
      %v420 = vpop.f32.mrb[0].mxu0
      %v421 = vadd.f32 %v243, %v420
      %v422 = vpop.f32.mrb[0].mxu0
      %v423 = vadd.f32 %v239, %v422
      %v424 = vpop.f32.mrb[0].mxu0
      %v425 = vadd.f32 %v243, %v424
      %426 = vmatprep.mubr.bf16.mxu0 0
      %427 = vmatmul.mubr.bf16.gmra.mrb[0].mxu0 %v323
      %v428 = vpop.f32.mrb[0].mxu0
      %v429 = vadd.f32 %v239, %v428
      %v430 = vpop.f32.mrb[0].mxu0
      %v431 = vadd.f32 %v243, %v430
      %v432 = vpop.f32.mrb[0].mxu0
      %v433 = vadd.f32 %v239, %v432
      %v434 = vpop.f32.mrb[0].mxu0
      %v435 = vadd.f32 %v243, %v434
      %436 = vmatprep.mubr.bf16.mxu0 0
      %437 = vmatmul.mubr.bf16.gmra.mrb[0].mxu0 %v326
      %v438 = vpop.f32.mrb[0].mxu0
      %v439 = vadd.f32 %v239, %v438
      %v440 = vpop.f32.mrb[0].mxu0
      %v441 = vadd.f32 %v243, %v440
      %v442 = vpop.f32.mrb[0].mxu0
      %v443 = vadd.f32 %v239, %v442
      %v444 = vpop.f32.mrb[0].mxu0
      %v445 = vadd.f32 %v243, %v444
      %446 = vmatprep.mubr.bf16.mxu0 0
      %447 = vmatmul.mubr.bf16.gmra.mrb[0].mxu0 %v329
      %v448 = vpop.f32.mrb[0].mxu0
      %v449 = vadd.f32 %v239, %v448
      %v450 = vpop.f32.mrb[0].mxu0
      %v451 = vadd.f32 %v243, %v450
      %v452 = vpop.f32.mrb[0].mxu0
      %v453 = vadd.f32 %v239, %v452
      %v454 = vpop.f32.mrb[0].mxu0
      %v455 = vadd.f32 %v243, %v454
      %456 = vdwg.mxu0
      %457 = vmatprep.subr.bf16.mxu0 %v342
      %458 = vmatpush1.bf16.msra.mxu0 %v339
      %459 = vmatprep.subr.bf16.mxu0 0
      %460 = vmatpush1.bf16.msra.mxu0 0
      %461 = vmatprep.subr.bf16.mxu0 0
      %462 = vmatpush1.bf16.msra.mxu0 0
      %463 = vmatprep.subr.bf16.mxu0 0
      %464 = vmatpush1.bf16.msra.mxu0 0
      %465 = vmatprep.subr.bf16.mxu0 0
      %466 = vmatpush1.bf16.msra.mxu0 0
      %467 = vmatprep.subr.bf16.mxu0 0
      %468 = vmatpush1.bf16.msra.mxu0 0
      %469 = vmatprep.subr.bf16.mxu0 0
      %470 = vmatpush1.bf16.msra.mxu0 0
      %471 = vmatprep.subr.bf16.mxu0 0
      %472 = vmatpush1.bf16.msra.mxu0 0
      %473 = vmatprep.subr.bf16.mxu0 0
      %474 = vmatpush1.bf16.msra.mxu0 0
      %475 = vmatprep.subr.bf16.mxu0 0
      %476 = vmatpush1.bf16.msra.mxu0 0
      %477 = vmatprep.subr.bf16.mxu0 0
      %478 = vmatpush1.bf16.msra.mxu0 0
      %479 = vmatprep.subr.bf16.mxu0 0
      %480 = vmatpush1.bf16.msra.mxu0 0
      %481 = vmatprep.subr.bf16.mxu0 0
      %482 = vmatpush1.bf16.msra.mxu0 0
      %483 = vmatprep.subr.bf16.mxu0 0
      %484 = vmatpush1.bf16.msra.mxu0 0
      %485 = vmatprep.subr.bf16.mxu0 0
      %486 = vmatpush1.bf16.msra.mxu0 0
      %487 = vmatprep.subr.bf16.mxu0 0
      %488 = vmatpush1.bf16.msra.mxu0 0
      %489 = vmatprep.mubr.bf16.mxu0 0
      %490 = vmatmul.mubr.bf16.gmra.mrb[0].mxu0 %v308
      %v491 = vpop.f32.mrb[0].mxu0
      %v492 = vadd.f32 %v247, %v491
      %v493 = vpop.f32.mrb[0].mxu0
      %v494 = vadd.f32 %v251, %v493
      %v495 = vpop.f32.mrb[0].mxu0
      %v496 = vadd.f32 %v247, %v495
      %v497 = vpop.f32.mrb[0].mxu0
      %v498 = vadd.f32 %v251, %v497
      %499 = vmatprep.mubr.bf16.mxu0 0
      %500 = vmatmul.mubr.bf16.gmra.mrb[0].mxu0 %v311
      %v501 = vpop.f32.mrb[0].mxu0
      %v502 = vadd.f32 %v247, %v501
      %v503 = vpop.f32.mrb[0].mxu0
      %v504 = vadd.f32 %v251, %v503
      %v505 = vpop.f32.mrb[0].mxu0
      %v506 = vadd.f32 %v247, %v505
      %v507 = vpop.f32.mrb[0].mxu0
      %v508 = vadd.f32 %v251, %v507
      %509 = vmatprep.mubr.bf16.mxu0 0
      %510 = vmatmul.mubr.bf16.gmra.mrb[0].mxu0 %v314
      %v511 = vpop.f32.mrb[0].mxu0
      %v512 = vadd.f32 %v247, %v511
      %v513 = vpop.f32.mrb[0].mxu0
      %v514 = vadd.f32 %v251, %v513
      %v515 = vpop.f32.mrb[0].mxu0
      %v516 = vadd.f32 %v247, %v515
      %v517 = vpop.f32.mrb[0].mxu0
      %v518 = vadd.f32 %v251, %v517
      %519 = vmatprep.mubr.bf16.mxu0 0
      %520 = vmatmul.mubr.bf16.gmra.mrb[0].mxu0 %v317
      %v521 = vpop.f32.mrb[0].mxu0
      %v522 = vadd.f32 %v247, %v521
      %v523 = vpop.f32.mrb[0].mxu0
      %v524 = vadd.f32 %v251, %v523
      %v525 = vpop.f32.mrb[0].mxu0
      %v526 = vadd.f32 %v247, %v525
      %v527 = vpop.f32.mrb[0].mxu0
      %v528 = vadd.f32 %v251, %v527
      %529 = vmatprep.mubr.bf16.mxu0 0
      %530 = vmatmul.mubr.bf16.gmra.mrb[0].mxu0 %v320
      %v531 = vpop.f32.mrb[0].mxu0
      %v532 = vadd.f32 %v247, %v531
      %v533 = vpop.f32.mrb[0].mxu0
      %v534 = vadd.f32 %v251, %v533
      %v535 = vpop.f32.mrb[0].mxu0
      %v536 = vadd.f32 %v247, %v535
      %v537 = vpop.f32.mrb[0].mxu0
      %v538 = vadd.f32 %v251, %v537
      %539 = vmatprep.mubr.bf16.mxu0 0
      %540 = vmatmul.mubr.bf16.gmra.mrb[0].mxu0 %v323
      %v541 = vpop.f32.mrb[0].mxu0
      %v542 = vadd.f32 %v247, %v541
      %v543 = vpop.f32.mrb[0].mxu0
      %v544 = vadd.f32 %v251, %v543
      %v545 = vpop.f32.mrb[0].mxu0
      %v546 = vadd.f32 %v247, %v545
      %v547 = vpop.f32.mrb[0].mxu0
      %v548 = vadd.f32 %v251, %v547
      %549 = vmatprep.mubr.bf16.mxu0 0
      %550 = vmatmul.mubr.bf16.gmra.mrb[0].mxu0 %v326
      %v551 = vpop.f32.mrb[0].mxu0
      %v552 = vadd.f32 %v247, %v551
      %v553 = vpop.f32.mrb[0].mxu0
      %v554 = vadd.f32 %v251, %v553
      %v555 = vpop.f32.mrb[0].mxu0
      %v556 = vadd.f32 %v247, %v555
      %v557 = vpop.f32.mrb[0].mxu0
      %v558 = vadd.f32 %v251, %v557
      %559 = vmatprep.mubr.bf16.mxu0 0
      %560 = vmatmul.mubr.bf16.gmra.mrb[0].mxu0 %v329
      %v561 = vpop.f32.mrb[0].mxu0
      %v562 = vadd.f32 %v247, %v561
      %v563 = vpop.f32.mrb[0].mxu0
      %v564 = vadd.f32 %v251, %v563
      %v565 = vpop.f32.mrb[0].mxu0
      %v566 = vadd.f32 %v247, %v565
      %v567 = vpop.f32.mrb[0].mxu0
      %v568 = vadd.f32 %v251, %v567
      %569 = vdwg.mxu0
      %v570 = vpack.c.bf16 %v383, %v379
      %v571 = vpack.c.bf16 %v385, %v381
      %v572 = vpack.c.bf16 %v393, %v389
      %v573 = vpack.c.bf16 %v395, %v391
      %v574 = vpack.c.bf16 %v403, %v399
      %v575 = vpack.c.bf16 %v405, %v401
      %v576 = vpack.c.bf16 %v413, %v409
      %v577 = vpack.c.bf16 %v415, %v411
      %v578 = vpack.c.bf16 %v423, %v419
      %v579 = vpack.c.bf16 %v425, %v421
      %v580 = vpack.c.bf16 %v433, %v429
      %v581 = vpack.c.bf16 %v435, %v431
      %v582 = vpack.c.bf16 %v443, %v439
      %v583 = vpack.c.bf16 %v445, %v441
      %v584 = vpack.c.bf16 %v453, %v449
      %v585 = vpack.c.bf16 %v455, %v451
      %v586 = vpack.c.bf16 %v496, %v492
      %v587 = vpack.c.bf16 %v498, %v494
      %v588 = vpack.c.bf16 %v506, %v502
      %v589 = vpack.c.bf16 %v508, %v504
      %v590 = vpack.c.bf16 %v516, %v512
      %v591 = vpack.c.bf16 %v518, %v514
      %v592 = vpack.c.bf16 %v526, %v522
      %v593 = vpack.c.bf16 %v528, %v524
      %v594 = vpack.c.bf16 %v536, %v532
      %v595 = vpack.c.bf16 %v538, %v534
      %v596 = vpack.c.bf16 %v546, %v542
      %v597 = vpack.c.bf16 %v548, %v544
      %v598 = vpack.c.bf16 %v556, %v552
      %v599 = vpack.c.bf16 %v558, %v554
      %v600 = vpack.c.bf16 %v566, %v562
      %v601 = vpack.c.bf16 %v568, %v564
      %v634 = vunpack.c.l.b16 %v570
      %v635 = vunpack.c.l.b16 %v571
      %v636 = vunpack.c.h.b16 %v570
      %v637 = vunpack.c.h.b16 %v571
      %v638 = vunpack.c.l.b16 %v586
      %v639 = vunpack.c.l.b16 %v587
      %v640 = vunpack.c.h.b16 %v586
      %v641 = vunpack.c.h.b16 %v587
      %v642 = vunpack.c.l.b16 %v572
      %v643 = vunpack.c.l.b16 %v573
      %v644 = vunpack.c.h.b16 %v572
      %v645 = vunpack.c.h.b16 %v573
      %v646 = vunpack.c.l.b16 %v588
      %v647 = vunpack.c.l.b16 %v589
      %v648 = vunpack.c.h.b16 %v588
      %v649 = vunpack.c.h.b16 %v589
      %v650 = vunpack.c.l.b16 %v574
      %v651 = vunpack.c.l.b16 %v575
      %v652 = vunpack.c.h.b16 %v574
      %v653 = vunpack.c.h.b16 %v575
      %v654 = vunpack.c.l.b16 %v590
      %v655 = vunpack.c.l.b16 %v591
      %v656 = vunpack.c.h.b16 %v590
      %v657 = vunpack.c.h.b16 %v591
      %v658 = vunpack.c.l.b16 %v576
      %v659 = vunpack.c.l.b16 %v577
      %v660 = vunpack.c.h.b16 %v576
      %v661 = vunpack.c.h.b16 %v577
      %v662 = vunpack.c.l.b16 %v592
      %v663 = vunpack.c.l.b16 %v593
      %v664 = vunpack.c.h.b16 %v592
      %v665 = vunpack.c.h.b16 %v593
      %v666 = vunpack.c.l.b16 %v578
      %v667 = vunpack.c.l.b16 %v579
      %v668 = vunpack.c.h.b16 %v578
      %v669 = vunpack.c.h.b16 %v579
      %v670 = vunpack.c.l.b16 %v594
      %v671 = vunpack.c.l.b16 %v595
      %v672 = vunpack.c.h.b16 %v594
      %v673 = vunpack.c.h.b16 %v595
      %v674 = vunpack.c.l.b16 %v580
      %v675 = vunpack.c.l.b16 %v581
      %v676 = vunpack.c.h.b16 %v580
      %v677 = vunpack.c.h.b16 %v581
      %v678 = vunpack.c.l.b16 %v596
      %v679 = vunpack.c.l.b16 %v597
      %v680 = vunpack.c.h.b16 %v596
      %v681 = vunpack.c.h.b16 %v597
      %v682 = vunpack.c.l.b16 %v582
      %v683 = vunpack.c.l.b16 %v583
      %v684 = vunpack.c.h.b16 %v582
      %v685 = vunpack.c.h.b16 %v583
      %v686 = vunpack.c.l.b16 %v598
      %v687 = vunpack.c.l.b16 %v599
      %v688 = vunpack.c.h.b16 %v598
      %v689 = vunpack.c.h.b16 %v599
      %v690 = vunpack.c.l.b16 %v584
      %v691 = vunpack.c.l.b16 %v585
      %v692 = vunpack.c.h.b16 %v584
      %v693 = vunpack.c.h.b16 %v585
      %v694 = vunpack.c.l.b16 %v600
      %v695 = vunpack.c.l.b16 %v601
      %v696 = vunpack.c.h.b16 %v600
      %v697 = vunpack.c.h.b16 %v601
      %v698 = vpack.c.b16 %v635, %v634
      %v699 = vpack.c.b16 %v637, %v636
      %v700 = vpack.c.b16 %v639, %v638
      %v701 = vpack.c.b16 %v641, %v640
      %v702 = vpack.c.b16 %v643, %v642
      %v703 = vpack.c.b16 %v645, %v644
      %v704 = vpack.c.b16 %v647, %v646
      %v705 = vpack.c.b16 %v649, %v648
      %v706 = vpack.c.b16 %v651, %v650
      %v707 = vpack.c.b16 %v653, %v652
      %v708 = vpack.c.b16 %v655, %v654
      %v709 = vpack.c.b16 %v657, %v656
      %v710 = vpack.c.b16 %v659, %v658
      %v711 = vpack.c.b16 %v661, %v660
      %v712 = vpack.c.b16 %v663, %v662
      %v713 = vpack.c.b16 %v665, %v664
      %v714 = vpack.c.b16 %v667, %v666
      %v715 = vpack.c.b16 %v669, %v668
      %v716 = vpack.c.b16 %v671, %v670
      %v717 = vpack.c.b16 %v673, %v672
      %v718 = vpack.c.b16 %v675, %v674
      %v719 = vpack.c.b16 %v677, %v676
      %v720 = vpack.c.b16 %v679, %v678
      %v721 = vpack.c.b16 %v681, %v680
      %v722 = vpack.c.b16 %v683, %v682
      %v723 = vpack.c.b16 %v685, %v684
      %v724 = vpack.c.b16 %v687, %v686
      %v725 = vpack.c.b16 %v689, %v688
      %v726 = vpack.c.b16 %v691, %v690
      %v727 = vpack.c.b16 %v693, %v692
      %v728 = vpack.c.b16 %v695, %v694
      %v729 = vpack.c.b16 %v697, %v696
      %762 = vst [vmem:[%s213] sm:$0xff] %v698
      %763 = vst [vmem:[%s213 + $0x8] sm:$0xff] %v699
      %764 = vst [vmem:[%s213 + $0x10] sm:$0xff] %v700
      %765 = vst [vmem:[%s213 + $0x18] sm:$0xff] %v701
      %766 = vst [vmem:[%s213 + $0x20] sm:$0xff] %v702
      %767 = vst [vmem:[%s213 + $0x28] sm:$0xff] %v703
      %768 = vst [vmem:[%s213 + $0x30] sm:$0xff] %v704
      %769 = vst [vmem:[%s213 + $0x38] sm:$0xff] %v705
      %770 = vst [vmem:[%s213 + $0x40] sm:$0xff] %v706
      %771 = vst [vmem:[%s213 + $0x48] sm:$0xff] %v707
      %772 = vst [vmem:[%s213 + $0x50] sm:$0xff] %v708
      %773 = vst [vmem:[%s213 + $0x58] sm:$0xff] %v709
      %774 = vst [vmem:[%s213 + $0x60] sm:$0xff] %v710
      %775 = vst [vmem:[%s213 + $0x68] sm:$0xff] %v711
      %776 = vst [vmem:[%s213 + $0x70] sm:$0xff] %v712
      %777 = vst [vmem:[%s213 + $0x78] sm:$0xff] %v713
      %778 = vst [vmem:[%s213 + $0x80] sm:$0xff] %v714
      %779 = vst [vmem:[%s213 + $0x88] sm:$0xff] %v715
      %780 = vst [vmem:[%s213 + $0x90] sm:$0xff] %v716
      %781 = vst [vmem:[%s213 + $0x98] sm:$0xff] %v717
      %782 = vst [vmem:[%s213 + $0xa0] sm:$0xff] %v718
      %783 = vst [vmem:[%s213 + $0xa8] sm:$0xff] %v719
      %784 = vst [vmem:[%s213 + $0xb0] sm:$0xff] %v720
      %785 = vst [vmem:[%s213 + $0xb8] sm:$0xff] %v721
      %786 = vst [vmem:[%s213 + $0xc0] sm:$0xff] %v722
      %787 = vst [vmem:[%s213 + $0xc8] sm:$0xff] %v723
      %788 = vst [vmem:[%s213 + $0xd0] sm:$0xff] %v724
      %789 = vst [vmem:[%s213 + $0xd8] sm:$0xff] %v725
      %790 = vst [vmem:[%s213 + $0xe0] sm:$0xff] %v726
      %791 = vst [vmem:[%s213 + $0xe8] sm:$0xff] %v727
      %792 = vst [vmem:[%s213 + $0xf0] sm:$0xff] %v728
      %793 = vst [vmem:[%s213 + $0xf8] sm:$0xff] %v729
      %s794 = smul.u32 8, %s19
      %p795 = scmp.lt.s32.totalorder %s18, 1
      %s796 = scalar_select %p795, %s18, 1
      %p797 = scmp.lt.s32.totalorder %s794, 15
      %s798 = scalar_select %p797, %s794, 15
      %s799 = smul.addr %s798, 8
      %s800 = smul.addr %s796, 128
      %s801 = sadd.s32 %s799, %s800
      %s802 = smul.addr %s801, 4
      %s803 = scalar_lea.vmem %s3, %s802
      // Predicated region
      $region33: #{upconv_forward.3} parent=31 // pred_check
        %p804 = pneg %p116
      $region34: #{upconv_forward.3} parent=31 // pred_check_branch
        %806 = sbr.rel (%p804) target = $region36
      $region35: #{upconv_forward.3} parent=31 // pred_region
        %s807 = smul.u32 8, %s19
      $region36: #{upconv_forward.3} parent=31 // pred_fallthru
        _
    $region32: #{upconv_forward.3} parent=5 // pred_fallthru
      _
    %p808 = scmp.le.s32.totalorder 2, %s9
    // Predicated region
    $region37: #{upconv_forward.3} parent=5 // pred_check
      %p809 = pneg %p808
    $region38: #{upconv_forward.3} parent=5 // pred_check_branch
      %811 = sbr.rel (%p809) target = $region40
    $region39: #{upconv_forward.3} parent=5 // pred_region
      %s812 = ssub.s32 %s9, 2
      // Predicated region
      $region41: #{upconv_forward.3} parent=39 // pred_check
        %p813 = pneg %p122
      $region42: #{upconv_forward.3} parent=39 // pred_check_branch
        %815 = sbr.rel (%p813) target = $region44
      $region43: #{upconv_forward.3} parent=39 // pred_region
        %s816 = smul.u32 8, %s21
        %p817 = scmp.lt.s32.totalorder %s20, 1
        %s818 = scalar_select %p817, %s20, 1
        %p819 = scmp.lt.s32.totalorder %s816, 15
        %s820 = scalar_select %p819, %s816, 15
        %s821 = smul.addr %s820, 8
        %s822 = smul.addr %s818, 128
        %s823 = sadd.s32 %s821, %s822
        %s824 = smul.addr %s823, 4
        %s825 = scalar_lea.vmem %s3, %s824
      $region44: #{upconv_forward.3} parent=39 // pred_fallthru
        _
    $region40: #{upconv_forward.3} parent=5 // pred_fallthru
      _
  $region6: #{upconv_forward.3} parent=0 // loop_footer
    %s13 = sadd.s32 1, %s9
  $region7: #{upconv_forward.3} parent=0 // loop_footer_branch
    %8 = sbr.rel target = $region3
  $region8: #{upconv_forward.3} parent=0 // loop_exit
    _

// kernel: upconv_forward.4
$region0: #{upconv_forward.4}
  #allocation0 [shape = 'u32[]', space=smem, size = 0x4, offset = 0x4, fixed_abs, tag = 'smem constant byte address 0x4 - core index']
  #allocation1 [shape = 'u32[144,128]{1,0:T(1,128)}', space=vmem, size = 0x12000, scoped, tag = 'internal scratch']
  %s0 = inlined_call_operand.vmem [shape: bf16[2,32,32,128], index: 0, kind: input, shape index: {}, may-alias: {0,1,2}]
  %s1 = inlined_call_operand.vmem [shape: bf16[2,32,32,128], index: 1, kind: input, shape index: {}, may-alias: {0,1,2}]
  %s2 = inlined_call_operand.vmem [shape: bf16[2,32,32,128], index: 2, kind: input, shape index: {}, may-alias: {0,1,2}]
  %s3 = inlined_call_operand.vmem [shape: bf16[2,32,32,4], index: 3, kind: input, shape index: {}, may-alias: {3,4,5}]
  %s4 = inlined_call_operand.vmem [shape: bf16[2,32,32,4], index: 4, kind: input, shape index: {}, may-alias: {3,4,5}]
  %s5 = inlined_call_operand.vmem [shape: bf16[2,32,32,4], index: 5, kind: input, shape index: {}, may-alias: {3,4,5}]
  %s6 = inlined_call_operand.vmem [shape: bf16[1188,128], index: 6, kind: input, shape index: {}]
  %s7 = inlined_call_operand.vmem [shape: f32[1,128], index: 7, kind: input, shape index: {}]
  %s8 = inlined_call_operand.vmem [shape: f32[1,128], index: 8, kind: input, shape index: {}]
  %s9 = inlined_call_operand.vmem [shape: bf16[2,32,32,128], index: 9, kind: output, shape index: {}]
  %s10 = sld [smem:[#allocation0]]
  $region69: #{upconv_forward.4} parent=0
    _
  %s12 = ssub.s32 1, %s10
  %s13 = scalar_select 0, %s12, %s10
  loop: start=0, step=1, limit=10
  $region2: #{upconv_forward.4} parent=0 // loop_pre_header
    _
  $region3: #{upconv_forward.4} parent=0 // loop_header
    %s15 = sphi 0, %s19
    %p16 = scmp.ge.s32.totalorder %s15, 10
    %s22 = sphi 0, %s34
    %s23 = sphi 0, %s30
    %s24 = sphi 0, %s22
    %s25 = sphi 0, %s23
    %s26 = sphi 0, %s24
    %s27 = sphi 0, %s25
    %s39 = sphi 0, %s41
    %s42 = sphi 0, %s39
    %s43 = sphi 0, %s42
    %s59 = sphi 0, %s43
    %s75 = sphi 0, %s77
    %s78 = sphi 0, %s75
    %s79 = sphi 0, %s78
    %s95 = sphi 0, %s79
    %s111 = sphi 0, %s113
    %s114 = sphi 0, %s111
    %s115 = sphi 0, %s114
    %s131 = sphi 0, %s115
    %s139 = sphi 0, %s141
    %s142 = sphi 0, %s139
    %s143 = sphi 0, %s142
    %s159 = sphi 0, %s143
    %s175 = sphi 0, %s177
    %s178 = sphi 0, %s175
    %s179 = sphi 0, %s178
    %s195 = sphi 0, %s179
    %s211 = sphi 0, %s213
    %s214 = sphi 0, %s211
    %s215 = sphi 0, %s214
    %s231 = sphi 0, %s215
    %s235 = sphi 0, %s235
    %s237 = sphi 0, %s235
    %s238 = sphi 0, %s237
    %s252 = sphi 0, %s238
    %s256 = sphi 0, %s256
    %s258 = sphi 0, %s256
    %s259 = sphi 0, %s258
    %s273 = sphi 0, %s259
    %s277 = sphi 0, %s277
    %s279 = sphi 0, %s277
    %s280 = sphi 0, %s279
    %s294 = sphi 0, %s280
    %s302 = sphi 0, %s304
    %s305 = sphi 0, %s302
    %s306 = sphi 0, %s305
    %s322 = sphi 0, %s306
  $region4: #{upconv_forward.4} parent=0 // loop_header_branch
    %18 = sbr.rel (%p16) target = $region8
  $region5: #{upconv_forward.4} parent=0 // loop_body
    %s20 = ssub.s32 %s15, 1
    %s21 = ssub.s32 %s15, 2
    %s28 = sadd.s32 1, %s23
    %p29 = scmp.ge.s32.totalorder %s28, 4
    %s30 = scalar_select %p29, 0, %s28
    %s31 = sadd.s32 1, %s22
    %s32 = scalar_select %p29, %s31, %s22
    %p33 = scmp.ge.s32.totalorder %s32, 2
    %s34 = scalar_select %p33, 0, %s32
    %s35 = ssub.s32 %s22, %s34
    %s36 = ssub.s32 %s23, %s30
    %s37 = sor.u32 %s35, %s36
    %p38 = scmp.eq.s32.totalorder %s37, 0
    %s40 = sadd.s32 %s39, 1
    %s41 = scalar_select %p38, %s39, %s40
    %p44 = pneg %p38
    %p45 = scmp.eq.s32.totalorder %s15, 7
    %p46 = por %p44, %p45
    %p47 = scmp.ne.s32.totalorder %s39, %s42
    %p48 = scmp.eq.s32.totalorder %s15, 0
    %p49 = por %p47, %p48
    %p50 = scmp.ne.s32.totalorder %s39, %s42
    %p51 = scmp.eq.s32.totalorder %s20, 7
    %p52 = por %p50, %p51
    %p53 = scmp.ne.s32.totalorder %s42, %s43
    %p54 = scmp.eq.s32.totalorder %s20, 0
    %p55 = por %p53, %p54
    %p56 = scmp.ne.s32.totalorder %s42, %s43
    %p57 = scmp.eq.s32.totalorder %s21, 7
    %p58 = por %p56, %p57
    %p60 = scmp.ne.s32.totalorder %s43, %s59
    %p61 = scmp.eq.s32.totalorder %s21, 0
    %p62 = por %p60, %p61
    %s63 = smul.u32 %s23, 8
    %s64 = ssub.s32 %s63, 1
    %p65 = scmp.gt.s32.totalorder %s64, 0
    %s66 = scalar_select %p65, %s64, 0
    %s67 = smul.u32 %s30, 8
    %s68 = ssub.s32 %s67, 1
    %p69 = scmp.gt.s32.totalorder %s68, 0
    %s70 = scalar_select %p69, %s68, 0
    %s71 = ssub.s32 %s22, %s34
    %s72 = ssub.s32 %s66, %s70
    %s73 = sor.u32 %s71, %s72
    %p74 = scmp.eq.s32.totalorder %s73, 0
    %s76 = sadd.s32 %s75, 1
    %s77 = scalar_select %p74, %s75, %s76
    %p80 = pneg %p74
    %p81 = scmp.eq.s32.totalorder %s15, 7
    %p82 = por %p80, %p81
    %p83 = scmp.ne.s32.totalorder %s75, %s78
    %p84 = scmp.eq.s32.totalorder %s15, 0
    %p85 = por %p83, %p84
    %p86 = scmp.ne.s32.totalorder %s75, %s78
    %p87 = scmp.eq.s32.totalorder %s20, 7
    %p88 = por %p86, %p87
    %p89 = scmp.ne.s32.totalorder %s78, %s79
    %p90 = scmp.eq.s32.totalorder %s20, 0
    %p91 = por %p89, %p90
    %p92 = scmp.ne.s32.totalorder %s78, %s79
    %p93 = scmp.eq.s32.totalorder %s21, 7
    %p94 = por %p92, %p93
    %p96 = scmp.ne.s32.totalorder %s79, %s95
    %p97 = scmp.eq.s32.totalorder %s21, 0
    %p98 = por %p96, %p97
    %s99 = sadd.s32 %s23, 1
    %s100 = smul.u32 %s99, 8
    %p101 = scmp.lt.s32.totalorder %s100, 31
    %s102 = scalar_select %p101, %s100, 31
    %s103 = sadd.s32 %s30, 1
    %s104 = smul.u32 %s103, 8
    %p105 = scmp.lt.s32.totalorder %s104, 31
    %s106 = scalar_select %p105, %s104, 31
    %s107 = ssub.s32 %s22, %s34
    %s108 = ssub.s32 %s102, %s106
    %s109 = sor.u32 %s107, %s108
    %p110 = scmp.eq.s32.totalorder %s109, 0
    %s112 = sadd.s32 %s111, 1
    %s113 = scalar_select %p110, %s111, %s112
    %p116 = pneg %p110
    %p117 = scmp.eq.s32.totalorder %s15, 7
    %p118 = por %p116, %p117
    %p119 = scmp.ne.s32.totalorder %s111, %s114
    %p120 = scmp.eq.s32.totalorder %s15, 0
    %p121 = por %p119, %p120
    %p122 = scmp.ne.s32.totalorder %s111, %s114
    %p123 = scmp.eq.s32.totalorder %s20, 7
    %p124 = por %p122, %p123
    %p125 = scmp.ne.s32.totalorder %s114, %s115
    %p126 = scmp.eq.s32.totalorder %s20, 0
    %p127 = por %p125, %p126
    %p128 = scmp.ne.s32.totalorder %s114, %s115
    %p129 = scmp.eq.s32.totalorder %s21, 7
    %p130 = por %p128, %p129
    %p132 = scmp.ne.s32.totalorder %s115, %s131
    %p133 = scmp.eq.s32.totalorder %s21, 0
    %p134 = por %p132, %p133
    %s135 = ssub.s32 %s22, %s34
    %s136 = ssub.s32 %s23, %s30
    %s137 = sor.u32 %s135, %s136
    %p138 = scmp.eq.s32.totalorder %s137, 0
    %s140 = sadd.s32 %s139, 1
    %s141 = scalar_select %p138, %s139, %s140
    %p144 = pneg %p138
    %p145 = scmp.eq.s32.totalorder %s15, 7
    %p146 = por %p144, %p145
    %p147 = scmp.ne.s32.totalorder %s139, %s142
    %p148 = scmp.eq.s32.totalorder %s15, 0
    %p149 = por %p147, %p148
    %p150 = scmp.ne.s32.totalorder %s139, %s142
    %p151 = scmp.eq.s32.totalorder %s20, 7
    %p152 = por %p150, %p151
    %p153 = scmp.ne.s32.totalorder %s142, %s143
    %p154 = scmp.eq.s32.totalorder %s20, 0
    %p155 = por %p153, %p154
    %p156 = scmp.ne.s32.totalorder %s142, %s143
    %p157 = scmp.eq.s32.totalorder %s21, 7
    %p158 = por %p156, %p157
    %p160 = scmp.ne.s32.totalorder %s143, %s159
    %p161 = scmp.eq.s32.totalorder %s21, 0
    %p162 = por %p160, %p161
    %s163 = smul.u32 %s23, 8
    %s164 = ssub.s32 %s163, 1
    %p165 = scmp.gt.s32.totalorder %s164, 0
    %s166 = scalar_select %p165, %s164, 0
    %s167 = smul.u32 %s30, 8
    %s168 = ssub.s32 %s167, 1
    %p169 = scmp.gt.s32.totalorder %s168, 0
    %s170 = scalar_select %p169, %s168, 0
    %s171 = ssub.s32 %s22, %s34
    %s172 = ssub.s32 %s166, %s170
    %s173 = sor.u32 %s171, %s172
    %p174 = scmp.eq.s32.totalorder %s173, 0
    %s176 = sadd.s32 %s175, 1
    %s177 = scalar_select %p174, %s175, %s176
    %p180 = pneg %p174
    %p181 = scmp.eq.s32.totalorder %s15, 7
    %p182 = por %p180, %p181
    %p183 = scmp.ne.s32.totalorder %s175, %s178
    %p184 = scmp.eq.s32.totalorder %s15, 0
    %p185 = por %p183, %p184
    %p186 = scmp.ne.s32.totalorder %s175, %s178
    %p187 = scmp.eq.s32.totalorder %s20, 7
    %p188 = por %p186, %p187
    %p189 = scmp.ne.s32.totalorder %s178, %s179
    %p190 = scmp.eq.s32.totalorder %s20, 0
    %p191 = por %p189, %p190
    %p192 = scmp.ne.s32.totalorder %s178, %s179
    %p193 = scmp.eq.s32.totalorder %s21, 7
    %p194 = por %p192, %p193
    %p196 = scmp.ne.s32.totalorder %s179, %s195
    %p197 = scmp.eq.s32.totalorder %s21, 0
    %p198 = por %p196, %p197
    %s199 = sadd.s32 %s23, 1
    %s200 = smul.u32 %s199, 8
    %p201 = scmp.lt.s32.totalorder %s200, 31
    %s202 = scalar_select %p201, %s200, 31
    %s203 = sadd.s32 %s30, 1
    %s204 = smul.u32 %s203, 8
    %p205 = scmp.lt.s32.totalorder %s204, 31
    %s206 = scalar_select %p205, %s204, 31
    %s207 = ssub.s32 %s22, %s34
    %s208 = ssub.s32 %s202, %s206
    %s209 = sor.u32 %s207, %s208
    %p210 = scmp.eq.s32.totalorder %s209, 0
    %s212 = sadd.s32 %s211, 1
    %s213 = scalar_select %p210, %s211, %s212
    %p216 = pneg %p210
    %p217 = scmp.eq.s32.totalorder %s15, 7
    %p218 = por %p216, %p217
    %p219 = scmp.ne.s32.totalorder %s211, %s214
    %p220 = scmp.eq.s32.totalorder %s15, 0
    %p221 = por %p219, %p220
    %p222 = scmp.ne.s32.totalorder %s211, %s214
    %p223 = scmp.eq.s32.totalorder %s20, 7
    %p224 = por %p222, %p223
    %p225 = scmp.ne.s32.totalorder %s214, %s215
    %p226 = scmp.eq.s32.totalorder %s20, 0
    %p227 = por %p225, %p226
    %p228 = scmp.ne.s32.totalorder %s214, %s215
    %p229 = scmp.eq.s32.totalorder %s21, 7
    %p230 = por %p228, %p229
    %p232 = scmp.ne.s32.totalorder %s215, %s231
    %p233 = scmp.eq.s32.totalorder %s21, 0
    %p234 = por %p232, %p233
    %s236 = sadd.s32 %s235, 1
    %p239 = scmp.eq.s32.totalorder %s15, 7
    %p240 = scmp.ne.s32.totalorder %s235, %s237
    %p241 = scmp.eq.s32.totalorder %s15, 0
    %p242 = por %p240, %p241
    %p243 = scmp.ne.s32.totalorder %s235, %s237
    %p244 = scmp.eq.s32.totalorder %s20, 7
    %p245 = por %p243, %p244
    %p246 = scmp.ne.s32.totalorder %s237, %s238
    %p247 = scmp.eq.s32.totalorder %s20, 0
    %p248 = por %p246, %p247
    %p249 = scmp.ne.s32.totalorder %s237, %s238
    %p250 = scmp.eq.s32.totalorder %s21, 7
    %p251 = por %p249, %p250
    %p253 = scmp.ne.s32.totalorder %s238, %s252
    %p254 = scmp.eq.s32.totalorder %s21, 0
    %p255 = por %p253, %p254
    %s257 = sadd.s32 %s256, 1
    %p260 = scmp.eq.s32.totalorder %s15, 7
    %p261 = scmp.ne.s32.totalorder %s256, %s258
    %p262 = scmp.eq.s32.totalorder %s15, 0
    %p263 = por %p261, %p262
    %p264 = scmp.ne.s32.totalorder %s256, %s258
    %p265 = scmp.eq.s32.totalorder %s20, 7
    %p266 = por %p264, %p265
    %p267 = scmp.ne.s32.totalorder %s258, %s259
    %p268 = scmp.eq.s32.totalorder %s20, 0
    %p269 = por %p267, %p268
    %p270 = scmp.ne.s32.totalorder %s258, %s259
    %p271 = scmp.eq.s32.totalorder %s21, 7
    %p272 = por %p270, %p271
    %p274 = scmp.ne.s32.totalorder %s259, %s273
    %p275 = scmp.eq.s32.totalorder %s21, 0
    %p276 = por %p274, %p275
    %s278 = sadd.s32 %s277, 1
    %p281 = scmp.eq.s32.totalorder %s15, 7
    %p282 = scmp.ne.s32.totalorder %s277, %s279
    %p283 = scmp.eq.s32.totalorder %s15, 0
    %p284 = por %p282, %p283
    %p285 = scmp.ne.s32.totalorder %s277, %s279
    %p286 = scmp.eq.s32.totalorder %s20, 7
    %p287 = por %p285, %p286
    %p288 = scmp.ne.s32.totalorder %s279, %s280
    %p289 = scmp.eq.s32.totalorder %s20, 0
    %p290 = por %p288, %p289
    %p291 = scmp.ne.s32.totalorder %s279, %s280
    %p292 = scmp.eq.s32.totalorder %s21, 7
    %p293 = por %p291, %p292
    %p295 = scmp.ne.s32.totalorder %s280, %s294
    %p296 = scmp.eq.s32.totalorder %s21, 0
    %p297 = por %p295, %p296
    %s298 = ssub.s32 %s22, %s34
    %s299 = ssub.s32 %s23, %s30
    %s300 = sor.u32 %s298, %s299
    %p301 = scmp.eq.s32.totalorder %s300, 0
    %s303 = sadd.s32 %s302, 1
    %s304 = scalar_select %p301, %s302, %s303
    %p307 = pneg %p301
    %p308 = scmp.eq.s32.totalorder %s15, 7
    %p309 = por %p307, %p308
    %p310 = scmp.ne.s32.totalorder %s302, %s305
    %p311 = scmp.eq.s32.totalorder %s15, 0
    %p312 = por %p310, %p311
    %p313 = scmp.ne.s32.totalorder %s302, %s305
    %p314 = scmp.eq.s32.totalorder %s20, 7
    %p315 = por %p313, %p314
    %p316 = scmp.ne.s32.totalorder %s305, %s306
    %p317 = scmp.eq.s32.totalorder %s20, 0
    %p318 = por %p316, %p317
    %p319 = scmp.ne.s32.totalorder %s305, %s306
    %p320 = scmp.eq.s32.totalorder %s21, 7
    %p321 = por %p319, %p320
    %p323 = scmp.ne.s32.totalorder %s306, %s322
    %p324 = scmp.eq.s32.totalorder %s21, 0
    %p325 = por %p323, %p324
    %p326 = scmp.le.s32.totalorder 1, %s15
    %p327 = scmp.lt.s32.totalorder %s15, 9
    %p328 = pnand %p326, %p327
    %p329 = pneg %p328
    // Predicated region
    $region9: #{upconv_forward.4} parent=5 // pred_check
      _
    $region10: #{upconv_forward.4} parent=5 // pred_check_branch
      %331 = sbr.rel (%p328) target = $region12
    $region11: #{upconv_forward.4} parent=5 // pred_region
      %s332 = ssub.s32 %s15, 1
      // Predicated region
      $region13: #{upconv_forward.4} parent=11 // pred_check
        %p333 = pneg %p248
      $region14: #{upconv_forward.4} parent=11 // pred_check_branch
        %335 = sbr.rel (%p333) target = $region16
      $region15: #{upconv_forward.4} parent=11 // pred_region
        _
      $region16: #{upconv_forward.4} parent=11 // pred_fallthru
        _
      // Predicated region
      $region17: #{upconv_forward.4} parent=11 // pred_check
        %p336 = pneg %p269
      $region18: #{upconv_forward.4} parent=11 // pred_check_branch
        %338 = sbr.rel (%p336) target = $region20
      $region19: #{upconv_forward.4} parent=11 // pred_region
        _
      $region20: #{upconv_forward.4} parent=11 // pred_fallthru
        _
      // Predicated region
      $region21: #{upconv_forward.4} parent=11 // pred_check
        %p339 = pneg %p290
      $region22: #{upconv_forward.4} parent=11 // pred_check_branch
        %341 = sbr.rel (%p339) target = $region24
      $region23: #{upconv_forward.4} parent=11 // pred_region
        _
      $region24: #{upconv_forward.4} parent=11 // pred_fallthru
        _
    $region12: #{upconv_forward.4} parent=5 // pred_fallthru
      _
    %p342 = scmp.lt.s32.totalorder %s15, 8
    // Predicated region
    $region25: #{upconv_forward.4} parent=5 // pred_check
      %p343 = pneg %p342
    $region26: #{upconv_forward.4} parent=5 // pred_check_branch
      %345 = sbr.rel (%p343) target = $region28
    $region27: #{upconv_forward.4} parent=5 // pred_region
      // Predicated region
      $region29: #{upconv_forward.4} parent=27 // pred_check
        %p346 = pneg %p49
      $region30: #{upconv_forward.4} parent=27 // pred_check_branch
        %348 = sbr.rel (%p346) target = $region32
      $region31: #{upconv_forward.4} parent=27 // pred_region
        %s349 = smul.u32 8, %s23
        %p350 = scmp.lt.s32.totalorder %s22, 1
        %s351 = scalar_select %p350, %s22, 1
        %p352 = scmp.lt.s32.totalorder %s349, 31
        %s353 = scalar_select %p352, %s349, 31
        %s354 = smul.addr %s353, 4
        %s355 = smul.addr %s351, 128
        %s356 = sadd.s32 %s354, %s355
        %s357 = smul.addr %s356, 4
        %s358 = scalar_lea.vmem %s0, %s357
        %s359 = smul.u32 8, %s23
      $region32: #{upconv_forward.4} parent=27 // pred_fallthru
        _
      // Predicated region
      $region33: #{upconv_forward.4} parent=27 // pred_check
        %p360 = pneg %p85
      $region34: #{upconv_forward.4} parent=27 // pred_check_branch
        %362 = sbr.rel (%p360) target = $region36
      $region35: #{upconv_forward.4} parent=27 // pred_region
        %s363 = smul.u32 %s23, 8
        %s364 = ssub.s32 %s363, 1
        %p365 = scmp.gt.s32.totalorder %s364, 0
        %s366 = scalar_select %p365, %s364, 0
        %p367 = scmp.lt.s32.totalorder %s22, 1
        %s368 = scalar_select %p367, %s22, 1
        %p369 = scmp.lt.s32.totalorder %s366, 31
        %s370 = scalar_select %p369, %s366, 31
        %s371 = smul.addr %s370, 4
        %s372 = smul.addr %s368, 128
        %s373 = sadd.s32 %s371, %s372
        %s374 = smul.addr %s373, 4
        %s375 = scalar_lea.vmem %s1, %s374
        %s376 = smul.u32 %s23, 8
        %s377 = ssub.s32 %s376, 1
        %p378 = scmp.gt.s32.totalorder %s377, 0
        %s379 = scalar_select %p378, %s377, 0
      $region36: #{upconv_forward.4} parent=27 // pred_fallthru
        _
      // Predicated region
      $region37: #{upconv_forward.4} parent=27 // pred_check
        %p380 = pneg %p121
      $region38: #{upconv_forward.4} parent=27 // pred_check_branch
        %382 = sbr.rel (%p380) target = $region40
      $region39: #{upconv_forward.4} parent=27 // pred_region
        %s383 = sadd.s32 %s23, 1
        %s384 = smul.u32 %s383, 8
        %p385 = scmp.lt.s32.totalorder %s384, 31
        %s386 = scalar_select %p385, %s384, 31
        %p387 = scmp.lt.s32.totalorder %s22, 1
        %s388 = scalar_select %p387, %s22, 1
        %p389 = scmp.lt.s32.totalorder %s386, 31
        %s390 = scalar_select %p389, %s386, 31
        %s391 = smul.addr %s390, 4
        %s392 = smul.addr %s388, 128
        %s393 = sadd.s32 %s391, %s392
        %s394 = smul.addr %s393, 4
        %s395 = scalar_lea.vmem %s2, %s394
        %s396 = sadd.s32 %s23, 1
        %s397 = smul.u32 %s396, 8
        %p398 = scmp.lt.s32.totalorder %s397, 31
        %s399 = scalar_select %p398, %s397, 31
      $region40: #{upconv_forward.4} parent=27 // pred_fallthru
        _
      // Predicated region
      $region41: #{upconv_forward.4} parent=27 // pred_check
        %p400 = pneg %p149
      $region42: #{upconv_forward.4} parent=27 // pred_check_branch
        %402 = sbr.rel (%p400) target = $region44
      $region43: #{upconv_forward.4} parent=27 // pred_region
        %s403 = smul.u32 8, %s23
        %p404 = scmp.lt.s32.totalorder %s22, 1
        %s405 = scalar_select %p404, %s22, 1
        %p406 = scmp.lt.s32.totalorder %s403, 31
        %s407 = scalar_select %p406, %s403, 31
        %s408 = smul.addr %s407, 4
        %s409 = smul.addr %s405, 128
        %s410 = sadd.s32 %s408, %s409
        %s411 = smul.addr %s410, 4
        %s412 = scalar_lea.vmem %s3, %s411
        %s413 = smul.u32 8, %s23
      $region44: #{upconv_forward.4} parent=27 // pred_fallthru
        _
      // Predicated region
      $region45: #{upconv_forward.4} parent=27 // pred_check
        %p414 = pneg %p185
      $region46: #{upconv_forward.4} parent=27 // pred_check_branch
        %416 = sbr.rel (%p414) target = $region48
      $region47: #{upconv_forward.4} parent=27 // pred_region
        %s417 = smul.u32 %s23, 8
        %s418 = ssub.s32 %s417, 1
        %p419 = scmp.gt.s32.totalorder %s418, 0
        %s420 = scalar_select %p419, %s418, 0
        %p421 = scmp.lt.s32.totalorder %s22, 1
        %s422 = scalar_select %p421, %s22, 1
        %p423 = scmp.lt.s32.totalorder %s420, 31
        %s424 = scalar_select %p423, %s420, 31
        %s425 = smul.addr %s424, 4
        %s426 = smul.addr %s422, 128
        %s427 = sadd.s32 %s425, %s426
        %s428 = smul.addr %s427, 4
        %s429 = scalar_lea.vmem %s4, %s428
        %s430 = smul.u32 %s23, 8
        %s431 = ssub.s32 %s430, 1
        %p432 = scmp.gt.s32.totalorder %s431, 0
        %s433 = scalar_select %p432, %s431, 0
      $region48: #{upconv_forward.4} parent=27 // pred_fallthru
        _
      // Predicated region
      $region49: #{upconv_forward.4} parent=27 // pred_check
        %p434 = pneg %p221
      $region50: #{upconv_forward.4} parent=27 // pred_check_branch
        %436 = sbr.rel (%p434) target = $region52
      $region51: #{upconv_forward.4} parent=27 // pred_region
        %s437 = sadd.s32 %s23, 1
        %s438 = smul.u32 %s437, 8
        %p439 = scmp.lt.s32.totalorder %s438, 31
        %s440 = scalar_select %p439, %s438, 31
        %p441 = scmp.lt.s32.totalorder %s22, 1
        %s442 = scalar_select %p441, %s22, 1
        %p443 = scmp.lt.s32.totalorder %s440, 31
        %s444 = scalar_select %p443, %s440, 31
        %s445 = smul.addr %s444, 4
        %s446 = smul.addr %s442, 128
        %s447 = sadd.s32 %s445, %s446
        %s448 = smul.addr %s447, 4
        %s449 = scalar_lea.vmem %s5, %s448
        %s450 = sadd.s32 %s23, 1
        %s451 = smul.u32 %s450, 8
        %p452 = scmp.lt.s32.totalorder %s451, 31
        %s453 = scalar_select %p452, %s451, 31
      $region52: #{upconv_forward.4} parent=27 // pred_fallthru
        _
    $region28: #{upconv_forward.4} parent=5 // pred_fallthru
      _
    %p454 = scmp.le.s32.totalorder 1, %s15
    %p455 = scmp.lt.s32.totalorder %s15, 9
    %p456 = pnand %p454, %p455
    %p457 = pneg %p456
    // Predicated region
    $region53: #{upconv_forward.4} parent=5 // pred_check
      _
    $region54: #{upconv_forward.4} parent=5 // pred_check_branch
      %459 = sbr.rel (%p456) target = $region56
    $region55: #{upconv_forward.4} parent=5 // pred_region
      %s460 = ssub.s32 %s15, 1
      %s461 = smul.u32 8, %s25
      %p462 = scmp.lt.s32.totalorder %s24, 1
      %s463 = scalar_select %p462, %s24, 1
      %p464 = scmp.lt.s32.totalorder %s461, 31
      %s465 = scalar_select %p464, %s461, 31
      %s466 = smul.addr %s465, 4
      %s467 = smul.addr %s463, 128
      %s468 = sadd.s32 %s466, %s467
      %s469 = smul.addr %s468, 4
      %s470 = scalar_lea.vmem %s0, %s469
      %p471 = pneg %p55
      %p472 = pneg %p52
      %s473 = smul.u32 %s25, 8
      %s474 = ssub.s32 %s473, 1
      %p475 = scmp.gt.s32.totalorder %s474, 0
      %s476 = scalar_select %p475, %s474, 0
      %p477 = scmp.lt.s32.totalorder %s24, 1
      %s478 = scalar_select %p477, %s24, 1
      %p479 = scmp.lt.s32.totalorder %s476, 31
      %s480 = scalar_select %p479, %s476, 31
      %s481 = smul.addr %s480, 4
      %s482 = smul.addr %s478, 128
      %s483 = sadd.s32 %s481, %s482
      %s484 = smul.addr %s483, 4
      %s485 = scalar_lea.vmem %s1, %s484
      %p486 = pneg %p91
      %p487 = pneg %p88
      %s488 = sadd.s32 %s25, 1
      %s489 = smul.u32 %s488, 8
      %p490 = scmp.lt.s32.totalorder %s489, 31
      %s491 = scalar_select %p490, %s489, 31
      %p492 = scmp.lt.s32.totalorder %s24, 1
      %s493 = scalar_select %p492, %s24, 1
      %p494 = scmp.lt.s32.totalorder %s491, 31
      %s495 = scalar_select %p494, %s491, 31
      %s496 = smul.addr %s495, 4
      %s497 = smul.addr %s493, 128
      %s498 = sadd.s32 %s496, %s497
      %s499 = smul.addr %s498, 4
      %s500 = scalar_lea.vmem %s2, %s499
      %p501 = pneg %p127
      %p502 = pneg %p124
      %s503 = smul.u32 8, %s25
      %p504 = scmp.lt.s32.totalorder %s24, 1
      %s505 = scalar_select %p504, %s24, 1
      %p506 = scmp.lt.s32.totalorder %s503, 31
      %s507 = scalar_select %p506, %s503, 31
      %s508 = smul.addr %s507, 4
      %s509 = smul.addr %s505, 128
      %s510 = sadd.s32 %s508, %s509
      %s511 = smul.addr %s510, 4
      %s512 = scalar_lea.vmem %s3, %s511
      %p513 = pneg %p155
      %p514 = pneg %p152
      %s515 = smul.u32 %s25, 8
      %s516 = ssub.s32 %s515, 1
      %p517 = scmp.gt.s32.totalorder %s516, 0
      %s518 = scalar_select %p517, %s516, 0
      %p519 = scmp.lt.s32.totalorder %s24, 1
      %s520 = scalar_select %p519, %s24, 1
      %p521 = scmp.lt.s32.totalorder %s518, 31
      %s522 = scalar_select %p521, %s518, 31
      %s523 = smul.addr %s522, 4
      %s524 = smul.addr %s520, 128
      %s525 = sadd.s32 %s523, %s524
      %s526 = smul.addr %s525, 4
      %s527 = scalar_lea.vmem %s4, %s526
      %p528 = pneg %p191
      %p529 = pneg %p188
      %s530 = sadd.s32 %s25, 1
      %s531 = smul.u32 %s530, 8
      %p532 = scmp.lt.s32.totalorder %s531, 31
      %s533 = scalar_select %p532, %s531, 31
      %p534 = scmp.lt.s32.totalorder %s24, 1
      %s535 = scalar_select %p534, %s24, 1
      %p536 = scmp.lt.s32.totalorder %s533, 31
      %s537 = scalar_select %p536, %s533, 31
      %s538 = smul.addr %s537, 4
      %s539 = smul.addr %s535, 128
      %s540 = sadd.s32 %s538, %s539
      %s541 = smul.addr %s540, 4
      %s542 = scalar_lea.vmem %s5, %s541
      %p543 = pneg %p227
      %p544 = pneg %p224
      %p545 = pneg %p248
      %p546 = pneg %p245
      %p547 = pneg %p269
      %p548 = pneg %p266
      %p549 = pneg %p290
      %p550 = pneg %p287
      %p551 = pneg %p318
      %p552 = pneg %p315
      %s553 = smul.u32 8, %s25
      %p554 = scmp.lt.s32.totalorder %s24, 1
      %s555 = scalar_select %p554, %s24, 1
      %p556 = scmp.lt.s32.totalorder %s553, 31
      %s557 = scalar_select %p556, %s553, 31
      %s558 = smul.addr %s557, 4
      %s559 = smul.addr %s555, 128
      %s560 = sadd.s32 %s558, %s559
      %s561 = smul.addr %s560, 4
      %s562 = scalar_lea.vmem %s9, %s561
      %s563 = smul.u32 8, %s25
      %p564 = scmp.lt.s32.totalorder %s24, 1
      %s565 = scalar_select %p564, %s24, 1
      %p566 = scmp.lt.s32.totalorder %s563, 31
      %s567 = scalar_select %p566, %s563, 31
      %s568 = smul.addr %s567, 4
      %s569 = smul.addr %s565, 128
      %s570 = sadd.s32 %s568, %s569
      %s571 = smul.addr %s570, 4
      %s572 = scalar_lea.vmem %s0, %s571
      %s573 = smul.u32 8, %s25
      %s574 = smul.u32 %s25, 8
      %s575 = ssub.s32 %s574, 1
      %p576 = scmp.gt.s32.totalorder %s575, 0
      %s577 = scalar_select %p576, %s575, 0
      %p578 = scmp.lt.s32.totalorder %s24, 1
      %s579 = scalar_select %p578, %s24, 1
      %p580 = scmp.lt.s32.totalorder %s577, 31
      %s581 = scalar_select %p580, %s577, 31
      %s582 = smul.addr %s581, 4
      %s583 = smul.addr %s579, 128
      %s584 = sadd.s32 %s582, %s583
      %s585 = smul.addr %s584, 4
      %s586 = scalar_lea.vmem %s1, %s585
      %s587 = smul.u32 %s25, 8
      %s588 = ssub.s32 %s587, 1
      %p589 = scmp.gt.s32.totalorder %s588, 0
      %s590 = scalar_select %p589, %s588, 0
      %s591 = sadd.s32 %s25, 1
      %s592 = smul.u32 %s591, 8
      %p593 = scmp.lt.s32.totalorder %s592, 31
      %s594 = scalar_select %p593, %s592, 31
      %p595 = scmp.lt.s32.totalorder %s24, 1
      %s596 = scalar_select %p595, %s24, 1
      %p597 = scmp.lt.s32.totalorder %s594, 31
      %s598 = scalar_select %p597, %s594, 31
      %s599 = smul.addr %s598, 4
      %s600 = smul.addr %s596, 128
      %s601 = sadd.s32 %s599, %s600
      %s602 = smul.addr %s601, 4
      %s603 = scalar_lea.vmem %s2, %s602
      %s604 = sadd.s32 %s25, 1
      %s605 = smul.u32 %s604, 8
      %p606 = scmp.lt.s32.totalorder %s605, 31
      %s607 = scalar_select %p606, %s605, 31
      %s608 = smul.u32 8, %s25
      %p609 = scmp.lt.s32.totalorder %s24, 1
      %s610 = scalar_select %p609, %s24, 1
      %p611 = scmp.lt.s32.totalorder %s608, 31
      %s612 = scalar_select %p611, %s608, 31
      %s613 = smul.addr %s612, 4
      %s614 = smul.addr %s610, 128
      %s615 = sadd.s32 %s613, %s614
      %s616 = smul.addr %s615, 4
      %s617 = scalar_lea.vmem %s3, %s616
      %s618 = smul.u32 8, %s25
      %s619 = smul.u32 %s25, 8
      %s620 = ssub.s32 %s619, 1
      %p621 = scmp.gt.s32.totalorder %s620, 0
      %s622 = scalar_select %p621, %s620, 0
      %p623 = scmp.lt.s32.totalorder %s24, 1
      %s624 = scalar_select %p623, %s24, 1
      %p625 = scmp.lt.s32.totalorder %s622, 31
      %s626 = scalar_select %p625, %s622, 31
      %s627 = smul.addr %s626, 4
      %s628 = smul.addr %s624, 128
      %s629 = sadd.s32 %s627, %s628
      %s630 = smul.addr %s629, 4
      %s631 = scalar_lea.vmem %s4, %s630
      %s632 = smul.u32 %s25, 8
      %s633 = ssub.s32 %s632, 1
      %p634 = scmp.gt.s32.totalorder %s633, 0
      %s635 = scalar_select %p634, %s633, 0
      %s636 = sadd.s32 %s25, 1
      %s637 = smul.u32 %s636, 8
      %p638 = scmp.lt.s32.totalorder %s637, 31
      %s639 = scalar_select %p638, %s637, 31
      %p640 = scmp.lt.s32.totalorder %s24, 1
      %s641 = scalar_select %p640, %s24, 1
      %p642 = scmp.lt.s32.totalorder %s639, 31
      %s643 = scalar_select %p642, %s639, 31
      %s644 = smul.addr %s643, 4
      %s645 = smul.addr %s641, 128
      %s646 = sadd.s32 %s644, %s645
      %s647 = smul.addr %s646, 4
      %s648 = scalar_lea.vmem %s5, %s647
      %s649 = sadd.s32 %s25, 1
      %s650 = smul.u32 %s649, 8
      %p651 = scmp.lt.s32.totalorder %s650, 31
      %s652 = scalar_select %p651, %s650, 31
      %s653 = smul.u32 8, %s25
      %p654 = scmp.lt.s32.totalorder %s24, 1
      %s655 = scalar_select %p654, %s24, 1
      %p656 = scmp.lt.s32.totalorder %s653, 31
      %s657 = scalar_select %p656, %s653, 31
      %s658 = smul.addr %s657, 4
      %s659 = smul.addr %s655, 128
      %s660 = sadd.s32 %s658, %s659
      %s661 = smul.addr %s660, 4
      %s662 = scalar_lea.vmem %s9, %s661
      %s663 = smul.u32 8, %s25
      %p665 = scmp.eq.s32.totalorder %s25, 0
      %p666 = scmp.eq.s32.totalorder %s25, 3
      %v667 = vld [vmem:[%s572] sm:$0xf]
      %v668 = vld [vmem:[%s572 + $0x4] sm:$0xf]
      %v669 = vld [vmem:[%s572 + $0x8] sm:$0xf]
      %v670 = vld [vmem:[%s572 + $0xc] sm:$0xf]
      %v671 = vld [vmem:[%s572 + $0x10] sm:$0xf]
      %v672 = vld [vmem:[%s572 + $0x14] sm:$0xf]
      %v673 = vld [vmem:[%s572 + $0x18] sm:$0xf]
      %v674 = vld [vmem:[%s572 + $0x1c] sm:$0xf]
      %v675 = vld [vmem:[%s572 + $0x20] sm:$0xf]
      %v676 = vld [vmem:[%s572 + $0x24] sm:$0xf]
      %v677 = vld [vmem:[%s572 + $0x28] sm:$0xf]
      %v678 = vld [vmem:[%s572 + $0x2c] sm:$0xf]
      %v679 = vld [vmem:[%s572 + $0x30] sm:$0xf]
      %v680 = vld [vmem:[%s572 + $0x34] sm:$0xf]
      %v681 = vld [vmem:[%s572 + $0x38] sm:$0xf]
      %v682 = vld [vmem:[%s572 + $0x3c] sm:$0xf]
      %v683 = vld [vmem:[%s572 + $0x40] sm:$0xf]
      %v684 = vld [vmem:[%s572 + $0x44] sm:$0xf]
      %v685 = vld [vmem:[%s572 + $0x48] sm:$0xf]
      %v686 = vld [vmem:[%s572 + $0x4c] sm:$0xf]
      %v687 = vld [vmem:[%s572 + $0x50] sm:$0xf]
      %v688 = vld [vmem:[%s572 + $0x54] sm:$0xf]
      %v689 = vld [vmem:[%s572 + $0x58] sm:$0xf]
      %v690 = vld [vmem:[%s572 + $0x5c] sm:$0xf]
      %v691 = vld [vmem:[%s572 + $0x60] sm:$0xf]
      %v692 = vld [vmem:[%s572 + $0x64] sm:$0xf]
      %v693 = vld [vmem:[%s572 + $0x68] sm:$0xf]
      %v694 = vld [vmem:[%s572 + $0x6c] sm:$0xf]
      %v695 = vld [vmem:[%s572 + $0x70] sm:$0xf]
      %v696 = vld [vmem:[%s572 + $0x74] sm:$0xf]
      %v697 = vld [vmem:[%s572 + $0x78] sm:$0xf]
      %v698 = vld [vmem:[%s572 + $0x7c] sm:$0xf]
      %v699 = vld [vmem:[%s586] sm:$0xf]
      %v700 = vld [vmem:[%s586 + $0x4] sm:$0xf]
      %v701 = vld [vmem:[%s586 + $0x8] sm:$0xf]
      %v702 = vld [vmem:[%s586 + $0xc] sm:$0xf]
      %v703 = vld [vmem:[%s603] sm:$0xf]
      %v704 = vld [vmem:[%s603 + $0x4] sm:$0xf]
      %v705 = vld [vmem:[%s603 + $0x8] sm:$0xf]
      %v706 = vld [vmem:[%s603 + $0xc] sm:$0xf]
      %s707 = scalar_select %p665, 1, 0
      %v708 = vstv %s707
      %vm709 = vcmp.eq.s32.totalorder %v708, 1
      %v710 = vsel %vm709, 0, %v699
      %v711 = vsel %vm709, 0, %v700
      %v712 = vsel %vm709, 0, %v701
      %v713 = vsel %vm709, 0, %v702
      %s714 = scalar_select %p666, 1, 0
      %v715 = vstv %s714
      %vm716 = vcmp.eq.s32.totalorder %v715, 1
      %v717 = vsel %vm716, 0, %v703
      %v718 = vsel %vm716, 0, %v704
      %v719 = vsel %vm716, 0, %v705
      %v720 = vsel %vm716, 0, %v706
      %v761 = vunpack.c.l.b16 %v710
      %v762 = vunpack.c.l.b16 %v711
      %v763 = vunpack.c.l.b16 %v712
      %v764 = vunpack.c.l.b16 %v713
      %v765 = vunpack.c.l.b16 %v667
      %v766 = vunpack.c.l.b16 %v668
      %v767 = vunpack.c.l.b16 %v669
      %v768 = vunpack.c.l.b16 %v670
      %v769 = vunpack.c.l.b16 %v671
      %v770 = vunpack.c.l.b16 %v672
      %v771 = vunpack.c.l.b16 %v673
      %v772 = vunpack.c.l.b16 %v674
      %v773 = vunpack.c.l.b16 %v675
      %v774 = vunpack.c.l.b16 %v676
      %v775 = vunpack.c.l.b16 %v677
      %v776 = vunpack.c.l.b16 %v678
      %v777 = vunpack.c.l.b16 %v679
      %v778 = vunpack.c.l.b16 %v680
      %v779 = vunpack.c.l.b16 %v681
      %v780 = vunpack.c.l.b16 %v682
      %v781 = vunpack.c.l.b16 %v683
      %v782 = vunpack.c.l.b16 %v684
      %v783 = vunpack.c.l.b16 %v685
      %v784 = vunpack.c.l.b16 %v686
      %v785 = vunpack.c.l.b16 %v687
      %v786 = vunpack.c.l.b16 %v688
      %v787 = vunpack.c.l.b16 %v689
      %v788 = vunpack.c.l.b16 %v690
      %v789 = vunpack.c.l.b16 %v691
      %v790 = vunpack.c.l.b16 %v692
      %v791 = vunpack.c.l.b16 %v693
      %v792 = vunpack.c.l.b16 %v694
      %v793 = vunpack.c.l.b16 %v695
      %v794 = vunpack.c.l.b16 %v696
      %v795 = vunpack.c.l.b16 %v697
      %v796 = vunpack.c.l.b16 %v698
      %v797 = vunpack.c.l.b16 %v717
      %v798 = vunpack.c.l.b16 %v718
      %v799 = vunpack.c.l.b16 %v719
      %v800 = vunpack.c.l.b16 %v720
      %v801 = vpack.c.b16 %v762, %v761
      %v802 = vpack.c.b16 %v764, %v763
      %v803 = vpack.c.b16 %v766, %v765
      %v804 = vpack.c.b16 %v768, %v767
      %v805 = vpack.c.b16 %v770, %v769
      %v806 = vpack.c.b16 %v772, %v771
      %v807 = vpack.c.b16 %v774, %v773
      %v808 = vpack.c.b16 %v776, %v775
      %v809 = vpack.c.b16 %v778, %v777
      %v810 = vpack.c.b16 %v780, %v779
      %v811 = vpack.c.b16 %v782, %v781
      %v812 = vpack.c.b16 %v784, %v783
      %v813 = vpack.c.b16 %v786, %v785
      %v814 = vpack.c.b16 %v788, %v787
      %v815 = vpack.c.b16 %v790, %v789
      %v816 = vpack.c.b16 %v792, %v791
      %v817 = vpack.c.b16 %v794, %v793
      %v818 = vpack.c.b16 %v796, %v795
      %v819 = vpack.c.b16 %v798, %v797
      %v820 = vpack.c.b16 %v800, %v799
      %vm821 = vsmask.f32 256
      %v823 = vshrl.u32 %v801, 16
      %v825 = vrot.slane %v823, 7
      %v826 = vshll.u32 %v801, 16
      %v828 = vor.u32 %v825, %v826
      %v830 = vshrl.u32 %v802, 16
      %v832 = vrot.slane %v830, 7
      %v833 = vshll.u32 %v802, 16
      %v835 = vor.u32 %v832, %v833
      %v836 = vsel %vm821, %v825, %v835
      %v838 = vshrl.u32 %v803, 16
      %v840 = vrot.slane %v838, 7
      %v841 = vshll.u32 %v803, 16
      %v843 = vor.u32 %v840, %v841
      %v845 = vshrl.u32 %v804, 16
      %v847 = vrot.slane %v845, 7
      %v848 = vshll.u32 %v804, 16
      %v850 = vor.u32 %v847, %v848
      %v851 = vsel %vm821, %v840, %v850
      %v853 = vshrl.u32 %v805, 16
      %v855 = vrot.slane %v853, 7
      %v856 = vshll.u32 %v805, 16
      %v858 = vor.u32 %v855, %v856
      %v860 = vshrl.u32 %v806, 16
      %v862 = vrot.slane %v860, 7
      %v863 = vshll.u32 %v806, 16
      %v865 = vor.u32 %v862, %v863
      %v866 = vsel %vm821, %v855, %v865
      %v868 = vshrl.u32 %v807, 16
      %v870 = vrot.slane %v868, 7
      %v871 = vshll.u32 %v807, 16
      %v873 = vor.u32 %v870, %v871
      %v875 = vshrl.u32 %v808, 16
      %v877 = vrot.slane %v875, 7
      %v878 = vshll.u32 %v808, 16
      %v880 = vor.u32 %v877, %v878
      %v881 = vsel %vm821, %v870, %v880
      %v883 = vshrl.u32 %v809, 16
      %v885 = vrot.slane %v883, 7
      %v886 = vshll.u32 %v809, 16
      %v888 = vor.u32 %v885, %v886
      %v890 = vshrl.u32 %v810, 16
      %v892 = vrot.slane %v890, 7
      %v893 = vshll.u32 %v810, 16
      %v895 = vor.u32 %v892, %v893
      %v896 = vsel %vm821, %v885, %v895
      %v898 = vshrl.u32 %v811, 16
      %v900 = vrot.slane %v898, 7
      %v901 = vshll.u32 %v811, 16
      %v903 = vor.u32 %v900, %v901
      %v905 = vshrl.u32 %v812, 16
      %v907 = vrot.slane %v905, 7
      %v908 = vshll.u32 %v812, 16
      %v910 = vor.u32 %v907, %v908
      %v911 = vsel %vm821, %v900, %v910
      %v913 = vshrl.u32 %v813, 16
      %v915 = vrot.slane %v913, 7
      %v916 = vshll.u32 %v813, 16
      %v918 = vor.u32 %v915, %v916
      %v920 = vshrl.u32 %v814, 16
      %v922 = vrot.slane %v920, 7
      %v923 = vshll.u32 %v814, 16
      %v925 = vor.u32 %v922, %v923
      %v926 = vsel %vm821, %v915, %v925
      %v928 = vshrl.u32 %v815, 16
      %v930 = vrot.slane %v928, 7
      %v931 = vshll.u32 %v815, 16
      %v933 = vor.u32 %v930, %v931
      %v935 = vshrl.u32 %v816, 16
      %v937 = vrot.slane %v935, 7
      %v938 = vshll.u32 %v816, 16
      %v940 = vor.u32 %v937, %v938
      %v941 = vsel %vm821, %v930, %v940
      %v943 = vshrl.u32 %v817, 16
      %v945 = vrot.slane %v943, 7
      %v946 = vshll.u32 %v817, 16
      %v948 = vor.u32 %v945, %v946
      %v950 = vshrl.u32 %v818, 16
      %v952 = vrot.slane %v950, 7
      %v953 = vshll.u32 %v818, 16
      %v955 = vor.u32 %v952, %v953
      %v956 = vsel %vm821, %v945, %v955
      %v958 = vshrl.u32 %v819, 16
      %v960 = vrot.slane %v958, 7
      %v961 = vshll.u32 %v819, 16
      %v963 = vor.u32 %v960, %v961
      %v965 = vshrl.u32 %v820, 16
      %v967 = vrot.slane %v965, 7
      %v968 = vshll.u32 %v820, 16
      %v970 = vor.u32 %v967, %v968
      %v971 = vsel %vm821, %v960, %v970
      %vm1002 = vcmask 1040384
      %vm1003 = vmand %vm1002, %vm821
      %v1004 = vsel %vm1003, 0, %v828
      %v1005 = vsel %vm1003, 0, %v843
      %v1006 = vsel %vm1003, 0, %v858
      %v1007 = vsel %vm1003, 0, %v873
      %v1008 = vsel %vm1003, 0, %v888
      %v1009 = vsel %vm1003, 0, %v903
      %v1010 = vsel %vm1003, 0, %v918
      %v1011 = vsel %vm1003, 0, %v933
      %v1012 = vsel %vm1003, 0, %v948
      %v1013 = vsel %vm1003, 0, %v963
      %v1014 = vsel %vm1003, %v832, 0
      %v1015 = vsel %vm1003, %v847, 0
      %v1016 = vsel %vm1003, %v862, 0
      %v1017 = vsel %vm1003, %v877, 0
      %v1018 = vsel %vm1003, %v892, 0
      %v1019 = vsel %vm1003, %v907, 0
      %v1020 = vsel %vm1003, %v922, 0
      %v1021 = vsel %vm1003, %v937, 0
      %v1022 = vsel %vm1003, %v952, 0
      %v1023 = vsel %vm1003, %v967, 0
      %vm1024 = vsmask.f32 7424
      %v1026 = vshrl.u32 %v1004, 16
      %v1028 = vshll.u32 %v1004, 16
      %v1030 = vrot.slane %v1028, 1
      %v1031 = vor.u32 %v1026, %v1030
      %v1033 = vshll.u32 %v836, 16
      %v1035 = vrot.slane %v1033, 1
      %v1036 = vsel %vm1024, %v1031, %v1035
      %v1037 = vshrl.u32 %v836, 16
      %v1039 = vor.u32 %v1037, %v1035
      %v1041 = vshll.u32 %v1014, 16
      %v1043 = vrot.slane %v1041, 1
      %v1044 = vsel %vm1024, %v1039, %v1043
      %v1046 = vshrl.u32 %v1005, 16
      %v1048 = vshll.u32 %v1005, 16
      %v1050 = vrot.slane %v1048, 1
      %v1051 = vor.u32 %v1046, %v1050
      %v1053 = vshll.u32 %v851, 16
      %v1055 = vrot.slane %v1053, 1
      %v1056 = vsel %vm1024, %v1051, %v1055
      %v1057 = vshrl.u32 %v851, 16
      %v1059 = vor.u32 %v1057, %v1055
      %v1061 = vshll.u32 %v1015, 16
      %v1063 = vrot.slane %v1061, 1
      %v1064 = vsel %vm1024, %v1059, %v1063
      %v1066 = vshrl.u32 %v1006, 16
      %v1068 = vshll.u32 %v1006, 16
      %v1070 = vrot.slane %v1068, 1
      %v1071 = vor.u32 %v1066, %v1070
      %v1073 = vshll.u32 %v866, 16
      %v1075 = vrot.slane %v1073, 1
      %v1076 = vsel %vm1024, %v1071, %v1075
      %v1077 = vshrl.u32 %v866, 16
      %v1079 = vor.u32 %v1077, %v1075
      %v1081 = vshll.u32 %v1016, 16
      %v1083 = vrot.slane %v1081, 1
      %v1084 = vsel %vm1024, %v1079, %v1083
      %v1086 = vshrl.u32 %v1007, 16
      %v1088 = vshll.u32 %v1007, 16
      %v1090 = vrot.slane %v1088, 1
      %v1091 = vor.u32 %v1086, %v1090
      %v1093 = vshll.u32 %v881, 16
      %v1095 = vrot.slane %v1093, 1
      %v1096 = vsel %vm1024, %v1091, %v1095
      %v1097 = vshrl.u32 %v881, 16
      %v1099 = vor.u32 %v1097, %v1095
      %v1101 = vshll.u32 %v1017, 16
      %v1103 = vrot.slane %v1101, 1
      %v1104 = vsel %vm1024, %v1099, %v1103
      %v1106 = vshrl.u32 %v1008, 16
      %v1108 = vshll.u32 %v1008, 16
      %v1110 = vrot.slane %v1108, 1
      %v1111 = vor.u32 %v1106, %v1110
      %v1113 = vshll.u32 %v896, 16
      %v1115 = vrot.slane %v1113, 1
      %v1116 = vsel %vm1024, %v1111, %v1115
      %v1117 = vshrl.u32 %v896, 16
      %v1119 = vor.u32 %v1117, %v1115
      %v1121 = vshll.u32 %v1018, 16
      %v1123 = vrot.slane %v1121, 1
      %v1124 = vsel %vm1024, %v1119, %v1123
      %v1126 = vshrl.u32 %v1009, 16
      %v1128 = vshll.u32 %v1009, 16
      %v1130 = vrot.slane %v1128, 1
      %v1131 = vor.u32 %v1126, %v1130
      %v1133 = vshll.u32 %v911, 16
      %v1135 = vrot.slane %v1133, 1
      %v1136 = vsel %vm1024, %v1131, %v1135
      %v1137 = vshrl.u32 %v911, 16
      %v1139 = vor.u32 %v1137, %v1135
      %v1141 = vshll.u32 %v1019, 16
      %v1143 = vrot.slane %v1141, 1
      %v1144 = vsel %vm1024, %v1139, %v1143
      %v1146 = vshrl.u32 %v1010, 16
      %v1148 = vshll.u32 %v1010, 16
      %v1150 = vrot.slane %v1148, 1
      %v1151 = vor.u32 %v1146, %v1150
      %v1153 = vshll.u32 %v926, 16
      %v1155 = vrot.slane %v1153, 1
      %v1156 = vsel %vm1024, %v1151, %v1155
      %v1157 = vshrl.u32 %v926, 16
      %v1159 = vor.u32 %v1157, %v1155
      %v1161 = vshll.u32 %v1020, 16
      %v1163 = vrot.slane %v1161, 1
      %v1164 = vsel %vm1024, %v1159, %v1163
      %v1166 = vshrl.u32 %v1011, 16
      %v1168 = vshll.u32 %v1011, 16
      %v1170 = vrot.slane %v1168, 1
      %v1171 = vor.u32 %v1166, %v1170
      %v1173 = vshll.u32 %v941, 16
      %v1175 = vrot.slane %v1173, 1
      %v1176 = vsel %vm1024, %v1171, %v1175
      %v1177 = vshrl.u32 %v941, 16
      %v1179 = vor.u32 %v1177, %v1175
      %v1181 = vshll.u32 %v1021, 16
      %v1183 = vrot.slane %v1181, 1
      %v1184 = vsel %vm1024, %v1179, %v1183
      %vm1217 = vcmask 1046528
      %v1218 = vrot.slane %v1004, 1
      %v1219 = vrot.slane %v836, 1
      %v1220 = vsel %vm1217, %v1218, %v1219
      %v1221 = vrot.slane %v1014, 1
      %v1222 = vsel %vm1217, %v1219, %v1221
      %v1223 = vrot.slane %v1005, 1
      %v1224 = vrot.slane %v851, 1
      %v1225 = vsel %vm1217, %v1223, %v1224
      %v1226 = vrot.slane %v1015, 1
      %v1227 = vsel %vm1217, %v1224, %v1226
      %v1228 = vrot.slane %v1006, 1
      %v1229 = vrot.slane %v866, 1
      %v1230 = vsel %vm1217, %v1228, %v1229
      %v1231 = vrot.slane %v1016, 1
      %v1232 = vsel %vm1217, %v1229, %v1231
      %v1233 = vrot.slane %v1007, 1
      %v1234 = vrot.slane %v881, 1
      %v1235 = vsel %vm1217, %v1233, %v1234
      %v1236 = vrot.slane %v1017, 1
      %v1237 = vsel %vm1217, %v1234, %v1236
      %v1238 = vrot.slane %v1008, 1
      %v1239 = vrot.slane %v896, 1
      %v1240 = vsel %vm1217, %v1238, %v1239
      %v1241 = vrot.slane %v1018, 1
      %v1242 = vsel %vm1217, %v1239, %v1241
      %v1243 = vrot.slane %v1009, 1
      %v1244 = vrot.slane %v911, 1
      %v1245 = vsel %vm1217, %v1243, %v1244
      %v1246 = vrot.slane %v1019, 1
      %v1247 = vsel %vm1217, %v1244, %v1246
      %v1248 = vrot.slane %v1010, 1
      %v1249 = vrot.slane %v926, 1
      %v1250 = vsel %vm1217, %v1248, %v1249
      %v1251 = vrot.slane %v1020, 1
      %v1252 = vsel %vm1217, %v1249, %v1251
      %v1253 = vrot.slane %v1011, 1
      %v1254 = vrot.slane %v941, 1
      %v1255 = vsel %vm1217, %v1253, %v1254
      %v1256 = vrot.slane %v1021, 1
      %v1257 = vsel %vm1217, %v1254, %v1256
      %v1275 = vshrl.u32 %v1012, 16
      %v1277 = vshll.u32 %v1012, 16
      %v1279 = vrot.slane %v1277, 1
      %v1280 = vor.u32 %v1275, %v1279
      %v1282 = vshll.u32 %v956, 16
      %v1284 = vrot.slane %v1282, 1
      %v1285 = vsel %vm1024, %v1280, %v1284
      %v1286 = vshrl.u32 %v956, 16
      %v1288 = vor.u32 %v1286, %v1284
      %v1290 = vshll.u32 %v1022, 16
      %v1292 = vrot.slane %v1290, 1
      %v1293 = vsel %vm1024, %v1288, %v1292
      %v1298 = vrot.slane %v1012, 1
      %v1299 = vrot.slane %v956, 1
      %v1300 = vsel %vm1217, %v1298, %v1299
      %v1301 = vrot.slane %v1022, 1
      %v1302 = vsel %vm1217, %v1299, %v1301
      %v1306 = vshrl.u32 %v1013, 16
      %v1308 = vshll.u32 %v1013, 16
      %v1310 = vrot.slane %v1308, 1
      %v1311 = vor.u32 %v1306, %v1310
      %v1313 = vshll.u32 %v971, 16
      %v1315 = vrot.slane %v1313, 1
      %v1316 = vsel %vm1024, %v1311, %v1315
      %v1317 = vshrl.u32 %v971, 16
      %v1319 = vor.u32 %v1317, %v1315
      %v1321 = vshll.u32 %v1023, 16
      %v1323 = vrot.slane %v1321, 1
      %v1324 = vsel %vm1024, %v1319, %v1323
      %v1329 = vrot.slane %v1013, 1
      %v1330 = vrot.slane %v971, 1
      %v1331 = vsel %vm1217, %v1329, %v1330
      %v1332 = vrot.slane %v1023, 1
      %v1333 = vsel %vm1217, %v1330, %v1332
      %v1336 = vld [vmem:[%s617] sm:$0xf]
      %v1337 = vld [vmem:[%s617 + $0x4] sm:$0xf]
      %v1338 = vld [vmem:[%s617 + $0x8] sm:$0xf]
      %v1339 = vld [vmem:[%s617 + $0xc] sm:$0xf]
      %v1340 = vld [vmem:[%s617 + $0x10] sm:$0xf]
      %v1341 = vld [vmem:[%s617 + $0x14] sm:$0xf]
      %v1342 = vld [vmem:[%s617 + $0x18] sm:$0xf]
      %v1343 = vld [vmem:[%s617 + $0x1c] sm:$0xf]
      %v1344 = vld [vmem:[%s617 + $0x20] sm:$0xf]
      %v1345 = vld [vmem:[%s617 + $0x24] sm:$0xf]
      %v1346 = vld [vmem:[%s617 + $0x28] sm:$0xf]
      %v1347 = vld [vmem:[%s617 + $0x2c] sm:$0xf]
      %v1348 = vld [vmem:[%s617 + $0x30] sm:$0xf]
      %v1349 = vld [vmem:[%s617 + $0x34] sm:$0xf]
      %v1350 = vld [vmem:[%s617 + $0x38] sm:$0xf]
      %v1351 = vld [vmem:[%s617 + $0x3c] sm:$0xf]
      %v1352 = vld [vmem:[%s617 + $0x40] sm:$0xf]
      %v1353 = vld [vmem:[%s617 + $0x44] sm:$0xf]
      %v1354 = vld [vmem:[%s617 + $0x48] sm:$0xf]
      %v1355 = vld [vmem:[%s617 + $0x4c] sm:$0xf]
      %v1356 = vld [vmem:[%s617 + $0x50] sm:$0xf]
      %v1357 = vld [vmem:[%s617 + $0x54] sm:$0xf]
      %v1358 = vld [vmem:[%s617 + $0x58] sm:$0xf]
      %v1359 = vld [vmem:[%s617 + $0x5c] sm:$0xf]
      %v1360 = vld [vmem:[%s617 + $0x60] sm:$0xf]
      %v1361 = vld [vmem:[%s617 + $0x64] sm:$0xf]
      %v1362 = vld [vmem:[%s617 + $0x68] sm:$0xf]
      %v1363 = vld [vmem:[%s617 + $0x6c] sm:$0xf]
      %v1364 = vld [vmem:[%s617 + $0x70] sm:$0xf]
      %v1365 = vld [vmem:[%s617 + $0x74] sm:$0xf]
      %v1366 = vld [vmem:[%s617 + $0x78] sm:$0xf]
      %v1367 = vld [vmem:[%s617 + $0x7c] sm:$0xf]
      %v1368 = vld [vmem:[%s631] sm:$0xf]
      %v1369 = vld [vmem:[%s631 + $0x4] sm:$0xf]
      %v1370 = vld [vmem:[%s631 + $0x8] sm:$0xf]
      %v1371 = vld [vmem:[%s631 + $0xc] sm:$0xf]
      %v1372 = vld [vmem:[%s648] sm:$0xf]
      %v1373 = vld [vmem:[%s648 + $0x4] sm:$0xf]
      %v1374 = vld [vmem:[%s648 + $0x8] sm:$0xf]
      %v1375 = vld [vmem:[%s648 + $0xc] sm:$0xf]
      %v1376 = vsel %vm709, 0, %v1368
      %v1377 = vsel %vm709, 0, %v1369
      %v1378 = vsel %vm709, 0, %v1370
      %v1379 = vsel %vm709, 0, %v1371
      %v1380 = vsel %vm716, 0, %v1372
      %v1381 = vsel %vm716, 0, %v1373
      %v1382 = vsel %vm716, 0, %v1374
      %v1383 = vsel %vm716, 0, %v1375
      %v1424 = vunpack.c.l.b16 %v1376
      %v1425 = vunpack.c.l.b16 %v1377
      %v1426 = vunpack.c.l.b16 %v1378
      %v1427 = vunpack.c.l.b16 %v1379
      %v1428 = vunpack.c.l.b16 %v1336
      %v1429 = vunpack.c.l.b16 %v1337
      %v1430 = vunpack.c.l.b16 %v1338
      %v1431 = vunpack.c.l.b16 %v1339
      %v1432 = vunpack.c.l.b16 %v1340
      %v1433 = vunpack.c.l.b16 %v1341
      %v1434 = vunpack.c.l.b16 %v1342
      %v1435 = vunpack.c.l.b16 %v1343
      %v1436 = vunpack.c.l.b16 %v1344
      %v1437 = vunpack.c.l.b16 %v1345
      %v1438 = vunpack.c.l.b16 %v1346
      %v1439 = vunpack.c.l.b16 %v1347
      %v1440 = vunpack.c.l.b16 %v1348
      %v1441 = vunpack.c.l.b16 %v1349
      %v1442 = vunpack.c.l.b16 %v1350
      %v1443 = vunpack.c.l.b16 %v1351
      %v1444 = vunpack.c.l.b16 %v1352
      %v1445 = vunpack.c.l.b16 %v1353
      %v1446 = vunpack.c.l.b16 %v1354
      %v1447 = vunpack.c.l.b16 %v1355
      %v1448 = vunpack.c.l.b16 %v1356
      %v1449 = vunpack.c.l.b16 %v1357
      %v1450 = vunpack.c.l.b16 %v1358
      %v1451 = vunpack.c.l.b16 %v1359
      %v1452 = vunpack.c.l.b16 %v1360
      %v1453 = vunpack.c.l.b16 %v1361
      %v1454 = vunpack.c.l.b16 %v1362
      %v1455 = vunpack.c.l.b16 %v1363
      %v1456 = vunpack.c.l.b16 %v1364
      %v1457 = vunpack.c.l.b16 %v1365
      %v1458 = vunpack.c.l.b16 %v1366
      %v1459 = vunpack.c.l.b16 %v1367
      %v1460 = vunpack.c.l.b16 %v1380
      %v1461 = vunpack.c.l.b16 %v1381
      %v1462 = vunpack.c.l.b16 %v1382
      %v1463 = vunpack.c.l.b16 %v1383
      %v1464 = vpack.c.b16 %v1425, %v1424
      %v1465 = vpack.c.b16 %v1427, %v1426
      %v1466 = vpack.c.b16 %v1429, %v1428
      %v1467 = vpack.c.b16 %v1431, %v1430
      %v1468 = vpack.c.b16 %v1433, %v1432
      %v1469 = vpack.c.b16 %v1435, %v1434
      %v1470 = vpack.c.b16 %v1437, %v1436
      %v1471 = vpack.c.b16 %v1439, %v1438
      %v1472 = vpack.c.b16 %v1441, %v1440
      %v1473 = vpack.c.b16 %v1443, %v1442
      %v1474 = vpack.c.b16 %v1445, %v1444
      %v1475 = vpack.c.b16 %v1447, %v1446
      %v1476 = vpack.c.b16 %v1449, %v1448
      %v1477 = vpack.c.b16 %v1451, %v1450
      %v1478 = vpack.c.b16 %v1453, %v1452
      %v1479 = vpack.c.b16 %v1455, %v1454
      %v1480 = vpack.c.b16 %v1457, %v1456
      %v1481 = vpack.c.b16 %v1459, %v1458
      %v1482 = vpack.c.b16 %v1461, %v1460
      %v1483 = vpack.c.b16 %v1463, %v1462
      %v1485 = vshrl.u32 %v1464, 16
      %v1487 = vrot.slane %v1485, 7
      %v1488 = vshll.u32 %v1464, 16
      %v1490 = vor.u32 %v1487, %v1488
      %v1492 = vshrl.u32 %v1465, 16
      %v1494 = vrot.slane %v1492, 7
      %v1495 = vshll.u32 %v1465, 16
      %v1497 = vor.u32 %v1494, %v1495
      %v1498 = vsel %vm821, %v1487, %v1497
      %v1500 = vshrl.u32 %v1466, 16
      %v1502 = vrot.slane %v1500, 7
      %v1503 = vshll.u32 %v1466, 16
      %v1505 = vor.u32 %v1502, %v1503
      %v1507 = vshrl.u32 %v1467, 16
      %v1509 = vrot.slane %v1507, 7
      %v1510 = vshll.u32 %v1467, 16
      %v1512 = vor.u32 %v1509, %v1510
      %v1513 = vsel %vm821, %v1502, %v1512
      %v1515 = vshrl.u32 %v1468, 16
      %v1517 = vrot.slane %v1515, 7
      %v1518 = vshll.u32 %v1468, 16
      %v1520 = vor.u32 %v1517, %v1518
      %v1522 = vshrl.u32 %v1469, 16
      %v1524 = vrot.slane %v1522, 7
      %v1525 = vshll.u32 %v1469, 16
      %v1527 = vor.u32 %v1524, %v1525
      %v1528 = vsel %vm821, %v1517, %v1527
      %v1530 = vshrl.u32 %v1470, 16
      %v1532 = vrot.slane %v1530, 7
      %v1533 = vshll.u32 %v1470, 16
      %v1535 = vor.u32 %v1532, %v1533
      %v1537 = vshrl.u32 %v1471, 16
      %v1539 = vrot.slane %v1537, 7
      %v1540 = vshll.u32 %v1471, 16
      %v1542 = vor.u32 %v1539, %v1540
      %v1543 = vsel %vm821, %v1532, %v1542
      %v1545 = vshrl.u32 %v1472, 16
      %v1547 = vrot.slane %v1545, 7
      %v1548 = vshll.u32 %v1472, 16
      %v1550 = vor.u32 %v1547, %v1548
      %v1552 = vshrl.u32 %v1473, 16
      %v1554 = vrot.slane %v1552, 7
      %v1555 = vshll.u32 %v1473, 16
      %v1557 = vor.u32 %v1554, %v1555
      %v1558 = vsel %vm821, %v1547, %v1557
      %v1560 = vshrl.u32 %v1474, 16
      %v1562 = vrot.slane %v1560, 7
      %v1563 = vshll.u32 %v1474, 16
      %v1565 = vor.u32 %v1562, %v1563
      %v1567 = vshrl.u32 %v1475, 16
      %v1569 = vrot.slane %v1567, 7
      %v1570 = vshll.u32 %v1475, 16
      %v1572 = vor.u32 %v1569, %v1570
      %v1573 = vsel %vm821, %v1562, %v1572
      %v1575 = vshrl.u32 %v1476, 16
      %v1577 = vrot.slane %v1575, 7
      %v1578 = vshll.u32 %v1476, 16
      %v1580 = vor.u32 %v1577, %v1578
      %v1582 = vshrl.u32 %v1477, 16
      %v1584 = vrot.slane %v1582, 7
      %v1585 = vshll.u32 %v1477, 16
      %v1587 = vor.u32 %v1584, %v1585
      %v1588 = vsel %vm821, %v1577, %v1587
      %v1590 = vshrl.u32 %v1478, 16
      %v1592 = vrot.slane %v1590, 7
      %v1593 = vshll.u32 %v1478, 16
      %v1595 = vor.u32 %v1592, %v1593
      %v1597 = vshrl.u32 %v1479, 16
      %v1599 = vrot.slane %v1597, 7
      %v1600 = vshll.u32 %v1479, 16
      %v1602 = vor.u32 %v1599, %v1600
      %v1603 = vsel %vm821, %v1592, %v1602
      %v1605 = vshrl.u32 %v1480, 16
      %v1607 = vrot.slane %v1605, 7
      %v1608 = vshll.u32 %v1480, 16
      %v1610 = vor.u32 %v1607, %v1608
      %v1612 = vshrl.u32 %v1481, 16
      %v1614 = vrot.slane %v1612, 7
      %v1615 = vshll.u32 %v1481, 16
      %v1617 = vor.u32 %v1614, %v1615
      %v1618 = vsel %vm821, %v1607, %v1617
      %v1620 = vshrl.u32 %v1482, 16
      %v1622 = vrot.slane %v1620, 7
      %v1623 = vshll.u32 %v1482, 16
      %v1625 = vor.u32 %v1622, %v1623
      %v1627 = vshrl.u32 %v1483, 16
      %v1629 = vrot.slane %v1627, 7
      %v1630 = vshll.u32 %v1483, 16
      %v1632 = vor.u32 %v1629, %v1630
      %v1633 = vsel %vm821, %v1622, %v1632
      %v1654 = vsel %vm1003, 0, %v1490
      %v1655 = vsel %vm1003, 0, %v1505
      %v1656 = vsel %vm1003, 0, %v1520
      %v1657 = vsel %vm1003, 0, %v1535
      %v1658 = vsel %vm1003, 0, %v1550
      %v1659 = vsel %vm1003, 0, %v1565
      %v1660 = vsel %vm1003, 0, %v1580
      %v1661 = vsel %vm1003, 0, %v1595
      %v1662 = vsel %vm1003, 0, %v1610
      %v1663 = vsel %vm1003, 0, %v1625
      %v1664 = vsel %vm1003, %v1494, 0
      %v1665 = vsel %vm1003, %v1509, 0
      %v1666 = vsel %vm1003, %v1524, 0
      %v1667 = vsel %vm1003, %v1539, 0
      %v1668 = vsel %vm1003, %v1554, 0
      %v1669 = vsel %vm1003, %v1569, 0
      %v1670 = vsel %vm1003, %v1584, 0
      %v1671 = vsel %vm1003, %v1599, 0
      %v1672 = vsel %vm1003, %v1614, 0
      %v1673 = vsel %vm1003, %v1629, 0
      %v1675 = vshrl.u32 %v1654, 16
      %v1677 = vshll.u32 %v1654, 16
      %v1679 = vrot.slane %v1677, 1
      %v1680 = vor.u32 %v1675, %v1679
      %v1682 = vshll.u32 %v1498, 16
      %v1684 = vrot.slane %v1682, 1
      %v1685 = vsel %vm1024, %v1680, %v1684
      %v1686 = vshrl.u32 %v1498, 16
      %v1688 = vor.u32 %v1686, %v1684
      %v1690 = vshll.u32 %v1664, 16
      %v1692 = vrot.slane %v1690, 1
      %v1693 = vsel %vm1024, %v1688, %v1692
      %v1695 = vshrl.u32 %v1655, 16
      %v1697 = vshll.u32 %v1655, 16
      %v1699 = vrot.slane %v1697, 1
      %v1700 = vor.u32 %v1695, %v1699
      %v1702 = vshll.u32 %v1513, 16
      %v1704 = vrot.slane %v1702, 1
      %v1705 = vsel %vm1024, %v1700, %v1704
      %v1706 = vshrl.u32 %v1513, 16
      %v1708 = vor.u32 %v1706, %v1704
      %v1710 = vshll.u32 %v1665, 16
      %v1712 = vrot.slane %v1710, 1
      %v1713 = vsel %vm1024, %v1708, %v1712
      %v1715 = vshrl.u32 %v1656, 16
      %v1717 = vshll.u32 %v1656, 16
      %v1719 = vrot.slane %v1717, 1
      %v1720 = vor.u32 %v1715, %v1719
      %v1722 = vshll.u32 %v1528, 16
      %v1724 = vrot.slane %v1722, 1
      %v1725 = vsel %vm1024, %v1720, %v1724
      %v1726 = vshrl.u32 %v1528, 16
      %v1728 = vor.u32 %v1726, %v1724
      %v1730 = vshll.u32 %v1666, 16
      %v1732 = vrot.slane %v1730, 1
      %v1733 = vsel %vm1024, %v1728, %v1732
      %v1735 = vshrl.u32 %v1657, 16
      %v1737 = vshll.u32 %v1657, 16
      %v1739 = vrot.slane %v1737, 1
      %v1740 = vor.u32 %v1735, %v1739
      %v1742 = vshll.u32 %v1543, 16
      %v1744 = vrot.slane %v1742, 1
      %v1745 = vsel %vm1024, %v1740, %v1744
      %v1746 = vshrl.u32 %v1543, 16
      %v1748 = vor.u32 %v1746, %v1744
      %v1750 = vshll.u32 %v1667, 16
      %v1752 = vrot.slane %v1750, 1
      %v1753 = vsel %vm1024, %v1748, %v1752
      %v1755 = vshrl.u32 %v1658, 16
      %v1757 = vshll.u32 %v1658, 16
      %v1759 = vrot.slane %v1757, 1
      %v1760 = vor.u32 %v1755, %v1759
      %v1762 = vshll.u32 %v1558, 16
      %v1764 = vrot.slane %v1762, 1
      %v1765 = vsel %vm1024, %v1760, %v1764
      %v1766 = vshrl.u32 %v1558, 16
      %v1768 = vor.u32 %v1766, %v1764
      %v1770 = vshll.u32 %v1668, 16
      %v1772 = vrot.slane %v1770, 1
      %v1773 = vsel %vm1024, %v1768, %v1772
      %v1775 = vshrl.u32 %v1659, 16
      %v1777 = vshll.u32 %v1659, 16
      %v1779 = vrot.slane %v1777, 1
      %v1780 = vor.u32 %v1775, %v1779
      %v1782 = vshll.u32 %v1573, 16
      %v1784 = vrot.slane %v1782, 1
      %v1785 = vsel %vm1024, %v1780, %v1784
      %v1786 = vshrl.u32 %v1573, 16
      %v1788 = vor.u32 %v1786, %v1784
      %v1790 = vshll.u32 %v1669, 16
      %v1792 = vrot.slane %v1790, 1
      %v1793 = vsel %vm1024, %v1788, %v1792
      %v1795 = vshrl.u32 %v1660, 16
      %v1797 = vshll.u32 %v1660, 16
      %v1799 = vrot.slane %v1797, 1
      %v1800 = vor.u32 %v1795, %v1799
      %v1802 = vshll.u32 %v1588, 16
      %v1804 = vrot.slane %v1802, 1
      %v1805 = vsel %vm1024, %v1800, %v1804
      %v1806 = vshrl.u32 %v1588, 16
      %v1808 = vor.u32 %v1806, %v1804
      %v1810 = vshll.u32 %v1670, 16
      %v1812 = vrot.slane %v1810, 1
      %v1813 = vsel %vm1024, %v1808, %v1812
      %v1815 = vshrl.u32 %v1661, 16
      %v1817 = vshll.u32 %v1661, 16
      %v1819 = vrot.slane %v1817, 1
      %v1820 = vor.u32 %v1815, %v1819
      %v1822 = vshll.u32 %v1603, 16
      %v1824 = vrot.slane %v1822, 1
      %v1825 = vsel %vm1024, %v1820, %v1824
      %v1826 = vshrl.u32 %v1603, 16
      %v1828 = vor.u32 %v1826, %v1824
      %v1830 = vshll.u32 %v1671, 16
      %v1832 = vrot.slane %v1830, 1
      %v1833 = vsel %vm1024, %v1828, %v1832
      %v1850 = vrot.slane %v1654, 1
      %v1851 = vrot.slane %v1498, 1
      %v1852 = vsel %vm1217, %v1850, %v1851
      %v1853 = vrot.slane %v1664, 1
      %v1854 = vsel %vm1217, %v1851, %v1853
      %v1855 = vrot.slane %v1655, 1
      %v1856 = vrot.slane %v1513, 1
      %v1857 = vsel %vm1217, %v1855, %v1856
      %v1858 = vrot.slane %v1665, 1
      %v1859 = vsel %vm1217, %v1856, %v1858
      %v1860 = vrot.slane %v1656, 1
      %v1861 = vrot.slane %v1528, 1
      %v1862 = vsel %vm1217, %v1860, %v1861
      %v1863 = vrot.slane %v1666, 1
      %v1864 = vsel %vm1217, %v1861, %v1863
      %v1865 = vrot.slane %v1657, 1
      %v1866 = vrot.slane %v1543, 1
      %v1867 = vsel %vm1217, %v1865, %v1866
      %v1868 = vrot.slane %v1667, 1
      %v1869 = vsel %vm1217, %v1866, %v1868
      %v1870 = vrot.slane %v1658, 1
      %v1871 = vrot.slane %v1558, 1
      %v1872 = vsel %vm1217, %v1870, %v1871
      %v1873 = vrot.slane %v1668, 1
      %v1874 = vsel %vm1217, %v1871, %v1873
      %v1875 = vrot.slane %v1659, 1
      %v1876 = vrot.slane %v1573, 1
      %v1877 = vsel %vm1217, %v1875, %v1876
      %v1878 = vrot.slane %v1669, 1
      %v1879 = vsel %vm1217, %v1876, %v1878
      %v1880 = vrot.slane %v1660, 1
      %v1881 = vrot.slane %v1588, 1
      %v1882 = vsel %vm1217, %v1880, %v1881
      %v1883 = vrot.slane %v1670, 1
      %v1884 = vsel %vm1217, %v1881, %v1883
      %v1885 = vrot.slane %v1661, 1
      %v1886 = vrot.slane %v1603, 1
      %v1887 = vsel %vm1217, %v1885, %v1886
      %v1888 = vrot.slane %v1671, 1
      %v1889 = vsel %vm1217, %v1886, %v1888
      %v1891 = vshrl.u32 %v1662, 16
      %v1893 = vshll.u32 %v1662, 16
      %v1895 = vrot.slane %v1893, 1
      %v1896 = vor.u32 %v1891, %v1895
      %v1898 = vshll.u32 %v1618, 16
      %v1900 = vrot.slane %v1898, 1
      %v1901 = vsel %vm1024, %v1896, %v1900
      %v1902 = vshrl.u32 %v1618, 16
      %v1904 = vor.u32 %v1902, %v1900
      %v1906 = vshll.u32 %v1672, 16
      %v1908 = vrot.slane %v1906, 1
      %v1909 = vsel %vm1024, %v1904, %v1908
      %v1912 = vrot.slane %v1662, 1
      %v1913 = vrot.slane %v1618, 1
      %v1914 = vsel %vm1217, %v1912, %v1913
      %v1915 = vrot.slane %v1672, 1
      %v1916 = vsel %vm1217, %v1913, %v1915
      %v1918 = vshrl.u32 %v1663, 16
      %v1920 = vshll.u32 %v1663, 16
      %v1922 = vrot.slane %v1920, 1
      %v1923 = vor.u32 %v1918, %v1922
      %v1925 = vshll.u32 %v1633, 16
      %v1927 = vrot.slane %v1925, 1
      %v1928 = vsel %vm1024, %v1923, %v1927
      %v1929 = vshrl.u32 %v1633, 16
      %v1931 = vor.u32 %v1929, %v1927
      %v1933 = vshll.u32 %v1673, 16
      %v1935 = vrot.slane %v1933, 1
      %v1936 = vsel %vm1024, %v1931, %v1935
      %v1939 = vrot.slane %v1663, 1
      %v1940 = vrot.slane %v1633, 1
      %v1941 = vsel %vm1217, %v1939, %v1940
      %v1942 = vrot.slane %v1673, 1
      %v1943 = vsel %vm1217, %v1940, %v1942
      %1944 = vrot.lane.b32.xlu0 %v1685, 4
      %v1945 = vpop.permute.xlu0 %1944
      %1946 = vrot.lane.b32.xlu0 %v1693, 4
      %v1947 = vpop.permute.xlu0 %1946
      %1948 = vrot.lane.b32.xlu0 %v1705, 4
      %v1949 = vpop.permute.xlu0 %1948
      %1950 = vrot.lane.b32.xlu0 %v1713, 4
      %v1951 = vpop.permute.xlu0 %1950
      %1952 = vrot.lane.b32.xlu0 %v1725, 4
      %v1953 = vpop.permute.xlu0 %1952
      %1954 = vrot.lane.b32.xlu0 %v1733, 4
      %v1955 = vpop.permute.xlu0 %1954
      %1956 = vrot.lane.b32.xlu0 %v1745, 4
      %v1957 = vpop.permute.xlu0 %1956
      %1958 = vrot.lane.b32.xlu0 %v1753, 4
      %v1959 = vpop.permute.xlu0 %1958
      %1960 = vrot.lane.b32.xlu0 %v1765, 4
      %v1961 = vpop.permute.xlu0 %1960
      %1962 = vrot.lane.b32.xlu0 %v1773, 4
      %v1963 = vpop.permute.xlu0 %1962
      %1964 = vrot.lane.b32.xlu0 %v1785, 4
      %v1965 = vpop.permute.xlu0 %1964
      %1966 = vrot.lane.b32.xlu0 %v1793, 4
      %v1967 = vpop.permute.xlu0 %1966
      %1968 = vrot.lane.b32.xlu0 %v1805, 4
      %v1969 = vpop.permute.xlu0 %1968
      %1970 = vrot.lane.b32.xlu0 %v1813, 4
      %v1971 = vpop.permute.xlu0 %1970
      %1972 = vrot.lane.b32.xlu0 %v1825, 4
      %v1973 = vpop.permute.xlu0 %1972
      %1974 = vrot.lane.b32.xlu0 %v1833, 4
      %v1975 = vpop.permute.xlu0 %1974
      %1976 = vrot.lane.b32.xlu0 %v1852, 8
      %v1977 = vpop.permute.xlu0 %1976
      %1978 = vrot.lane.b32.xlu0 %v1854, 8
      %v1979 = vpop.permute.xlu0 %1978
      %1980 = vrot.lane.b32.xlu0 %v1857, 8
      %v1981 = vpop.permute.xlu0 %1980
      %1982 = vrot.lane.b32.xlu0 %v1859, 8
      %v1983 = vpop.permute.xlu0 %1982
      %1984 = vrot.lane.b32.xlu0 %v1862, 8
      %v1985 = vpop.permute.xlu0 %1984
      %1986 = vrot.lane.b32.xlu0 %v1864, 8
      %v1987 = vpop.permute.xlu0 %1986
      %1988 = vrot.lane.b32.xlu0 %v1867, 8
      %v1989 = vpop.permute.xlu0 %1988
      %1990 = vrot.lane.b32.xlu0 %v1869, 8
      %v1991 = vpop.permute.xlu0 %1990
      %1992 = vrot.lane.b32.xlu0 %v1872, 8
      %v1993 = vpop.permute.xlu0 %1992
      %1994 = vrot.lane.b32.xlu0 %v1874, 8
      %v1995 = vpop.permute.xlu0 %1994
      %1996 = vrot.lane.b32.xlu0 %v1877, 8
      %v1997 = vpop.permute.xlu0 %1996
      %1998 = vrot.lane.b32.xlu0 %v1879, 8
      %v1999 = vpop.permute.xlu0 %1998
      %2000 = vrot.lane.b32.xlu0 %v1882, 8
      %v2001 = vpop.permute.xlu0 %2000
      %2002 = vrot.lane.b32.xlu0 %v1884, 8
      %v2003 = vpop.permute.xlu0 %2002
      %2004 = vrot.lane.b32.xlu0 %v1887, 8
      %v2005 = vpop.permute.xlu0 %2004
      %2006 = vrot.lane.b32.xlu0 %v1889, 8
      %v2007 = vpop.permute.xlu0 %2006
      %2008 = vrot.lane.b32.xlu0 %v1655, 12
      %v2009 = vpop.permute.xlu0 %2008
      %2010 = vrot.lane.b32.xlu0 %v1513, 12
      %v2011 = vpop.permute.xlu0 %2010
      %2012 = vrot.lane.b32.xlu0 %v1656, 12
      %v2013 = vpop.permute.xlu0 %2012
      %2014 = vrot.lane.b32.xlu0 %v1528, 12
      %v2015 = vpop.permute.xlu0 %2014
      %2016 = vrot.lane.b32.xlu0 %v1657, 12
      %v2017 = vpop.permute.xlu0 %2016
      %2018 = vrot.lane.b32.xlu0 %v1543, 12
      %v2019 = vpop.permute.xlu0 %2018
      %2020 = vrot.lane.b32.xlu0 %v1658, 12
      %v2021 = vpop.permute.xlu0 %2020
      %2022 = vrot.lane.b32.xlu0 %v1558, 12
      %v2023 = vpop.permute.xlu0 %2022
      %2024 = vrot.lane.b32.xlu0 %v1659, 12
      %v2025 = vpop.permute.xlu0 %2024
      %2026 = vrot.lane.b32.xlu0 %v1573, 12
      %v2027 = vpop.permute.xlu0 %2026
      %2028 = vrot.lane.b32.xlu0 %v1660, 12
      %v2029 = vpop.permute.xlu0 %2028
      %2030 = vrot.lane.b32.xlu0 %v1588, 12
      %v2031 = vpop.permute.xlu0 %2030
      %2032 = vrot.lane.b32.xlu0 %v1661, 12
      %v2033 = vpop.permute.xlu0 %2032
      %2034 = vrot.lane.b32.xlu0 %v1603, 12
      %v2035 = vpop.permute.xlu0 %2034
      %2036 = vrot.lane.b32.xlu0 %v1662, 12
      %v2037 = vpop.permute.xlu0 %2036
      %2038 = vrot.lane.b32.xlu0 %v1618, 12
      %v2039 = vpop.permute.xlu0 %2038
      %2040 = vrot.lane.b32.xlu0 %v1705, 16
      %v2041 = vpop.permute.xlu0 %2040
      %2042 = vrot.lane.b32.xlu0 %v1713, 16
      %v2043 = vpop.permute.xlu0 %2042
      %2044 = vrot.lane.b32.xlu0 %v1725, 16
      %v2045 = vpop.permute.xlu0 %2044
      %2046 = vrot.lane.b32.xlu0 %v1733, 16
      %v2047 = vpop.permute.xlu0 %2046
      %2048 = vrot.lane.b32.xlu0 %v1745, 16
      %v2049 = vpop.permute.xlu0 %2048
      %2050 = vrot.lane.b32.xlu0 %v1753, 16
      %v2051 = vpop.permute.xlu0 %2050
      %2052 = vrot.lane.b32.xlu0 %v1765, 16
      %v2053 = vpop.permute.xlu0 %2052
      %2054 = vrot.lane.b32.xlu0 %v1773, 16
      %v2055 = vpop.permute.xlu0 %2054
      %2056 = vrot.lane.b32.xlu0 %v1785, 16
      %v2057 = vpop.permute.xlu0 %2056
      %2058 = vrot.lane.b32.xlu0 %v1793, 16
      %v2059 = vpop.permute.xlu0 %2058
      %2060 = vrot.lane.b32.xlu0 %v1805, 16
      %v2061 = vpop.permute.xlu0 %2060
      %2062 = vrot.lane.b32.xlu0 %v1813, 16
      %v2063 = vpop.permute.xlu0 %2062
      %2064 = vrot.lane.b32.xlu0 %v1825, 16
      %v2065 = vpop.permute.xlu0 %2064
      %2066 = vrot.lane.b32.xlu0 %v1833, 16
      %v2067 = vpop.permute.xlu0 %2066
      %2068 = vrot.lane.b32.xlu0 %v1901, 16
      %v2069 = vpop.permute.xlu0 %2068
      %2070 = vrot.lane.b32.xlu0 %v1909, 16
      %v2071 = vpop.permute.xlu0 %2070
      %2072 = vrot.lane.b32.xlu0 %v1857, 20
      %v2073 = vpop.permute.xlu0 %2072
      %2074 = vrot.lane.b32.xlu0 %v1859, 20
      %v2075 = vpop.permute.xlu0 %2074
      %2076 = vrot.lane.b32.xlu0 %v1862, 20
      %v2077 = vpop.permute.xlu0 %2076
      %2078 = vrot.lane.b32.xlu0 %v1864, 20
      %v2079 = vpop.permute.xlu0 %2078
      %2080 = vrot.lane.b32.xlu0 %v1867, 20
      %v2081 = vpop.permute.xlu0 %2080
      %2082 = vrot.lane.b32.xlu0 %v1869, 20
      %v2083 = vpop.permute.xlu0 %2082
      %2084 = vrot.lane.b32.xlu0 %v1872, 20
      %v2085 = vpop.permute.xlu0 %2084
      %2086 = vrot.lane.b32.xlu0 %v1874, 20
      %v2087 = vpop.permute.xlu0 %2086
      %2088 = vrot.lane.b32.xlu0 %v1877, 20
      %v2089 = vpop.permute.xlu0 %2088
      %2090 = vrot.lane.b32.xlu0 %v1879, 20
      %v2091 = vpop.permute.xlu0 %2090
      %2092 = vrot.lane.b32.xlu0 %v1882, 20
      %v2093 = vpop.permute.xlu0 %2092
      %2094 = vrot.lane.b32.xlu0 %v1884, 20
      %v2095 = vpop.permute.xlu0 %2094
      %2096 = vrot.lane.b32.xlu0 %v1887, 20
      %v2097 = vpop.permute.xlu0 %2096
      %2098 = vrot.lane.b32.xlu0 %v1889, 20
      %v2099 = vpop.permute.xlu0 %2098
      %2100 = vrot.lane.b32.xlu0 %v1914, 20
      %v2101 = vpop.permute.xlu0 %2100
      %2102 = vrot.lane.b32.xlu0 %v1916, 20
      %v2103 = vpop.permute.xlu0 %2102
      %2104 = vrot.lane.b32.xlu0 %v1656, 24
      %v2105 = vpop.permute.xlu0 %2104
      %2106 = vrot.lane.b32.xlu0 %v1528, 24
      %v2107 = vpop.permute.xlu0 %2106
      %2108 = vrot.lane.b32.xlu0 %v1657, 24
      %v2109 = vpop.permute.xlu0 %2108
      %2110 = vrot.lane.b32.xlu0 %v1543, 24
      %v2111 = vpop.permute.xlu0 %2110
      %2112 = vrot.lane.b32.xlu0 %v1658, 24
      %v2113 = vpop.permute.xlu0 %2112
      %2114 = vrot.lane.b32.xlu0 %v1558, 24
      %v2115 = vpop.permute.xlu0 %2114
      %2116 = vrot.lane.b32.xlu0 %v1659, 24
      %v2117 = vpop.permute.xlu0 %2116
      %2118 = vrot.lane.b32.xlu0 %v1573, 24
      %v2119 = vpop.permute.xlu0 %2118
      %2120 = vrot.lane.b32.xlu0 %v1660, 24
      %v2121 = vpop.permute.xlu0 %2120
      %2122 = vrot.lane.b32.xlu0 %v1588, 24
      %v2123 = vpop.permute.xlu0 %2122
      %2124 = vrot.lane.b32.xlu0 %v1661, 24
      %v2125 = vpop.permute.xlu0 %2124
      %2126 = vrot.lane.b32.xlu0 %v1603, 24
      %v2127 = vpop.permute.xlu0 %2126
      %2128 = vrot.lane.b32.xlu0 %v1662, 24
      %v2129 = vpop.permute.xlu0 %2128
      %2130 = vrot.lane.b32.xlu0 %v1618, 24
      %v2131 = vpop.permute.xlu0 %2130
      %2132 = vrot.lane.b32.xlu0 %v1663, 24
      %v2133 = vpop.permute.xlu0 %2132
      %2134 = vrot.lane.b32.xlu0 %v1633, 24
      %v2135 = vpop.permute.xlu0 %2134
      %vm2136 = vcmask 31744
      %v2138 = vsel %vm2136, %v1654, %v1945
      %v2140 = vsel %vm2136, %v1498, %v1947
      %v2142 = vsel %vm2136, %v1655, %v1949
      %v2144 = vsel %vm2136, %v1513, %v1951
      %v2146 = vsel %vm2136, %v1656, %v1953
      %v2148 = vsel %vm2136, %v1528, %v1955
      %v2150 = vsel %vm2136, %v1657, %v1957
      %v2152 = vsel %vm2136, %v1543, %v1959
      %v2154 = vsel %vm2136, %v1658, %v1961
      %v2156 = vsel %vm2136, %v1558, %v1963
      %v2158 = vsel %vm2136, %v1659, %v1965
      %v2160 = vsel %vm2136, %v1573, %v1967
      %v2162 = vsel %vm2136, %v1660, %v1969
      %v2164 = vsel %vm2136, %v1588, %v1971
      %v2166 = vsel %vm2136, %v1661, %v1973
      %v2168 = vsel %vm2136, %v1603, %v1975
      %vm2169 = vcmask 64512
      %v2171 = vsel %vm2169, %v2138, %v1977
      %v2173 = vsel %vm2169, %v2140, %v1979
      %v2175 = vsel %vm2169, %v2142, %v1981
      %v2177 = vsel %vm2169, %v2144, %v1983
      %v2179 = vsel %vm2169, %v2146, %v1985
      %v2181 = vsel %vm2169, %v2148, %v1987
      %v2183 = vsel %vm2169, %v2150, %v1989
      %v2185 = vsel %vm2169, %v2152, %v1991
      %v2187 = vsel %vm2169, %v2154, %v1993
      %v2189 = vsel %vm2169, %v2156, %v1995
      %v2191 = vsel %vm2169, %v2158, %v1997
      %v2193 = vsel %vm2169, %v2160, %v1999
      %v2195 = vsel %vm2169, %v2162, %v2001
      %v2197 = vsel %vm2169, %v2164, %v2003
      %v2199 = vsel %vm2169, %v2166, %v2005
      %v2201 = vsel %vm2169, %v2168, %v2007
      %vm2202 = vcmask 97280
      %v2204 = vsel %vm2202, %v2171, %v2009
      %v2206 = vsel %vm2202, %v2173, %v2011
      %v2208 = vsel %vm2202, %v2175, %v2013
      %v2210 = vsel %vm2202, %v2177, %v2015
      %v2212 = vsel %vm2202, %v2179, %v2017
      %v2214 = vsel %vm2202, %v2181, %v2019
      %v2216 = vsel %vm2202, %v2183, %v2021
      %v2218 = vsel %vm2202, %v2185, %v2023
      %v2220 = vsel %vm2202, %v2187, %v2025
      %v2222 = vsel %vm2202, %v2189, %v2027
      %v2224 = vsel %vm2202, %v2191, %v2029
      %v2226 = vsel %vm2202, %v2193, %v2031
      %v2228 = vsel %vm2202, %v2195, %v2033
      %v2230 = vsel %vm2202, %v2197, %v2035
      %v2232 = vsel %vm2202, %v2199, %v2037
      %v2234 = vsel %vm2202, %v2201, %v2039
      %vm2235 = vcmask 130048
      %v2237 = vsel %vm2235, %v2204, %v2041
      %v2239 = vsel %vm2235, %v2206, %v2043
      %v2241 = vsel %vm2235, %v2208, %v2045
      %v2243 = vsel %vm2235, %v2210, %v2047
      %v2245 = vsel %vm2235, %v2212, %v2049
      %v2247 = vsel %vm2235, %v2214, %v2051
      %v2249 = vsel %vm2235, %v2216, %v2053
      %v2251 = vsel %vm2235, %v2218, %v2055
      %v2253 = vsel %vm2235, %v2220, %v2057
      %v2255 = vsel %vm2235, %v2222, %v2059
      %v2257 = vsel %vm2235, %v2224, %v2061
      %v2259 = vsel %vm2235, %v2226, %v2063
      %v2261 = vsel %vm2235, %v2228, %v2065
      %v2263 = vsel %vm2235, %v2230, %v2067
      %v2265 = vsel %vm2235, %v2232, %v2069
      %v2267 = vsel %vm2235, %v2234, %v2071
      %vm2268 = vcmask 162816
      %v2270 = vsel %vm2268, %v2237, %v2073
      %v2272 = vsel %vm2268, %v2239, %v2075
      %v2274 = vsel %vm2268, %v2241, %v2077
      %v2276 = vsel %vm2268, %v2243, %v2079
      %v2278 = vsel %vm2268, %v2245, %v2081
      %v2280 = vsel %vm2268, %v2247, %v2083
      %v2282 = vsel %vm2268, %v2249, %v2085
      %v2284 = vsel %vm2268, %v2251, %v2087
      %v2286 = vsel %vm2268, %v2253, %v2089
      %v2288 = vsel %vm2268, %v2255, %v2091
      %v2290 = vsel %vm2268, %v2257, %v2093
      %v2292 = vsel %vm2268, %v2259, %v2095
      %v2294 = vsel %vm2268, %v2261, %v2097
      %v2296 = vsel %vm2268, %v2263, %v2099
      %v2298 = vsel %vm2268, %v2265, %v2101
      %v2300 = vsel %vm2268, %v2267, %v2103
      %vm2301 = vcmask 195584
      %v2303 = vsel %vm2301, %v2270, %v2105
      %v2305 = vsel %vm2301, %v2272, %v2107
      %v2307 = vsel %vm2301, %v2274, %v2109
      %v2309 = vsel %vm2301, %v2276, %v2111
      %v2311 = vsel %vm2301, %v2278, %v2113
      %v2313 = vsel %vm2301, %v2280, %v2115
      %v2315 = vsel %vm2301, %v2282, %v2117
      %v2317 = vsel %vm2301, %v2284, %v2119
      %v2319 = vsel %vm2301, %v2286, %v2121
      %v2321 = vsel %vm2301, %v2288, %v2123
      %v2323 = vsel %vm2301, %v2290, %v2125
      %v2325 = vsel %vm2301, %v2292, %v2127
      %v2327 = vsel %vm2301, %v2294, %v2129
      %v2329 = vsel %vm2301, %v2296, %v2131
      %v2331 = vsel %vm2301, %v2298, %v2133
      %v2333 = vsel %vm2301, %v2300, %v2135
      %2334 = vrot.lane.b32.xlu0 %v1862, 4
      %v2335 = vpop.permute.xlu0 %2334
      %2336 = vrot.lane.b32.xlu0 %v1864, 4
      %v2337 = vpop.permute.xlu0 %2336
      %2338 = vrot.lane.b32.xlu0 %v1867, 4
      %v2339 = vpop.permute.xlu0 %2338
      %2340 = vrot.lane.b32.xlu0 %v1869, 4
      %v2341 = vpop.permute.xlu0 %2340
      %2342 = vrot.lane.b32.xlu0 %v1872, 4
      %v2343 = vpop.permute.xlu0 %2342
      %2344 = vrot.lane.b32.xlu0 %v1874, 4
      %v2345 = vpop.permute.xlu0 %2344
      %2346 = vrot.lane.b32.xlu0 %v1877, 4
      %v2347 = vpop.permute.xlu0 %2346
      %2348 = vrot.lane.b32.xlu0 %v1879, 4
      %v2349 = vpop.permute.xlu0 %2348
      %2350 = vrot.lane.b32.xlu0 %v1882, 4
      %v2351 = vpop.permute.xlu0 %2350
      %2352 = vrot.lane.b32.xlu0 %v1884, 4
      %v2353 = vpop.permute.xlu0 %2352
      %2354 = vrot.lane.b32.xlu0 %v1887, 4
      %v2355 = vpop.permute.xlu0 %2354
      %2356 = vrot.lane.b32.xlu0 %v1889, 4
      %v2357 = vpop.permute.xlu0 %2356
      %2358 = vrot.lane.b32.xlu0 %v1914, 4
      %v2359 = vpop.permute.xlu0 %2358
      %2360 = vrot.lane.b32.xlu0 %v1916, 4
      %v2361 = vpop.permute.xlu0 %2360
      %2362 = vrot.lane.b32.xlu0 %v1941, 4
      %v2363 = vpop.permute.xlu0 %2362
      %2364 = vrot.lane.b32.xlu0 %v1943, 4
      %v2365 = vpop.permute.xlu0 %2364
      %v2368 = vsel %vm2136, %v1725, %v2335
      %v2371 = vsel %vm2136, %v1733, %v2337
      %v2374 = vsel %vm2136, %v1745, %v2339
      %v2377 = vsel %vm2136, %v1753, %v2341
      %v2380 = vsel %vm2136, %v1765, %v2343
      %v2383 = vsel %vm2136, %v1773, %v2345
      %v2386 = vsel %vm2136, %v1785, %v2347
      %v2389 = vsel %vm2136, %v1793, %v2349
      %v2392 = vsel %vm2136, %v1805, %v2351
      %v2395 = vsel %vm2136, %v1813, %v2353
      %v2398 = vsel %vm2136, %v1825, %v2355
      %v2401 = vsel %vm2136, %v1833, %v2357
      %v2404 = vsel %vm2136, %v1901, %v2359
      %v2407 = vsel %vm2136, %v1909, %v2361
      %v2410 = vsel %vm2136, %v1928, %v2363
      %v2413 = vsel %vm2136, %v1936, %v2365
      %2430 = vrot.lane.b32.xlu0 %v2368, 28
      %v2431 = vpop.permute.xlu0 %2430
      %2432 = vrot.lane.b32.xlu0 %v2371, 28
      %v2433 = vpop.permute.xlu0 %2432
      %2434 = vrot.lane.b32.xlu0 %v2374, 28
      %v2435 = vpop.permute.xlu0 %2434
      %2436 = vrot.lane.b32.xlu0 %v2377, 28
      %v2437 = vpop.permute.xlu0 %2436
      %2438 = vrot.lane.b32.xlu0 %v2380, 28
      %v2439 = vpop.permute.xlu0 %2438
      %2440 = vrot.lane.b32.xlu0 %v2383, 28
      %v2441 = vpop.permute.xlu0 %2440
      %2442 = vrot.lane.b32.xlu0 %v2386, 28
      %v2443 = vpop.permute.xlu0 %2442
      %2444 = vrot.lane.b32.xlu0 %v2389, 28
      %v2445 = vpop.permute.xlu0 %2444
      %2446 = vrot.lane.b32.xlu0 %v2392, 28
      %v2447 = vpop.permute.xlu0 %2446
      %2448 = vrot.lane.b32.xlu0 %v2395, 28
      %v2449 = vpop.permute.xlu0 %2448
      %2450 = vrot.lane.b32.xlu0 %v2398, 28
      %v2451 = vpop.permute.xlu0 %2450
      %2452 = vrot.lane.b32.xlu0 %v2401, 28
      %v2453 = vpop.permute.xlu0 %2452
      %2454 = vrot.lane.b32.xlu0 %v2404, 28
      %v2455 = vpop.permute.xlu0 %2454
      %2456 = vrot.lane.b32.xlu0 %v2407, 28
      %v2457 = vpop.permute.xlu0 %2456
      %2458 = vrot.lane.b32.xlu0 %v2410, 28
      %v2459 = vpop.permute.xlu0 %2458
      %2460 = vrot.lane.b32.xlu0 %v2413, 28
      %v2461 = vpop.permute.xlu0 %2460
      %vm2462 = vcmask 228352
      %v2464 = vsel %vm2462, %v2303, %v2431
      %v2466 = vsel %vm2462, %v2305, %v2433
      %v2468 = vsel %vm2462, %v2307, %v2435
      %v2470 = vsel %vm2462, %v2309, %v2437
      %v2472 = vsel %vm2462, %v2311, %v2439
      %v2474 = vsel %vm2462, %v2313, %v2441
      %v2476 = vsel %vm2462, %v2315, %v2443
      %v2478 = vsel %vm2462, %v2317, %v2445
      %v2480 = vsel %vm2462, %v2319, %v2447
      %v2482 = vsel %vm2462, %v2321, %v2449
      %v2484 = vsel %vm2462, %v2323, %v2451
      %v2486 = vsel %vm2462, %v2325, %v2453
      %v2488 = vsel %vm2462, %v2327, %v2455
      %v2490 = vsel %vm2462, %v2329, %v2457
      %v2492 = vsel %vm2462, %v2331, %v2459
      %v2494 = vsel %vm2462, %v2333, %v2461
      %v2495 = vld [vmem:[%s6] sm:$0xf]
      %v2496 = vld [vmem:[%s6 + $0x4] sm:$0xf]
      %v2497 = vld [vmem:[%s6 + $0x8] sm:$0xf]
      %v2498 = vld [vmem:[%s6 + $0xc] sm:$0xf]
      %v2499 = vld [vmem:[%s6 + $0x10] sm:$0xf]
      %v2500 = vld [vmem:[%s6 + $0x14] sm:$0xf]
      %v2501 = vld [vmem:[%s6 + $0x18] sm:$0xf]
      %v2502 = vld [vmem:[%s6 + $0x1c] sm:$0xf]
      %v2503 = vld [vmem:[%s6 + $0x20] sm:$0xf]
      %v2504 = vld [vmem:[%s6 + $0x24] sm:$0xf]
      %v2505 = vld [vmem:[%s6 + $0x28] sm:$0xf]
      %v2506 = vld [vmem:[%s6 + $0x2c] sm:$0xf]
      %v2507 = vld [vmem:[%s6 + $0x30] sm:$0xf]
      %v2508 = vld [vmem:[%s6 + $0x34] sm:$0xf]
      %v2509 = vld [vmem:[%s6 + $0x38] sm:$0xf]
      %v2510 = vld [vmem:[%s6 + $0x3c] sm:$0xf]
      %v2511 = vld [vmem:[%s6 + $0x40] sm:$0xf]
      %v2512 = vld [vmem:[%s6 + $0x44] sm:$0xf]
      %v2513 = vld [vmem:[%s6 + $0x48] sm:$0xf]
      %v2514 = vld [vmem:[%s6 + $0x4c] sm:$0xf]
      %v2515 = vld [vmem:[%s6 + $0x50] sm:$0xf]
      %v2516 = vld [vmem:[%s6 + $0x54] sm:$0xf]
      %v2517 = vld [vmem:[%s6 + $0x58] sm:$0xf]
      %v2518 = vld [vmem:[%s6 + $0x5c] sm:$0xf]
      %v2519 = vld [vmem:[%s6 + $0x60] sm:$0xf]
      %v2520 = vld [vmem:[%s6 + $0x64] sm:$0xf]
      %v2521 = vld [vmem:[%s6 + $0x68] sm:$0xf]
      %v2522 = vld [vmem:[%s6 + $0x6c] sm:$0xf]
      %v2523 = vld [vmem:[%s6 + $0x70] sm:$0xf]
      %v2524 = vld [vmem:[%s6 + $0x74] sm:$0xf]
      %v2525 = vld [vmem:[%s6 + $0x78] sm:$0xf]
      %v2526 = vld [vmem:[%s6 + $0x7c] sm:$0xf]
      %v2527 = vld [vmem:[%s6 + $0x80] sm:$0xf]
      %v2528 = vld [vmem:[%s6 + $0x84] sm:$0xf]
      %v2529 = vld [vmem:[%s6 + $0x88] sm:$0xf]
      %v2530 = vld [vmem:[%s6 + $0x8c] sm:$0xf]
      %v2531 = vld [vmem:[%s6 + $0x90] sm:$0xf]
      %v2532 = vld [vmem:[%s6 + $0x94] sm:$0xf]
      %v2533 = vld [vmem:[%s6 + $0x98] sm:$0xf]
      %v2534 = vld [vmem:[%s6 + $0x9c] sm:$0xf]
      %v2535 = vld [vmem:[%s6 + $0xa0] sm:$0xf]
      %v2536 = vld [vmem:[%s6 + $0xa4] sm:$0xf]
      %v2537 = vld [vmem:[%s6 + $0xa8] sm:$0xf]
      %v2538 = vld [vmem:[%s6 + $0xac] sm:$0xf]
      %v2539 = vld [vmem:[%s6 + $0xb0] sm:$0xf]
      %v2540 = vld [vmem:[%s6 + $0xb4] sm:$0xf]
      %v2541 = vld [vmem:[%s6 + $0xb8] sm:$0xf]
      %v2542 = vld [vmem:[%s6 + $0xbc] sm:$0xf]
      %v2543 = vld [vmem:[%s6 + $0xc0] sm:$0xf]
      %v2544 = vld [vmem:[%s6 + $0xc4] sm:$0xf]
      %v2545 = vld [vmem:[%s6 + $0xc8] sm:$0xf]
      %v2546 = vld [vmem:[%s6 + $0xcc] sm:$0xf]
      %v2547 = vld [vmem:[%s6 + $0xd0] sm:$0xf]
      %v2548 = vld [vmem:[%s6 + $0xd4] sm:$0xf]
      %v2549 = vld [vmem:[%s6 + $0xd8] sm:$0xf]
      %v2550 = vld [vmem:[%s6 + $0xdc] sm:$0xf]
      %v2551 = vld [vmem:[%s6 + $0xe0] sm:$0xf]
      %v2552 = vld [vmem:[%s6 + $0xe4] sm:$0xf]
      %v2553 = vld [vmem:[%s6 + $0xe8] sm:$0xf]
      %v2554 = vld [vmem:[%s6 + $0xec] sm:$0xf]
      %v2555 = vld [vmem:[%s6 + $0xf0] sm:$0xf]
      %v2556 = vld [vmem:[%s6 + $0xf4] sm:$0xf]
      %v2557 = vld [vmem:[%s6 + $0xf8] sm:$0xf]
      %v2558 = vld [vmem:[%s6 + $0xfc] sm:$0xf]
      %v2559 = vld [vmem:[%s6 + $0x100] sm:$0xf]
      %v2560 = vld [vmem:[%s6 + $0x104] sm:$0xf]
      %v2561 = vld [vmem:[%s6 + $0x108] sm:$0xf]
      %v2562 = vld [vmem:[%s6 + $0x10c] sm:$0xf]
      %v2563 = vld [vmem:[%s6 + $0x110] sm:$0xf]
      %v2564 = vld [vmem:[%s6 + $0x114] sm:$0xf]
      %v2565 = vld [vmem:[%s6 + $0x118] sm:$0xf]
      %v2566 = vld [vmem:[%s6 + $0x11c] sm:$0xf]
      %v2567 = vld [vmem:[%s6 + $0x120] sm:$0xf]
      %v2568 = vld [vmem:[%s6 + $0x124] sm:$0xf]
      %v2569 = vld [vmem:[%s6 + $0x128] sm:$0xf]
      %v2570 = vld [vmem:[%s6 + $0x12c] sm:$0xf]
      %v2571 = vld [vmem:[%s6 + $0x130] sm:$0xf]
      %v2572 = vld [vmem:[%s6 + $0x134] sm:$0xf]
      %v2573 = vld [vmem:[%s6 + $0x138] sm:$0xf]
      %v2574 = vld [vmem:[%s6 + $0x13c] sm:$0xf]
      %v2575 = vld [vmem:[%s6 + $0x140] sm:$0xf]
      %v2576 = vld [vmem:[%s6 + $0x144] sm:$0xf]
      %v2577 = vld [vmem:[%s6 + $0x148] sm:$0xf]
      %v2578 = vld [vmem:[%s6 + $0x14c] sm:$0xf]
      %v2579 = vld [vmem:[%s6 + $0x150] sm:$0xf]
      %v2580 = vld [vmem:[%s6 + $0x154] sm:$0xf]
      %v2581 = vld [vmem:[%s6 + $0x158] sm:$0xf]
      %v2582 = vld [vmem:[%s6 + $0x15c] sm:$0xf]
      %v2583 = vld [vmem:[%s6 + $0x160] sm:$0xf]
      %v2584 = vld [vmem:[%s6 + $0x164] sm:$0xf]
      %v2585 = vld [vmem:[%s6 + $0x168] sm:$0xf]
      %v2586 = vld [vmem:[%s6 + $0x16c] sm:$0xf]
      %v2587 = vld [vmem:[%s6 + $0x170] sm:$0xf]
      %v2588 = vld [vmem:[%s6 + $0x174] sm:$0xf]
      %v2589 = vld [vmem:[%s6 + $0x178] sm:$0xf]
      %v2590 = vld [vmem:[%s6 + $0x17c] sm:$0xf]
      %v2591 = vld [vmem:[%s6 + $0x180] sm:$0xf]
      %v2592 = vld [vmem:[%s6 + $0x184] sm:$0xf]
      %v2593 = vld [vmem:[%s6 + $0x188] sm:$0xf]
      %v2594 = vld [vmem:[%s6 + $0x18c] sm:$0xf]
      %v2595 = vld [vmem:[%s6 + $0x190] sm:$0xf]
      %v2596 = vld [vmem:[%s6 + $0x194] sm:$0xf]
      %v2597 = vld [vmem:[%s6 + $0x198] sm:$0xf]
      %v2598 = vld [vmem:[%s6 + $0x19c] sm:$0xf]
      %v2599 = vld [vmem:[%s6 + $0x1a0] sm:$0xf]
      %v2600 = vld [vmem:[%s6 + $0x1a4] sm:$0xf]
      %v2601 = vld [vmem:[%s6 + $0x1a8] sm:$0xf]
      %v2602 = vld [vmem:[%s6 + $0x1ac] sm:$0xf]
      %v2603 = vld [vmem:[%s6 + $0x1b0] sm:$0xf]
      %v2604 = vld [vmem:[%s6 + $0x1b4] sm:$0xf]
      %v2605 = vld [vmem:[%s6 + $0x1b8] sm:$0xf]
      %v2606 = vld [vmem:[%s6 + $0x1bc] sm:$0xf]
      %v2607 = vld [vmem:[%s6 + $0x1c0] sm:$0xf]
      %v2608 = vld [vmem:[%s6 + $0x1c4] sm:$0xf]
      %v2609 = vld [vmem:[%s6 + $0x1c8] sm:$0xf]
      %v2610 = vld [vmem:[%s6 + $0x1cc] sm:$0xf]
      %v2611 = vld [vmem:[%s6 + $0x1d0] sm:$0xf]
      %v2612 = vld [vmem:[%s6 + $0x1d4] sm:$0xf]
      %v2613 = vld [vmem:[%s6 + $0x1d8] sm:$0xf]
      %v2614 = vld [vmem:[%s6 + $0x1dc] sm:$0xf]
      %v2615 = vld [vmem:[%s6 + $0x1e0] sm:$0xf]
      %v2616 = vld [vmem:[%s6 + $0x1e4] sm:$0xf]
      %v2617 = vld [vmem:[%s6 + $0x1e8] sm:$0xf]
      %v2618 = vld [vmem:[%s6 + $0x1ec] sm:$0xf]
      %v2619 = vld [vmem:[%s6 + $0x1f0] sm:$0xf]
      %v2620 = vld [vmem:[%s6 + $0x1f4] sm:$0xf]
      %v2621 = vld [vmem:[%s6 + $0x1f8] sm:$0xf]
      %v2622 = vld [vmem:[%s6 + $0x1fc] sm:$0xf]
      %v2623 = vld [vmem:[%s6 + $0x200] sm:$0xf]
      %v2624 = vld [vmem:[%s6 + $0x204] sm:$0xf]
      %v2625 = vld [vmem:[%s6 + $0x208] sm:$0xf]
      %v2626 = vld [vmem:[%s6 + $0x20c] sm:$0xf]
      %v2627 = vld [vmem:[%s6 + $0x210] sm:$0xf]
      %v2628 = vld [vmem:[%s6 + $0x214] sm:$0xf]
      %v2629 = vld [vmem:[%s6 + $0x218] sm:$0xf]
      %v2630 = vld [vmem:[%s6 + $0x21c] sm:$0xf]
      %v2631 = vld [vmem:[%s6 + $0x220] sm:$0xf]
      %v2632 = vld [vmem:[%s6 + $0x224] sm:$0xf]
      %v2633 = vld [vmem:[%s6 + $0x228] sm:$0xf]
      %v2634 = vld [vmem:[%s6 + $0x22c] sm:$0xf]
      %v2635 = vld [vmem:[%s6 + $0x230] sm:$0xf]
      %v2636 = vld [vmem:[%s6 + $0x234] sm:$0xf]
      %v2637 = vld [vmem:[%s6 + $0x238] sm:$0xf]
      %v2638 = vld [vmem:[%s6 + $0x23c] sm:$0xf]
      %v2639 = vld [vmem:[%s6 + $0x240] sm:$0xf]
      %v2640 = vld [vmem:[%s6 + $0x244] sm:$0xf]
      %v2641 = vld [vmem:[%s6 + $0x248] sm:$0xf]
      %v2642 = vld [vmem:[%s6 + $0x24c] sm:$0xf]
      %v2643 = vld [vmem:[%s6 + $0x250] sm:$0x3]
      %v2793 = vunpack.c.l.b16 %v2495
      %v2794 = vunpack.c.l.b16 %v2496
      %v2795 = vunpack.c.l.b16 %v2497
      %v2796 = vunpack.c.l.b16 %v2498
      %v2797 = vunpack.c.l.b16 %v2499
      %v2798 = vunpack.c.l.b16 %v2500
      %v2799 = vunpack.c.l.b16 %v2501
      %v2800 = vunpack.c.l.b16 %v2502
      %v2801 = vunpack.c.l.b16 %v2503
      %v2802 = vunpack.c.l.b16 %v2504
      %v2803 = vunpack.c.l.b16 %v2505
      %v2804 = vunpack.c.l.b16 %v2506
      %v2805 = vunpack.c.l.b16 %v2507
      %v2806 = vunpack.c.l.b16 %v2508
      %v2807 = vunpack.c.l.b16 %v2509
      %v2808 = vunpack.c.l.b16 %v2510
      %v2809 = vunpack.c.l.b16 %v2511
      %v2810 = vunpack.c.l.b16 %v2512
      %v2811 = vunpack.c.l.b16 %v2513
      %v2812 = vunpack.c.l.b16 %v2514
      %v2813 = vunpack.c.l.b16 %v2515
      %v2814 = vunpack.c.l.b16 %v2516
      %v2815 = vunpack.c.l.b16 %v2517
      %v2816 = vunpack.c.l.b16 %v2518
      %v2817 = vunpack.c.l.b16 %v2519
      %v2818 = vunpack.c.l.b16 %v2520
      %v2819 = vunpack.c.l.b16 %v2521
      %v2820 = vunpack.c.l.b16 %v2522
      %v2821 = vunpack.c.l.b16 %v2523
      %v2822 = vunpack.c.l.b16 %v2524
      %v2823 = vunpack.c.l.b16 %v2525
      %v2824 = vunpack.c.l.b16 %v2526
      %v2825 = vunpack.c.l.b16 %v2527
      %v2826 = vunpack.c.l.b16 %v2528
      %v2827 = vunpack.c.l.b16 %v2529
      %v2828 = vunpack.c.l.b16 %v2530
      %v2829 = vunpack.c.l.b16 %v2531
      %v2830 = vunpack.c.l.b16 %v2532
      %v2831 = vunpack.c.l.b16 %v2533
      %v2832 = vunpack.c.l.b16 %v2534
      %v2833 = vunpack.c.l.b16 %v2535
      %v2834 = vunpack.c.l.b16 %v2536
      %v2835 = vunpack.c.l.b16 %v2537
      %v2836 = vunpack.c.l.b16 %v2538
      %v2837 = vunpack.c.l.b16 %v2539
      %v2838 = vunpack.c.l.b16 %v2540
      %v2839 = vunpack.c.l.b16 %v2541
      %v2840 = vunpack.c.l.b16 %v2542
      %v2841 = vunpack.c.l.b16 %v2543
      %v2842 = vunpack.c.l.b16 %v2544
      %v2843 = vunpack.c.l.b16 %v2545
      %v2844 = vunpack.c.l.b16 %v2546
      %v2845 = vunpack.c.l.b16 %v2547
      %v2846 = vunpack.c.l.b16 %v2548
      %v2847 = vunpack.c.l.b16 %v2549
      %v2848 = vunpack.c.l.b16 %v2550
      %v2849 = vunpack.c.l.b16 %v2551
      %v2850 = vunpack.c.l.b16 %v2552
      %v2851 = vunpack.c.l.b16 %v2553
      %v2852 = vunpack.c.l.b16 %v2554
      %v2853 = vunpack.c.l.b16 %v2555
      %v2854 = vunpack.c.l.b16 %v2556
      %v2855 = vunpack.c.l.b16 %v2557
      %v2856 = vunpack.c.l.b16 %v2558
      %v2857 = vunpack.c.l.b16 %v2559
      %v2858 = vunpack.c.l.b16 %v2560
      %v2859 = vunpack.c.l.b16 %v2561
      %v2860 = vunpack.c.l.b16 %v2562
      %v2861 = vunpack.c.l.b16 %v2563
      %v2862 = vunpack.c.l.b16 %v2564
      %v2863 = vunpack.c.l.b16 %v2565
      %v2864 = vunpack.c.l.b16 %v2566
      %v2865 = vunpack.c.l.b16 %v2567
      %v2866 = vunpack.c.l.b16 %v2568
      %v2867 = vunpack.c.l.b16 %v2569
      %v2868 = vunpack.c.l.b16 %v2570
      %v2869 = vunpack.c.l.b16 %v2571
      %v2870 = vunpack.c.l.b16 %v2572
      %v2871 = vunpack.c.l.b16 %v2573
      %v2872 = vunpack.c.l.b16 %v2574
      %v2873 = vunpack.c.l.b16 %v2575
      %v2874 = vunpack.c.l.b16 %v2576
      %v2875 = vunpack.c.l.b16 %v2577
      %v2876 = vunpack.c.l.b16 %v2578
      %v2877 = vunpack.c.l.b16 %v2579
      %v2878 = vunpack.c.l.b16 %v2580
      %v2879 = vunpack.c.l.b16 %v2581
      %v2880 = vunpack.c.l.b16 %v2582
      %v2881 = vunpack.c.l.b16 %v2583
      %v2882 = vunpack.c.l.b16 %v2584
      %v2883 = vunpack.c.l.b16 %v2585
      %v2884 = vunpack.c.l.b16 %v2586
      %v2885 = vunpack.c.l.b16 %v2587
      %v2886 = vunpack.c.l.b16 %v2588
      %v2887 = vunpack.c.l.b16 %v2589
      %v2888 = vunpack.c.l.b16 %v2590
      %v2889 = vunpack.c.l.b16 %v2591
      %v2890 = vunpack.c.l.b16 %v2592
      %v2891 = vunpack.c.l.b16 %v2593
      %v2892 = vunpack.c.l.b16 %v2594
      %v2893 = vunpack.c.l.b16 %v2595
      %v2894 = vunpack.c.l.b16 %v2596
      %v2895 = vunpack.c.l.b16 %v2597
      %v2896 = vunpack.c.l.b16 %v2598
      %v2897 = vunpack.c.l.b16 %v2599
      %v2898 = vunpack.c.l.b16 %v2600
      %v2899 = vunpack.c.l.b16 %v2601
      %v2900 = vunpack.c.l.b16 %v2602
      %v2901 = vunpack.c.l.b16 %v2603
      %v2902 = vunpack.c.l.b16 %v2604
      %v2903 = vunpack.c.l.b16 %v2605
      %v2904 = vunpack.c.l.b16 %v2606
      %v2905 = vunpack.c.l.b16 %v2607
      %v2906 = vunpack.c.l.b16 %v2608
      %v2907 = vunpack.c.l.b16 %v2609
      %v2908 = vunpack.c.l.b16 %v2610
      %v2909 = vunpack.c.l.b16 %v2611
      %v2910 = vunpack.c.l.b16 %v2612
      %v2911 = vunpack.c.l.b16 %v2613
      %v2912 = vunpack.c.l.b16 %v2614
      %v2913 = vunpack.c.l.b16 %v2615
      %v2914 = vunpack.c.l.b16 %v2616
      %v2915 = vunpack.c.l.b16 %v2617
      %v2916 = vunpack.c.l.b16 %v2618
      %v2917 = vunpack.c.l.b16 %v2619
      %v2918 = vunpack.c.l.b16 %v2620
      %v2919 = vunpack.c.l.b16 %v2621
      %v2920 = vunpack.c.l.b16 %v2622
      %v2921 = vunpack.c.l.b16 %v2623
      %v2922 = vunpack.c.l.b16 %v2624
      %v2923 = vunpack.c.l.b16 %v2625
      %v2924 = vunpack.c.l.b16 %v2626
      %v2925 = vunpack.c.l.b16 %v2627
      %v2926 = vunpack.c.l.b16 %v2628
      %v2927 = vunpack.c.l.b16 %v2629
      %v2928 = vunpack.c.l.b16 %v2630
      %v2929 = vunpack.c.l.b16 %v2631
      %v2930 = vunpack.c.l.b16 %v2632
      %v2931 = vunpack.c.l.b16 %v2633
      %v2932 = vunpack.c.l.b16 %v2634
      %v2933 = vunpack.c.l.b16 %v2635
      %v2934 = vunpack.c.l.b16 %v2636
      %v2935 = vunpack.c.l.b16 %v2637
      %v2936 = vunpack.c.l.b16 %v2638
      %v2937 = vunpack.c.l.b16 %v2639
      %v2938 = vunpack.c.l.b16 %v2640
      %v2939 = vunpack.c.l.b16 %v2641
      %v2940 = vunpack.c.l.b16 %v2642
      %v2941 = vunpack.c.l.b16 %v2643
      %v2942 = vpack.c.b16 %v2794, %v2793
      %v2943 = vpack.c.b16 %v2796, %v2795
      %v2944 = vpack.c.b16 %v2798, %v2797
      %v2945 = vpack.c.b16 %v2800, %v2799
      %v2946 = vpack.c.b16 %v2802, %v2801
      %v2947 = vpack.c.b16 %v2804, %v2803
      %v2948 = vpack.c.b16 %v2806, %v2805
      %v2949 = vpack.c.b16 %v2808, %v2807
      %v2950 = vpack.c.b16 %v2810, %v2809
      %v2951 = vpack.c.b16 %v2812, %v2811
      %v2952 = vpack.c.b16 %v2814, %v2813
      %v2953 = vpack.c.b16 %v2816, %v2815
      %v2954 = vpack.c.b16 %v2818, %v2817
      %v2955 = vpack.c.b16 %v2820, %v2819
      %v2956 = vpack.c.b16 %v2822, %v2821
      %v2957 = vpack.c.b16 %v2824, %v2823
      %v2958 = vpack.c.b16 %v2826, %v2825
      %v2959 = vpack.c.b16 %v2828, %v2827
      %v2960 = vpack.c.b16 %v2830, %v2829
      %v2961 = vpack.c.b16 %v2832, %v2831
      %v2962 = vpack.c.b16 %v2834, %v2833
      %v2963 = vpack.c.b16 %v2836, %v2835
      %v2964 = vpack.c.b16 %v2838, %v2837
      %v2965 = vpack.c.b16 %v2840, %v2839
      %v2966 = vpack.c.b16 %v2842, %v2841
      %v2967 = vpack.c.b16 %v2844, %v2843
      %v2968 = vpack.c.b16 %v2846, %v2845
      %v2969 = vpack.c.b16 %v2848, %v2847
      %v2970 = vpack.c.b16 %v2850, %v2849
      %v2971 = vpack.c.b16 %v2852, %v2851
      %v2972 = vpack.c.b16 %v2854, %v2853
      %v2973 = vpack.c.b16 %v2856, %v2855
      %v2974 = vpack.c.b16 %v2858, %v2857
      %v2975 = vpack.c.b16 %v2860, %v2859
      %v2976 = vpack.c.b16 %v2862, %v2861
      %v2977 = vpack.c.b16 %v2864, %v2863
      %v2978 = vpack.c.b16 %v2866, %v2865
      %v2979 = vpack.c.b16 %v2868, %v2867
      %v2980 = vpack.c.b16 %v2870, %v2869
      %v2981 = vpack.c.b16 %v2872, %v2871
      %v2982 = vpack.c.b16 %v2874, %v2873
      %v2983 = vpack.c.b16 %v2876, %v2875
      %v2984 = vpack.c.b16 %v2878, %v2877
      %v2985 = vpack.c.b16 %v2880, %v2879
      %v2986 = vpack.c.b16 %v2882, %v2881
      %v2987 = vpack.c.b16 %v2884, %v2883
      %v2988 = vpack.c.b16 %v2886, %v2885
      %v2989 = vpack.c.b16 %v2888, %v2887
      %v2990 = vpack.c.b16 %v2890, %v2889
      %v2991 = vpack.c.b16 %v2892, %v2891
      %v2992 = vpack.c.b16 %v2894, %v2893
      %v2993 = vpack.c.b16 %v2896, %v2895
      %v2994 = vpack.c.b16 %v2898, %v2897
      %v2995 = vpack.c.b16 %v2900, %v2899
      %v2996 = vpack.c.b16 %v2902, %v2901
      %v2997 = vpack.c.b16 %v2904, %v2903
      %v2998 = vpack.c.b16 %v2906, %v2905
      %v2999 = vpack.c.b16 %v2908, %v2907
      %v3000 = vpack.c.b16 %v2910, %v2909
      %v3001 = vpack.c.b16 %v2912, %v2911
      %v3002 = vpack.c.b16 %v2914, %v2913
      %v3003 = vpack.c.b16 %v2916, %v2915
      %v3004 = vpack.c.b16 %v2918, %v2917
      %v3005 = vpack.c.b16 %v2920, %v2919
      %v3006 = vpack.c.b16 %v2922, %v2921
      %v3007 = vpack.c.b16 %v2924, %v2923
      %v3008 = vpack.c.b16 %v2926, %v2925
      %v3009 = vpack.c.b16 %v2928, %v2927
      %v3010 = vpack.c.b16 %v2930, %v2929
      %v3011 = vpack.c.b16 %v2932, %v2931
      %v3012 = vpack.c.b16 %v2934, %v2933
      %v3013 = vpack.c.b16 %v2936, %v2935
      %v3014 = vpack.c.b16 %v2938, %v2937
      %v3015 = vpack.c.b16 %v2940, %v2939
      %v3016 = vpack.c.b16 %v2941, %v2941
      %vm3091 = vcmask 293888
      %v3092 = vsel %vm3091, %v2464, 0
      %v3094 = vsel %vm3091, %v2466, 0
      %v3096 = vsel %vm3091, %v2468, 0
      %v3098 = vsel %vm3091, %v2470, 0
      %v3100 = vsel %vm3091, %v2472, 0
      %v3102 = vsel %vm3091, %v2474, 0
      %v3104 = vsel %vm3091, %v2476, 0
      %v3106 = vsel %vm3091, %v2478, 0
      %v3108 = vsel %vm3091, %v2480, 0
      %v3110 = vsel %vm3091, %v2482, 0
      %v3112 = vsel %vm3091, %v2484, 0
      %v3114 = vsel %vm3091, %v2486, 0
      %v3116 = vsel %vm3091, %v2488, 0
      %v3118 = vsel %vm3091, %v2490, 0
      %v3120 = vsel %vm3091, %v2492, 0
      %v3122 = vsel %vm3091, %v2494, 0
      %vm3124 = vcmask 1041408
      %v3126 = vsel %vm3124, %v3016, 0
      %3128 = vmatprep.subr.bf16.mxu0 0
      %3129 = vmatpush1.bf16.msra.mxu0 %v2942
      %3130 = vmatprep.subr.bf16.mxu0 0
      %3131 = vmatpush1.bf16.msra.mxu0 %v2943
      %3132 = vmatprep.subr.bf16.mxu0 0
      %3133 = vmatpush1.bf16.msra.mxu0 %v2944
      %3134 = vmatprep.subr.bf16.mxu0 0
      %3135 = vmatpush1.bf16.msra.mxu0 %v2945
      %3136 = vmatprep.subr.bf16.mxu0 0
      %3137 = vmatpush1.bf16.msra.mxu0 %v2946
      %3138 = vmatprep.subr.bf16.mxu0 0
      %3139 = vmatpush1.bf16.msra.mxu0 %v2947
      %3140 = vmatprep.subr.bf16.mxu0 0
      %3141 = vmatpush1.bf16.msra.mxu0 %v2948
      %3142 = vmatprep.subr.bf16.mxu0 0
      %3143 = vmatpush1.bf16.msra.mxu0 %v2949
      %3144 = vmatprep.subr.bf16.mxu0 0
      %3145 = vmatpush1.bf16.msra.mxu0 %v2950
      %3146 = vmatprep.subr.bf16.mxu0 0
      %3147 = vmatpush1.bf16.msra.mxu0 %v2951
      %3148 = vmatprep.subr.bf16.mxu0 0
      %3149 = vmatpush1.bf16.msra.mxu0 %v2952
      %3150 = vmatprep.subr.bf16.mxu0 0
      %3151 = vmatpush1.bf16.msra.mxu0 %v2953
      %3152 = vmatprep.subr.bf16.mxu0 0
      %3153 = vmatpush1.bf16.msra.mxu0 %v2954
      %3154 = vmatprep.subr.bf16.mxu0 0
      %3155 = vmatpush1.bf16.msra.mxu0 %v2955
      %3156 = vmatprep.subr.bf16.mxu0 0
      %3157 = vmatpush1.bf16.msra.mxu0 %v2956
      %3158 = vmatprep.subr.bf16.mxu0 0
      %3159 = vmatpush1.bf16.msra.mxu0 %v2957
      %3160 = vmatprep.mubr.bf16.mxu0 %v1036
      %3161 = vmatmul.mubr.bf16.gmra.mrb[0].mxu0 %v1004
      %v3162 = vpop.f32.mrb[0].mxu0
      %v3163 = vadd.f32 0.0, %v3162
      %v3164 = vpop.f32.mrb[0].mxu0
      %v3165 = vpop.f32.mrb[0].mxu0
      %v3166 = vadd.f32 0.0, %v3165
      %v3167 = vpop.f32.mrb[0].mxu0
      %3168 = vmatprep.mubr.bf16.mxu0 %v1044
      %3169 = vmatmul.mubr.bf16.gmra.mrb[0].mxu0 %v836
      %v3170 = vpop.f32.mrb[0].mxu0
      %v3171 = vadd.f32 0.0, %v3170
      %v3172 = vpop.f32.mrb[0].mxu0
      %v3173 = vpop.f32.mrb[0].mxu0
      %v3174 = vadd.f32 0.0, %v3173
      %v3175 = vpop.f32.mrb[0].mxu0
      %3176 = vmatprep.mubr.bf16.mxu0 %v1056
      %3177 = vmatmul.mubr.bf16.gmra.mrb[0].mxu0 %v1005
      %v3178 = vpop.f32.mrb[0].mxu0
      %v3179 = vadd.f32 0.0, %v3178
      %v3180 = vpop.f32.mrb[0].mxu0
      %v3181 = vpop.f32.mrb[0].mxu0
      %v3182 = vadd.f32 0.0, %v3181
      %v3183 = vpop.f32.mrb[0].mxu0
      %3184 = vmatprep.mubr.bf16.mxu0 %v1064
      %3185 = vmatmul.mubr.bf16.gmra.mrb[0].mxu0 %v851
      %v3186 = vpop.f32.mrb[0].mxu0
      %v3187 = vadd.f32 0.0, %v3186
      %v3188 = vpop.f32.mrb[0].mxu0
      %v3189 = vpop.f32.mrb[0].mxu0
      %v3190 = vadd.f32 0.0, %v3189
      %v3191 = vpop.f32.mrb[0].mxu0
      %3192 = vmatprep.mubr.bf16.mxu0 %v1076
      %3193 = vmatmul.mubr.bf16.gmra.mrb[0].mxu0 %v1006
      %v3194 = vpop.f32.mrb[0].mxu0
      %v3195 = vadd.f32 0.0, %v3194
      %v3196 = vpop.f32.mrb[0].mxu0
      %v3197 = vpop.f32.mrb[0].mxu0
      %v3198 = vadd.f32 0.0, %v3197
      %v3199 = vpop.f32.mrb[0].mxu0
      %3200 = vmatprep.mubr.bf16.mxu0 %v1084
      %3201 = vmatmul.mubr.bf16.gmra.mrb[0].mxu0 %v866
      %v3202 = vpop.f32.mrb[0].mxu0
      %v3203 = vadd.f32 0.0, %v3202
      %v3204 = vpop.f32.mrb[0].mxu0
      %v3205 = vpop.f32.mrb[0].mxu0
      %v3206 = vadd.f32 0.0, %v3205
      %v3207 = vpop.f32.mrb[0].mxu0
      %3208 = vmatprep.mubr.bf16.mxu0 %v1096
      %3209 = vmatmul.mubr.bf16.gmra.mrb[0].mxu0 %v1007
      %v3210 = vpop.f32.mrb[0].mxu0
      %v3211 = vadd.f32 0.0, %v3210
      %v3212 = vpop.f32.mrb[0].mxu0
      %v3213 = vpop.f32.mrb[0].mxu0
      %v3214 = vadd.f32 0.0, %v3213
      %v3215 = vpop.f32.mrb[0].mxu0
      %3216 = vmatprep.mubr.bf16.mxu0 %v1104
      %3217 = vmatmul.mubr.bf16.gmra.mrb[0].mxu0 %v881
      %v3218 = vpop.f32.mrb[0].mxu0
      %v3219 = vadd.f32 0.0, %v3218
      %v3220 = vpop.f32.mrb[0].mxu0
      %v3221 = vpop.f32.mrb[0].mxu0
      %v3222 = vadd.f32 0.0, %v3221
      %v3223 = vpop.f32.mrb[0].mxu0
      %3224 = vmatprep.mubr.bf16.mxu0 %v1116
      %3225 = vmatmul.mubr.bf16.gmra.mrb[0].mxu0 %v1008
      %v3226 = vpop.f32.mrb[0].mxu0
      %v3227 = vadd.f32 0.0, %v3226
      %v3228 = vpop.f32.mrb[0].mxu0
      %v3229 = vpop.f32.mrb[0].mxu0
      %v3230 = vadd.f32 0.0, %v3229
      %v3231 = vpop.f32.mrb[0].mxu0
      %3232 = vmatprep.mubr.bf16.mxu0 %v1124
      %3233 = vmatmul.mubr.bf16.gmra.mrb[0].mxu0 %v896
      %v3234 = vpop.f32.mrb[0].mxu0
      %v3235 = vadd.f32 0.0, %v3234
      %v3236 = vpop.f32.mrb[0].mxu0
      %v3237 = vpop.f32.mrb[0].mxu0
      %v3238 = vadd.f32 0.0, %v3237
      %v3239 = vpop.f32.mrb[0].mxu0
      %3240 = vmatprep.mubr.bf16.mxu0 %v1136
      %3241 = vmatmul.mubr.bf16.gmra.mrb[0].mxu0 %v1009
      %v3242 = vpop.f32.mrb[0].mxu0
      %v3243 = vadd.f32 0.0, %v3242
      %v3244 = vpop.f32.mrb[0].mxu0
      %v3245 = vpop.f32.mrb[0].mxu0
      %v3246 = vadd.f32 0.0, %v3245
      %v3247 = vpop.f32.mrb[0].mxu0
      %3248 = vmatprep.mubr.bf16.mxu0 %v1144
      %3249 = vmatmul.mubr.bf16.gmra.mrb[0].mxu0 %v911
      %v3250 = vpop.f32.mrb[0].mxu0
      %v3251 = vadd.f32 0.0, %v3250
      %v3252 = vpop.f32.mrb[0].mxu0
      %v3253 = vpop.f32.mrb[0].mxu0
      %v3254 = vadd.f32 0.0, %v3253
      %v3255 = vpop.f32.mrb[0].mxu0
      %3256 = vmatprep.mubr.bf16.mxu0 %v1156
      %3257 = vmatmul.mubr.bf16.gmra.mrb[0].mxu0 %v1010
      %v3258 = vpop.f32.mrb[0].mxu0
      %v3259 = vadd.f32 0.0, %v3258
      %v3260 = vpop.f32.mrb[0].mxu0
      %v3261 = vpop.f32.mrb[0].mxu0
      %v3262 = vadd.f32 0.0, %v3261
      %v3263 = vpop.f32.mrb[0].mxu0
      %3264 = vmatprep.mubr.bf16.mxu0 %v1164
      %3265 = vmatmul.mubr.bf16.gmra.mrb[0].mxu0 %v926
      %v3266 = vpop.f32.mrb[0].mxu0
      %v3267 = vadd.f32 0.0, %v3266
      %v3268 = vpop.f32.mrb[0].mxu0
      %v3269 = vpop.f32.mrb[0].mxu0
      %v3270 = vadd.f32 0.0, %v3269
      %v3271 = vpop.f32.mrb[0].mxu0
      %3272 = vmatprep.mubr.bf16.mxu0 %v1176
      %3273 = vmatmul.mubr.bf16.gmra.mrb[0].mxu0 %v1011
      %v3274 = vpop.f32.mrb[0].mxu0
      %v3275 = vadd.f32 0.0, %v3274
      %v3276 = vpop.f32.mrb[0].mxu0
      %v3277 = vpop.f32.mrb[0].mxu0
      %v3278 = vadd.f32 0.0, %v3277
      %v3279 = vpop.f32.mrb[0].mxu0
      %3280 = vmatprep.mubr.bf16.mxu0 %v1184
      %3281 = vmatmul.mubr.bf16.gmra.mrb[0].mxu0 %v941
      %v3282 = vpop.f32.mrb[0].mxu0
      %v3283 = vadd.f32 0.0, %v3282
      %v3284 = vpop.f32.mrb[0].mxu0
      %v3285 = vpop.f32.mrb[0].mxu0
      %v3286 = vadd.f32 0.0, %v3285
      %v3287 = vpop.f32.mrb[0].mxu0
      %3288 = vdwg.mxu0
      %3289 = vmatprep.subr.bf16.mxu0 0
      %3290 = vmatpush1.bf16.msra.mxu0 %v2958
      %3291 = vmatprep.subr.bf16.mxu0 0
      %3292 = vmatpush1.bf16.msra.mxu0 %v2959
      %3293 = vmatprep.subr.bf16.mxu0 0
      %3294 = vmatpush1.bf16.msra.mxu0 %v2960
      %3295 = vmatprep.subr.bf16.mxu0 0
      %3296 = vmatpush1.bf16.msra.mxu0 %v2961
      %3297 = vmatprep.subr.bf16.mxu0 0
      %3298 = vmatpush1.bf16.msra.mxu0 %v2962
      %3299 = vmatprep.subr.bf16.mxu0 0
      %3300 = vmatpush1.bf16.msra.mxu0 %v2963
      %3301 = vmatprep.subr.bf16.mxu0 0
      %3302 = vmatpush1.bf16.msra.mxu0 %v2964
      %3303 = vmatprep.subr.bf16.mxu0 0
      %3304 = vmatpush1.bf16.msra.mxu0 %v2965
      %3305 = vmatprep.subr.bf16.mxu0 0
      %3306 = vmatpush1.bf16.msra.mxu0 %v2966
      %3307 = vmatprep.subr.bf16.mxu0 0
      %3308 = vmatpush1.bf16.msra.mxu0 %v2967
      %3309 = vmatprep.subr.bf16.mxu0 0
      %3310 = vmatpush1.bf16.msra.mxu0 %v2968
      %3311 = vmatprep.subr.bf16.mxu0 0
      %3312 = vmatpush1.bf16.msra.mxu0 %v2969
      %3313 = vmatprep.subr.bf16.mxu0 0
      %3314 = vmatpush1.bf16.msra.mxu0 %v2970
      %3315 = vmatprep.subr.bf16.mxu0 0
      %3316 = vmatpush1.bf16.msra.mxu0 %v2971
      %3317 = vmatprep.subr.bf16.mxu0 0
      %3318 = vmatpush1.bf16.msra.mxu0 %v2972
      %3319 = vmatprep.subr.bf16.mxu0 0
      %3320 = vmatpush1.bf16.msra.mxu0 %v2973
      %3321 = vmatprep.mubr.bf16.mxu0 %v1005
      %3322 = vmatmul.mubr.bf16.gmra.mrb[0].mxu0 %v1220
      %v3323 = vpop.f32.mrb[0].mxu0
      %v3324 = vadd.f32 %v3163, %v3323
      %v3325 = vpop.f32.mrb[0].mxu0
      %v3326 = vpop.f32.mrb[0].mxu0
      %v3327 = vadd.f32 %v3166, %v3326
      %v3328 = vpop.f32.mrb[0].mxu0
      %3329 = vmatprep.mubr.bf16.mxu0 %v851
      %3330 = vmatmul.mubr.bf16.gmra.mrb[0].mxu0 %v1222
      %v3331 = vpop.f32.mrb[0].mxu0
      %v3332 = vadd.f32 %v3171, %v3331
      %v3333 = vpop.f32.mrb[0].mxu0
      %v3334 = vpop.f32.mrb[0].mxu0
      %v3335 = vadd.f32 %v3174, %v3334
      %v3336 = vpop.f32.mrb[0].mxu0
      %3337 = vmatprep.mubr.bf16.mxu0 %v1006
      %3338 = vmatmul.mubr.bf16.gmra.mrb[0].mxu0 %v1225
      %v3339 = vpop.f32.mrb[0].mxu0
      %v3340 = vadd.f32 %v3179, %v3339
      %v3341 = vpop.f32.mrb[0].mxu0
      %v3342 = vpop.f32.mrb[0].mxu0
      %v3343 = vadd.f32 %v3182, %v3342
      %v3344 = vpop.f32.mrb[0].mxu0
      %3345 = vmatprep.mubr.bf16.mxu0 %v866
      %3346 = vmatmul.mubr.bf16.gmra.mrb[0].mxu0 %v1227
      %v3347 = vpop.f32.mrb[0].mxu0
      %v3348 = vadd.f32 %v3187, %v3347
      %v3349 = vpop.f32.mrb[0].mxu0
      %v3350 = vpop.f32.mrb[0].mxu0
      %v3351 = vadd.f32 %v3190, %v3350
      %v3352 = vpop.f32.mrb[0].mxu0
      %3353 = vmatprep.mubr.bf16.mxu0 %v1007
      %3354 = vmatmul.mubr.bf16.gmra.mrb[0].mxu0 %v1230
      %v3355 = vpop.f32.mrb[0].mxu0
      %v3356 = vadd.f32 %v3195, %v3355
      %v3357 = vpop.f32.mrb[0].mxu0
      %v3358 = vpop.f32.mrb[0].mxu0
      %v3359 = vadd.f32 %v3198, %v3358
      %v3360 = vpop.f32.mrb[0].mxu0
      %3361 = vmatprep.mubr.bf16.mxu0 %v881
      %3362 = vmatmul.mubr.bf16.gmra.mrb[0].mxu0 %v1232
      %v3363 = vpop.f32.mrb[0].mxu0
      %v3364 = vadd.f32 %v3203, %v3363
      %v3365 = vpop.f32.mrb[0].mxu0
      %v3366 = vpop.f32.mrb[0].mxu0
      %v3367 = vadd.f32 %v3206, %v3366
      %v3368 = vpop.f32.mrb[0].mxu0
      %3369 = vmatprep.mubr.bf16.mxu0 %v1008
      %3370 = vmatmul.mubr.bf16.gmra.mrb[0].mxu0 %v1235
      %v3371 = vpop.f32.mrb[0].mxu0
      %v3372 = vadd.f32 %v3211, %v3371
      %v3373 = vpop.f32.mrb[0].mxu0
      %v3374 = vpop.f32.mrb[0].mxu0
      %v3375 = vadd.f32 %v3214, %v3374
      %v3376 = vpop.f32.mrb[0].mxu0
      %3377 = vmatprep.mubr.bf16.mxu0 %v896
      %3378 = vmatmul.mubr.bf16.gmra.mrb[0].mxu0 %v1237
      %v3379 = vpop.f32.mrb[0].mxu0
      %v3380 = vadd.f32 %v3219, %v3379
      %v3381 = vpop.f32.mrb[0].mxu0
      %v3382 = vpop.f32.mrb[0].mxu0
      %v3383 = vadd.f32 %v3222, %v3382
      %v3384 = vpop.f32.mrb[0].mxu0
      %3385 = vmatprep.mubr.bf16.mxu0 %v1009
      %3386 = vmatmul.mubr.bf16.gmra.mrb[0].mxu0 %v1240
      %v3387 = vpop.f32.mrb[0].mxu0
      %v3388 = vadd.f32 %v3227, %v3387
      %v3389 = vpop.f32.mrb[0].mxu0
      %v3390 = vpop.f32.mrb[0].mxu0
      %v3391 = vadd.f32 %v3230, %v3390
      %v3392 = vpop.f32.mrb[0].mxu0
      %3393 = vmatprep.mubr.bf16.mxu0 %v911
      %3394 = vmatmul.mubr.bf16.gmra.mrb[0].mxu0 %v1242
      %v3395 = vpop.f32.mrb[0].mxu0
      %v3396 = vadd.f32 %v3235, %v3395
      %v3397 = vpop.f32.mrb[0].mxu0
      %v3398 = vpop.f32.mrb[0].mxu0
      %v3399 = vadd.f32 %v3238, %v3398
      %v3400 = vpop.f32.mrb[0].mxu0
      %3401 = vmatprep.mubr.bf16.mxu0 %v1010
      %3402 = vmatmul.mubr.bf16.gmra.mrb[0].mxu0 %v1245
      %v3403 = vpop.f32.mrb[0].mxu0
      %v3404 = vadd.f32 %v3243, %v3403
      %v3405 = vpop.f32.mrb[0].mxu0
      %v3406 = vpop.f32.mrb[0].mxu0
      %v3407 = vadd.f32 %v3246, %v3406
      %v3408 = vpop.f32.mrb[0].mxu0
      %3409 = vmatprep.mubr.bf16.mxu0 %v926
      %3410 = vmatmul.mubr.bf16.gmra.mrb[0].mxu0 %v1247
      %v3411 = vpop.f32.mrb[0].mxu0
      %v3412 = vadd.f32 %v3251, %v3411
      %v3413 = vpop.f32.mrb[0].mxu0
      %v3414 = vpop.f32.mrb[0].mxu0
      %v3415 = vadd.f32 %v3254, %v3414
      %v3416 = vpop.f32.mrb[0].mxu0
      %3417 = vmatprep.mubr.bf16.mxu0 %v1011
      %3418 = vmatmul.mubr.bf16.gmra.mrb[0].mxu0 %v1250
      %v3419 = vpop.f32.mrb[0].mxu0
      %v3420 = vadd.f32 %v3259, %v3419
      %v3421 = vpop.f32.mrb[0].mxu0
      %v3422 = vpop.f32.mrb[0].mxu0
      %v3423 = vadd.f32 %v3262, %v3422
      %v3424 = vpop.f32.mrb[0].mxu0
      %3425 = vmatprep.mubr.bf16.mxu0 %v941
      %3426 = vmatmul.mubr.bf16.gmra.mrb[0].mxu0 %v1252
      %v3427 = vpop.f32.mrb[0].mxu0
      %v3428 = vadd.f32 %v3267, %v3427
      %v3429 = vpop.f32.mrb[0].mxu0
      %v3430 = vpop.f32.mrb[0].mxu0
      %v3431 = vadd.f32 %v3270, %v3430
      %v3432 = vpop.f32.mrb[0].mxu0
      %3433 = vmatprep.mubr.bf16.mxu0 %v1012
      %3434 = vmatmul.mubr.bf16.gmra.mrb[0].mxu0 %v1255
      %v3435 = vpop.f32.mrb[0].mxu0
      %v3436 = vadd.f32 %v3275, %v3435
      %v3437 = vpop.f32.mrb[0].mxu0
      %v3438 = vpop.f32.mrb[0].mxu0
      %v3439 = vadd.f32 %v3278, %v3438
      %v3440 = vpop.f32.mrb[0].mxu0
      %3441 = vmatprep.mubr.bf16.mxu0 %v956
      %3442 = vmatmul.mubr.bf16.gmra.mrb[0].mxu0 %v1257
      %v3443 = vpop.f32.mrb[0].mxu0
      %v3444 = vadd.f32 %v3283, %v3443
      %v3445 = vpop.f32.mrb[0].mxu0
      %v3446 = vpop.f32.mrb[0].mxu0
      %v3447 = vadd.f32 %v3286, %v3446
      %v3448 = vpop.f32.mrb[0].mxu0
      %3449 = vdwg.mxu0
      %3450 = vmatprep.subr.bf16.mxu0 0
      %3451 = vmatpush1.bf16.msra.mxu0 %v2974
      %3452 = vmatprep.subr.bf16.mxu0 0
      %3453 = vmatpush1.bf16.msra.mxu0 %v2975
      %3454 = vmatprep.subr.bf16.mxu0 0
      %3455 = vmatpush1.bf16.msra.mxu0 %v2976
      %3456 = vmatprep.subr.bf16.mxu0 0
      %3457 = vmatpush1.bf16.msra.mxu0 %v2977
      %3458 = vmatprep.subr.bf16.mxu0 0
      %3459 = vmatpush1.bf16.msra.mxu0 %v2978
      %3460 = vmatprep.subr.bf16.mxu0 0
      %3461 = vmatpush1.bf16.msra.mxu0 %v2979
      %3462 = vmatprep.subr.bf16.mxu0 0
      %3463 = vmatpush1.bf16.msra.mxu0 %v2980
      %3464 = vmatprep.subr.bf16.mxu0 0
      %3465 = vmatpush1.bf16.msra.mxu0 %v2981
      %3466 = vmatprep.subr.bf16.mxu0 0
      %3467 = vmatpush1.bf16.msra.mxu0 %v2982
      %3468 = vmatprep.subr.bf16.mxu0 0
      %3469 = vmatpush1.bf16.msra.mxu0 %v2983
      %3470 = vmatprep.subr.bf16.mxu0 0
      %3471 = vmatpush1.bf16.msra.mxu0 %v2984
      %3472 = vmatprep.subr.bf16.mxu0 0
      %3473 = vmatpush1.bf16.msra.mxu0 %v2985
      %3474 = vmatprep.subr.bf16.mxu0 0
      %3475 = vmatpush1.bf16.msra.mxu0 %v2986
      %3476 = vmatprep.subr.bf16.mxu0 0
      %3477 = vmatpush1.bf16.msra.mxu0 %v2987
      %3478 = vmatprep.subr.bf16.mxu0 0
      %3479 = vmatpush1.bf16.msra.mxu0 %v2988
      %3480 = vmatprep.subr.bf16.mxu0 0
      %3481 = vmatpush1.bf16.msra.mxu0 %v2989
      %3482 = vmatprep.mubr.bf16.mxu0 %v1225
      %3483 = vmatmul.mubr.bf16.gmra.mrb[0].mxu0 %v1056
      %v3484 = vpop.f32.mrb[0].mxu0
      %v3485 = vadd.f32 %v3324, %v3484
      %v3486 = vpop.f32.mrb[0].mxu0
      %v3487 = vpop.f32.mrb[0].mxu0
      %v3488 = vadd.f32 %v3327, %v3487
      %v3489 = vpop.f32.mrb[0].mxu0
      %3490 = vmatprep.mubr.bf16.mxu0 %v1227
      %3491 = vmatmul.mubr.bf16.gmra.mrb[0].mxu0 %v1064
      %v3492 = vpop.f32.mrb[0].mxu0
      %v3493 = vadd.f32 %v3332, %v3492
      %v3494 = vpop.f32.mrb[0].mxu0
      %v3495 = vpop.f32.mrb[0].mxu0
      %v3496 = vadd.f32 %v3335, %v3495
      %v3497 = vpop.f32.mrb[0].mxu0
      %3498 = vmatprep.mubr.bf16.mxu0 %v1230
      %3499 = vmatmul.mubr.bf16.gmra.mrb[0].mxu0 %v1076
      %v3500 = vpop.f32.mrb[0].mxu0
      %v3501 = vadd.f32 %v3340, %v3500
      %v3502 = vpop.f32.mrb[0].mxu0
      %v3503 = vpop.f32.mrb[0].mxu0
      %v3504 = vadd.f32 %v3343, %v3503
      %v3505 = vpop.f32.mrb[0].mxu0
      %3506 = vmatprep.mubr.bf16.mxu0 %v1232
      %3507 = vmatmul.mubr.bf16.gmra.mrb[0].mxu0 %v1084
      %v3508 = vpop.f32.mrb[0].mxu0
      %v3509 = vadd.f32 %v3348, %v3508
      %v3510 = vpop.f32.mrb[0].mxu0
      %v3511 = vpop.f32.mrb[0].mxu0
      %v3512 = vadd.f32 %v3351, %v3511
      %v3513 = vpop.f32.mrb[0].mxu0
      %3514 = vmatprep.mubr.bf16.mxu0 %v1235
      %3515 = vmatmul.mubr.bf16.gmra.mrb[0].mxu0 %v1096
      %v3516 = vpop.f32.mrb[0].mxu0
      %v3517 = vadd.f32 %v3356, %v3516
      %v3518 = vpop.f32.mrb[0].mxu0
      %v3519 = vpop.f32.mrb[0].mxu0
      %v3520 = vadd.f32 %v3359, %v3519
      %v3521 = vpop.f32.mrb[0].mxu0
      %3522 = vmatprep.mubr.bf16.mxu0 %v1237
      %3523 = vmatmul.mubr.bf16.gmra.mrb[0].mxu0 %v1104
      %v3524 = vpop.f32.mrb[0].mxu0
      %v3525 = vadd.f32 %v3364, %v3524
      %v3526 = vpop.f32.mrb[0].mxu0
      %v3527 = vpop.f32.mrb[0].mxu0
      %v3528 = vadd.f32 %v3367, %v3527
      %v3529 = vpop.f32.mrb[0].mxu0
      %3530 = vmatprep.mubr.bf16.mxu0 %v1240
      %3531 = vmatmul.mubr.bf16.gmra.mrb[0].mxu0 %v1116
      %v3532 = vpop.f32.mrb[0].mxu0
      %v3533 = vadd.f32 %v3372, %v3532
      %v3534 = vpop.f32.mrb[0].mxu0
      %v3535 = vpop.f32.mrb[0].mxu0
      %v3536 = vadd.f32 %v3375, %v3535
      %v3537 = vpop.f32.mrb[0].mxu0
      %3538 = vmatprep.mubr.bf16.mxu0 %v1242
      %3539 = vmatmul.mubr.bf16.gmra.mrb[0].mxu0 %v1124
      %v3540 = vpop.f32.mrb[0].mxu0
      %v3541 = vadd.f32 %v3380, %v3540
      %v3542 = vpop.f32.mrb[0].mxu0
      %v3543 = vpop.f32.mrb[0].mxu0
      %v3544 = vadd.f32 %v3383, %v3543
      %v3545 = vpop.f32.mrb[0].mxu0
      %3546 = vmatprep.mubr.bf16.mxu0 %v1245
      %3547 = vmatmul.mubr.bf16.gmra.mrb[0].mxu0 %v1136
      %v3548 = vpop.f32.mrb[0].mxu0
      %v3549 = vadd.f32 %v3388, %v3548
      %v3550 = vpop.f32.mrb[0].mxu0
      %v3551 = vpop.f32.mrb[0].mxu0
      %v3552 = vadd.f32 %v3391, %v3551
      %v3553 = vpop.f32.mrb[0].mxu0
      %3554 = vmatprep.mubr.bf16.mxu0 %v1247
      %3555 = vmatmul.mubr.bf16.gmra.mrb[0].mxu0 %v1144
      %v3556 = vpop.f32.mrb[0].mxu0
      %v3557 = vadd.f32 %v3396, %v3556
      %v3558 = vpop.f32.mrb[0].mxu0
      %v3559 = vpop.f32.mrb[0].mxu0
      %v3560 = vadd.f32 %v3399, %v3559
      %v3561 = vpop.f32.mrb[0].mxu0
      %3562 = vmatprep.mubr.bf16.mxu0 %v1250
      %3563 = vmatmul.mubr.bf16.gmra.mrb[0].mxu0 %v1156
      %v3564 = vpop.f32.mrb[0].mxu0
      %v3565 = vadd.f32 %v3404, %v3564
      %v3566 = vpop.f32.mrb[0].mxu0
      %v3567 = vpop.f32.mrb[0].mxu0
      %v3568 = vadd.f32 %v3407, %v3567
      %v3569 = vpop.f32.mrb[0].mxu0
      %3570 = vmatprep.mubr.bf16.mxu0 %v1252
      %3571 = vmatmul.mubr.bf16.gmra.mrb[0].mxu0 %v1164
      %v3572 = vpop.f32.mrb[0].mxu0
      %v3573 = vadd.f32 %v3412, %v3572
      %v3574 = vpop.f32.mrb[0].mxu0
      %v3575 = vpop.f32.mrb[0].mxu0
      %v3576 = vadd.f32 %v3415, %v3575
      %v3577 = vpop.f32.mrb[0].mxu0
      %3578 = vmatprep.mubr.bf16.mxu0 %v1255
      %3579 = vmatmul.mubr.bf16.gmra.mrb[0].mxu0 %v1176
      %v3580 = vpop.f32.mrb[0].mxu0
      %v3581 = vadd.f32 %v3420, %v3580
      %v3582 = vpop.f32.mrb[0].mxu0
      %v3583 = vpop.f32.mrb[0].mxu0
      %v3584 = vadd.f32 %v3423, %v3583
      %v3585 = vpop.f32.mrb[0].mxu0
      %3586 = vmatprep.mubr.bf16.mxu0 %v1257
      %3587 = vmatmul.mubr.bf16.gmra.mrb[0].mxu0 %v1184
      %v3588 = vpop.f32.mrb[0].mxu0
      %v3589 = vadd.f32 %v3428, %v3588
      %v3590 = vpop.f32.mrb[0].mxu0
      %v3591 = vpop.f32.mrb[0].mxu0
      %v3592 = vadd.f32 %v3431, %v3591
      %v3593 = vpop.f32.mrb[0].mxu0
      %3594 = vmatprep.mubr.bf16.mxu0 %v1300
      %3595 = vmatmul.mubr.bf16.gmra.mrb[0].mxu0 %v1285
      %v3596 = vpop.f32.mrb[0].mxu0
      %v3597 = vadd.f32 %v3436, %v3596
      %v3598 = vpop.f32.mrb[0].mxu0
      %v3599 = vpop.f32.mrb[0].mxu0
      %v3600 = vadd.f32 %v3439, %v3599
      %v3601 = vpop.f32.mrb[0].mxu0
      %3602 = vmatprep.mubr.bf16.mxu0 %v1302
      %3603 = vmatmul.mubr.bf16.gmra.mrb[0].mxu0 %v1293
      %v3604 = vpop.f32.mrb[0].mxu0
      %v3605 = vadd.f32 %v3444, %v3604
      %v3606 = vpop.f32.mrb[0].mxu0
      %v3607 = vpop.f32.mrb[0].mxu0
      %v3608 = vadd.f32 %v3447, %v3607
      %v3609 = vpop.f32.mrb[0].mxu0
      %3610 = vdwg.mxu0
      %3611 = vmatprep.subr.bf16.mxu0 0
      %3612 = vmatpush1.bf16.msra.mxu0 %v2990
      %3613 = vmatprep.subr.bf16.mxu0 0
      %3614 = vmatpush1.bf16.msra.mxu0 %v2991
      %3615 = vmatprep.subr.bf16.mxu0 0
      %3616 = vmatpush1.bf16.msra.mxu0 %v2992
      %3617 = vmatprep.subr.bf16.mxu0 0
      %3618 = vmatpush1.bf16.msra.mxu0 %v2993
      %3619 = vmatprep.subr.bf16.mxu0 0
      %3620 = vmatpush1.bf16.msra.mxu0 %v2994
      %3621 = vmatprep.subr.bf16.mxu0 0
      %3622 = vmatpush1.bf16.msra.mxu0 %v2995
      %3623 = vmatprep.subr.bf16.mxu0 0
      %3624 = vmatpush1.bf16.msra.mxu0 %v2996
      %3625 = vmatprep.subr.bf16.mxu0 0
      %3626 = vmatpush1.bf16.msra.mxu0 %v2997
      %3627 = vmatprep.subr.bf16.mxu0 0
      %3628 = vmatpush1.bf16.msra.mxu0 %v2998
      %3629 = vmatprep.subr.bf16.mxu0 0
      %3630 = vmatpush1.bf16.msra.mxu0 %v2999
      %3631 = vmatprep.subr.bf16.mxu0 0
      %3632 = vmatpush1.bf16.msra.mxu0 %v3000
      %3633 = vmatprep.subr.bf16.mxu0 0
      %3634 = vmatpush1.bf16.msra.mxu0 %v3001
      %3635 = vmatprep.subr.bf16.mxu0 0
      %3636 = vmatpush1.bf16.msra.mxu0 %v3002
      %3637 = vmatprep.subr.bf16.mxu0 0
      %3638 = vmatpush1.bf16.msra.mxu0 %v3003
      %3639 = vmatprep.subr.bf16.mxu0 0
      %3640 = vmatpush1.bf16.msra.mxu0 %v3004
      %3641 = vmatprep.subr.bf16.mxu0 0
      %3642 = vmatpush1.bf16.msra.mxu0 %v3005
      %3643 = vmatprep.mubr.bf16.mxu0 %v1076
      %3644 = vmatmul.mubr.bf16.gmra.mrb[0].mxu0 %v1006
      %v3645 = vpop.f32.mrb[0].mxu0
      %v3646 = vadd.f32 %v3485, %v3645
      %v3647 = vpop.f32.mrb[0].mxu0
      %v3648 = vpop.f32.mrb[0].mxu0
      %v3649 = vadd.f32 %v3488, %v3648
      %v3650 = vpop.f32.mrb[0].mxu0
      %3651 = vmatprep.mubr.bf16.mxu0 %v1084
      %3652 = vmatmul.mubr.bf16.gmra.mrb[0].mxu0 %v866
      %v3653 = vpop.f32.mrb[0].mxu0
      %v3654 = vadd.f32 %v3493, %v3653
      %v3655 = vpop.f32.mrb[0].mxu0
      %v3656 = vpop.f32.mrb[0].mxu0
      %v3657 = vadd.f32 %v3496, %v3656
      %v3658 = vpop.f32.mrb[0].mxu0
      %3659 = vmatprep.mubr.bf16.mxu0 %v1096
      %3660 = vmatmul.mubr.bf16.gmra.mrb[0].mxu0 %v1007
      %v3661 = vpop.f32.mrb[0].mxu0
      %v3662 = vadd.f32 %v3501, %v3661
      %v3663 = vpop.f32.mrb[0].mxu0
      %v3664 = vpop.f32.mrb[0].mxu0
      %v3665 = vadd.f32 %v3504, %v3664
      %v3666 = vpop.f32.mrb[0].mxu0
      %3667 = vmatprep.mubr.bf16.mxu0 %v1104
      %3668 = vmatmul.mubr.bf16.gmra.mrb[0].mxu0 %v881
      %v3669 = vpop.f32.mrb[0].mxu0
      %v3670 = vadd.f32 %v3509, %v3669
      %v3671 = vpop.f32.mrb[0].mxu0
      %v3672 = vpop.f32.mrb[0].mxu0
      %v3673 = vadd.f32 %v3512, %v3672
      %v3674 = vpop.f32.mrb[0].mxu0
      %3675 = vmatprep.mubr.bf16.mxu0 %v1116
      %3676 = vmatmul.mubr.bf16.gmra.mrb[0].mxu0 %v1008
      %v3677 = vpop.f32.mrb[0].mxu0
      %v3678 = vadd.f32 %v3517, %v3677
      %v3679 = vpop.f32.mrb[0].mxu0
      %v3680 = vpop.f32.mrb[0].mxu0
      %v3681 = vadd.f32 %v3520, %v3680
      %v3682 = vpop.f32.mrb[0].mxu0
      %3683 = vmatprep.mubr.bf16.mxu0 %v1124
      %3684 = vmatmul.mubr.bf16.gmra.mrb[0].mxu0 %v896
      %v3685 = vpop.f32.mrb[0].mxu0
      %v3686 = vadd.f32 %v3525, %v3685
      %v3687 = vpop.f32.mrb[0].mxu0
      %v3688 = vpop.f32.mrb[0].mxu0
      %v3689 = vadd.f32 %v3528, %v3688
      %v3690 = vpop.f32.mrb[0].mxu0
      %3691 = vmatprep.mubr.bf16.mxu0 %v1136
      %3692 = vmatmul.mubr.bf16.gmra.mrb[0].mxu0 %v1009
      %v3693 = vpop.f32.mrb[0].mxu0
      %v3694 = vadd.f32 %v3533, %v3693
      %v3695 = vpop.f32.mrb[0].mxu0
      %v3696 = vpop.f32.mrb[0].mxu0
      %v3697 = vadd.f32 %v3536, %v3696
      %v3698 = vpop.f32.mrb[0].mxu0
      %3699 = vmatprep.mubr.bf16.mxu0 %v1144
      %3700 = vmatmul.mubr.bf16.gmra.mrb[0].mxu0 %v911
      %v3701 = vpop.f32.mrb[0].mxu0
      %v3702 = vadd.f32 %v3541, %v3701
      %v3703 = vpop.f32.mrb[0].mxu0
      %v3704 = vpop.f32.mrb[0].mxu0
      %v3705 = vadd.f32 %v3544, %v3704
      %v3706 = vpop.f32.mrb[0].mxu0
      %3707 = vmatprep.mubr.bf16.mxu0 %v1156
      %3708 = vmatmul.mubr.bf16.gmra.mrb[0].mxu0 %v1010
      %v3709 = vpop.f32.mrb[0].mxu0
      %v3710 = vadd.f32 %v3549, %v3709
      %v3711 = vpop.f32.mrb[0].mxu0
      %v3712 = vpop.f32.mrb[0].mxu0
      %v3713 = vadd.f32 %v3552, %v3712
      %v3714 = vpop.f32.mrb[0].mxu0
      %3715 = vmatprep.mubr.bf16.mxu0 %v1164
      %3716 = vmatmul.mubr.bf16.gmra.mrb[0].mxu0 %v926
      %v3717 = vpop.f32.mrb[0].mxu0
      %v3718 = vadd.f32 %v3557, %v3717
      %v3719 = vpop.f32.mrb[0].mxu0
      %v3720 = vpop.f32.mrb[0].mxu0
      %v3721 = vadd.f32 %v3560, %v3720
      %v3722 = vpop.f32.mrb[0].mxu0
      %3723 = vmatprep.mubr.bf16.mxu0 %v1176
      %3724 = vmatmul.mubr.bf16.gmra.mrb[0].mxu0 %v1011
      %v3725 = vpop.f32.mrb[0].mxu0
      %v3726 = vadd.f32 %v3565, %v3725
      %v3727 = vpop.f32.mrb[0].mxu0
      %v3728 = vpop.f32.mrb[0].mxu0
      %v3729 = vadd.f32 %v3568, %v3728
      %v3730 = vpop.f32.mrb[0].mxu0
      %3731 = vmatprep.mubr.bf16.mxu0 %v1184
      %3732 = vmatmul.mubr.bf16.gmra.mrb[0].mxu0 %v941
      %v3733 = vpop.f32.mrb[0].mxu0
      %v3734 = vadd.f32 %v3573, %v3733
      %v3735 = vpop.f32.mrb[0].mxu0
      %v3736 = vpop.f32.mrb[0].mxu0
      %v3737 = vadd.f32 %v3576, %v3736
      %v3738 = vpop.f32.mrb[0].mxu0
      %3739 = vmatprep.mubr.bf16.mxu0 %v1285
      %3740 = vmatmul.mubr.bf16.gmra.mrb[0].mxu0 %v1012
      %v3741 = vpop.f32.mrb[0].mxu0
      %v3742 = vadd.f32 %v3581, %v3741
      %v3743 = vpop.f32.mrb[0].mxu0
      %v3744 = vpop.f32.mrb[0].mxu0
      %v3745 = vadd.f32 %v3584, %v3744
      %v3746 = vpop.f32.mrb[0].mxu0
      %3747 = vmatprep.mubr.bf16.mxu0 %v1293
      %3748 = vmatmul.mubr.bf16.gmra.mrb[0].mxu0 %v956
      %v3749 = vpop.f32.mrb[0].mxu0
      %v3750 = vadd.f32 %v3589, %v3749
      %v3751 = vpop.f32.mrb[0].mxu0
      %v3752 = vpop.f32.mrb[0].mxu0
      %v3753 = vadd.f32 %v3592, %v3752
      %v3754 = vpop.f32.mrb[0].mxu0
      %3755 = vmatprep.mubr.bf16.mxu0 %v1316
      %3756 = vmatmul.mubr.bf16.gmra.mrb[0].mxu0 %v1013
      %v3757 = vpop.f32.mrb[0].mxu0
      %v3758 = vadd.f32 %v3597, %v3757
      %v3759 = vpop.f32.mrb[0].mxu0
      %v3760 = vpop.f32.mrb[0].mxu0
      %v3761 = vadd.f32 %v3600, %v3760
      %v3762 = vpop.f32.mrb[0].mxu0
      %3763 = vmatprep.mubr.bf16.mxu0 %v1324
      %3764 = vmatmul.mubr.bf16.gmra.mrb[0].mxu0 %v971
      %v3765 = vpop.f32.mrb[0].mxu0
      %v3766 = vadd.f32 %v3605, %v3765
      %v3767 = vpop.f32.mrb[0].mxu0
      %v3768 = vpop.f32.mrb[0].mxu0
      %v3769 = vadd.f32 %v3608, %v3768
      %v3770 = vpop.f32.mrb[0].mxu0
      %3771 = vdwg.mxu0
      %3772 = vmatprep.subr.bf16.mxu0 0
      %3773 = vmatpush1.bf16.msra.mxu0 %v3006
      %3774 = vmatprep.subr.bf16.mxu0 0
      %3775 = vmatpush1.bf16.msra.mxu0 %v3007
      %3776 = vmatprep.subr.bf16.mxu0 0
      %3777 = vmatpush1.bf16.msra.mxu0 %v3008
      %3778 = vmatprep.subr.bf16.mxu0 0
      %3779 = vmatpush1.bf16.msra.mxu0 %v3009
      %3780 = vmatprep.subr.bf16.mxu0 0
      %3781 = vmatpush1.bf16.msra.mxu0 %v3010
      %3782 = vmatprep.subr.bf16.mxu0 0
      %3783 = vmatpush1.bf16.msra.mxu0 %v3011
      %3784 = vmatprep.subr.bf16.mxu0 0
      %3785 = vmatpush1.bf16.msra.mxu0 %v3012
      %3786 = vmatprep.subr.bf16.mxu0 0
      %3787 = vmatpush1.bf16.msra.mxu0 %v3013
      %3788 = vmatprep.subr.bf16.mxu0 0
      %3789 = vmatpush1.bf16.msra.mxu0 %v3014
      %3790 = vmatprep.subr.bf16.mxu0 0
      %3791 = vmatpush1.bf16.msra.mxu0 %v3015
      %3792 = vmatprep.subr.bf16.mxu0 0
      %3793 = vmatpush1.bf16.msra.mxu0 %v3126
      %3794 = vmatprep.subr.bf16.mxu0 0
      %3795 = vmatpush1.bf16.msra.mxu0 0
      %3796 = vmatprep.subr.bf16.mxu0 0
      %3797 = vmatpush1.bf16.msra.mxu0 0
      %3798 = vmatprep.subr.bf16.mxu0 0
      %3799 = vmatpush1.bf16.msra.mxu0 0
      %3800 = vmatprep.subr.bf16.mxu0 0
      %3801 = vmatpush1.bf16.msra.mxu0 0
      %3802 = vmatprep.subr.bf16.mxu0 0
      %3803 = vmatpush1.bf16.msra.mxu0 0
      %3804 = vmatprep.mubr.bf16.mxu0 %v3092
      %3805 = vmatmul.mubr.bf16.gmra.mrb[0].mxu0 %v1230
      %v3806 = vpop.f32.mrb[0].mxu0
      %v3807 = vadd.f32 %v3646, %v3806
      %v3808 = vpop.f32.mrb[0].mxu0
      %v3809 = vpop.f32.mrb[0].mxu0
      %v3810 = vadd.f32 %v3649, %v3809
      %v3811 = vpop.f32.mrb[0].mxu0
      %3812 = vmatprep.mubr.bf16.mxu0 %v3094
      %3813 = vmatmul.mubr.bf16.gmra.mrb[0].mxu0 %v1232
      %v3814 = vpop.f32.mrb[0].mxu0
      %v3815 = vadd.f32 %v3654, %v3814
      %v3816 = vpop.f32.mrb[0].mxu0
      %v3817 = vpop.f32.mrb[0].mxu0
      %v3818 = vadd.f32 %v3657, %v3817
      %v3819 = vpop.f32.mrb[0].mxu0
      %3820 = vmatprep.mubr.bf16.mxu0 %v3096
      %3821 = vmatmul.mubr.bf16.gmra.mrb[0].mxu0 %v1235
      %v3822 = vpop.f32.mrb[0].mxu0
      %v3823 = vadd.f32 %v3662, %v3822
      %v3824 = vpop.f32.mrb[0].mxu0
      %v3825 = vpop.f32.mrb[0].mxu0
      %v3826 = vadd.f32 %v3665, %v3825
      %v3827 = vpop.f32.mrb[0].mxu0
      %3828 = vmatprep.mubr.bf16.mxu0 %v3098
      %3829 = vmatmul.mubr.bf16.gmra.mrb[0].mxu0 %v1237
      %v3830 = vpop.f32.mrb[0].mxu0
      %v3831 = vadd.f32 %v3670, %v3830
      %v3832 = vpop.f32.mrb[0].mxu0
      %v3833 = vpop.f32.mrb[0].mxu0
      %v3834 = vadd.f32 %v3673, %v3833
      %v3835 = vpop.f32.mrb[0].mxu0
      %3836 = vmatprep.mubr.bf16.mxu0 %v3100
      %3837 = vmatmul.mubr.bf16.gmra.mrb[0].mxu0 %v1240
      %v3838 = vpop.f32.mrb[0].mxu0
      %v3839 = vadd.f32 %v3678, %v3838
      %v3840 = vpop.f32.mrb[0].mxu0
      %v3841 = vpop.f32.mrb[0].mxu0
      %v3842 = vadd.f32 %v3681, %v3841
      %v3843 = vpop.f32.mrb[0].mxu0
      %3844 = vmatprep.mubr.bf16.mxu0 %v3102
      %3845 = vmatmul.mubr.bf16.gmra.mrb[0].mxu0 %v1242
      %v3846 = vpop.f32.mrb[0].mxu0
      %v3847 = vadd.f32 %v3686, %v3846
      %v3848 = vpop.f32.mrb[0].mxu0
      %v3849 = vpop.f32.mrb[0].mxu0
      %v3850 = vadd.f32 %v3689, %v3849
      %v3851 = vpop.f32.mrb[0].mxu0
      %3852 = vmatprep.mubr.bf16.mxu0 %v3104
      %3853 = vmatmul.mubr.bf16.gmra.mrb[0].mxu0 %v1245
      %v3854 = vpop.f32.mrb[0].mxu0
      %v3855 = vadd.f32 %v3694, %v3854
      %v3856 = vpop.f32.mrb[0].mxu0
      %v3857 = vpop.f32.mrb[0].mxu0
      %v3858 = vadd.f32 %v3697, %v3857
      %v3859 = vpop.f32.mrb[0].mxu0
      %3860 = vmatprep.mubr.bf16.mxu0 %v3106
      %3861 = vmatmul.mubr.bf16.gmra.mrb[0].mxu0 %v1247
      %v3862 = vpop.f32.mrb[0].mxu0
      %v3863 = vadd.f32 %v3702, %v3862
      %v3864 = vpop.f32.mrb[0].mxu0
      %v3865 = vpop.f32.mrb[0].mxu0
      %v3866 = vadd.f32 %v3705, %v3865
      %v3867 = vpop.f32.mrb[0].mxu0
      %3868 = vmatprep.mubr.bf16.mxu0 %v3108
      %3869 = vmatmul.mubr.bf16.gmra.mrb[0].mxu0 %v1250
      %v3870 = vpop.f32.mrb[0].mxu0
      %v3871 = vadd.f32 %v3710, %v3870
      %v3872 = vpop.f32.mrb[0].mxu0
      %v3873 = vpop.f32.mrb[0].mxu0
      %v3874 = vadd.f32 %v3713, %v3873
      %v3875 = vpop.f32.mrb[0].mxu0
      %3876 = vmatprep.mubr.bf16.mxu0 %v3110
      %3877 = vmatmul.mubr.bf16.gmra.mrb[0].mxu0 %v1252
      %v3878 = vpop.f32.mrb[0].mxu0
      %v3879 = vadd.f32 %v3718, %v3878
      %v3880 = vpop.f32.mrb[0].mxu0
      %v3881 = vpop.f32.mrb[0].mxu0
      %v3882 = vadd.f32 %v3721, %v3881
      %v3883 = vpop.f32.mrb[0].mxu0
      %3884 = vmatprep.mubr.bf16.mxu0 %v3112
      %3885 = vmatmul.mubr.bf16.gmra.mrb[0].mxu0 %v1255
      %v3886 = vpop.f32.mrb[0].mxu0
      %v3887 = vadd.f32 %v3726, %v3886
      %v3888 = vpop.f32.mrb[0].mxu0
      %v3889 = vpop.f32.mrb[0].mxu0
      %v3890 = vadd.f32 %v3729, %v3889
      %v3891 = vpop.f32.mrb[0].mxu0
      %3892 = vmatprep.mubr.bf16.mxu0 %v3114
      %3893 = vmatmul.mubr.bf16.gmra.mrb[0].mxu0 %v1257
      %v3894 = vpop.f32.mrb[0].mxu0
      %v3895 = vadd.f32 %v3734, %v3894
      %v3896 = vpop.f32.mrb[0].mxu0
      %v3897 = vpop.f32.mrb[0].mxu0
      %v3898 = vadd.f32 %v3737, %v3897
      %v3899 = vpop.f32.mrb[0].mxu0
      %3900 = vmatprep.mubr.bf16.mxu0 %v3116
      %3901 = vmatmul.mubr.bf16.gmra.mrb[0].mxu0 %v1300
      %v3902 = vpop.f32.mrb[0].mxu0
      %v3903 = vadd.f32 %v3742, %v3902
      %v3904 = vpop.f32.mrb[0].mxu0
      %v3905 = vpop.f32.mrb[0].mxu0
      %v3906 = vadd.f32 %v3745, %v3905
      %v3907 = vpop.f32.mrb[0].mxu0
      %3908 = vmatprep.mubr.bf16.mxu0 %v3118
      %3909 = vmatmul.mubr.bf16.gmra.mrb[0].mxu0 %v1302
      %v3910 = vpop.f32.mrb[0].mxu0
      %v3911 = vadd.f32 %v3750, %v3910
      %v3912 = vpop.f32.mrb[0].mxu0
      %v3913 = vpop.f32.mrb[0].mxu0
      %v3914 = vadd.f32 %v3753, %v3913
      %v3915 = vpop.f32.mrb[0].mxu0
      %3916 = vmatprep.mubr.bf16.mxu0 %v3120
      %3917 = vmatmul.mubr.bf16.gmra.mrb[0].mxu0 %v1331
      %v3918 = vpop.f32.mrb[0].mxu0
      %v3919 = vadd.f32 %v3758, %v3918
      %v3920 = vpop.f32.mrb[0].mxu0
      %v3921 = vpop.f32.mrb[0].mxu0
      %v3922 = vadd.f32 %v3761, %v3921
      %v3923 = vpop.f32.mrb[0].mxu0
      %3924 = vmatprep.mubr.bf16.mxu0 %v3122
      %3925 = vmatmul.mubr.bf16.gmra.mrb[0].mxu0 %v1333
      %v3926 = vpop.f32.mrb[0].mxu0
      %v3927 = vadd.f32 %v3766, %v3926
      %v3928 = vpop.f32.mrb[0].mxu0
      %v3929 = vpop.f32.mrb[0].mxu0
      %v3930 = vadd.f32 %v3769, %v3929
      %v3931 = vpop.f32.mrb[0].mxu0
      %3932 = vdwg.mxu0
      %v3933 = vld [vmem:[%s7] sm:$0x1]
      %v3935 = vlaneseq
      %v3936 = vshrl.u32 %v3935, 7
      %v3937 = vsub.s32 0, %v3936
      %v3938 = vrot.slane %v3933, %v3937
      %v3940 = vmul.f32 %v3807, %v3938
      %v3941 = vmul.f32 %v3810, %v3938
      %v3942 = vmul.f32 %v3815, %v3938
      %v3943 = vmul.f32 %v3818, %v3938
      %v3944 = vmul.f32 %v3823, %v3938
      %v3945 = vmul.f32 %v3826, %v3938
      %v3946 = vmul.f32 %v3831, %v3938
      %v3947 = vmul.f32 %v3834, %v3938
      %v3948 = vmul.f32 %v3839, %v3938
      %v3949 = vmul.f32 %v3842, %v3938
      %v3950 = vmul.f32 %v3847, %v3938
      %v3951 = vmul.f32 %v3850, %v3938
      %v3952 = vmul.f32 %v3855, %v3938
      %v3953 = vmul.f32 %v3858, %v3938
      %v3954 = vmul.f32 %v3863, %v3938
      %v3955 = vmul.f32 %v3866, %v3938
      %v3956 = vmul.f32 %v3871, %v3938
      %v3957 = vmul.f32 %v3874, %v3938
      %v3958 = vmul.f32 %v3879, %v3938
      %v3959 = vmul.f32 %v3882, %v3938
      %v3960 = vmul.f32 %v3887, %v3938
      %v3961 = vmul.f32 %v3890, %v3938
      %v3962 = vmul.f32 %v3895, %v3938
      %v3963 = vmul.f32 %v3898, %v3938
      %v3964 = vmul.f32 %v3903, %v3938
      %v3965 = vmul.f32 %v3906, %v3938
      %v3966 = vmul.f32 %v3911, %v3938
      %v3967 = vmul.f32 %v3914, %v3938
      %v3968 = vmul.f32 %v3919, %v3938
      %v3969 = vmul.f32 %v3922, %v3938
      %v3970 = vmul.f32 %v3927, %v3938
      %v3971 = vmul.f32 %v3930, %v3938
      %v3972 = vld [vmem:[%s8] sm:$0x1]
      %v3974 = vlaneseq
      %v3975 = vshrl.u32 %v3974, 7
      %v3976 = vsub.s32 0, %v3975
      %v3977 = vrot.slane %v3972, %v3976
      %v3979 = vadd.f32 %v3940, %v3977
      %v3980 = vadd.f32 %v3941, %v3977
      %v3981 = vadd.f32 %v3942, %v3977
      %v3982 = vadd.f32 %v3943, %v3977
      %v3983 = vadd.f32 %v3944, %v3977
      %v3984 = vadd.f32 %v3945, %v3977
      %v3985 = vadd.f32 %v3946, %v3977
      %v3986 = vadd.f32 %v3947, %v3977
      %v3987 = vadd.f32 %v3948, %v3977
      %v3988 = vadd.f32 %v3949, %v3977
      %v3989 = vadd.f32 %v3950, %v3977
      %v3990 = vadd.f32 %v3951, %v3977
      %v3991 = vadd.f32 %v3952, %v3977
      %v3992 = vadd.f32 %v3953, %v3977
      %v3993 = vadd.f32 %v3954, %v3977
      %v3994 = vadd.f32 %v3955, %v3977
      %v3995 = vadd.f32 %v3956, %v3977
      %v3996 = vadd.f32 %v3957, %v3977
      %v3997 = vadd.f32 %v3958, %v3977
      %v3998 = vadd.f32 %v3959, %v3977
      %v3999 = vadd.f32 %v3960, %v3977
      %v4000 = vadd.f32 %v3961, %v3977
      %v4001 = vadd.f32 %v3962, %v3977
      %v4002 = vadd.f32 %v3963, %v3977
      %v4003 = vadd.f32 %v3964, %v3977
      %v4004 = vadd.f32 %v3965, %v3977
      %v4005 = vadd.f32 %v3966, %v3977
      %v4006 = vadd.f32 %v3967, %v3977
      %v4007 = vadd.f32 %v3968, %v3977
      %v4008 = vadd.f32 %v3969, %v3977
      %v4009 = vadd.f32 %v3970, %v3977
      %v4010 = vadd.f32 %v3971, %v3977
      %v4011 = vmax.f32 %v3979, 0.0
      %v4012 = vmax.f32 %v3980, 0.0
      %v4013 = vmax.f32 %v3981, 0.0
      %v4014 = vmax.f32 %v3982, 0.0
      %v4015 = vmax.f32 %v3983, 0.0
      %v4016 = vmax.f32 %v3984, 0.0
      %v4017 = vmax.f32 %v3985, 0.0
      %v4018 = vmax.f32 %v3986, 0.0
      %v4019 = vmax.f32 %v3987, 0.0
      %v4020 = vmax.f32 %v3988, 0.0
      %v4021 = vmax.f32 %v3989, 0.0
      %v4022 = vmax.f32 %v3990, 0.0
      %v4023 = vmax.f32 %v3991, 0.0
      %v4024 = vmax.f32 %v3992, 0.0
      %v4025 = vmax.f32 %v3993, 0.0
      %v4026 = vmax.f32 %v3994, 0.0
      %v4027 = vmax.f32 %v3995, 0.0
      %v4028 = vmax.f32 %v3996, 0.0
      %v4029 = vmax.f32 %v3997, 0.0
      %v4030 = vmax.f32 %v3998, 0.0
      %v4031 = vmax.f32 %v3999, 0.0
      %v4032 = vmax.f32 %v4000, 0.0
      %v4033 = vmax.f32 %v4001, 0.0
      %v4034 = vmax.f32 %v4002, 0.0
      %v4035 = vmax.f32 %v4003, 0.0
      %v4036 = vmax.f32 %v4004, 0.0
      %v4037 = vmax.f32 %v4005, 0.0
      %v4038 = vmax.f32 %v4006, 0.0
      %v4039 = vmax.f32 %v4007, 0.0
      %v4040 = vmax.f32 %v4008, 0.0
      %v4041 = vmax.f32 %v4009, 0.0
      %v4042 = vmax.f32 %v4010, 0.0
      %v4043 = vpack.c.bf16 %v4012, %v4011
      %v4044 = vpack.c.bf16 %v4014, %v4013
      %v4045 = vpack.c.bf16 %v4016, %v4015
      %v4046 = vpack.c.bf16 %v4018, %v4017
      %v4047 = vpack.c.bf16 %v4020, %v4019
      %v4048 = vpack.c.bf16 %v4022, %v4021
      %v4049 = vpack.c.bf16 %v4024, %v4023
      %v4050 = vpack.c.bf16 %v4026, %v4025
      %v4051 = vpack.c.bf16 %v4028, %v4027
      %v4052 = vpack.c.bf16 %v4030, %v4029
      %v4053 = vpack.c.bf16 %v4032, %v4031
      %v4054 = vpack.c.bf16 %v4034, %v4033
      %v4055 = vpack.c.bf16 %v4036, %v4035
      %v4056 = vpack.c.bf16 %v4038, %v4037
      %v4057 = vpack.c.bf16 %v4040, %v4039
      %v4058 = vpack.c.bf16 %v4042, %v4041
      %v4075 = vunpack.c.l.b16 %v4043
      %v4076 = vunpack.c.h.b16 %v4043
      %v4077 = vunpack.c.l.b16 %v4044
      %v4078 = vunpack.c.h.b16 %v4044
      %v4079 = vunpack.c.l.b16 %v4045
      %v4080 = vunpack.c.h.b16 %v4045
      %v4081 = vunpack.c.l.b16 %v4046
      %v4082 = vunpack.c.h.b16 %v4046
      %v4083 = vunpack.c.l.b16 %v4047
      %v4084 = vunpack.c.h.b16 %v4047
      %v4085 = vunpack.c.l.b16 %v4048
      %v4086 = vunpack.c.h.b16 %v4048
      %v4087 = vunpack.c.l.b16 %v4049
      %v4088 = vunpack.c.h.b16 %v4049
      %v4089 = vunpack.c.l.b16 %v4050
      %v4090 = vunpack.c.h.b16 %v4050
      %v4091 = vunpack.c.l.b16 %v4051
      %v4092 = vunpack.c.h.b16 %v4051
      %v4093 = vunpack.c.l.b16 %v4052
      %v4094 = vunpack.c.h.b16 %v4052
      %v4095 = vunpack.c.l.b16 %v4053
      %v4096 = vunpack.c.h.b16 %v4053
      %v4097 = vunpack.c.l.b16 %v4054
      %v4098 = vunpack.c.h.b16 %v4054
      %v4099 = vunpack.c.l.b16 %v4055
      %v4100 = vunpack.c.h.b16 %v4055
      %v4101 = vunpack.c.l.b16 %v4056
      %v4102 = vunpack.c.h.b16 %v4056
      %v4103 = vunpack.c.l.b16 %v4057
      %v4104 = vunpack.c.h.b16 %v4057
      %v4105 = vunpack.c.l.b16 %v4058
      %v4106 = vunpack.c.h.b16 %v4058
      %v4107 = vpack.c.b16 %v4075, %v4075
      %v4108 = vpack.c.b16 %v4076, %v4076
      %v4109 = vpack.c.b16 %v4077, %v4077
      %v4110 = vpack.c.b16 %v4078, %v4078
      %v4111 = vpack.c.b16 %v4079, %v4079
      %v4112 = vpack.c.b16 %v4080, %v4080
      %v4113 = vpack.c.b16 %v4081, %v4081
      %v4114 = vpack.c.b16 %v4082, %v4082
      %v4115 = vpack.c.b16 %v4083, %v4083
      %v4116 = vpack.c.b16 %v4084, %v4084
      %v4117 = vpack.c.b16 %v4085, %v4085
      %v4118 = vpack.c.b16 %v4086, %v4086
      %v4119 = vpack.c.b16 %v4087, %v4087
      %v4120 = vpack.c.b16 %v4088, %v4088
      %v4121 = vpack.c.b16 %v4089, %v4089
      %v4122 = vpack.c.b16 %v4090, %v4090
      %v4123 = vpack.c.b16 %v4091, %v4091
      %v4124 = vpack.c.b16 %v4092, %v4092
      %v4125 = vpack.c.b16 %v4093, %v4093
      %v4126 = vpack.c.b16 %v4094, %v4094
      %v4127 = vpack.c.b16 %v4095, %v4095
      %v4128 = vpack.c.b16 %v4096, %v4096
      %v4129 = vpack.c.b16 %v4097, %v4097
      %v4130 = vpack.c.b16 %v4098, %v4098
      %v4131 = vpack.c.b16 %v4099, %v4099
      %v4132 = vpack.c.b16 %v4100, %v4100
      %v4133 = vpack.c.b16 %v4101, %v4101
      %v4134 = vpack.c.b16 %v4102, %v4102
      %v4135 = vpack.c.b16 %v4103, %v4103
      %v4136 = vpack.c.b16 %v4104, %v4104
      %v4137 = vpack.c.b16 %v4105, %v4105
      %v4138 = vpack.c.b16 %v4106, %v4106
      %4171 = vst [vmem:[%s662] sm:$0xf] %v4107
      %4172 = vst [vmem:[%s662 + $0x4] sm:$0xf] %v4108
      %4173 = vst [vmem:[%s662 + $0x8] sm:$0xf] %v4109
      %4174 = vst [vmem:[%s662 + $0xc] sm:$0xf] %v4110
      %4175 = vst [vmem:[%s662 + $0x10] sm:$0xf] %v4111
      %4176 = vst [vmem:[%s662 + $0x14] sm:$0xf] %v4112
      %4177 = vst [vmem:[%s662 + $0x18] sm:$0xf] %v4113
      %4178 = vst [vmem:[%s662 + $0x1c] sm:$0xf] %v4114
      %4179 = vst [vmem:[%s662 + $0x20] sm:$0xf] %v4115
      %4180 = vst [vmem:[%s662 + $0x24] sm:$0xf] %v4116
      %4181 = vst [vmem:[%s662 + $0x28] sm:$0xf] %v4117
      %4182 = vst [vmem:[%s662 + $0x2c] sm:$0xf] %v4118
      %4183 = vst [vmem:[%s662 + $0x30] sm:$0xf] %v4119
      %4184 = vst [vmem:[%s662 + $0x34] sm:$0xf] %v4120
      %4185 = vst [vmem:[%s662 + $0x38] sm:$0xf] %v4121
      %4186 = vst [vmem:[%s662 + $0x3c] sm:$0xf] %v4122
      %4187 = vst [vmem:[%s662 + $0x40] sm:$0xf] %v4123
      %4188 = vst [vmem:[%s662 + $0x44] sm:$0xf] %v4124
      %4189 = vst [vmem:[%s662 + $0x48] sm:$0xf] %v4125
      %4190 = vst [vmem:[%s662 + $0x4c] sm:$0xf] %v4126
      %4191 = vst [vmem:[%s662 + $0x50] sm:$0xf] %v4127
      %4192 = vst [vmem:[%s662 + $0x54] sm:$0xf] %v4128
      %4193 = vst [vmem:[%s662 + $0x58] sm:$0xf] %v4129
      %4194 = vst [vmem:[%s662 + $0x5c] sm:$0xf] %v4130
      %4195 = vst [vmem:[%s662 + $0x60] sm:$0xf] %v4131
      %4196 = vst [vmem:[%s662 + $0x64] sm:$0xf] %v4132
      %4197 = vst [vmem:[%s662 + $0x68] sm:$0xf] %v4133
      %4198 = vst [vmem:[%s662 + $0x6c] sm:$0xf] %v4134
      %4199 = vst [vmem:[%s662 + $0x70] sm:$0xf] %v4135
      %4200 = vst [vmem:[%s662 + $0x74] sm:$0xf] %v4136
      %4201 = vst [vmem:[%s662 + $0x78] sm:$0xf] %v4137
      %4202 = vst [vmem:[%s662 + $0x7c] sm:$0xf] %v4138
      %s4203 = smul.u32 8, %s25
      %p4204 = scmp.lt.s32.totalorder %s24, 1
      %s4205 = scalar_select %p4204, %s24, 1
      %p4206 = scmp.lt.s32.totalorder %s4203, 31
      %s4207 = scalar_select %p4206, %s4203, 31
      %s4208 = smul.addr %s4207, 4
      %s4209 = smul.addr %s4205, 128
      %s4210 = sadd.s32 %s4208, %s4209
      %s4211 = smul.addr %s4210, 4
      %s4212 = scalar_lea.vmem %s9, %s4211
      // Predicated region
      $region57: #{upconv_forward.4} parent=55 // pred_check
        %p4213 = pneg %p315
      $region58: #{upconv_forward.4} parent=55 // pred_check_branch
        %4215 = sbr.rel (%p4213) target = $region60
      $region59: #{upconv_forward.4} parent=55 // pred_region
        %s4216 = smul.u32 8, %s25
      $region60: #{upconv_forward.4} parent=55 // pred_fallthru
        _
    $region56: #{upconv_forward.4} parent=5 // pred_fallthru
      _
    %p4217 = scmp.le.s32.totalorder 2, %s15
    // Predicated region
    $region61: #{upconv_forward.4} parent=5 // pred_check
      %p4218 = pneg %p4217
    $region62: #{upconv_forward.4} parent=5 // pred_check_branch
      %4220 = sbr.rel (%p4218) target = $region64
    $region63: #{upconv_forward.4} parent=5 // pred_region
      %s4221 = ssub.s32 %s15, 2
      // Predicated region
      $region65: #{upconv_forward.4} parent=63 // pred_check
        %p4222 = pneg %p321
      $region66: #{upconv_forward.4} parent=63 // pred_check_branch
        %4224 = sbr.rel (%p4222) target = $region68
      $region67: #{upconv_forward.4} parent=63 // pred_region
        %s4225 = smul.u32 8, %s27
        %p4226 = scmp.lt.s32.totalorder %s26, 1
        %s4227 = scalar_select %p4226, %s26, 1
        %p4228 = scmp.lt.s32.totalorder %s4225, 31
        %s4229 = scalar_select %p4228, %s4225, 31
        %s4230 = smul.addr %s4229, 4
        %s4231 = smul.addr %s4227, 128
        %s4232 = sadd.s32 %s4230, %s4231
        %s4233 = smul.addr %s4232, 4
        %s4234 = scalar_lea.vmem %s9, %s4233
      $region68: #{upconv_forward.4} parent=63 // pred_fallthru
        _
    $region64: #{upconv_forward.4} parent=5 // pred_fallthru
      _
  $region6: #{upconv_forward.4} parent=0 // loop_footer
    %s19 = sadd.s32 1, %s15
  $region7: #{upconv_forward.4} parent=0 // loop_footer_branch
    %14 = sbr.rel target = $region3
  $region8: #{upconv_forward.4} parent=0 // loop_exit
    _

// kernel: upconv_forward.5
$region0: #{upconv_forward.5}
  #allocation0 [shape = 'u32[]', space=smem, size = 0x4, offset = 0x4, fixed_abs, tag = 'smem constant byte address 0x4 - core index']
  #allocation1 [shape = 'u32[144,128]{1,0:T(1,128)}', space=vmem, size = 0x12000, scoped, tag = 'internal scratch']
  %s0 = inlined_call_operand.vmem [shape: bf16[2,32,32,128], index: 0, kind: input, shape index: {}, may-alias: {0,1,2}]
  %s1 = inlined_call_operand.vmem [shape: bf16[2,32,32,128], index: 1, kind: input, shape index: {}, may-alias: {0,1,2}]
  %s2 = inlined_call_operand.vmem [shape: bf16[2,32,32,128], index: 2, kind: input, shape index: {}, may-alias: {0,1,2}]
  %s3 = inlined_call_operand.vmem [shape: bf16[1152,128], index: 3, kind: input, shape index: {}]
  %s4 = inlined_call_operand.vmem [shape: f32[1,128], index: 4, kind: input, shape index: {}]
  %s5 = inlined_call_operand.vmem [shape: f32[1,128], index: 5, kind: input, shape index: {}]
  %s6 = inlined_call_operand.vmem [shape: f32[2,32,32,128], index: 6, kind: output, shape index: {}]
  %s7 = sld [smem:[#allocation0]]
  $region57: #{upconv_forward.5} parent=0
    _
  %s9 = ssub.s32 1, %s7
  %s10 = scalar_select 0, %s9, %s7
  loop: start=0, step=1, limit=10
  $region2: #{upconv_forward.5} parent=0 // loop_pre_header
    _
  $region3: #{upconv_forward.5} parent=0 // loop_header
    %s12 = sphi 0, %s16
    %p13 = scmp.ge.s32.totalorder %s12, 10
    %s19 = sphi 0, %s31
    %s20 = sphi 0, %s27
    %s21 = sphi 0, %s19
    %s22 = sphi 0, %s20
    %s23 = sphi 0, %s21
    %s24 = sphi 0, %s22
    %s36 = sphi 0, %s38
    %s39 = sphi 0, %s36
    %s40 = sphi 0, %s39
    %s56 = sphi 0, %s40
    %s72 = sphi 0, %s74
    %s75 = sphi 0, %s72
    %s76 = sphi 0, %s75
    %s92 = sphi 0, %s76
    %s108 = sphi 0, %s110
    %s111 = sphi 0, %s108
    %s112 = sphi 0, %s111
    %s128 = sphi 0, %s112
    %s132 = sphi 0, %s132
    %s134 = sphi 0, %s132
    %s135 = sphi 0, %s134
    %s149 = sphi 0, %s135
    %s153 = sphi 0, %s153
    %s155 = sphi 0, %s153
    %s156 = sphi 0, %s155
    %s170 = sphi 0, %s156
    %s174 = sphi 0, %s174
    %s176 = sphi 0, %s174
    %s177 = sphi 0, %s176
    %s191 = sphi 0, %s177
    %s199 = sphi 0, %s201
    %s202 = sphi 0, %s199
    %s203 = sphi 0, %s202
    %s219 = sphi 0, %s203
  $region4: #{upconv_forward.5} parent=0 // loop_header_branch
    %15 = sbr.rel (%p13) target = $region8
  $region5: #{upconv_forward.5} parent=0 // loop_body
    %s17 = ssub.s32 %s12, 1
    %s18 = ssub.s32 %s12, 2
    %s25 = sadd.s32 1, %s20
    %p26 = scmp.ge.s32.totalorder %s25, 4
    %s27 = scalar_select %p26, 0, %s25
    %s28 = sadd.s32 1, %s19
    %s29 = scalar_select %p26, %s28, %s19
    %p30 = scmp.ge.s32.totalorder %s29, 2
    %s31 = scalar_select %p30, 0, %s29
    %s32 = ssub.s32 %s19, %s31
    %s33 = ssub.s32 %s20, %s27
    %s34 = sor.u32 %s32, %s33
    %p35 = scmp.eq.s32.totalorder %s34, 0
    %s37 = sadd.s32 %s36, 1
    %s38 = scalar_select %p35, %s36, %s37
    %p41 = pneg %p35
    %p42 = scmp.eq.s32.totalorder %s12, 7
    %p43 = por %p41, %p42
    %p44 = scmp.ne.s32.totalorder %s36, %s39
    %p45 = scmp.eq.s32.totalorder %s12, 0
    %p46 = por %p44, %p45
    %p47 = scmp.ne.s32.totalorder %s36, %s39
    %p48 = scmp.eq.s32.totalorder %s17, 7
    %p49 = por %p47, %p48
    %p50 = scmp.ne.s32.totalorder %s39, %s40
    %p51 = scmp.eq.s32.totalorder %s17, 0
    %p52 = por %p50, %p51
    %p53 = scmp.ne.s32.totalorder %s39, %s40
    %p54 = scmp.eq.s32.totalorder %s18, 7
    %p55 = por %p53, %p54
    %p57 = scmp.ne.s32.totalorder %s40, %s56
    %p58 = scmp.eq.s32.totalorder %s18, 0
    %p59 = por %p57, %p58
    %s60 = smul.u32 %s20, 8
    %s61 = ssub.s32 %s60, 1
    %p62 = scmp.gt.s32.totalorder %s61, 0
    %s63 = scalar_select %p62, %s61, 0
    %s64 = smul.u32 %s27, 8
    %s65 = ssub.s32 %s64, 1
    %p66 = scmp.gt.s32.totalorder %s65, 0
    %s67 = scalar_select %p66, %s65, 0
    %s68 = ssub.s32 %s19, %s31
    %s69 = ssub.s32 %s63, %s67
    %s70 = sor.u32 %s68, %s69
    %p71 = scmp.eq.s32.totalorder %s70, 0
    %s73 = sadd.s32 %s72, 1
    %s74 = scalar_select %p71, %s72, %s73
    %p77 = pneg %p71
    %p78 = scmp.eq.s32.totalorder %s12, 7
    %p79 = por %p77, %p78
    %p80 = scmp.ne.s32.totalorder %s72, %s75
    %p81 = scmp.eq.s32.totalorder %s12, 0
    %p82 = por %p80, %p81
    %p83 = scmp.ne.s32.totalorder %s72, %s75
    %p84 = scmp.eq.s32.totalorder %s17, 7
    %p85 = por %p83, %p84
    %p86 = scmp.ne.s32.totalorder %s75, %s76
    %p87 = scmp.eq.s32.totalorder %s17, 0
    %p88 = por %p86, %p87
    %p89 = scmp.ne.s32.totalorder %s75, %s76
    %p90 = scmp.eq.s32.totalorder %s18, 7
    %p91 = por %p89, %p90
    %p93 = scmp.ne.s32.totalorder %s76, %s92
    %p94 = scmp.eq.s32.totalorder %s18, 0
    %p95 = por %p93, %p94
    %s96 = sadd.s32 %s20, 1
    %s97 = smul.u32 %s96, 8
    %p98 = scmp.lt.s32.totalorder %s97, 31
    %s99 = scalar_select %p98, %s97, 31
    %s100 = sadd.s32 %s27, 1
    %s101 = smul.u32 %s100, 8
    %p102 = scmp.lt.s32.totalorder %s101, 31
    %s103 = scalar_select %p102, %s101, 31
    %s104 = ssub.s32 %s19, %s31
    %s105 = ssub.s32 %s99, %s103
    %s106 = sor.u32 %s104, %s105
    %p107 = scmp.eq.s32.totalorder %s106, 0
    %s109 = sadd.s32 %s108, 1
    %s110 = scalar_select %p107, %s108, %s109
    %p113 = pneg %p107
    %p114 = scmp.eq.s32.totalorder %s12, 7
    %p115 = por %p113, %p114
    %p116 = scmp.ne.s32.totalorder %s108, %s111
    %p117 = scmp.eq.s32.totalorder %s12, 0
    %p118 = por %p116, %p117
    %p119 = scmp.ne.s32.totalorder %s108, %s111
    %p120 = scmp.eq.s32.totalorder %s17, 7
    %p121 = por %p119, %p120
    %p122 = scmp.ne.s32.totalorder %s111, %s112
    %p123 = scmp.eq.s32.totalorder %s17, 0
    %p124 = por %p122, %p123
    %p125 = scmp.ne.s32.totalorder %s111, %s112
    %p126 = scmp.eq.s32.totalorder %s18, 7
    %p127 = por %p125, %p126
    %p129 = scmp.ne.s32.totalorder %s112, %s128
    %p130 = scmp.eq.s32.totalorder %s18, 0
    %p131 = por %p129, %p130
    %s133 = sadd.s32 %s132, 1
    %p136 = scmp.eq.s32.totalorder %s12, 7
    %p137 = scmp.ne.s32.totalorder %s132, %s134
    %p138 = scmp.eq.s32.totalorder %s12, 0
    %p139 = por %p137, %p138
    %p140 = scmp.ne.s32.totalorder %s132, %s134
    %p141 = scmp.eq.s32.totalorder %s17, 7
    %p142 = por %p140, %p141
    %p143 = scmp.ne.s32.totalorder %s134, %s135
    %p144 = scmp.eq.s32.totalorder %s17, 0
    %p145 = por %p143, %p144
    %p146 = scmp.ne.s32.totalorder %s134, %s135
    %p147 = scmp.eq.s32.totalorder %s18, 7
    %p148 = por %p146, %p147
    %p150 = scmp.ne.s32.totalorder %s135, %s149
    %p151 = scmp.eq.s32.totalorder %s18, 0
    %p152 = por %p150, %p151
    %s154 = sadd.s32 %s153, 1
    %p157 = scmp.eq.s32.totalorder %s12, 7
    %p158 = scmp.ne.s32.totalorder %s153, %s155
    %p159 = scmp.eq.s32.totalorder %s12, 0
    %p160 = por %p158, %p159
    %p161 = scmp.ne.s32.totalorder %s153, %s155
    %p162 = scmp.eq.s32.totalorder %s17, 7
    %p163 = por %p161, %p162
    %p164 = scmp.ne.s32.totalorder %s155, %s156
    %p165 = scmp.eq.s32.totalorder %s17, 0
    %p166 = por %p164, %p165
    %p167 = scmp.ne.s32.totalorder %s155, %s156
    %p168 = scmp.eq.s32.totalorder %s18, 7
    %p169 = por %p167, %p168
    %p171 = scmp.ne.s32.totalorder %s156, %s170
    %p172 = scmp.eq.s32.totalorder %s18, 0
    %p173 = por %p171, %p172
    %s175 = sadd.s32 %s174, 1
    %p178 = scmp.eq.s32.totalorder %s12, 7
    %p179 = scmp.ne.s32.totalorder %s174, %s176
    %p180 = scmp.eq.s32.totalorder %s12, 0
    %p181 = por %p179, %p180
    %p182 = scmp.ne.s32.totalorder %s174, %s176
    %p183 = scmp.eq.s32.totalorder %s17, 7
    %p184 = por %p182, %p183
    %p185 = scmp.ne.s32.totalorder %s176, %s177
    %p186 = scmp.eq.s32.totalorder %s17, 0
    %p187 = por %p185, %p186
    %p188 = scmp.ne.s32.totalorder %s176, %s177
    %p189 = scmp.eq.s32.totalorder %s18, 7
    %p190 = por %p188, %p189
    %p192 = scmp.ne.s32.totalorder %s177, %s191
    %p193 = scmp.eq.s32.totalorder %s18, 0
    %p194 = por %p192, %p193
    %s195 = ssub.s32 %s19, %s31
    %s196 = ssub.s32 %s20, %s27
    %s197 = sor.u32 %s195, %s196
    %p198 = scmp.eq.s32.totalorder %s197, 0
    %s200 = sadd.s32 %s199, 1
    %s201 = scalar_select %p198, %s199, %s200
    %p204 = pneg %p198
    %p205 = scmp.eq.s32.totalorder %s12, 7
    %p206 = por %p204, %p205
    %p207 = scmp.ne.s32.totalorder %s199, %s202
    %p208 = scmp.eq.s32.totalorder %s12, 0
    %p209 = por %p207, %p208
    %p210 = scmp.ne.s32.totalorder %s199, %s202
    %p211 = scmp.eq.s32.totalorder %s17, 7
    %p212 = por %p210, %p211
    %p213 = scmp.ne.s32.totalorder %s202, %s203
    %p214 = scmp.eq.s32.totalorder %s17, 0
    %p215 = por %p213, %p214
    %p216 = scmp.ne.s32.totalorder %s202, %s203
    %p217 = scmp.eq.s32.totalorder %s18, 7
    %p218 = por %p216, %p217
    %p220 = scmp.ne.s32.totalorder %s203, %s219
    %p221 = scmp.eq.s32.totalorder %s18, 0
    %p222 = por %p220, %p221
    %p223 = scmp.le.s32.totalorder 1, %s12
    %p224 = scmp.lt.s32.totalorder %s12, 9
    %p225 = pnand %p223, %p224
    %p226 = pneg %p225
    // Predicated region
    $region9: #{upconv_forward.5} parent=5 // pred_check
      _
    $region10: #{upconv_forward.5} parent=5 // pred_check_branch
      %228 = sbr.rel (%p225) target = $region12
    $region11: #{upconv_forward.5} parent=5 // pred_region
      %s229 = ssub.s32 %s12, 1
      // Predicated region
      $region13: #{upconv_forward.5} parent=11 // pred_check
        %p230 = pneg %p145
      $region14: #{upconv_forward.5} parent=11 // pred_check_branch
        %232 = sbr.rel (%p230) target = $region16
      $region15: #{upconv_forward.5} parent=11 // pred_region
        _
      $region16: #{upconv_forward.5} parent=11 // pred_fallthru
        _
      // Predicated region
      $region17: #{upconv_forward.5} parent=11 // pred_check
        %p233 = pneg %p166
      $region18: #{upconv_forward.5} parent=11 // pred_check_branch
        %235 = sbr.rel (%p233) target = $region20
      $region19: #{upconv_forward.5} parent=11 // pred_region
        _
      $region20: #{upconv_forward.5} parent=11 // pred_fallthru
        _
      // Predicated region
      $region21: #{upconv_forward.5} parent=11 // pred_check
        %p236 = pneg %p187
      $region22: #{upconv_forward.5} parent=11 // pred_check_branch
        %238 = sbr.rel (%p236) target = $region24
      $region23: #{upconv_forward.5} parent=11 // pred_region
        _
      $region24: #{upconv_forward.5} parent=11 // pred_fallthru
        _
    $region12: #{upconv_forward.5} parent=5 // pred_fallthru
      _
    %p239 = scmp.lt.s32.totalorder %s12, 8
    // Predicated region
    $region25: #{upconv_forward.5} parent=5 // pred_check
      %p240 = pneg %p239
    $region26: #{upconv_forward.5} parent=5 // pred_check_branch
      %242 = sbr.rel (%p240) target = $region28
    $region27: #{upconv_forward.5} parent=5 // pred_region
      // Predicated region
      $region29: #{upconv_forward.5} parent=27 // pred_check
        %p243 = pneg %p46
      $region30: #{upconv_forward.5} parent=27 // pred_check_branch
        %245 = sbr.rel (%p243) target = $region32
      $region31: #{upconv_forward.5} parent=27 // pred_region
        %s246 = smul.u32 8, %s20
        %p247 = scmp.lt.s32.totalorder %s19, 1
        %s248 = scalar_select %p247, %s19, 1
        %p249 = scmp.lt.s32.totalorder %s246, 31
        %s250 = scalar_select %p249, %s246, 31
        %s251 = smul.addr %s250, 4
        %s252 = smul.addr %s248, 128
        %s253 = sadd.s32 %s251, %s252
        %s254 = smul.addr %s253, 4
        %s255 = scalar_lea.vmem %s0, %s254
        %s256 = smul.u32 8, %s20
      $region32: #{upconv_forward.5} parent=27 // pred_fallthru
        _
      // Predicated region
      $region33: #{upconv_forward.5} parent=27 // pred_check
        %p257 = pneg %p82
      $region34: #{upconv_forward.5} parent=27 // pred_check_branch
        %259 = sbr.rel (%p257) target = $region36
      $region35: #{upconv_forward.5} parent=27 // pred_region
        %s260 = smul.u32 %s20, 8
        %s261 = ssub.s32 %s260, 1
        %p262 = scmp.gt.s32.totalorder %s261, 0
        %s263 = scalar_select %p262, %s261, 0
        %p264 = scmp.lt.s32.totalorder %s19, 1
        %s265 = scalar_select %p264, %s19, 1
        %p266 = scmp.lt.s32.totalorder %s263, 31
        %s267 = scalar_select %p266, %s263, 31
        %s268 = smul.addr %s267, 4
        %s269 = smul.addr %s265, 128
        %s270 = sadd.s32 %s268, %s269
        %s271 = smul.addr %s270, 4
        %s272 = scalar_lea.vmem %s1, %s271
        %s273 = smul.u32 %s20, 8
        %s274 = ssub.s32 %s273, 1
        %p275 = scmp.gt.s32.totalorder %s274, 0
        %s276 = scalar_select %p275, %s274, 0
      $region36: #{upconv_forward.5} parent=27 // pred_fallthru
        _
      // Predicated region
      $region37: #{upconv_forward.5} parent=27 // pred_check
        %p277 = pneg %p118
      $region38: #{upconv_forward.5} parent=27 // pred_check_branch
        %279 = sbr.rel (%p277) target = $region40
      $region39: #{upconv_forward.5} parent=27 // pred_region
        %s280 = sadd.s32 %s20, 1
        %s281 = smul.u32 %s280, 8
        %p282 = scmp.lt.s32.totalorder %s281, 31
        %s283 = scalar_select %p282, %s281, 31
        %p284 = scmp.lt.s32.totalorder %s19, 1
        %s285 = scalar_select %p284, %s19, 1
        %p286 = scmp.lt.s32.totalorder %s283, 31
        %s287 = scalar_select %p286, %s283, 31
        %s288 = smul.addr %s287, 4
        %s289 = smul.addr %s285, 128
        %s290 = sadd.s32 %s288, %s289
        %s291 = smul.addr %s290, 4
        %s292 = scalar_lea.vmem %s2, %s291
        %s293 = sadd.s32 %s20, 1
        %s294 = smul.u32 %s293, 8
        %p295 = scmp.lt.s32.totalorder %s294, 31
        %s296 = scalar_select %p295, %s294, 31
      $region40: #{upconv_forward.5} parent=27 // pred_fallthru
        _
    $region28: #{upconv_forward.5} parent=5 // pred_fallthru
      _
    %p297 = scmp.le.s32.totalorder 1, %s12
    %p298 = scmp.lt.s32.totalorder %s12, 9
    %p299 = pnand %p297, %p298
    %p300 = pneg %p299
    // Predicated region
    $region41: #{upconv_forward.5} parent=5 // pred_check
      _
    $region42: #{upconv_forward.5} parent=5 // pred_check_branch
      %302 = sbr.rel (%p299) target = $region44
    $region43: #{upconv_forward.5} parent=5 // pred_region
      %s303 = ssub.s32 %s12, 1
      %s304 = smul.u32 8, %s22
      %p305 = scmp.lt.s32.totalorder %s21, 1
      %s306 = scalar_select %p305, %s21, 1
      %p307 = scmp.lt.s32.totalorder %s304, 31
      %s308 = scalar_select %p307, %s304, 31
      %s309 = smul.addr %s308, 4
      %s310 = smul.addr %s306, 128
      %s311 = sadd.s32 %s309, %s310
      %s312 = smul.addr %s311, 4
      %s313 = scalar_lea.vmem %s0, %s312
      %p314 = pneg %p52
      %p315 = pneg %p49
      %s316 = smul.u32 %s22, 8
      %s317 = ssub.s32 %s316, 1
      %p318 = scmp.gt.s32.totalorder %s317, 0
      %s319 = scalar_select %p318, %s317, 0
      %p320 = scmp.lt.s32.totalorder %s21, 1
      %s321 = scalar_select %p320, %s21, 1
      %p322 = scmp.lt.s32.totalorder %s319, 31
      %s323 = scalar_select %p322, %s319, 31
      %s324 = smul.addr %s323, 4
      %s325 = smul.addr %s321, 128
      %s326 = sadd.s32 %s324, %s325
      %s327 = smul.addr %s326, 4
      %s328 = scalar_lea.vmem %s1, %s327
      %p329 = pneg %p88
      %p330 = pneg %p85
      %s331 = sadd.s32 %s22, 1
      %s332 = smul.u32 %s331, 8
      %p333 = scmp.lt.s32.totalorder %s332, 31
      %s334 = scalar_select %p333, %s332, 31
      %p335 = scmp.lt.s32.totalorder %s21, 1
      %s336 = scalar_select %p335, %s21, 1
      %p337 = scmp.lt.s32.totalorder %s334, 31
      %s338 = scalar_select %p337, %s334, 31
      %s339 = smul.addr %s338, 4
      %s340 = smul.addr %s336, 128
      %s341 = sadd.s32 %s339, %s340
      %s342 = smul.addr %s341, 4
      %s343 = scalar_lea.vmem %s2, %s342
      %p344 = pneg %p124
      %p345 = pneg %p121
      %p346 = pneg %p145
      %p347 = pneg %p142
      %p348 = pneg %p166
      %p349 = pneg %p163
      %p350 = pneg %p187
      %p351 = pneg %p184
      %p352 = pneg %p215
      %p353 = pneg %p212
      %s354 = smul.u32 8, %s22
      %p355 = scmp.lt.s32.totalorder %s21, 1
      %s356 = scalar_select %p355, %s21, 1
      %p357 = scmp.lt.s32.totalorder %s354, 31
      %s358 = scalar_select %p357, %s354, 31
      %s359 = smul.addr %s358, 4
      %s360 = smul.addr %s356, 128
      %s361 = sadd.s32 %s359, %s360
      %s362 = smul.addr %s361, 8
      %s363 = scalar_lea.vmem %s6, %s362
      %s364 = smul.u32 8, %s22
      %p365 = scmp.lt.s32.totalorder %s21, 1
      %s366 = scalar_select %p365, %s21, 1
      %p367 = scmp.lt.s32.totalorder %s364, 31
      %s368 = scalar_select %p367, %s364, 31
      %s369 = smul.addr %s368, 4
      %s370 = smul.addr %s366, 128
      %s371 = sadd.s32 %s369, %s370
      %s372 = smul.addr %s371, 4
      %s373 = scalar_lea.vmem %s0, %s372
      %s374 = smul.u32 8, %s22
      %s375 = smul.u32 %s22, 8
      %s376 = ssub.s32 %s375, 1
      %p377 = scmp.gt.s32.totalorder %s376, 0
      %s378 = scalar_select %p377, %s376, 0
      %p379 = scmp.lt.s32.totalorder %s21, 1
      %s380 = scalar_select %p379, %s21, 1
      %p381 = scmp.lt.s32.totalorder %s378, 31
      %s382 = scalar_select %p381, %s378, 31
      %s383 = smul.addr %s382, 4
      %s384 = smul.addr %s380, 128
      %s385 = sadd.s32 %s383, %s384
      %s386 = smul.addr %s385, 4
      %s387 = scalar_lea.vmem %s1, %s386
      %s388 = smul.u32 %s22, 8
      %s389 = ssub.s32 %s388, 1
      %p390 = scmp.gt.s32.totalorder %s389, 0
      %s391 = scalar_select %p390, %s389, 0
      %s392 = sadd.s32 %s22, 1
      %s393 = smul.u32 %s392, 8
      %p394 = scmp.lt.s32.totalorder %s393, 31
      %s395 = scalar_select %p394, %s393, 31
      %p396 = scmp.lt.s32.totalorder %s21, 1
      %s397 = scalar_select %p396, %s21, 1
      %p398 = scmp.lt.s32.totalorder %s395, 31
      %s399 = scalar_select %p398, %s395, 31
      %s400 = smul.addr %s399, 4
      %s401 = smul.addr %s397, 128
      %s402 = sadd.s32 %s400, %s401
      %s403 = smul.addr %s402, 4
      %s404 = scalar_lea.vmem %s2, %s403
      %s405 = sadd.s32 %s22, 1
      %s406 = smul.u32 %s405, 8
      %p407 = scmp.lt.s32.totalorder %s406, 31
      %s408 = scalar_select %p407, %s406, 31
      %s409 = smul.u32 8, %s22
      %p410 = scmp.lt.s32.totalorder %s21, 1
      %s411 = scalar_select %p410, %s21, 1
      %p412 = scmp.lt.s32.totalorder %s409, 31
      %s413 = scalar_select %p412, %s409, 31
      %s414 = smul.addr %s413, 4
      %s415 = smul.addr %s411, 128
      %s416 = sadd.s32 %s414, %s415
      %s417 = smul.addr %s416, 8
      %s418 = scalar_lea.vmem %s6, %s417
      %s419 = smul.u32 8, %s22
      %p421 = scmp.eq.s32.totalorder %s22, 0
      %p422 = scmp.eq.s32.totalorder %s22, 3
      %v423 = vld [vmem:[%s373] sm:$0xf]
      %v424 = vld [vmem:[%s373 + $0x4] sm:$0xf]
      %v425 = vld [vmem:[%s373 + $0x8] sm:$0xf]
      %v426 = vld [vmem:[%s373 + $0xc] sm:$0xf]
      %v427 = vld [vmem:[%s373 + $0x10] sm:$0xf]
      %v428 = vld [vmem:[%s373 + $0x14] sm:$0xf]
      %v429 = vld [vmem:[%s373 + $0x18] sm:$0xf]
      %v430 = vld [vmem:[%s373 + $0x1c] sm:$0xf]
      %v431 = vld [vmem:[%s373 + $0x20] sm:$0xf]
      %v432 = vld [vmem:[%s373 + $0x24] sm:$0xf]
      %v433 = vld [vmem:[%s373 + $0x28] sm:$0xf]
      %v434 = vld [vmem:[%s373 + $0x2c] sm:$0xf]
      %v435 = vld [vmem:[%s373 + $0x30] sm:$0xf]
      %v436 = vld [vmem:[%s373 + $0x34] sm:$0xf]
      %v437 = vld [vmem:[%s373 + $0x38] sm:$0xf]
      %v438 = vld [vmem:[%s373 + $0x3c] sm:$0xf]
      %v439 = vld [vmem:[%s373 + $0x40] sm:$0xf]
      %v440 = vld [vmem:[%s373 + $0x44] sm:$0xf]
      %v441 = vld [vmem:[%s373 + $0x48] sm:$0xf]
      %v442 = vld [vmem:[%s373 + $0x4c] sm:$0xf]
      %v443 = vld [vmem:[%s373 + $0x50] sm:$0xf]
      %v444 = vld [vmem:[%s373 + $0x54] sm:$0xf]
      %v445 = vld [vmem:[%s373 + $0x58] sm:$0xf]
      %v446 = vld [vmem:[%s373 + $0x5c] sm:$0xf]
      %v447 = vld [vmem:[%s373 + $0x60] sm:$0xf]
      %v448 = vld [vmem:[%s373 + $0x64] sm:$0xf]
      %v449 = vld [vmem:[%s373 + $0x68] sm:$0xf]
      %v450 = vld [vmem:[%s373 + $0x6c] sm:$0xf]
      %v451 = vld [vmem:[%s373 + $0x70] sm:$0xf]
      %v452 = vld [vmem:[%s373 + $0x74] sm:$0xf]
      %v453 = vld [vmem:[%s373 + $0x78] sm:$0xf]
      %v454 = vld [vmem:[%s373 + $0x7c] sm:$0xf]
      %v455 = vld [vmem:[%s387] sm:$0xf]
      %v456 = vld [vmem:[%s387 + $0x4] sm:$0xf]
      %v457 = vld [vmem:[%s387 + $0x8] sm:$0xf]
      %v458 = vld [vmem:[%s387 + $0xc] sm:$0xf]
      %v459 = vld [vmem:[%s404] sm:$0xf]
      %v460 = vld [vmem:[%s404 + $0x4] sm:$0xf]
      %v461 = vld [vmem:[%s404 + $0x8] sm:$0xf]
      %v462 = vld [vmem:[%s404 + $0xc] sm:$0xf]
      %s463 = scalar_select %p421, 1, 0
      %v464 = vstv %s463
      %vm465 = vcmp.eq.s32.totalorder %v464, 1
      %v466 = vsel %vm465, 0, %v455
      %v467 = vsel %vm465, 0, %v456
      %v468 = vsel %vm465, 0, %v457
      %v469 = vsel %vm465, 0, %v458
      %s470 = scalar_select %p422, 1, 0
      %v471 = vstv %s470
      %vm472 = vcmp.eq.s32.totalorder %v471, 1
      %v473 = vsel %vm472, 0, %v459
      %v474 = vsel %vm472, 0, %v460
      %v475 = vsel %vm472, 0, %v461
      %v476 = vsel %vm472, 0, %v462
      %v517 = vunpack.c.l.b16 %v466
      %v518 = vunpack.c.l.b16 %v467
      %v519 = vunpack.c.l.b16 %v468
      %v520 = vunpack.c.l.b16 %v469
      %v521 = vunpack.c.l.b16 %v423
      %v522 = vunpack.c.l.b16 %v424
      %v523 = vunpack.c.l.b16 %v425
      %v524 = vunpack.c.l.b16 %v426
      %v525 = vunpack.c.l.b16 %v427
      %v526 = vunpack.c.l.b16 %v428
      %v527 = vunpack.c.l.b16 %v429
      %v528 = vunpack.c.l.b16 %v430
      %v529 = vunpack.c.l.b16 %v431
      %v530 = vunpack.c.l.b16 %v432
      %v531 = vunpack.c.l.b16 %v433
      %v532 = vunpack.c.l.b16 %v434
      %v533 = vunpack.c.l.b16 %v435
      %v534 = vunpack.c.l.b16 %v436
      %v535 = vunpack.c.l.b16 %v437
      %v536 = vunpack.c.l.b16 %v438
      %v537 = vunpack.c.l.b16 %v439
      %v538 = vunpack.c.l.b16 %v440
      %v539 = vunpack.c.l.b16 %v441
      %v540 = vunpack.c.l.b16 %v442
      %v541 = vunpack.c.l.b16 %v443
      %v542 = vunpack.c.l.b16 %v444
      %v543 = vunpack.c.l.b16 %v445
      %v544 = vunpack.c.l.b16 %v446
      %v545 = vunpack.c.l.b16 %v447
      %v546 = vunpack.c.l.b16 %v448
      %v547 = vunpack.c.l.b16 %v449
      %v548 = vunpack.c.l.b16 %v450
      %v549 = vunpack.c.l.b16 %v451
      %v550 = vunpack.c.l.b16 %v452
      %v551 = vunpack.c.l.b16 %v453
      %v552 = vunpack.c.l.b16 %v454
      %v553 = vunpack.c.l.b16 %v473
      %v554 = vunpack.c.l.b16 %v474
      %v555 = vunpack.c.l.b16 %v475
      %v556 = vunpack.c.l.b16 %v476
      %v557 = vpack.c.b16 %v518, %v517
      %v558 = vpack.c.b16 %v520, %v519
      %v559 = vpack.c.b16 %v522, %v521
      %v560 = vpack.c.b16 %v524, %v523
      %v561 = vpack.c.b16 %v526, %v525
      %v562 = vpack.c.b16 %v528, %v527
      %v563 = vpack.c.b16 %v530, %v529
      %v564 = vpack.c.b16 %v532, %v531
      %v565 = vpack.c.b16 %v534, %v533
      %v566 = vpack.c.b16 %v536, %v535
      %v567 = vpack.c.b16 %v538, %v537
      %v568 = vpack.c.b16 %v540, %v539
      %v569 = vpack.c.b16 %v542, %v541
      %v570 = vpack.c.b16 %v544, %v543
      %v571 = vpack.c.b16 %v546, %v545
      %v572 = vpack.c.b16 %v548, %v547
      %v573 = vpack.c.b16 %v550, %v549
      %v574 = vpack.c.b16 %v552, %v551
      %v575 = vpack.c.b16 %v554, %v553
      %v576 = vpack.c.b16 %v556, %v555
      %vm577 = vsmask.f32 256
      %v579 = vshrl.u32 %v557, 16
      %v581 = vrot.slane %v579, 7
      %v582 = vshll.u32 %v557, 16
      %v584 = vor.u32 %v581, %v582
      %v586 = vshrl.u32 %v558, 16
      %v588 = vrot.slane %v586, 7
      %v589 = vshll.u32 %v558, 16
      %v591 = vor.u32 %v588, %v589
      %v592 = vsel %vm577, %v581, %v591
      %v594 = vshrl.u32 %v559, 16
      %v596 = vrot.slane %v594, 7
      %v597 = vshll.u32 %v559, 16
      %v599 = vor.u32 %v596, %v597
      %v601 = vshrl.u32 %v560, 16
      %v603 = vrot.slane %v601, 7
      %v604 = vshll.u32 %v560, 16
      %v606 = vor.u32 %v603, %v604
      %v607 = vsel %vm577, %v596, %v606
      %v609 = vshrl.u32 %v561, 16
      %v611 = vrot.slane %v609, 7
      %v612 = vshll.u32 %v561, 16
      %v614 = vor.u32 %v611, %v612
      %v616 = vshrl.u32 %v562, 16
      %v618 = vrot.slane %v616, 7
      %v619 = vshll.u32 %v562, 16
      %v621 = vor.u32 %v618, %v619
      %v622 = vsel %vm577, %v611, %v621
      %v624 = vshrl.u32 %v563, 16
      %v626 = vrot.slane %v624, 7
      %v627 = vshll.u32 %v563, 16
      %v629 = vor.u32 %v626, %v627
      %v631 = vshrl.u32 %v564, 16
      %v633 = vrot.slane %v631, 7
      %v634 = vshll.u32 %v564, 16
      %v636 = vor.u32 %v633, %v634
      %v637 = vsel %vm577, %v626, %v636
      %v639 = vshrl.u32 %v565, 16
      %v641 = vrot.slane %v639, 7
      %v642 = vshll.u32 %v565, 16
      %v644 = vor.u32 %v641, %v642
      %v646 = vshrl.u32 %v566, 16
      %v648 = vrot.slane %v646, 7
      %v649 = vshll.u32 %v566, 16
      %v651 = vor.u32 %v648, %v649
      %v652 = vsel %vm577, %v641, %v651
      %v654 = vshrl.u32 %v567, 16
      %v656 = vrot.slane %v654, 7
      %v657 = vshll.u32 %v567, 16
      %v659 = vor.u32 %v656, %v657
      %v661 = vshrl.u32 %v568, 16
      %v663 = vrot.slane %v661, 7
      %v664 = vshll.u32 %v568, 16
      %v666 = vor.u32 %v663, %v664
      %v667 = vsel %vm577, %v656, %v666
      %v669 = vshrl.u32 %v569, 16
      %v671 = vrot.slane %v669, 7
      %v672 = vshll.u32 %v569, 16
      %v674 = vor.u32 %v671, %v672
      %v676 = vshrl.u32 %v570, 16
      %v678 = vrot.slane %v676, 7
      %v679 = vshll.u32 %v570, 16
      %v681 = vor.u32 %v678, %v679
      %v682 = vsel %vm577, %v671, %v681
      %v684 = vshrl.u32 %v571, 16
      %v686 = vrot.slane %v684, 7
      %v687 = vshll.u32 %v571, 16
      %v689 = vor.u32 %v686, %v687
      %v691 = vshrl.u32 %v572, 16
      %v693 = vrot.slane %v691, 7
      %v694 = vshll.u32 %v572, 16
      %v696 = vor.u32 %v693, %v694
      %v697 = vsel %vm577, %v686, %v696
      %v699 = vshrl.u32 %v573, 16
      %v701 = vrot.slane %v699, 7
      %v702 = vshll.u32 %v573, 16
      %v704 = vor.u32 %v701, %v702
      %v706 = vshrl.u32 %v574, 16
      %v708 = vrot.slane %v706, 7
      %v709 = vshll.u32 %v574, 16
      %v711 = vor.u32 %v708, %v709
      %v712 = vsel %vm577, %v701, %v711
      %v714 = vshrl.u32 %v575, 16
      %v716 = vrot.slane %v714, 7
      %v717 = vshll.u32 %v575, 16
      %v719 = vor.u32 %v716, %v717
      %v721 = vshrl.u32 %v576, 16
      %v723 = vrot.slane %v721, 7
      %v724 = vshll.u32 %v576, 16
      %v726 = vor.u32 %v723, %v724
      %v727 = vsel %vm577, %v716, %v726
      %vm758 = vcmask 1040384
      %vm759 = vmand %vm758, %vm577
      %v760 = vsel %vm759, 0, %v584
      %v761 = vsel %vm759, 0, %v599
      %v762 = vsel %vm759, 0, %v614
      %v763 = vsel %vm759, 0, %v629
      %v764 = vsel %vm759, 0, %v644
      %v765 = vsel %vm759, 0, %v659
      %v766 = vsel %vm759, 0, %v674
      %v767 = vsel %vm759, 0, %v689
      %v768 = vsel %vm759, 0, %v704
      %v769 = vsel %vm759, 0, %v719
      %v770 = vsel %vm759, %v588, 0
      %v771 = vsel %vm759, %v603, 0
      %v772 = vsel %vm759, %v618, 0
      %v773 = vsel %vm759, %v633, 0
      %v774 = vsel %vm759, %v648, 0
      %v775 = vsel %vm759, %v663, 0
      %v776 = vsel %vm759, %v678, 0
      %v777 = vsel %vm759, %v693, 0
      %v778 = vsel %vm759, %v708, 0
      %v779 = vsel %vm759, %v723, 0
      %vm780 = vsmask.f32 7424
      %v782 = vshrl.u32 %v760, 16
      %v784 = vshll.u32 %v760, 16
      %v786 = vrot.slane %v784, 1
      %v787 = vor.u32 %v782, %v786
      %v789 = vshll.u32 %v592, 16
      %v791 = vrot.slane %v789, 1
      %v792 = vsel %vm780, %v787, %v791
      %v793 = vshrl.u32 %v592, 16
      %v795 = vor.u32 %v793, %v791
      %v797 = vshll.u32 %v770, 16
      %v799 = vrot.slane %v797, 1
      %v800 = vsel %vm780, %v795, %v799
      %v802 = vshrl.u32 %v761, 16
      %v804 = vshll.u32 %v761, 16
      %v806 = vrot.slane %v804, 1
      %v807 = vor.u32 %v802, %v806
      %v809 = vshll.u32 %v607, 16
      %v811 = vrot.slane %v809, 1
      %v812 = vsel %vm780, %v807, %v811
      %v813 = vshrl.u32 %v607, 16
      %v815 = vor.u32 %v813, %v811
      %v817 = vshll.u32 %v771, 16
      %v819 = vrot.slane %v817, 1
      %v820 = vsel %vm780, %v815, %v819
      %v822 = vshrl.u32 %v762, 16
      %v824 = vshll.u32 %v762, 16
      %v826 = vrot.slane %v824, 1
      %v827 = vor.u32 %v822, %v826
      %v829 = vshll.u32 %v622, 16
      %v831 = vrot.slane %v829, 1
      %v832 = vsel %vm780, %v827, %v831
      %v833 = vshrl.u32 %v622, 16
      %v835 = vor.u32 %v833, %v831
      %v837 = vshll.u32 %v772, 16
      %v839 = vrot.slane %v837, 1
      %v840 = vsel %vm780, %v835, %v839
      %v842 = vshrl.u32 %v763, 16
      %v844 = vshll.u32 %v763, 16
      %v846 = vrot.slane %v844, 1
      %v847 = vor.u32 %v842, %v846
      %v849 = vshll.u32 %v637, 16
      %v851 = vrot.slane %v849, 1
      %v852 = vsel %vm780, %v847, %v851
      %v853 = vshrl.u32 %v637, 16
      %v855 = vor.u32 %v853, %v851
      %v857 = vshll.u32 %v773, 16
      %v859 = vrot.slane %v857, 1
      %v860 = vsel %vm780, %v855, %v859
      %v862 = vshrl.u32 %v764, 16
      %v864 = vshll.u32 %v764, 16
      %v866 = vrot.slane %v864, 1
      %v867 = vor.u32 %v862, %v866
      %v869 = vshll.u32 %v652, 16
      %v871 = vrot.slane %v869, 1
      %v872 = vsel %vm780, %v867, %v871
      %v873 = vshrl.u32 %v652, 16
      %v875 = vor.u32 %v873, %v871
      %v877 = vshll.u32 %v774, 16
      %v879 = vrot.slane %v877, 1
      %v880 = vsel %vm780, %v875, %v879
      %v882 = vshrl.u32 %v765, 16
      %v884 = vshll.u32 %v765, 16
      %v886 = vrot.slane %v884, 1
      %v887 = vor.u32 %v882, %v886
      %v889 = vshll.u32 %v667, 16
      %v891 = vrot.slane %v889, 1
      %v892 = vsel %vm780, %v887, %v891
      %v893 = vshrl.u32 %v667, 16
      %v895 = vor.u32 %v893, %v891
      %v897 = vshll.u32 %v775, 16
      %v899 = vrot.slane %v897, 1
      %v900 = vsel %vm780, %v895, %v899
      %v902 = vshrl.u32 %v766, 16
      %v904 = vshll.u32 %v766, 16
      %v906 = vrot.slane %v904, 1
      %v907 = vor.u32 %v902, %v906
      %v909 = vshll.u32 %v682, 16
      %v911 = vrot.slane %v909, 1
      %v912 = vsel %vm780, %v907, %v911
      %v913 = vshrl.u32 %v682, 16
      %v915 = vor.u32 %v913, %v911
      %v917 = vshll.u32 %v776, 16
      %v919 = vrot.slane %v917, 1
      %v920 = vsel %vm780, %v915, %v919
      %v922 = vshrl.u32 %v767, 16
      %v924 = vshll.u32 %v767, 16
      %v926 = vrot.slane %v924, 1
      %v927 = vor.u32 %v922, %v926
      %v929 = vshll.u32 %v697, 16
      %v931 = vrot.slane %v929, 1
      %v932 = vsel %vm780, %v927, %v931
      %v933 = vshrl.u32 %v697, 16
      %v935 = vor.u32 %v933, %v931
      %v937 = vshll.u32 %v777, 16
      %v939 = vrot.slane %v937, 1
      %v940 = vsel %vm780, %v935, %v939
      %vm973 = vcmask 1046528
      %v974 = vrot.slane %v760, 1
      %v975 = vrot.slane %v592, 1
      %v976 = vsel %vm973, %v974, %v975
      %v977 = vrot.slane %v770, 1
      %v978 = vsel %vm973, %v975, %v977
      %v979 = vrot.slane %v761, 1
      %v980 = vrot.slane %v607, 1
      %v981 = vsel %vm973, %v979, %v980
      %v982 = vrot.slane %v771, 1
      %v983 = vsel %vm973, %v980, %v982
      %v984 = vrot.slane %v762, 1
      %v985 = vrot.slane %v622, 1
      %v986 = vsel %vm973, %v984, %v985
      %v987 = vrot.slane %v772, 1
      %v988 = vsel %vm973, %v985, %v987
      %v989 = vrot.slane %v763, 1
      %v990 = vrot.slane %v637, 1
      %v991 = vsel %vm973, %v989, %v990
      %v992 = vrot.slane %v773, 1
      %v993 = vsel %vm973, %v990, %v992
      %v994 = vrot.slane %v764, 1
      %v995 = vrot.slane %v652, 1
      %v996 = vsel %vm973, %v994, %v995
      %v997 = vrot.slane %v774, 1
      %v998 = vsel %vm973, %v995, %v997
      %v999 = vrot.slane %v765, 1
      %v1000 = vrot.slane %v667, 1
      %v1001 = vsel %vm973, %v999, %v1000
      %v1002 = vrot.slane %v775, 1
      %v1003 = vsel %vm973, %v1000, %v1002
      %v1004 = vrot.slane %v766, 1
      %v1005 = vrot.slane %v682, 1
      %v1006 = vsel %vm973, %v1004, %v1005
      %v1007 = vrot.slane %v776, 1
      %v1008 = vsel %vm973, %v1005, %v1007
      %v1009 = vrot.slane %v767, 1
      %v1010 = vrot.slane %v697, 1
      %v1011 = vsel %vm973, %v1009, %v1010
      %v1012 = vrot.slane %v777, 1
      %v1013 = vsel %vm973, %v1010, %v1012
      %v1031 = vshrl.u32 %v768, 16
      %v1033 = vshll.u32 %v768, 16
      %v1035 = vrot.slane %v1033, 1
      %v1036 = vor.u32 %v1031, %v1035
      %v1038 = vshll.u32 %v712, 16
      %v1040 = vrot.slane %v1038, 1
      %v1041 = vsel %vm780, %v1036, %v1040
      %v1042 = vshrl.u32 %v712, 16
      %v1044 = vor.u32 %v1042, %v1040
      %v1046 = vshll.u32 %v778, 16
      %v1048 = vrot.slane %v1046, 1
      %v1049 = vsel %vm780, %v1044, %v1048
      %v1054 = vrot.slane %v768, 1
      %v1055 = vrot.slane %v712, 1
      %v1056 = vsel %vm973, %v1054, %v1055
      %v1057 = vrot.slane %v778, 1
      %v1058 = vsel %vm973, %v1055, %v1057
      %v1062 = vshrl.u32 %v769, 16
      %v1064 = vshll.u32 %v769, 16
      %v1066 = vrot.slane %v1064, 1
      %v1067 = vor.u32 %v1062, %v1066
      %v1069 = vshll.u32 %v727, 16
      %v1071 = vrot.slane %v1069, 1
      %v1072 = vsel %vm780, %v1067, %v1071
      %v1073 = vshrl.u32 %v727, 16
      %v1075 = vor.u32 %v1073, %v1071
      %v1077 = vshll.u32 %v779, 16
      %v1079 = vrot.slane %v1077, 1
      %v1080 = vsel %vm780, %v1075, %v1079
      %v1085 = vrot.slane %v769, 1
      %v1086 = vrot.slane %v727, 1
      %v1087 = vsel %vm973, %v1085, %v1086
      %v1088 = vrot.slane %v779, 1
      %v1089 = vsel %vm973, %v1086, %v1088
      %v1092 = vld [vmem:[%s3] sm:$0xf]
      %v1093 = vld [vmem:[%s3 + $0x4] sm:$0xf]
      %v1094 = vld [vmem:[%s3 + $0x8] sm:$0xf]
      %v1095 = vld [vmem:[%s3 + $0xc] sm:$0xf]
      %v1096 = vld [vmem:[%s3 + $0x10] sm:$0xf]
      %v1097 = vld [vmem:[%s3 + $0x14] sm:$0xf]
      %v1098 = vld [vmem:[%s3 + $0x18] sm:$0xf]
      %v1099 = vld [vmem:[%s3 + $0x1c] sm:$0xf]
      %v1100 = vld [vmem:[%s3 + $0x20] sm:$0xf]
      %v1101 = vld [vmem:[%s3 + $0x24] sm:$0xf]
      %v1102 = vld [vmem:[%s3 + $0x28] sm:$0xf]
      %v1103 = vld [vmem:[%s3 + $0x2c] sm:$0xf]
      %v1104 = vld [vmem:[%s3 + $0x30] sm:$0xf]
      %v1105 = vld [vmem:[%s3 + $0x34] sm:$0xf]
      %v1106 = vld [vmem:[%s3 + $0x38] sm:$0xf]
      %v1107 = vld [vmem:[%s3 + $0x3c] sm:$0xf]
      %v1108 = vld [vmem:[%s3 + $0x40] sm:$0xf]
      %v1109 = vld [vmem:[%s3 + $0x44] sm:$0xf]
      %v1110 = vld [vmem:[%s3 + $0x48] sm:$0xf]
      %v1111 = vld [vmem:[%s3 + $0x4c] sm:$0xf]
      %v1112 = vld [vmem:[%s3 + $0x50] sm:$0xf]
      %v1113 = vld [vmem:[%s3 + $0x54] sm:$0xf]
      %v1114 = vld [vmem:[%s3 + $0x58] sm:$0xf]
      %v1115 = vld [vmem:[%s3 + $0x5c] sm:$0xf]
      %v1116 = vld [vmem:[%s3 + $0x60] sm:$0xf]
      %v1117 = vld [vmem:[%s3 + $0x64] sm:$0xf]
      %v1118 = vld [vmem:[%s3 + $0x68] sm:$0xf]
      %v1119 = vld [vmem:[%s3 + $0x6c] sm:$0xf]
      %v1120 = vld [vmem:[%s3 + $0x70] sm:$0xf]
      %v1121 = vld [vmem:[%s3 + $0x74] sm:$0xf]
      %v1122 = vld [vmem:[%s3 + $0x78] sm:$0xf]
      %v1123 = vld [vmem:[%s3 + $0x7c] sm:$0xf]
      %v1124 = vld [vmem:[%s3 + $0x80] sm:$0xf]
      %v1125 = vld [vmem:[%s3 + $0x84] sm:$0xf]
      %v1126 = vld [vmem:[%s3 + $0x88] sm:$0xf]
      %v1127 = vld [vmem:[%s3 + $0x8c] sm:$0xf]
      %v1128 = vld [vmem:[%s3 + $0x90] sm:$0xf]
      %v1129 = vld [vmem:[%s3 + $0x94] sm:$0xf]
      %v1130 = vld [vmem:[%s3 + $0x98] sm:$0xf]
      %v1131 = vld [vmem:[%s3 + $0x9c] sm:$0xf]
      %v1132 = vld [vmem:[%s3 + $0xa0] sm:$0xf]
      %v1133 = vld [vmem:[%s3 + $0xa4] sm:$0xf]
      %v1134 = vld [vmem:[%s3 + $0xa8] sm:$0xf]
      %v1135 = vld [vmem:[%s3 + $0xac] sm:$0xf]
      %v1136 = vld [vmem:[%s3 + $0xb0] sm:$0xf]
      %v1137 = vld [vmem:[%s3 + $0xb4] sm:$0xf]
      %v1138 = vld [vmem:[%s3 + $0xb8] sm:$0xf]
      %v1139 = vld [vmem:[%s3 + $0xbc] sm:$0xf]
      %v1140 = vld [vmem:[%s3 + $0xc0] sm:$0xf]
      %v1141 = vld [vmem:[%s3 + $0xc4] sm:$0xf]
      %v1142 = vld [vmem:[%s3 + $0xc8] sm:$0xf]
      %v1143 = vld [vmem:[%s3 + $0xcc] sm:$0xf]
      %v1144 = vld [vmem:[%s3 + $0xd0] sm:$0xf]
      %v1145 = vld [vmem:[%s3 + $0xd4] sm:$0xf]
      %v1146 = vld [vmem:[%s3 + $0xd8] sm:$0xf]
      %v1147 = vld [vmem:[%s3 + $0xdc] sm:$0xf]
      %v1148 = vld [vmem:[%s3 + $0xe0] sm:$0xf]
      %v1149 = vld [vmem:[%s3 + $0xe4] sm:$0xf]
      %v1150 = vld [vmem:[%s3 + $0xe8] sm:$0xf]
      %v1151 = vld [vmem:[%s3 + $0xec] sm:$0xf]
      %v1152 = vld [vmem:[%s3 + $0xf0] sm:$0xf]
      %v1153 = vld [vmem:[%s3 + $0xf4] sm:$0xf]
      %v1154 = vld [vmem:[%s3 + $0xf8] sm:$0xf]
      %v1155 = vld [vmem:[%s3 + $0xfc] sm:$0xf]
      %v1156 = vld [vmem:[%s3 + $0x100] sm:$0xf]
      %v1157 = vld [vmem:[%s3 + $0x104] sm:$0xf]
      %v1158 = vld [vmem:[%s3 + $0x108] sm:$0xf]
      %v1159 = vld [vmem:[%s3 + $0x10c] sm:$0xf]
      %v1160 = vld [vmem:[%s3 + $0x110] sm:$0xf]
      %v1161 = vld [vmem:[%s3 + $0x114] sm:$0xf]
      %v1162 = vld [vmem:[%s3 + $0x118] sm:$0xf]
      %v1163 = vld [vmem:[%s3 + $0x11c] sm:$0xf]
      %v1164 = vld [vmem:[%s3 + $0x120] sm:$0xf]
      %v1165 = vld [vmem:[%s3 + $0x124] sm:$0xf]
      %v1166 = vld [vmem:[%s3 + $0x128] sm:$0xf]
      %v1167 = vld [vmem:[%s3 + $0x12c] sm:$0xf]
      %v1168 = vld [vmem:[%s3 + $0x130] sm:$0xf]
      %v1169 = vld [vmem:[%s3 + $0x134] sm:$0xf]
      %v1170 = vld [vmem:[%s3 + $0x138] sm:$0xf]
      %v1171 = vld [vmem:[%s3 + $0x13c] sm:$0xf]
      %v1172 = vld [vmem:[%s3 + $0x140] sm:$0xf]
      %v1173 = vld [vmem:[%s3 + $0x144] sm:$0xf]
      %v1174 = vld [vmem:[%s3 + $0x148] sm:$0xf]
      %v1175 = vld [vmem:[%s3 + $0x14c] sm:$0xf]
      %v1176 = vld [vmem:[%s3 + $0x150] sm:$0xf]
      %v1177 = vld [vmem:[%s3 + $0x154] sm:$0xf]
      %v1178 = vld [vmem:[%s3 + $0x158] sm:$0xf]
      %v1179 = vld [vmem:[%s3 + $0x15c] sm:$0xf]
      %v1180 = vld [vmem:[%s3 + $0x160] sm:$0xf]
      %v1181 = vld [vmem:[%s3 + $0x164] sm:$0xf]
      %v1182 = vld [vmem:[%s3 + $0x168] sm:$0xf]
      %v1183 = vld [vmem:[%s3 + $0x16c] sm:$0xf]
      %v1184 = vld [vmem:[%s3 + $0x170] sm:$0xf]
      %v1185 = vld [vmem:[%s3 + $0x174] sm:$0xf]
      %v1186 = vld [vmem:[%s3 + $0x178] sm:$0xf]
      %v1187 = vld [vmem:[%s3 + $0x17c] sm:$0xf]
      %v1188 = vld [vmem:[%s3 + $0x180] sm:$0xf]
      %v1189 = vld [vmem:[%s3 + $0x184] sm:$0xf]
      %v1190 = vld [vmem:[%s3 + $0x188] sm:$0xf]
      %v1191 = vld [vmem:[%s3 + $0x18c] sm:$0xf]
      %v1192 = vld [vmem:[%s3 + $0x190] sm:$0xf]
      %v1193 = vld [vmem:[%s3 + $0x194] sm:$0xf]
      %v1194 = vld [vmem:[%s3 + $0x198] sm:$0xf]
      %v1195 = vld [vmem:[%s3 + $0x19c] sm:$0xf]
      %v1196 = vld [vmem:[%s3 + $0x1a0] sm:$0xf]
      %v1197 = vld [vmem:[%s3 + $0x1a4] sm:$0xf]
      %v1198 = vld [vmem:[%s3 + $0x1a8] sm:$0xf]
      %v1199 = vld [vmem:[%s3 + $0x1ac] sm:$0xf]
      %v1200 = vld [vmem:[%s3 + $0x1b0] sm:$0xf]
      %v1201 = vld [vmem:[%s3 + $0x1b4] sm:$0xf]
      %v1202 = vld [vmem:[%s3 + $0x1b8] sm:$0xf]
      %v1203 = vld [vmem:[%s3 + $0x1bc] sm:$0xf]
      %v1204 = vld [vmem:[%s3 + $0x1c0] sm:$0xf]
      %v1205 = vld [vmem:[%s3 + $0x1c4] sm:$0xf]
      %v1206 = vld [vmem:[%s3 + $0x1c8] sm:$0xf]
      %v1207 = vld [vmem:[%s3 + $0x1cc] sm:$0xf]
      %v1208 = vld [vmem:[%s3 + $0x1d0] sm:$0xf]
      %v1209 = vld [vmem:[%s3 + $0x1d4] sm:$0xf]
      %v1210 = vld [vmem:[%s3 + $0x1d8] sm:$0xf]
      %v1211 = vld [vmem:[%s3 + $0x1dc] sm:$0xf]
      %v1212 = vld [vmem:[%s3 + $0x1e0] sm:$0xf]
      %v1213 = vld [vmem:[%s3 + $0x1e4] sm:$0xf]
      %v1214 = vld [vmem:[%s3 + $0x1e8] sm:$0xf]
      %v1215 = vld [vmem:[%s3 + $0x1ec] sm:$0xf]
      %v1216 = vld [vmem:[%s3 + $0x1f0] sm:$0xf]
      %v1217 = vld [vmem:[%s3 + $0x1f4] sm:$0xf]
      %v1218 = vld [vmem:[%s3 + $0x1f8] sm:$0xf]
      %v1219 = vld [vmem:[%s3 + $0x1fc] sm:$0xf]
      %v1220 = vld [vmem:[%s3 + $0x200] sm:$0xf]
      %v1221 = vld [vmem:[%s3 + $0x204] sm:$0xf]
      %v1222 = vld [vmem:[%s3 + $0x208] sm:$0xf]
      %v1223 = vld [vmem:[%s3 + $0x20c] sm:$0xf]
      %v1224 = vld [vmem:[%s3 + $0x210] sm:$0xf]
      %v1225 = vld [vmem:[%s3 + $0x214] sm:$0xf]
      %v1226 = vld [vmem:[%s3 + $0x218] sm:$0xf]
      %v1227 = vld [vmem:[%s3 + $0x21c] sm:$0xf]
      %v1228 = vld [vmem:[%s3 + $0x220] sm:$0xf]
      %v1229 = vld [vmem:[%s3 + $0x224] sm:$0xf]
      %v1230 = vld [vmem:[%s3 + $0x228] sm:$0xf]
      %v1231 = vld [vmem:[%s3 + $0x22c] sm:$0xf]
      %v1232 = vld [vmem:[%s3 + $0x230] sm:$0xf]
      %v1233 = vld [vmem:[%s3 + $0x234] sm:$0xf]
      %v1234 = vld [vmem:[%s3 + $0x238] sm:$0xf]
      %v1235 = vld [vmem:[%s3 + $0x23c] sm:$0xf]
      %v1380 = vunpack.c.l.b16 %v1092
      %v1381 = vunpack.c.l.b16 %v1093
      %v1382 = vunpack.c.l.b16 %v1094
      %v1383 = vunpack.c.l.b16 %v1095
      %v1384 = vunpack.c.l.b16 %v1096
      %v1385 = vunpack.c.l.b16 %v1097
      %v1386 = vunpack.c.l.b16 %v1098
      %v1387 = vunpack.c.l.b16 %v1099
      %v1388 = vunpack.c.l.b16 %v1100
      %v1389 = vunpack.c.l.b16 %v1101
      %v1390 = vunpack.c.l.b16 %v1102
      %v1391 = vunpack.c.l.b16 %v1103
      %v1392 = vunpack.c.l.b16 %v1104
      %v1393 = vunpack.c.l.b16 %v1105
      %v1394 = vunpack.c.l.b16 %v1106
      %v1395 = vunpack.c.l.b16 %v1107
      %v1396 = vunpack.c.l.b16 %v1108
      %v1397 = vunpack.c.l.b16 %v1109
      %v1398 = vunpack.c.l.b16 %v1110
      %v1399 = vunpack.c.l.b16 %v1111
      %v1400 = vunpack.c.l.b16 %v1112
      %v1401 = vunpack.c.l.b16 %v1113
      %v1402 = vunpack.c.l.b16 %v1114
      %v1403 = vunpack.c.l.b16 %v1115
      %v1404 = vunpack.c.l.b16 %v1116
      %v1405 = vunpack.c.l.b16 %v1117
      %v1406 = vunpack.c.l.b16 %v1118
      %v1407 = vunpack.c.l.b16 %v1119
      %v1408 = vunpack.c.l.b16 %v1120
      %v1409 = vunpack.c.l.b16 %v1121
      %v1410 = vunpack.c.l.b16 %v1122
      %v1411 = vunpack.c.l.b16 %v1123
      %v1412 = vunpack.c.l.b16 %v1124
      %v1413 = vunpack.c.l.b16 %v1125
      %v1414 = vunpack.c.l.b16 %v1126
      %v1415 = vunpack.c.l.b16 %v1127
      %v1416 = vunpack.c.l.b16 %v1128
      %v1417 = vunpack.c.l.b16 %v1129
      %v1418 = vunpack.c.l.b16 %v1130
      %v1419 = vunpack.c.l.b16 %v1131
      %v1420 = vunpack.c.l.b16 %v1132
      %v1421 = vunpack.c.l.b16 %v1133
      %v1422 = vunpack.c.l.b16 %v1134
      %v1423 = vunpack.c.l.b16 %v1135
      %v1424 = vunpack.c.l.b16 %v1136
      %v1425 = vunpack.c.l.b16 %v1137
      %v1426 = vunpack.c.l.b16 %v1138
      %v1427 = vunpack.c.l.b16 %v1139
      %v1428 = vunpack.c.l.b16 %v1140
      %v1429 = vunpack.c.l.b16 %v1141
      %v1430 = vunpack.c.l.b16 %v1142
      %v1431 = vunpack.c.l.b16 %v1143
      %v1432 = vunpack.c.l.b16 %v1144
      %v1433 = vunpack.c.l.b16 %v1145
      %v1434 = vunpack.c.l.b16 %v1146
      %v1435 = vunpack.c.l.b16 %v1147
      %v1436 = vunpack.c.l.b16 %v1148
      %v1437 = vunpack.c.l.b16 %v1149
      %v1438 = vunpack.c.l.b16 %v1150
      %v1439 = vunpack.c.l.b16 %v1151
      %v1440 = vunpack.c.l.b16 %v1152
      %v1441 = vunpack.c.l.b16 %v1153
      %v1442 = vunpack.c.l.b16 %v1154
      %v1443 = vunpack.c.l.b16 %v1155
      %v1444 = vunpack.c.l.b16 %v1156
      %v1445 = vunpack.c.l.b16 %v1157
      %v1446 = vunpack.c.l.b16 %v1158
      %v1447 = vunpack.c.l.b16 %v1159
      %v1448 = vunpack.c.l.b16 %v1160
      %v1449 = vunpack.c.l.b16 %v1161
      %v1450 = vunpack.c.l.b16 %v1162
      %v1451 = vunpack.c.l.b16 %v1163
      %v1452 = vunpack.c.l.b16 %v1164
      %v1453 = vunpack.c.l.b16 %v1165
      %v1454 = vunpack.c.l.b16 %v1166
      %v1455 = vunpack.c.l.b16 %v1167
      %v1456 = vunpack.c.l.b16 %v1168
      %v1457 = vunpack.c.l.b16 %v1169
      %v1458 = vunpack.c.l.b16 %v1170
      %v1459 = vunpack.c.l.b16 %v1171
      %v1460 = vunpack.c.l.b16 %v1172
      %v1461 = vunpack.c.l.b16 %v1173
      %v1462 = vunpack.c.l.b16 %v1174
      %v1463 = vunpack.c.l.b16 %v1175
      %v1464 = vunpack.c.l.b16 %v1176
      %v1465 = vunpack.c.l.b16 %v1177
      %v1466 = vunpack.c.l.b16 %v1178
      %v1467 = vunpack.c.l.b16 %v1179
      %v1468 = vunpack.c.l.b16 %v1180
      %v1469 = vunpack.c.l.b16 %v1181
      %v1470 = vunpack.c.l.b16 %v1182
      %v1471 = vunpack.c.l.b16 %v1183
      %v1472 = vunpack.c.l.b16 %v1184
      %v1473 = vunpack.c.l.b16 %v1185
      %v1474 = vunpack.c.l.b16 %v1186
      %v1475 = vunpack.c.l.b16 %v1187
      %v1476 = vunpack.c.l.b16 %v1188
      %v1477 = vunpack.c.l.b16 %v1189
      %v1478 = vunpack.c.l.b16 %v1190
      %v1479 = vunpack.c.l.b16 %v1191
      %v1480 = vunpack.c.l.b16 %v1192
      %v1481 = vunpack.c.l.b16 %v1193
      %v1482 = vunpack.c.l.b16 %v1194
      %v1483 = vunpack.c.l.b16 %v1195
      %v1484 = vunpack.c.l.b16 %v1196
      %v1485 = vunpack.c.l.b16 %v1197
      %v1486 = vunpack.c.l.b16 %v1198
      %v1487 = vunpack.c.l.b16 %v1199
      %v1488 = vunpack.c.l.b16 %v1200
      %v1489 = vunpack.c.l.b16 %v1201
      %v1490 = vunpack.c.l.b16 %v1202
      %v1491 = vunpack.c.l.b16 %v1203
      %v1492 = vunpack.c.l.b16 %v1204
      %v1493 = vunpack.c.l.b16 %v1205
      %v1494 = vunpack.c.l.b16 %v1206
      %v1495 = vunpack.c.l.b16 %v1207
      %v1496 = vunpack.c.l.b16 %v1208
      %v1497 = vunpack.c.l.b16 %v1209
      %v1498 = vunpack.c.l.b16 %v1210
      %v1499 = vunpack.c.l.b16 %v1211
      %v1500 = vunpack.c.l.b16 %v1212
      %v1501 = vunpack.c.l.b16 %v1213
      %v1502 = vunpack.c.l.b16 %v1214
      %v1503 = vunpack.c.l.b16 %v1215
      %v1504 = vunpack.c.l.b16 %v1216
      %v1505 = vunpack.c.l.b16 %v1217
      %v1506 = vunpack.c.l.b16 %v1218
      %v1507 = vunpack.c.l.b16 %v1219
      %v1508 = vunpack.c.l.b16 %v1220
      %v1509 = vunpack.c.l.b16 %v1221
      %v1510 = vunpack.c.l.b16 %v1222
      %v1511 = vunpack.c.l.b16 %v1223
      %v1512 = vunpack.c.l.b16 %v1224
      %v1513 = vunpack.c.l.b16 %v1225
      %v1514 = vunpack.c.l.b16 %v1226
      %v1515 = vunpack.c.l.b16 %v1227
      %v1516 = vunpack.c.l.b16 %v1228
      %v1517 = vunpack.c.l.b16 %v1229
      %v1518 = vunpack.c.l.b16 %v1230
      %v1519 = vunpack.c.l.b16 %v1231
      %v1520 = vunpack.c.l.b16 %v1232
      %v1521 = vunpack.c.l.b16 %v1233
      %v1522 = vunpack.c.l.b16 %v1234
      %v1523 = vunpack.c.l.b16 %v1235
      %v1524 = vpack.c.b16 %v1381, %v1380
      %v1525 = vpack.c.b16 %v1383, %v1382
      %v1526 = vpack.c.b16 %v1385, %v1384
      %v1527 = vpack.c.b16 %v1387, %v1386
      %v1528 = vpack.c.b16 %v1389, %v1388
      %v1529 = vpack.c.b16 %v1391, %v1390
      %v1530 = vpack.c.b16 %v1393, %v1392
      %v1531 = vpack.c.b16 %v1395, %v1394
      %v1532 = vpack.c.b16 %v1397, %v1396
      %v1533 = vpack.c.b16 %v1399, %v1398
      %v1534 = vpack.c.b16 %v1401, %v1400
      %v1535 = vpack.c.b16 %v1403, %v1402
      %v1536 = vpack.c.b16 %v1405, %v1404
      %v1537 = vpack.c.b16 %v1407, %v1406
      %v1538 = vpack.c.b16 %v1409, %v1408
      %v1539 = vpack.c.b16 %v1411, %v1410
      %v1540 = vpack.c.b16 %v1413, %v1412
      %v1541 = vpack.c.b16 %v1415, %v1414
      %v1542 = vpack.c.b16 %v1417, %v1416
      %v1543 = vpack.c.b16 %v1419, %v1418
      %v1544 = vpack.c.b16 %v1421, %v1420
      %v1545 = vpack.c.b16 %v1423, %v1422
      %v1546 = vpack.c.b16 %v1425, %v1424
      %v1547 = vpack.c.b16 %v1427, %v1426
      %v1548 = vpack.c.b16 %v1429, %v1428
      %v1549 = vpack.c.b16 %v1431, %v1430
      %v1550 = vpack.c.b16 %v1433, %v1432
      %v1551 = vpack.c.b16 %v1435, %v1434
      %v1552 = vpack.c.b16 %v1437, %v1436
      %v1553 = vpack.c.b16 %v1439, %v1438
      %v1554 = vpack.c.b16 %v1441, %v1440
      %v1555 = vpack.c.b16 %v1443, %v1442
      %v1556 = vpack.c.b16 %v1445, %v1444
      %v1557 = vpack.c.b16 %v1447, %v1446
      %v1558 = vpack.c.b16 %v1449, %v1448
      %v1559 = vpack.c.b16 %v1451, %v1450
      %v1560 = vpack.c.b16 %v1453, %v1452
      %v1561 = vpack.c.b16 %v1455, %v1454
      %v1562 = vpack.c.b16 %v1457, %v1456
      %v1563 = vpack.c.b16 %v1459, %v1458
      %v1564 = vpack.c.b16 %v1461, %v1460
      %v1565 = vpack.c.b16 %v1463, %v1462
      %v1566 = vpack.c.b16 %v1465, %v1464
      %v1567 = vpack.c.b16 %v1467, %v1466
      %v1568 = vpack.c.b16 %v1469, %v1468
      %v1569 = vpack.c.b16 %v1471, %v1470
      %v1570 = vpack.c.b16 %v1473, %v1472
      %v1571 = vpack.c.b16 %v1475, %v1474
      %v1572 = vpack.c.b16 %v1477, %v1476
      %v1573 = vpack.c.b16 %v1479, %v1478
      %v1574 = vpack.c.b16 %v1481, %v1480
      %v1575 = vpack.c.b16 %v1483, %v1482
      %v1576 = vpack.c.b16 %v1485, %v1484
      %v1577 = vpack.c.b16 %v1487, %v1486
      %v1578 = vpack.c.b16 %v1489, %v1488
      %v1579 = vpack.c.b16 %v1491, %v1490
      %v1580 = vpack.c.b16 %v1493, %v1492
      %v1581 = vpack.c.b16 %v1495, %v1494
      %v1582 = vpack.c.b16 %v1497, %v1496
      %v1583 = vpack.c.b16 %v1499, %v1498
      %v1584 = vpack.c.b16 %v1501, %v1500
      %v1585 = vpack.c.b16 %v1503, %v1502
      %v1586 = vpack.c.b16 %v1505, %v1504
      %v1587 = vpack.c.b16 %v1507, %v1506
      %v1588 = vpack.c.b16 %v1509, %v1508
      %v1589 = vpack.c.b16 %v1511, %v1510
      %v1590 = vpack.c.b16 %v1513, %v1512
      %v1591 = vpack.c.b16 %v1515, %v1514
      %v1592 = vpack.c.b16 %v1517, %v1516
      %v1593 = vpack.c.b16 %v1519, %v1518
      %v1594 = vpack.c.b16 %v1521, %v1520
      %v1595 = vpack.c.b16 %v1523, %v1522
      %1668 = vmatprep.subr.bf16.mxu0 0
      %1669 = vmatpush1.bf16.msra.mxu0 %v1524
      %1670 = vmatprep.subr.bf16.mxu0 0
      %1671 = vmatpush1.bf16.msra.mxu0 %v1525
      %1672 = vmatprep.subr.bf16.mxu0 0
      %1673 = vmatpush1.bf16.msra.mxu0 %v1526
      %1674 = vmatprep.subr.bf16.mxu0 0
      %1675 = vmatpush1.bf16.msra.mxu0 %v1527
      %1676 = vmatprep.subr.bf16.mxu0 0
      %1677 = vmatpush1.bf16.msra.mxu0 %v1528
      %1678 = vmatprep.subr.bf16.mxu0 0
      %1679 = vmatpush1.bf16.msra.mxu0 %v1529
      %1680 = vmatprep.subr.bf16.mxu0 0
      %1681 = vmatpush1.bf16.msra.mxu0 %v1530
      %1682 = vmatprep.subr.bf16.mxu0 0
      %1683 = vmatpush1.bf16.msra.mxu0 %v1531
      %1684 = vmatprep.subr.bf16.mxu0 0
      %1685 = vmatpush1.bf16.msra.mxu0 %v1532
      %1686 = vmatprep.subr.bf16.mxu0 0
      %1687 = vmatpush1.bf16.msra.mxu0 %v1533
      %1688 = vmatprep.subr.bf16.mxu0 0
      %1689 = vmatpush1.bf16.msra.mxu0 %v1534
      %1690 = vmatprep.subr.bf16.mxu0 0
      %1691 = vmatpush1.bf16.msra.mxu0 %v1535
      %1692 = vmatprep.subr.bf16.mxu0 0
      %1693 = vmatpush1.bf16.msra.mxu0 %v1536
      %1694 = vmatprep.subr.bf16.mxu0 0
      %1695 = vmatpush1.bf16.msra.mxu0 %v1537
      %1696 = vmatprep.subr.bf16.mxu0 0
      %1697 = vmatpush1.bf16.msra.mxu0 %v1538
      %1698 = vmatprep.subr.bf16.mxu0 0
      %1699 = vmatpush1.bf16.msra.mxu0 %v1539
      %1700 = vmatprep.mubr.bf16.mxu0 %v792
      %1701 = vmatmul.mubr.bf16.gmra.mrb[0].mxu0 %v760
      %v1702 = vpop.f32.mrb[0].mxu0
      %v1703 = vadd.f32 0.0, %v1702
      %v1704 = vpop.f32.mrb[0].mxu0
      %v1705 = vpop.f32.mrb[0].mxu0
      %v1706 = vadd.f32 0.0, %v1705
      %v1707 = vpop.f32.mrb[0].mxu0
      %1708 = vmatprep.mubr.bf16.mxu0 %v800
      %1709 = vmatmul.mubr.bf16.gmra.mrb[0].mxu0 %v592
      %v1710 = vpop.f32.mrb[0].mxu0
      %v1711 = vadd.f32 0.0, %v1710
      %v1712 = vpop.f32.mrb[0].mxu0
      %v1713 = vpop.f32.mrb[0].mxu0
      %v1714 = vadd.f32 0.0, %v1713
      %v1715 = vpop.f32.mrb[0].mxu0
      %1716 = vmatprep.mubr.bf16.mxu0 %v812
      %1717 = vmatmul.mubr.bf16.gmra.mrb[0].mxu0 %v761
      %v1718 = vpop.f32.mrb[0].mxu0
      %v1719 = vadd.f32 0.0, %v1718
      %v1720 = vpop.f32.mrb[0].mxu0
      %v1721 = vpop.f32.mrb[0].mxu0
      %v1722 = vadd.f32 0.0, %v1721
      %v1723 = vpop.f32.mrb[0].mxu0
      %1724 = vmatprep.mubr.bf16.mxu0 %v820
      %1725 = vmatmul.mubr.bf16.gmra.mrb[0].mxu0 %v607
      %v1726 = vpop.f32.mrb[0].mxu0
      %v1727 = vadd.f32 0.0, %v1726
      %v1728 = vpop.f32.mrb[0].mxu0
      %v1729 = vpop.f32.mrb[0].mxu0
      %v1730 = vadd.f32 0.0, %v1729
      %v1731 = vpop.f32.mrb[0].mxu0
      %1732 = vmatprep.mubr.bf16.mxu0 %v832
      %1733 = vmatmul.mubr.bf16.gmra.mrb[0].mxu0 %v762
      %v1734 = vpop.f32.mrb[0].mxu0
      %v1735 = vadd.f32 0.0, %v1734
      %v1736 = vpop.f32.mrb[0].mxu0
      %v1737 = vpop.f32.mrb[0].mxu0
      %v1738 = vadd.f32 0.0, %v1737
      %v1739 = vpop.f32.mrb[0].mxu0
      %1740 = vmatprep.mubr.bf16.mxu0 %v840
      %1741 = vmatmul.mubr.bf16.gmra.mrb[0].mxu0 %v622
      %v1742 = vpop.f32.mrb[0].mxu0
      %v1743 = vadd.f32 0.0, %v1742
      %v1744 = vpop.f32.mrb[0].mxu0
      %v1745 = vpop.f32.mrb[0].mxu0
      %v1746 = vadd.f32 0.0, %v1745
      %v1747 = vpop.f32.mrb[0].mxu0
      %1748 = vmatprep.mubr.bf16.mxu0 %v852
      %1749 = vmatmul.mubr.bf16.gmra.mrb[0].mxu0 %v763
      %v1750 = vpop.f32.mrb[0].mxu0
      %v1751 = vadd.f32 0.0, %v1750
      %v1752 = vpop.f32.mrb[0].mxu0
      %v1753 = vpop.f32.mrb[0].mxu0
      %v1754 = vadd.f32 0.0, %v1753
      %v1755 = vpop.f32.mrb[0].mxu0
      %1756 = vmatprep.mubr.bf16.mxu0 %v860
      %1757 = vmatmul.mubr.bf16.gmra.mrb[0].mxu0 %v637
      %v1758 = vpop.f32.mrb[0].mxu0
      %v1759 = vadd.f32 0.0, %v1758
      %v1760 = vpop.f32.mrb[0].mxu0
      %v1761 = vpop.f32.mrb[0].mxu0
      %v1762 = vadd.f32 0.0, %v1761
      %v1763 = vpop.f32.mrb[0].mxu0
      %1764 = vmatprep.mubr.bf16.mxu0 %v872
      %1765 = vmatmul.mubr.bf16.gmra.mrb[0].mxu0 %v764
      %v1766 = vpop.f32.mrb[0].mxu0
      %v1767 = vadd.f32 0.0, %v1766
      %v1768 = vpop.f32.mrb[0].mxu0
      %v1769 = vpop.f32.mrb[0].mxu0
      %v1770 = vadd.f32 0.0, %v1769
      %v1771 = vpop.f32.mrb[0].mxu0
      %1772 = vmatprep.mubr.bf16.mxu0 %v880
      %1773 = vmatmul.mubr.bf16.gmra.mrb[0].mxu0 %v652
      %v1774 = vpop.f32.mrb[0].mxu0
      %v1775 = vadd.f32 0.0, %v1774
      %v1776 = vpop.f32.mrb[0].mxu0
      %v1777 = vpop.f32.mrb[0].mxu0
      %v1778 = vadd.f32 0.0, %v1777
      %v1779 = vpop.f32.mrb[0].mxu0
      %1780 = vmatprep.mubr.bf16.mxu0 %v892
      %1781 = vmatmul.mubr.bf16.gmra.mrb[0].mxu0 %v765
      %v1782 = vpop.f32.mrb[0].mxu0
      %v1783 = vadd.f32 0.0, %v1782
      %v1784 = vpop.f32.mrb[0].mxu0
      %v1785 = vpop.f32.mrb[0].mxu0
      %v1786 = vadd.f32 0.0, %v1785
      %v1787 = vpop.f32.mrb[0].mxu0
      %1788 = vmatprep.mubr.bf16.mxu0 %v900
      %1789 = vmatmul.mubr.bf16.gmra.mrb[0].mxu0 %v667
      %v1790 = vpop.f32.mrb[0].mxu0
      %v1791 = vadd.f32 0.0, %v1790
      %v1792 = vpop.f32.mrb[0].mxu0
      %v1793 = vpop.f32.mrb[0].mxu0
      %v1794 = vadd.f32 0.0, %v1793
      %v1795 = vpop.f32.mrb[0].mxu0
      %1796 = vmatprep.mubr.bf16.mxu0 %v912
      %1797 = vmatmul.mubr.bf16.gmra.mrb[0].mxu0 %v766
      %v1798 = vpop.f32.mrb[0].mxu0
      %v1799 = vadd.f32 0.0, %v1798
      %v1800 = vpop.f32.mrb[0].mxu0
      %v1801 = vpop.f32.mrb[0].mxu0
      %v1802 = vadd.f32 0.0, %v1801
      %v1803 = vpop.f32.mrb[0].mxu0
      %1804 = vmatprep.mubr.bf16.mxu0 %v920
      %1805 = vmatmul.mubr.bf16.gmra.mrb[0].mxu0 %v682
      %v1806 = vpop.f32.mrb[0].mxu0
      %v1807 = vadd.f32 0.0, %v1806
      %v1808 = vpop.f32.mrb[0].mxu0
      %v1809 = vpop.f32.mrb[0].mxu0
      %v1810 = vadd.f32 0.0, %v1809
      %v1811 = vpop.f32.mrb[0].mxu0
      %1812 = vmatprep.mubr.bf16.mxu0 %v932
      %1813 = vmatmul.mubr.bf16.gmra.mrb[0].mxu0 %v767
      %v1814 = vpop.f32.mrb[0].mxu0
      %v1815 = vadd.f32 0.0, %v1814
      %v1816 = vpop.f32.mrb[0].mxu0
      %v1817 = vpop.f32.mrb[0].mxu0
      %v1818 = vadd.f32 0.0, %v1817
      %v1819 = vpop.f32.mrb[0].mxu0
      %1820 = vmatprep.mubr.bf16.mxu0 %v940
      %1821 = vmatmul.mubr.bf16.gmra.mrb[0].mxu0 %v697
      %v1822 = vpop.f32.mrb[0].mxu0
      %v1823 = vadd.f32 0.0, %v1822
      %v1824 = vpop.f32.mrb[0].mxu0
      %v1825 = vpop.f32.mrb[0].mxu0
      %v1826 = vadd.f32 0.0, %v1825
      %v1827 = vpop.f32.mrb[0].mxu0
      %1828 = vdwg.mxu0
      %1829 = vmatprep.subr.bf16.mxu0 0
      %1830 = vmatpush1.bf16.msra.mxu0 %v1540
      %1831 = vmatprep.subr.bf16.mxu0 0
      %1832 = vmatpush1.bf16.msra.mxu0 %v1541
      %1833 = vmatprep.subr.bf16.mxu0 0
      %1834 = vmatpush1.bf16.msra.mxu0 %v1542
      %1835 = vmatprep.subr.bf16.mxu0 0
      %1836 = vmatpush1.bf16.msra.mxu0 %v1543
      %1837 = vmatprep.subr.bf16.mxu0 0
      %1838 = vmatpush1.bf16.msra.mxu0 %v1544
      %1839 = vmatprep.subr.bf16.mxu0 0
      %1840 = vmatpush1.bf16.msra.mxu0 %v1545
      %1841 = vmatprep.subr.bf16.mxu0 0
      %1842 = vmatpush1.bf16.msra.mxu0 %v1546
      %1843 = vmatprep.subr.bf16.mxu0 0
      %1844 = vmatpush1.bf16.msra.mxu0 %v1547
      %1845 = vmatprep.subr.bf16.mxu0 0
      %1846 = vmatpush1.bf16.msra.mxu0 %v1548
      %1847 = vmatprep.subr.bf16.mxu0 0
      %1848 = vmatpush1.bf16.msra.mxu0 %v1549
      %1849 = vmatprep.subr.bf16.mxu0 0
      %1850 = vmatpush1.bf16.msra.mxu0 %v1550
      %1851 = vmatprep.subr.bf16.mxu0 0
      %1852 = vmatpush1.bf16.msra.mxu0 %v1551
      %1853 = vmatprep.subr.bf16.mxu0 0
      %1854 = vmatpush1.bf16.msra.mxu0 %v1552
      %1855 = vmatprep.subr.bf16.mxu0 0
      %1856 = vmatpush1.bf16.msra.mxu0 %v1553
      %1857 = vmatprep.subr.bf16.mxu0 0
      %1858 = vmatpush1.bf16.msra.mxu0 %v1554
      %1859 = vmatprep.subr.bf16.mxu0 0
      %1860 = vmatpush1.bf16.msra.mxu0 %v1555
      %1861 = vmatprep.mubr.bf16.mxu0 %v761
      %1862 = vmatmul.mubr.bf16.gmra.mrb[0].mxu0 %v976
      %v1863 = vpop.f32.mrb[0].mxu0
      %v1864 = vadd.f32 %v1703, %v1863
      %v1865 = vpop.f32.mrb[0].mxu0
      %v1866 = vpop.f32.mrb[0].mxu0
      %v1867 = vadd.f32 %v1706, %v1866
      %v1868 = vpop.f32.mrb[0].mxu0
      %1869 = vmatprep.mubr.bf16.mxu0 %v607
      %1870 = vmatmul.mubr.bf16.gmra.mrb[0].mxu0 %v978
      %v1871 = vpop.f32.mrb[0].mxu0
      %v1872 = vadd.f32 %v1711, %v1871
      %v1873 = vpop.f32.mrb[0].mxu0
      %v1874 = vpop.f32.mrb[0].mxu0
      %v1875 = vadd.f32 %v1714, %v1874
      %v1876 = vpop.f32.mrb[0].mxu0
      %1877 = vmatprep.mubr.bf16.mxu0 %v762
      %1878 = vmatmul.mubr.bf16.gmra.mrb[0].mxu0 %v981
      %v1879 = vpop.f32.mrb[0].mxu0
      %v1880 = vadd.f32 %v1719, %v1879
      %v1881 = vpop.f32.mrb[0].mxu0
      %v1882 = vpop.f32.mrb[0].mxu0
      %v1883 = vadd.f32 %v1722, %v1882
      %v1884 = vpop.f32.mrb[0].mxu0
      %1885 = vmatprep.mubr.bf16.mxu0 %v622
      %1886 = vmatmul.mubr.bf16.gmra.mrb[0].mxu0 %v983
      %v1887 = vpop.f32.mrb[0].mxu0
      %v1888 = vadd.f32 %v1727, %v1887
      %v1889 = vpop.f32.mrb[0].mxu0
      %v1890 = vpop.f32.mrb[0].mxu0
      %v1891 = vadd.f32 %v1730, %v1890
      %v1892 = vpop.f32.mrb[0].mxu0
      %1893 = vmatprep.mubr.bf16.mxu0 %v763
      %1894 = vmatmul.mubr.bf16.gmra.mrb[0].mxu0 %v986
      %v1895 = vpop.f32.mrb[0].mxu0
      %v1896 = vadd.f32 %v1735, %v1895
      %v1897 = vpop.f32.mrb[0].mxu0
      %v1898 = vpop.f32.mrb[0].mxu0
      %v1899 = vadd.f32 %v1738, %v1898
      %v1900 = vpop.f32.mrb[0].mxu0
      %1901 = vmatprep.mubr.bf16.mxu0 %v637
      %1902 = vmatmul.mubr.bf16.gmra.mrb[0].mxu0 %v988
      %v1903 = vpop.f32.mrb[0].mxu0
      %v1904 = vadd.f32 %v1743, %v1903
      %v1905 = vpop.f32.mrb[0].mxu0
      %v1906 = vpop.f32.mrb[0].mxu0
      %v1907 = vadd.f32 %v1746, %v1906
      %v1908 = vpop.f32.mrb[0].mxu0
      %1909 = vmatprep.mubr.bf16.mxu0 %v764
      %1910 = vmatmul.mubr.bf16.gmra.mrb[0].mxu0 %v991
      %v1911 = vpop.f32.mrb[0].mxu0
      %v1912 = vadd.f32 %v1751, %v1911
      %v1913 = vpop.f32.mrb[0].mxu0
      %v1914 = vpop.f32.mrb[0].mxu0
      %v1915 = vadd.f32 %v1754, %v1914
      %v1916 = vpop.f32.mrb[0].mxu0
      %1917 = vmatprep.mubr.bf16.mxu0 %v652
      %1918 = vmatmul.mubr.bf16.gmra.mrb[0].mxu0 %v993
      %v1919 = vpop.f32.mrb[0].mxu0
      %v1920 = vadd.f32 %v1759, %v1919
      %v1921 = vpop.f32.mrb[0].mxu0
      %v1922 = vpop.f32.mrb[0].mxu0
      %v1923 = vadd.f32 %v1762, %v1922
      %v1924 = vpop.f32.mrb[0].mxu0
      %1925 = vmatprep.mubr.bf16.mxu0 %v765
      %1926 = vmatmul.mubr.bf16.gmra.mrb[0].mxu0 %v996
      %v1927 = vpop.f32.mrb[0].mxu0
      %v1928 = vadd.f32 %v1767, %v1927
      %v1929 = vpop.f32.mrb[0].mxu0
      %v1930 = vpop.f32.mrb[0].mxu0
      %v1931 = vadd.f32 %v1770, %v1930
      %v1932 = vpop.f32.mrb[0].mxu0
      %1933 = vmatprep.mubr.bf16.mxu0 %v667
      %1934 = vmatmul.mubr.bf16.gmra.mrb[0].mxu0 %v998
      %v1935 = vpop.f32.mrb[0].mxu0
      %v1936 = vadd.f32 %v1775, %v1935
      %v1937 = vpop.f32.mrb[0].mxu0
      %v1938 = vpop.f32.mrb[0].mxu0
      %v1939 = vadd.f32 %v1778, %v1938
      %v1940 = vpop.f32.mrb[0].mxu0
      %1941 = vmatprep.mubr.bf16.mxu0 %v766
      %1942 = vmatmul.mubr.bf16.gmra.mrb[0].mxu0 %v1001
      %v1943 = vpop.f32.mrb[0].mxu0
      %v1944 = vadd.f32 %v1783, %v1943
      %v1945 = vpop.f32.mrb[0].mxu0
      %v1946 = vpop.f32.mrb[0].mxu0
      %v1947 = vadd.f32 %v1786, %v1946
      %v1948 = vpop.f32.mrb[0].mxu0
      %1949 = vmatprep.mubr.bf16.mxu0 %v682
      %1950 = vmatmul.mubr.bf16.gmra.mrb[0].mxu0 %v1003
      %v1951 = vpop.f32.mrb[0].mxu0
      %v1952 = vadd.f32 %v1791, %v1951
      %v1953 = vpop.f32.mrb[0].mxu0
      %v1954 = vpop.f32.mrb[0].mxu0
      %v1955 = vadd.f32 %v1794, %v1954
      %v1956 = vpop.f32.mrb[0].mxu0
      %1957 = vmatprep.mubr.bf16.mxu0 %v767
      %1958 = vmatmul.mubr.bf16.gmra.mrb[0].mxu0 %v1006
      %v1959 = vpop.f32.mrb[0].mxu0
      %v1960 = vadd.f32 %v1799, %v1959
      %v1961 = vpop.f32.mrb[0].mxu0
      %v1962 = vpop.f32.mrb[0].mxu0
      %v1963 = vadd.f32 %v1802, %v1962
      %v1964 = vpop.f32.mrb[0].mxu0
      %1965 = vmatprep.mubr.bf16.mxu0 %v697
      %1966 = vmatmul.mubr.bf16.gmra.mrb[0].mxu0 %v1008
      %v1967 = vpop.f32.mrb[0].mxu0
      %v1968 = vadd.f32 %v1807, %v1967
      %v1969 = vpop.f32.mrb[0].mxu0
      %v1970 = vpop.f32.mrb[0].mxu0
      %v1971 = vadd.f32 %v1810, %v1970
      %v1972 = vpop.f32.mrb[0].mxu0
      %1973 = vmatprep.mubr.bf16.mxu0 %v768
      %1974 = vmatmul.mubr.bf16.gmra.mrb[0].mxu0 %v1011
      %v1975 = vpop.f32.mrb[0].mxu0
      %v1976 = vadd.f32 %v1815, %v1975
      %v1977 = vpop.f32.mrb[0].mxu0
      %v1978 = vpop.f32.mrb[0].mxu0
      %v1979 = vadd.f32 %v1818, %v1978
      %v1980 = vpop.f32.mrb[0].mxu0
      %1981 = vmatprep.mubr.bf16.mxu0 %v712
      %1982 = vmatmul.mubr.bf16.gmra.mrb[0].mxu0 %v1013
      %v1983 = vpop.f32.mrb[0].mxu0
      %v1984 = vadd.f32 %v1823, %v1983
      %v1985 = vpop.f32.mrb[0].mxu0
      %v1986 = vpop.f32.mrb[0].mxu0
      %v1987 = vadd.f32 %v1826, %v1986
      %v1988 = vpop.f32.mrb[0].mxu0
      %1989 = vdwg.mxu0
      %1990 = vmatprep.subr.bf16.mxu0 0
      %1991 = vmatpush1.bf16.msra.mxu0 %v1556
      %1992 = vmatprep.subr.bf16.mxu0 0
      %1993 = vmatpush1.bf16.msra.mxu0 %v1557
      %1994 = vmatprep.subr.bf16.mxu0 0
      %1995 = vmatpush1.bf16.msra.mxu0 %v1558
      %1996 = vmatprep.subr.bf16.mxu0 0
      %1997 = vmatpush1.bf16.msra.mxu0 %v1559
      %1998 = vmatprep.subr.bf16.mxu0 0
      %1999 = vmatpush1.bf16.msra.mxu0 %v1560
      %2000 = vmatprep.subr.bf16.mxu0 0
      %2001 = vmatpush1.bf16.msra.mxu0 %v1561
      %2002 = vmatprep.subr.bf16.mxu0 0
      %2003 = vmatpush1.bf16.msra.mxu0 %v1562
      %2004 = vmatprep.subr.bf16.mxu0 0
      %2005 = vmatpush1.bf16.msra.mxu0 %v1563
      %2006 = vmatprep.subr.bf16.mxu0 0
      %2007 = vmatpush1.bf16.msra.mxu0 %v1564
      %2008 = vmatprep.subr.bf16.mxu0 0
      %2009 = vmatpush1.bf16.msra.mxu0 %v1565
      %2010 = vmatprep.subr.bf16.mxu0 0
      %2011 = vmatpush1.bf16.msra.mxu0 %v1566
      %2012 = vmatprep.subr.bf16.mxu0 0
      %2013 = vmatpush1.bf16.msra.mxu0 %v1567
      %2014 = vmatprep.subr.bf16.mxu0 0
      %2015 = vmatpush1.bf16.msra.mxu0 %v1568
      %2016 = vmatprep.subr.bf16.mxu0 0
      %2017 = vmatpush1.bf16.msra.mxu0 %v1569
      %2018 = vmatprep.subr.bf16.mxu0 0
      %2019 = vmatpush1.bf16.msra.mxu0 %v1570
      %2020 = vmatprep.subr.bf16.mxu0 0
      %2021 = vmatpush1.bf16.msra.mxu0 %v1571
      %2022 = vmatprep.mubr.bf16.mxu0 %v981
      %2023 = vmatmul.mubr.bf16.gmra.mrb[0].mxu0 %v812
      %v2024 = vpop.f32.mrb[0].mxu0
      %v2025 = vadd.f32 %v1864, %v2024
      %v2026 = vpop.f32.mrb[0].mxu0
      %v2027 = vpop.f32.mrb[0].mxu0
      %v2028 = vadd.f32 %v1867, %v2027
      %v2029 = vpop.f32.mrb[0].mxu0
      %2030 = vmatprep.mubr.bf16.mxu0 %v983
      %2031 = vmatmul.mubr.bf16.gmra.mrb[0].mxu0 %v820
      %v2032 = vpop.f32.mrb[0].mxu0
      %v2033 = vadd.f32 %v1872, %v2032
      %v2034 = vpop.f32.mrb[0].mxu0
      %v2035 = vpop.f32.mrb[0].mxu0
      %v2036 = vadd.f32 %v1875, %v2035
      %v2037 = vpop.f32.mrb[0].mxu0
      %2038 = vmatprep.mubr.bf16.mxu0 %v986
      %2039 = vmatmul.mubr.bf16.gmra.mrb[0].mxu0 %v832
      %v2040 = vpop.f32.mrb[0].mxu0
      %v2041 = vadd.f32 %v1880, %v2040
      %v2042 = vpop.f32.mrb[0].mxu0
      %v2043 = vpop.f32.mrb[0].mxu0
      %v2044 = vadd.f32 %v1883, %v2043
      %v2045 = vpop.f32.mrb[0].mxu0
      %2046 = vmatprep.mubr.bf16.mxu0 %v988
      %2047 = vmatmul.mubr.bf16.gmra.mrb[0].mxu0 %v840
      %v2048 = vpop.f32.mrb[0].mxu0
      %v2049 = vadd.f32 %v1888, %v2048
      %v2050 = vpop.f32.mrb[0].mxu0
      %v2051 = vpop.f32.mrb[0].mxu0
      %v2052 = vadd.f32 %v1891, %v2051
      %v2053 = vpop.f32.mrb[0].mxu0
      %2054 = vmatprep.mubr.bf16.mxu0 %v991
      %2055 = vmatmul.mubr.bf16.gmra.mrb[0].mxu0 %v852
      %v2056 = vpop.f32.mrb[0].mxu0
      %v2057 = vadd.f32 %v1896, %v2056
      %v2058 = vpop.f32.mrb[0].mxu0
      %v2059 = vpop.f32.mrb[0].mxu0
      %v2060 = vadd.f32 %v1899, %v2059
      %v2061 = vpop.f32.mrb[0].mxu0
      %2062 = vmatprep.mubr.bf16.mxu0 %v993
      %2063 = vmatmul.mubr.bf16.gmra.mrb[0].mxu0 %v860
      %v2064 = vpop.f32.mrb[0].mxu0
      %v2065 = vadd.f32 %v1904, %v2064
      %v2066 = vpop.f32.mrb[0].mxu0
      %v2067 = vpop.f32.mrb[0].mxu0
      %v2068 = vadd.f32 %v1907, %v2067
      %v2069 = vpop.f32.mrb[0].mxu0
      %2070 = vmatprep.mubr.bf16.mxu0 %v996
      %2071 = vmatmul.mubr.bf16.gmra.mrb[0].mxu0 %v872
      %v2072 = vpop.f32.mrb[0].mxu0
      %v2073 = vadd.f32 %v1912, %v2072
      %v2074 = vpop.f32.mrb[0].mxu0
      %v2075 = vpop.f32.mrb[0].mxu0
      %v2076 = vadd.f32 %v1915, %v2075
      %v2077 = vpop.f32.mrb[0].mxu0
      %2078 = vmatprep.mubr.bf16.mxu0 %v998
      %2079 = vmatmul.mubr.bf16.gmra.mrb[0].mxu0 %v880
      %v2080 = vpop.f32.mrb[0].mxu0
      %v2081 = vadd.f32 %v1920, %v2080
      %v2082 = vpop.f32.mrb[0].mxu0
      %v2083 = vpop.f32.mrb[0].mxu0
      %v2084 = vadd.f32 %v1923, %v2083
      %v2085 = vpop.f32.mrb[0].mxu0
      %2086 = vmatprep.mubr.bf16.mxu0 %v1001
      %2087 = vmatmul.mubr.bf16.gmra.mrb[0].mxu0 %v892
      %v2088 = vpop.f32.mrb[0].mxu0
      %v2089 = vadd.f32 %v1928, %v2088
      %v2090 = vpop.f32.mrb[0].mxu0
      %v2091 = vpop.f32.mrb[0].mxu0
      %v2092 = vadd.f32 %v1931, %v2091
      %v2093 = vpop.f32.mrb[0].mxu0
      %2094 = vmatprep.mubr.bf16.mxu0 %v1003
      %2095 = vmatmul.mubr.bf16.gmra.mrb[0].mxu0 %v900
      %v2096 = vpop.f32.mrb[0].mxu0
      %v2097 = vadd.f32 %v1936, %v2096
      %v2098 = vpop.f32.mrb[0].mxu0
      %v2099 = vpop.f32.mrb[0].mxu0
      %v2100 = vadd.f32 %v1939, %v2099
      %v2101 = vpop.f32.mrb[0].mxu0
      %2102 = vmatprep.mubr.bf16.mxu0 %v1006
      %2103 = vmatmul.mubr.bf16.gmra.mrb[0].mxu0 %v912
      %v2104 = vpop.f32.mrb[0].mxu0
      %v2105 = vadd.f32 %v1944, %v2104
      %v2106 = vpop.f32.mrb[0].mxu0
      %v2107 = vpop.f32.mrb[0].mxu0
      %v2108 = vadd.f32 %v1947, %v2107
      %v2109 = vpop.f32.mrb[0].mxu0
      %2110 = vmatprep.mubr.bf16.mxu0 %v1008
      %2111 = vmatmul.mubr.bf16.gmra.mrb[0].mxu0 %v920
      %v2112 = vpop.f32.mrb[0].mxu0
      %v2113 = vadd.f32 %v1952, %v2112
      %v2114 = vpop.f32.mrb[0].mxu0
      %v2115 = vpop.f32.mrb[0].mxu0
      %v2116 = vadd.f32 %v1955, %v2115
      %v2117 = vpop.f32.mrb[0].mxu0
      %2118 = vmatprep.mubr.bf16.mxu0 %v1011
      %2119 = vmatmul.mubr.bf16.gmra.mrb[0].mxu0 %v932
      %v2120 = vpop.f32.mrb[0].mxu0
      %v2121 = vadd.f32 %v1960, %v2120
      %v2122 = vpop.f32.mrb[0].mxu0
      %v2123 = vpop.f32.mrb[0].mxu0
      %v2124 = vadd.f32 %v1963, %v2123
      %v2125 = vpop.f32.mrb[0].mxu0
      %2126 = vmatprep.mubr.bf16.mxu0 %v1013
      %2127 = vmatmul.mubr.bf16.gmra.mrb[0].mxu0 %v940
      %v2128 = vpop.f32.mrb[0].mxu0
      %v2129 = vadd.f32 %v1968, %v2128
      %v2130 = vpop.f32.mrb[0].mxu0
      %v2131 = vpop.f32.mrb[0].mxu0
      %v2132 = vadd.f32 %v1971, %v2131
      %v2133 = vpop.f32.mrb[0].mxu0
      %2134 = vmatprep.mubr.bf16.mxu0 %v1056
      %2135 = vmatmul.mubr.bf16.gmra.mrb[0].mxu0 %v1041
      %v2136 = vpop.f32.mrb[0].mxu0
      %v2137 = vadd.f32 %v1976, %v2136
      %v2138 = vpop.f32.mrb[0].mxu0
      %v2139 = vpop.f32.mrb[0].mxu0
      %v2140 = vadd.f32 %v1979, %v2139
      %v2141 = vpop.f32.mrb[0].mxu0
      %2142 = vmatprep.mubr.bf16.mxu0 %v1058
      %2143 = vmatmul.mubr.bf16.gmra.mrb[0].mxu0 %v1049
      %v2144 = vpop.f32.mrb[0].mxu0
      %v2145 = vadd.f32 %v1984, %v2144
      %v2146 = vpop.f32.mrb[0].mxu0
      %v2147 = vpop.f32.mrb[0].mxu0
      %v2148 = vadd.f32 %v1987, %v2147
      %v2149 = vpop.f32.mrb[0].mxu0
      %2150 = vdwg.mxu0
      %2151 = vmatprep.subr.bf16.mxu0 0
      %2152 = vmatpush1.bf16.msra.mxu0 %v1572
      %2153 = vmatprep.subr.bf16.mxu0 0
      %2154 = vmatpush1.bf16.msra.mxu0 %v1573
      %2155 = vmatprep.subr.bf16.mxu0 0
      %2156 = vmatpush1.bf16.msra.mxu0 %v1574
      %2157 = vmatprep.subr.bf16.mxu0 0
      %2158 = vmatpush1.bf16.msra.mxu0 %v1575
      %2159 = vmatprep.subr.bf16.mxu0 0
      %2160 = vmatpush1.bf16.msra.mxu0 %v1576
      %2161 = vmatprep.subr.bf16.mxu0 0
      %2162 = vmatpush1.bf16.msra.mxu0 %v1577
      %2163 = vmatprep.subr.bf16.mxu0 0
      %2164 = vmatpush1.bf16.msra.mxu0 %v1578
      %2165 = vmatprep.subr.bf16.mxu0 0
      %2166 = vmatpush1.bf16.msra.mxu0 %v1579
      %2167 = vmatprep.subr.bf16.mxu0 0
      %2168 = vmatpush1.bf16.msra.mxu0 %v1580
      %2169 = vmatprep.subr.bf16.mxu0 0
      %2170 = vmatpush1.bf16.msra.mxu0 %v1581
      %2171 = vmatprep.subr.bf16.mxu0 0
      %2172 = vmatpush1.bf16.msra.mxu0 %v1582
      %2173 = vmatprep.subr.bf16.mxu0 0
      %2174 = vmatpush1.bf16.msra.mxu0 %v1583
      %2175 = vmatprep.subr.bf16.mxu0 0
      %2176 = vmatpush1.bf16.msra.mxu0 %v1584
      %2177 = vmatprep.subr.bf16.mxu0 0
      %2178 = vmatpush1.bf16.msra.mxu0 %v1585
      %2179 = vmatprep.subr.bf16.mxu0 0
      %2180 = vmatpush1.bf16.msra.mxu0 %v1586
      %2181 = vmatprep.subr.bf16.mxu0 0
      %2182 = vmatpush1.bf16.msra.mxu0 %v1587
      %2183 = vmatprep.mubr.bf16.mxu0 %v832
      %2184 = vmatmul.mubr.bf16.gmra.mrb[0].mxu0 %v762
      %v2185 = vpop.f32.mrb[0].mxu0
      %v2186 = vadd.f32 %v2025, %v2185
      %v2187 = vpop.f32.mrb[0].mxu0
      %v2188 = vpop.f32.mrb[0].mxu0
      %v2189 = vadd.f32 %v2028, %v2188
      %v2190 = vpop.f32.mrb[0].mxu0
      %2191 = vmatprep.mubr.bf16.mxu0 %v840
      %2192 = vmatmul.mubr.bf16.gmra.mrb[0].mxu0 %v622
      %v2193 = vpop.f32.mrb[0].mxu0
      %v2194 = vadd.f32 %v2033, %v2193
      %v2195 = vpop.f32.mrb[0].mxu0
      %v2196 = vpop.f32.mrb[0].mxu0
      %v2197 = vadd.f32 %v2036, %v2196
      %v2198 = vpop.f32.mrb[0].mxu0
      %2199 = vmatprep.mubr.bf16.mxu0 %v852
      %2200 = vmatmul.mubr.bf16.gmra.mrb[0].mxu0 %v763
      %v2201 = vpop.f32.mrb[0].mxu0
      %v2202 = vadd.f32 %v2041, %v2201
      %v2203 = vpop.f32.mrb[0].mxu0
      %v2204 = vpop.f32.mrb[0].mxu0
      %v2205 = vadd.f32 %v2044, %v2204
      %v2206 = vpop.f32.mrb[0].mxu0
      %2207 = vmatprep.mubr.bf16.mxu0 %v860
      %2208 = vmatmul.mubr.bf16.gmra.mrb[0].mxu0 %v637
      %v2209 = vpop.f32.mrb[0].mxu0
      %v2210 = vadd.f32 %v2049, %v2209
      %v2211 = vpop.f32.mrb[0].mxu0
      %v2212 = vpop.f32.mrb[0].mxu0
      %v2213 = vadd.f32 %v2052, %v2212
      %v2214 = vpop.f32.mrb[0].mxu0
      %2215 = vmatprep.mubr.bf16.mxu0 %v872
      %2216 = vmatmul.mubr.bf16.gmra.mrb[0].mxu0 %v764
      %v2217 = vpop.f32.mrb[0].mxu0
      %v2218 = vadd.f32 %v2057, %v2217
      %v2219 = vpop.f32.mrb[0].mxu0
      %v2220 = vpop.f32.mrb[0].mxu0
      %v2221 = vadd.f32 %v2060, %v2220
      %v2222 = vpop.f32.mrb[0].mxu0
      %2223 = vmatprep.mubr.bf16.mxu0 %v880
      %2224 = vmatmul.mubr.bf16.gmra.mrb[0].mxu0 %v652
      %v2225 = vpop.f32.mrb[0].mxu0
      %v2226 = vadd.f32 %v2065, %v2225
      %v2227 = vpop.f32.mrb[0].mxu0
      %v2228 = vpop.f32.mrb[0].mxu0
      %v2229 = vadd.f32 %v2068, %v2228
      %v2230 = vpop.f32.mrb[0].mxu0
      %2231 = vmatprep.mubr.bf16.mxu0 %v892
      %2232 = vmatmul.mubr.bf16.gmra.mrb[0].mxu0 %v765
      %v2233 = vpop.f32.mrb[0].mxu0
      %v2234 = vadd.f32 %v2073, %v2233
      %v2235 = vpop.f32.mrb[0].mxu0
      %v2236 = vpop.f32.mrb[0].mxu0
      %v2237 = vadd.f32 %v2076, %v2236
      %v2238 = vpop.f32.mrb[0].mxu0
      %2239 = vmatprep.mubr.bf16.mxu0 %v900
      %2240 = vmatmul.mubr.bf16.gmra.mrb[0].mxu0 %v667
      %v2241 = vpop.f32.mrb[0].mxu0
      %v2242 = vadd.f32 %v2081, %v2241
      %v2243 = vpop.f32.mrb[0].mxu0
      %v2244 = vpop.f32.mrb[0].mxu0
      %v2245 = vadd.f32 %v2084, %v2244
      %v2246 = vpop.f32.mrb[0].mxu0
      %2247 = vmatprep.mubr.bf16.mxu0 %v912
      %2248 = vmatmul.mubr.bf16.gmra.mrb[0].mxu0 %v766
      %v2249 = vpop.f32.mrb[0].mxu0
      %v2250 = vadd.f32 %v2089, %v2249
      %v2251 = vpop.f32.mrb[0].mxu0
      %v2252 = vpop.f32.mrb[0].mxu0
      %v2253 = vadd.f32 %v2092, %v2252
      %v2254 = vpop.f32.mrb[0].mxu0
      %2255 = vmatprep.mubr.bf16.mxu0 %v920
      %2256 = vmatmul.mubr.bf16.gmra.mrb[0].mxu0 %v682
      %v2257 = vpop.f32.mrb[0].mxu0
      %v2258 = vadd.f32 %v2097, %v2257
      %v2259 = vpop.f32.mrb[0].mxu0
      %v2260 = vpop.f32.mrb[0].mxu0
      %v2261 = vadd.f32 %v2100, %v2260
      %v2262 = vpop.f32.mrb[0].mxu0
      %2263 = vmatprep.mubr.bf16.mxu0 %v932
      %2264 = vmatmul.mubr.bf16.gmra.mrb[0].mxu0 %v767
      %v2265 = vpop.f32.mrb[0].mxu0
      %v2266 = vadd.f32 %v2105, %v2265
      %v2267 = vpop.f32.mrb[0].mxu0
      %v2268 = vpop.f32.mrb[0].mxu0
      %v2269 = vadd.f32 %v2108, %v2268
      %v2270 = vpop.f32.mrb[0].mxu0
      %2271 = vmatprep.mubr.bf16.mxu0 %v940
      %2272 = vmatmul.mubr.bf16.gmra.mrb[0].mxu0 %v697
      %v2273 = vpop.f32.mrb[0].mxu0
      %v2274 = vadd.f32 %v2113, %v2273
      %v2275 = vpop.f32.mrb[0].mxu0
      %v2276 = vpop.f32.mrb[0].mxu0
      %v2277 = vadd.f32 %v2116, %v2276
      %v2278 = vpop.f32.mrb[0].mxu0
      %2279 = vmatprep.mubr.bf16.mxu0 %v1041
      %2280 = vmatmul.mubr.bf16.gmra.mrb[0].mxu0 %v768
      %v2281 = vpop.f32.mrb[0].mxu0
      %v2282 = vadd.f32 %v2121, %v2281
      %v2283 = vpop.f32.mrb[0].mxu0
      %v2284 = vpop.f32.mrb[0].mxu0
      %v2285 = vadd.f32 %v2124, %v2284
      %v2286 = vpop.f32.mrb[0].mxu0
      %2287 = vmatprep.mubr.bf16.mxu0 %v1049
      %2288 = vmatmul.mubr.bf16.gmra.mrb[0].mxu0 %v712
      %v2289 = vpop.f32.mrb[0].mxu0
      %v2290 = vadd.f32 %v2129, %v2289
      %v2291 = vpop.f32.mrb[0].mxu0
      %v2292 = vpop.f32.mrb[0].mxu0
      %v2293 = vadd.f32 %v2132, %v2292
      %v2294 = vpop.f32.mrb[0].mxu0
      %2295 = vmatprep.mubr.bf16.mxu0 %v1072
      %2296 = vmatmul.mubr.bf16.gmra.mrb[0].mxu0 %v769
      %v2297 = vpop.f32.mrb[0].mxu0
      %v2298 = vadd.f32 %v2137, %v2297
      %v2299 = vpop.f32.mrb[0].mxu0
      %v2300 = vpop.f32.mrb[0].mxu0
      %v2301 = vadd.f32 %v2140, %v2300
      %v2302 = vpop.f32.mrb[0].mxu0
      %2303 = vmatprep.mubr.bf16.mxu0 %v1080
      %2304 = vmatmul.mubr.bf16.gmra.mrb[0].mxu0 %v727
      %v2305 = vpop.f32.mrb[0].mxu0
      %v2306 = vadd.f32 %v2145, %v2305
      %v2307 = vpop.f32.mrb[0].mxu0
      %v2308 = vpop.f32.mrb[0].mxu0
      %v2309 = vadd.f32 %v2148, %v2308
      %v2310 = vpop.f32.mrb[0].mxu0
      %2311 = vdwg.mxu0
      %2312 = vmatprep.subr.bf16.mxu0 0
      %2313 = vmatpush1.bf16.msra.mxu0 %v1588
      %2314 = vmatprep.subr.bf16.mxu0 0
      %2315 = vmatpush1.bf16.msra.mxu0 %v1589
      %2316 = vmatprep.subr.bf16.mxu0 0
      %2317 = vmatpush1.bf16.msra.mxu0 %v1590
      %2318 = vmatprep.subr.bf16.mxu0 0
      %2319 = vmatpush1.bf16.msra.mxu0 %v1591
      %2320 = vmatprep.subr.bf16.mxu0 0
      %2321 = vmatpush1.bf16.msra.mxu0 %v1592
      %2322 = vmatprep.subr.bf16.mxu0 0
      %2323 = vmatpush1.bf16.msra.mxu0 %v1593
      %2324 = vmatprep.subr.bf16.mxu0 0
      %2325 = vmatpush1.bf16.msra.mxu0 %v1594
      %2326 = vmatprep.subr.bf16.mxu0 0
      %2327 = vmatpush1.bf16.msra.mxu0 %v1595
      %2328 = vmatprep.subr.bf16.mxu0 0
      %2329 = vmatpush1.bf16.msra.mxu0 0
      %2330 = vmatprep.subr.bf16.mxu0 0
      %2331 = vmatpush1.bf16.msra.mxu0 0
      %2332 = vmatprep.subr.bf16.mxu0 0
      %2333 = vmatpush1.bf16.msra.mxu0 0
      %2334 = vmatprep.subr.bf16.mxu0 0
      %2335 = vmatpush1.bf16.msra.mxu0 0
      %2336 = vmatprep.subr.bf16.mxu0 0
      %2337 = vmatpush1.bf16.msra.mxu0 0
      %2338 = vmatprep.subr.bf16.mxu0 0
      %2339 = vmatpush1.bf16.msra.mxu0 0
      %2340 = vmatprep.subr.bf16.mxu0 0
      %2341 = vmatpush1.bf16.msra.mxu0 0
      %2342 = vmatprep.subr.bf16.mxu0 0
      %2343 = vmatpush1.bf16.msra.mxu0 0
      %2344 = vmatprep.mubr.bf16.mxu0 0
      %2345 = vmatmul.mubr.bf16.gmra.mrb[0].mxu0 %v986
      %v2346 = vpop.f32.mrb[0].mxu0
      %v2347 = vadd.f32 %v2186, %v2346
      %v2348 = vpop.f32.mrb[0].mxu0
      %v2349 = vpop.f32.mrb[0].mxu0
      %v2350 = vadd.f32 %v2189, %v2349
      %v2351 = vpop.f32.mrb[0].mxu0
      %2352 = vmatprep.mubr.bf16.mxu0 0
      %2353 = vmatmul.mubr.bf16.gmra.mrb[0].mxu0 %v988
      %v2354 = vpop.f32.mrb[0].mxu0
      %v2355 = vadd.f32 %v2194, %v2354
      %v2356 = vpop.f32.mrb[0].mxu0
      %v2357 = vpop.f32.mrb[0].mxu0
      %v2358 = vadd.f32 %v2197, %v2357
      %v2359 = vpop.f32.mrb[0].mxu0
      %2360 = vmatprep.mubr.bf16.mxu0 0
      %2361 = vmatmul.mubr.bf16.gmra.mrb[0].mxu0 %v991
      %v2362 = vpop.f32.mrb[0].mxu0
      %v2363 = vadd.f32 %v2202, %v2362
      %v2364 = vpop.f32.mrb[0].mxu0
      %v2365 = vpop.f32.mrb[0].mxu0
      %v2366 = vadd.f32 %v2205, %v2365
      %v2367 = vpop.f32.mrb[0].mxu0
      %2368 = vmatprep.mubr.bf16.mxu0 0
      %2369 = vmatmul.mubr.bf16.gmra.mrb[0].mxu0 %v993
      %v2370 = vpop.f32.mrb[0].mxu0
      %v2371 = vadd.f32 %v2210, %v2370
      %v2372 = vpop.f32.mrb[0].mxu0
      %v2373 = vpop.f32.mrb[0].mxu0
      %v2374 = vadd.f32 %v2213, %v2373
      %v2375 = vpop.f32.mrb[0].mxu0
      %2376 = vmatprep.mubr.bf16.mxu0 0
      %2377 = vmatmul.mubr.bf16.gmra.mrb[0].mxu0 %v996
      %v2378 = vpop.f32.mrb[0].mxu0
      %v2379 = vadd.f32 %v2218, %v2378
      %v2380 = vpop.f32.mrb[0].mxu0
      %v2381 = vpop.f32.mrb[0].mxu0
      %v2382 = vadd.f32 %v2221, %v2381
      %v2383 = vpop.f32.mrb[0].mxu0
      %2384 = vmatprep.mubr.bf16.mxu0 0
      %2385 = vmatmul.mubr.bf16.gmra.mrb[0].mxu0 %v998
      %v2386 = vpop.f32.mrb[0].mxu0
      %v2387 = vadd.f32 %v2226, %v2386
      %v2388 = vpop.f32.mrb[0].mxu0
      %v2389 = vpop.f32.mrb[0].mxu0
      %v2390 = vadd.f32 %v2229, %v2389
      %v2391 = vpop.f32.mrb[0].mxu0
      %2392 = vmatprep.mubr.bf16.mxu0 0
      %2393 = vmatmul.mubr.bf16.gmra.mrb[0].mxu0 %v1001
      %v2394 = vpop.f32.mrb[0].mxu0
      %v2395 = vadd.f32 %v2234, %v2394
      %v2396 = vpop.f32.mrb[0].mxu0
      %v2397 = vpop.f32.mrb[0].mxu0
      %v2398 = vadd.f32 %v2237, %v2397
      %v2399 = vpop.f32.mrb[0].mxu0
      %2400 = vmatprep.mubr.bf16.mxu0 0
      %2401 = vmatmul.mubr.bf16.gmra.mrb[0].mxu0 %v1003
      %v2402 = vpop.f32.mrb[0].mxu0
      %v2403 = vadd.f32 %v2242, %v2402
      %v2404 = vpop.f32.mrb[0].mxu0
      %v2405 = vpop.f32.mrb[0].mxu0
      %v2406 = vadd.f32 %v2245, %v2405
      %v2407 = vpop.f32.mrb[0].mxu0
      %2408 = vmatprep.mubr.bf16.mxu0 0
      %2409 = vmatmul.mubr.bf16.gmra.mrb[0].mxu0 %v1006
      %v2410 = vpop.f32.mrb[0].mxu0
      %v2411 = vadd.f32 %v2250, %v2410
      %v2412 = vpop.f32.mrb[0].mxu0
      %v2413 = vpop.f32.mrb[0].mxu0
      %v2414 = vadd.f32 %v2253, %v2413
      %v2415 = vpop.f32.mrb[0].mxu0
      %2416 = vmatprep.mubr.bf16.mxu0 0
      %2417 = vmatmul.mubr.bf16.gmra.mrb[0].mxu0 %v1008
      %v2418 = vpop.f32.mrb[0].mxu0
      %v2419 = vadd.f32 %v2258, %v2418
      %v2420 = vpop.f32.mrb[0].mxu0
      %v2421 = vpop.f32.mrb[0].mxu0
      %v2422 = vadd.f32 %v2261, %v2421
      %v2423 = vpop.f32.mrb[0].mxu0
      %2424 = vmatprep.mubr.bf16.mxu0 0
      %2425 = vmatmul.mubr.bf16.gmra.mrb[0].mxu0 %v1011
      %v2426 = vpop.f32.mrb[0].mxu0
      %v2427 = vadd.f32 %v2266, %v2426
      %v2428 = vpop.f32.mrb[0].mxu0
      %v2429 = vpop.f32.mrb[0].mxu0
      %v2430 = vadd.f32 %v2269, %v2429
      %v2431 = vpop.f32.mrb[0].mxu0
      %2432 = vmatprep.mubr.bf16.mxu0 0
      %2433 = vmatmul.mubr.bf16.gmra.mrb[0].mxu0 %v1013
      %v2434 = vpop.f32.mrb[0].mxu0
      %v2435 = vadd.f32 %v2274, %v2434
      %v2436 = vpop.f32.mrb[0].mxu0
      %v2437 = vpop.f32.mrb[0].mxu0
      %v2438 = vadd.f32 %v2277, %v2437
      %v2439 = vpop.f32.mrb[0].mxu0
      %2440 = vmatprep.mubr.bf16.mxu0 0
      %2441 = vmatmul.mubr.bf16.gmra.mrb[0].mxu0 %v1056
      %v2442 = vpop.f32.mrb[0].mxu0
      %v2443 = vadd.f32 %v2282, %v2442
      %v2444 = vpop.f32.mrb[0].mxu0
      %v2445 = vpop.f32.mrb[0].mxu0
      %v2446 = vadd.f32 %v2285, %v2445
      %v2447 = vpop.f32.mrb[0].mxu0
      %2448 = vmatprep.mubr.bf16.mxu0 0
      %2449 = vmatmul.mubr.bf16.gmra.mrb[0].mxu0 %v1058
      %v2450 = vpop.f32.mrb[0].mxu0
      %v2451 = vadd.f32 %v2290, %v2450
      %v2452 = vpop.f32.mrb[0].mxu0
      %v2453 = vpop.f32.mrb[0].mxu0
      %v2454 = vadd.f32 %v2293, %v2453
      %v2455 = vpop.f32.mrb[0].mxu0
      %2456 = vmatprep.mubr.bf16.mxu0 0
      %2457 = vmatmul.mubr.bf16.gmra.mrb[0].mxu0 %v1087
      %v2458 = vpop.f32.mrb[0].mxu0
      %v2459 = vadd.f32 %v2298, %v2458
      %v2460 = vpop.f32.mrb[0].mxu0
      %v2461 = vpop.f32.mrb[0].mxu0
      %v2462 = vadd.f32 %v2301, %v2461
      %v2463 = vpop.f32.mrb[0].mxu0
      %2464 = vmatprep.mubr.bf16.mxu0 0
      %2465 = vmatmul.mubr.bf16.gmra.mrb[0].mxu0 %v1089
      %v2466 = vpop.f32.mrb[0].mxu0
      %v2467 = vadd.f32 %v2306, %v2466
      %v2468 = vpop.f32.mrb[0].mxu0
      %v2469 = vpop.f32.mrb[0].mxu0
      %v2470 = vadd.f32 %v2309, %v2469
      %v2471 = vpop.f32.mrb[0].mxu0
      %2472 = vdwg.mxu0
      %v2473 = vld [vmem:[%s4] sm:$0x1]
      %v2475 = vlaneseq
      %v2476 = vshrl.u32 %v2475, 7
      %v2477 = vsub.s32 0, %v2476
      %v2478 = vrot.slane %v2473, %v2477
      %v2480 = vmul.f32 %v2347, %v2478
      %v2481 = vmul.f32 %v2350, %v2478
      %v2482 = vmul.f32 %v2355, %v2478
      %v2483 = vmul.f32 %v2358, %v2478
      %v2484 = vmul.f32 %v2363, %v2478
      %v2485 = vmul.f32 %v2366, %v2478
      %v2486 = vmul.f32 %v2371, %v2478
      %v2487 = vmul.f32 %v2374, %v2478
      %v2488 = vmul.f32 %v2379, %v2478
      %v2489 = vmul.f32 %v2382, %v2478
      %v2490 = vmul.f32 %v2387, %v2478
      %v2491 = vmul.f32 %v2390, %v2478
      %v2492 = vmul.f32 %v2395, %v2478
      %v2493 = vmul.f32 %v2398, %v2478
      %v2494 = vmul.f32 %v2403, %v2478
      %v2495 = vmul.f32 %v2406, %v2478
      %v2496 = vmul.f32 %v2411, %v2478
      %v2497 = vmul.f32 %v2414, %v2478
      %v2498 = vmul.f32 %v2419, %v2478
      %v2499 = vmul.f32 %v2422, %v2478
      %v2500 = vmul.f32 %v2427, %v2478
      %v2501 = vmul.f32 %v2430, %v2478
      %v2502 = vmul.f32 %v2435, %v2478
      %v2503 = vmul.f32 %v2438, %v2478
      %v2504 = vmul.f32 %v2443, %v2478
      %v2505 = vmul.f32 %v2446, %v2478
      %v2506 = vmul.f32 %v2451, %v2478
      %v2507 = vmul.f32 %v2454, %v2478
      %v2508 = vmul.f32 %v2459, %v2478
      %v2509 = vmul.f32 %v2462, %v2478
      %v2510 = vmul.f32 %v2467, %v2478
      %v2511 = vmul.f32 %v2470, %v2478
      %v2512 = vld [vmem:[%s5] sm:$0x1]
      %v2514 = vlaneseq
      %v2515 = vshrl.u32 %v2514, 7
      %v2516 = vsub.s32 0, %v2515
      %v2517 = vrot.slane %v2512, %v2516
      %v2519 = vadd.f32 %v2480, %v2517
      %v2520 = vadd.f32 %v2481, %v2517
      %v2521 = vadd.f32 %v2482, %v2517
      %v2522 = vadd.f32 %v2483, %v2517
      %v2523 = vadd.f32 %v2484, %v2517
      %v2524 = vadd.f32 %v2485, %v2517
      %v2525 = vadd.f32 %v2486, %v2517
      %v2526 = vadd.f32 %v2487, %v2517
      %v2527 = vadd.f32 %v2488, %v2517
      %v2528 = vadd.f32 %v2489, %v2517
      %v2529 = vadd.f32 %v2490, %v2517
      %v2530 = vadd.f32 %v2491, %v2517
      %v2531 = vadd.f32 %v2492, %v2517
      %v2532 = vadd.f32 %v2493, %v2517
      %v2533 = vadd.f32 %v2494, %v2517
      %v2534 = vadd.f32 %v2495, %v2517
      %v2535 = vadd.f32 %v2496, %v2517
      %v2536 = vadd.f32 %v2497, %v2517
      %v2537 = vadd.f32 %v2498, %v2517
      %v2538 = vadd.f32 %v2499, %v2517
      %v2539 = vadd.f32 %v2500, %v2517
      %v2540 = vadd.f32 %v2501, %v2517
      %v2541 = vadd.f32 %v2502, %v2517
      %v2542 = vadd.f32 %v2503, %v2517
      %v2543 = vadd.f32 %v2504, %v2517
      %v2544 = vadd.f32 %v2505, %v2517
      %v2545 = vadd.f32 %v2506, %v2517
      %v2546 = vadd.f32 %v2507, %v2517
      %v2547 = vadd.f32 %v2508, %v2517
      %v2548 = vadd.f32 %v2509, %v2517
      %v2549 = vadd.f32 %v2510, %v2517
      %v2550 = vadd.f32 %v2511, %v2517
      %v2551 = vmax.f32 %v2519, 0.0
      %v2552 = vmax.f32 %v2520, 0.0
      %v2553 = vmax.f32 %v2521, 0.0
      %v2554 = vmax.f32 %v2522, 0.0
      %v2555 = vmax.f32 %v2523, 0.0
      %v2556 = vmax.f32 %v2524, 0.0
      %v2557 = vmax.f32 %v2525, 0.0
      %v2558 = vmax.f32 %v2526, 0.0
      %v2559 = vmax.f32 %v2527, 0.0
      %v2560 = vmax.f32 %v2528, 0.0
      %v2561 = vmax.f32 %v2529, 0.0
      %v2562 = vmax.f32 %v2530, 0.0
      %v2563 = vmax.f32 %v2531, 0.0
      %v2564 = vmax.f32 %v2532, 0.0
      %v2565 = vmax.f32 %v2533, 0.0
      %v2566 = vmax.f32 %v2534, 0.0
      %v2567 = vmax.f32 %v2535, 0.0
      %v2568 = vmax.f32 %v2536, 0.0
      %v2569 = vmax.f32 %v2537, 0.0
      %v2570 = vmax.f32 %v2538, 0.0
      %v2571 = vmax.f32 %v2539, 0.0
      %v2572 = vmax.f32 %v2540, 0.0
      %v2573 = vmax.f32 %v2541, 0.0
      %v2574 = vmax.f32 %v2542, 0.0
      %v2575 = vmax.f32 %v2543, 0.0
      %v2576 = vmax.f32 %v2544, 0.0
      %v2577 = vmax.f32 %v2545, 0.0
      %v2578 = vmax.f32 %v2546, 0.0
      %v2579 = vmax.f32 %v2547, 0.0
      %v2580 = vmax.f32 %v2548, 0.0
      %v2581 = vmax.f32 %v2549, 0.0
      %v2582 = vmax.f32 %v2550, 0.0
      %2583 = vst [vmem:[%s418] sm:$0xff] %v2551
      %2584 = vst [vmem:[%s418 + $0x8] sm:$0xff] %v2552
      %2585 = vst [vmem:[%s418 + $0x10] sm:$0xff] %v2553
      %2586 = vst [vmem:[%s418 + $0x18] sm:$0xff] %v2554
      %2587 = vst [vmem:[%s418 + $0x20] sm:$0xff] %v2555
      %2588 = vst [vmem:[%s418 + $0x28] sm:$0xff] %v2556
      %2589 = vst [vmem:[%s418 + $0x30] sm:$0xff] %v2557
      %2590 = vst [vmem:[%s418 + $0x38] sm:$0xff] %v2558
      %2591 = vst [vmem:[%s418 + $0x40] sm:$0xff] %v2559
      %2592 = vst [vmem:[%s418 + $0x48] sm:$0xff] %v2560
      %2593 = vst [vmem:[%s418 + $0x50] sm:$0xff] %v2561
      %2594 = vst [vmem:[%s418 + $0x58] sm:$0xff] %v2562
      %2595 = vst [vmem:[%s418 + $0x60] sm:$0xff] %v2563
      %2596 = vst [vmem:[%s418 + $0x68] sm:$0xff] %v2564
      %2597 = vst [vmem:[%s418 + $0x70] sm:$0xff] %v2565
      %2598 = vst [vmem:[%s418 + $0x78] sm:$0xff] %v2566
      %2599 = vst [vmem:[%s418 + $0x80] sm:$0xff] %v2567
      %2600 = vst [vmem:[%s418 + $0x88] sm:$0xff] %v2568
      %2601 = vst [vmem:[%s418 + $0x90] sm:$0xff] %v2569
      %2602 = vst [vmem:[%s418 + $0x98] sm:$0xff] %v2570
      %2603 = vst [vmem:[%s418 + $0xa0] sm:$0xff] %v2571
      %2604 = vst [vmem:[%s418 + $0xa8] sm:$0xff] %v2572
      %2605 = vst [vmem:[%s418 + $0xb0] sm:$0xff] %v2573
      %2606 = vst [vmem:[%s418 + $0xb8] sm:$0xff] %v2574
      %2607 = vst [vmem:[%s418 + $0xc0] sm:$0xff] %v2575
      %2608 = vst [vmem:[%s418 + $0xc8] sm:$0xff] %v2576
      %2609 = vst [vmem:[%s418 + $0xd0] sm:$0xff] %v2577
      %2610 = vst [vmem:[%s418 + $0xd8] sm:$0xff] %v2578
      %2611 = vst [vmem:[%s418 + $0xe0] sm:$0xff] %v2579
      %2612 = vst [vmem:[%s418 + $0xe8] sm:$0xff] %v2580
      %2613 = vst [vmem:[%s418 + $0xf0] sm:$0xff] %v2581
      %2614 = vst [vmem:[%s418 + $0xf8] sm:$0xff] %v2582
      %s2615 = smul.u32 8, %s22
      %p2616 = scmp.lt.s32.totalorder %s21, 1
      %s2617 = scalar_select %p2616, %s21, 1
      %p2618 = scmp.lt.s32.totalorder %s2615, 31
      %s2619 = scalar_select %p2618, %s2615, 31
      %s2620 = smul.addr %s2619, 4
      %s2621 = smul.addr %s2617, 128
      %s2622 = sadd.s32 %s2620, %s2621
      %s2623 = smul.addr %s2622, 8
      %s2624 = scalar_lea.vmem %s6, %s2623
      // Predicated region
      $region45: #{upconv_forward.5} parent=43 // pred_check
        %p2625 = pneg %p212
      $region46: #{upconv_forward.5} parent=43 // pred_check_branch
        %2627 = sbr.rel (%p2625) target = $region48
      $region47: #{upconv_forward.5} parent=43 // pred_region
        %s2628 = smul.u32 8, %s22
      $region48: #{upconv_forward.5} parent=43 // pred_fallthru
        _
    $region44: #{upconv_forward.5} parent=5 // pred_fallthru
      _
    %p2629 = scmp.le.s32.totalorder 2, %s12
    // Predicated region
    $region49: #{upconv_forward.5} parent=5 // pred_check
      %p2630 = pneg %p2629
    $region50: #{upconv_forward.5} parent=5 // pred_check_branch
      %2632 = sbr.rel (%p2630) target = $region52
    $region51: #{upconv_forward.5} parent=5 // pred_region
      %s2633 = ssub.s32 %s12, 2
      // Predicated region
      $region53: #{upconv_forward.5} parent=51 // pred_check
        %p2634 = pneg %p218
      $region54: #{upconv_forward.5} parent=51 // pred_check_branch
        %2636 = sbr.rel (%p2634) target = $region56
      $region55: #{upconv_forward.5} parent=51 // pred_region
        %s2637 = smul.u32 8, %s24
        %p2638 = scmp.lt.s32.totalorder %s23, 1
        %s2639 = scalar_select %p2638, %s23, 1
        %p2640 = scmp.lt.s32.totalorder %s2637, 31
        %s2641 = scalar_select %p2640, %s2637, 31
        %s2642 = smul.addr %s2641, 4
        %s2643 = smul.addr %s2639, 128
        %s2644 = sadd.s32 %s2642, %s2643
        %s2645 = smul.addr %s2644, 8
        %s2646 = scalar_lea.vmem %s6, %s2645
      $region56: #{upconv_forward.5} parent=51 // pred_fallthru
        _
    $region52: #{upconv_forward.5} parent=5 // pred_fallthru
      _
  $region6: #{upconv_forward.5} parent=0 // loop_footer
    %s16 = sadd.s32 1, %s12
  $region7: #{upconv_forward.5} parent=0 // loop_footer_branch
    %11 = sbr.rel target = $region3
  $region8: #{upconv_forward.5} parent=0 // loop_exit
    _

</llo_original>
